<compile_context>
chip_gen: v6e
topology: v6e:2x2x1
jax: 0.10.0
libtpu: 0.0.40
codegen_flags: <defaults>
</compile_context>

<pallas_src>
import math

import jax
import jax.numpy as jnp
import numpy as np
from jax.experimental import pallas as pl
from jax.experimental.pallas import tpu as pltpu

# ---------------- configuration (small, deterministic) ----------------
B, N, C = 2, 16, 4                      # batch, num points, feature_dim
NUM_FREQS = 8                           # FourierEmbedder num_freqs
FOURIER_DIM = 3 * (2 * NUM_FREQS + 1)   # 51 (include_input=True)
D_IN = FOURIER_DIM + C                  # input_proj in_features = 55
WIDTH = 32
HEADS = 4
HEAD_DIM = WIDTH // HEADS
LAYERS = 2
NUM_LATENTS = 8
LN_EPS = 1e-5

PAD_COLS = 128                          # weight slabs padded to 128 lanes
PF_DIM = 3 + C                          # packed [pc | feats] column count = 7
FREQ_COLS = 3 * NUM_FREQS               # 24


# ---------------- packed weight-slab layouts (shared wrapper <-> kernel) ----
# Matrices first (each start row aligned to a multiple of 8 sublanes), then all
# 1-row bias / LayerNorm params packed contiguously.
_G_LAYOUT = [
    ("freq_mat", PF_DIM, FREQ_COLS),          # (7, 24)  feats rows are zero
    ("w_pf",     PF_DIM, WIDTH),              # (7, 32)  [pc rows ; feats rows] of in_w
    ("w_sin",    FREQ_COLS, WIDTH),           # (24, 32) sin rows of in_w
    ("w_cos",    FREQ_COLS, WIDTH),           # (24, 32) cos rows of in_w
    ("query",    NUM_LATENTS, WIDTH),
    ("ca_q_w",   WIDTH, WIDTH),
    ("ca_kv_w",  WIDTH, 2 * WIDTH),
    ("ca_p_w",   WIDTH, WIDTH),
    ("ca_fc_w",  WIDTH, 4 * WIDTH),
    ("ca_fp_w",  4 * WIDTH, WIDTH),
    # --- 1-row params (packed densely) ---
    ("in_b",     1, WIDTH),
    ("ca_ln1_g", 1, WIDTH), ("ca_ln1_b", 1, WIDTH),
    ("ca_ln2_g", 1, WIDTH), ("ca_ln2_b", 1, WIDTH),
    ("ca_q_b",   1, WIDTH),
    ("ca_kv_b",  1, 2 * WIDTH),
    ("ca_p_b",   1, WIDTH),
    ("ca_ln3_g", 1, WIDTH), ("ca_ln3_b", 1, WIDTH),
    ("ca_fc_b",  1, 4 * WIDTH),
    ("ca_fp_b",  1, WIDTH),
]

_SA_LAYOUT = [
    ("qkv_w", WIDTH, 3 * WIDTH),
    ("p_w",   WIDTH, WIDTH),
    ("fc_w",  WIDTH, 4 * WIDTH),
    ("fp_w",  4 * WIDTH, WIDTH),
    # --- 1-row params ---
    ("ln1_g", 1, WIDTH), ("ln1_b", 1, WIDTH),
    ("qkv_b", 1, 3 * WIDTH),
    ("p_b",   1, WIDTH),
    ("ln2_g", 1, WIDTH), ("ln2_b", 1, WIDTH),
    ("fc_b",  1, 4 * WIDTH),
    ("fp_b",  1, WIDTH),
]


def _build_layout(layout):
    """Row offsets with 8-row (sublane) alignment for every multi-row matrix."""
    offs, r = {}, 0
    for name, nr, nc in layout:
        if nr > 1 and r % 8 != 0:
            r += 8 - (r % 8)
        offs[name] = (r, nr, nc)
        r += nr
    total = r + ((-r) % 8)
    return offs, total


_G_OFFS, _G_ROWS = _build_layout(_G_LAYOUT)
_SA_OFFS, _SA_ROWS = _build_layout(_SA_LAYOUT)


# ---------------- in-kernel helpers ----------------
def _gs(g_ref, name):
    """Lazy slab slice: load scheduled next to its consumer."""
    r0, nr, nc = _G_OFFS[name]
    return g_ref[r0:r0 + nr, :nc]


def _ss(sa_ref, layer, name):
    r0, nr, nc = _SA_OFFS[name]
    return sa_ref[layer, r0:r0 + nr, :nc]


def _layer_norm(x, g, b):
    mu = jnp.mean(x, axis=-1, keepdims=True)
    # mean(x*x) - mu*mu: both cross-lane reductions issue directly from x.
    var = jnp.mean(x * x, axis=-1, keepdims=True) - mu * mu
    return (x - mu) * jax.lax.rsqrt(var + LN_EPS) * g + b


def _softmax(s):
    m = jnp.max(s, axis=-1, keepdims=True)
    e = jnp.exp(s - m)
    return e * pl.reciprocal(jnp.sum(e, axis=-1, keepdims=True), approx=False)


def _gelu(x):
    # TODO(synk): PyTorch nn.GELU() defaults to the exact erf form; tanh
    # approximation is used here (erf has no guaranteed Mosaic lowering).
    return jax.nn.gelu(x, approximate=True)


def _mha(q, k, v, bb, tq, tk):
    """Head-batched multi-head attention (no output projection).

    q: (bb*tq, W), k/v: (bb*tk, W) -> (bb*tq, W).
    The double-sqrt scale is folded into the Q/K projection weights, so there
    are no runtime scale multiplies.  Heads are moved into a leading batch
    axis (HEADS*bb) so the score and PV products are two batched matmuls.
    """
    q3 = q.reshape(bb, tq, WIDTH)
    k3 = k.reshape(bb, tk, WIDTH)
    v3 = v.reshape(bb, tk, WIDTH)
    qh = jnp.concatenate(
        [q3[:, :, h * HEAD_DIM:(h + 1) * HEAD_DIM] for h in range(HEADS)], axis=0)
    kh = jnp.concatenate(
        [k3[:, :, h * HEAD_DIM:(h + 1) * HEAD_DIM] for h in range(HEADS)], axis=0)
    vh = jnp.concatenate(
        [v3[:, :, h * HEAD_DIM:(h + 1) * HEAD_DIM] for h in range(HEADS)], axis=0)
    s = jnp.einsum("bqd,bkd->bqk", qh, kh, preferred_element_type=jnp.float32)
    p = _softmax(s)
    o = jnp.einsum("bqk,bkd->bqd", p, vh, preferred_element_type=jnp.float32)
    # merge heads back into lanes (single small concat per attention call)
    out = jnp.concatenate([o[h * bb:(h + 1) * bb] for h in range(HEADS)], axis=-1)
    return out.reshape(bb * tq, WIDTH)


# ---------------- the Pallas kernel ----------------
def _make_kernel(bb, n):
    m = NUM_LATENTS

    def encoder_kernel(inp_ref, g_ref, sa_ref, out_ref):
        inp = inp_ref[...]                                   # (bb*n, 7) = [pc|feats]

        # --- FourierEmbedder + concat([pc, sin, cos, feats]) + input_proj ---
        # ang[:, d*NF+f] = pc[:, d] * pi * 2^f (feats rows of freq_mat are 0)
        ang = jnp.dot(inp, _gs(g_ref, "freq_mat"), preferred_element_type=jnp.float32)
        data = (jnp.dot(inp, _gs(g_ref, "w_pf"), preferred_element_type=jnp.float32)
                + jnp.dot(jnp.sin(ang), _gs(g_ref, "w_sin"),
                          preferred_element_type=jnp.float32)
                + jnp.dot(jnp.cos(ang), _gs(g_ref, "w_cos"),
                          preferred_element_type=jnp.float32)
                + _gs(g_ref, "in_b"))                        # (bb*n, W)

        # latent queries broadcast over the batch (batch-major rows)
        query = _gs(g_ref, "query")                          # (m, W)
        x = query if bb == 1 else jnp.concatenate([query] * bb, axis=0)   # (bb*m, W)

        # --- ResidualCrossAttentionBlock (all projections batch-stacked) ---
        qn = _layer_norm(x, _gs(g_ref, "ca_ln1_g"), _gs(g_ref, "ca_ln1_b"))
        dn = _layer_norm(data, _gs(g_ref, "ca_ln2_g"), _gs(g_ref, "ca_ln2_b"))
        q = (jnp.dot(qn, _gs(g_ref, "ca_q_w"), preferred_element_type=jnp.float32)
             + _gs(g_ref, "ca_q_b"))
        kv = (jnp.dot(dn, _gs(g_ref, "ca_kv_w"), preferred_element_type=jnp.float32)
              + _gs(g_ref, "ca_kv_b"))
        att = _mha(q, kv[:, :WIDTH], kv[:, WIDTH:], bb, m, n)
        x = x + (jnp.dot(att, _gs(g_ref, "ca_p_w"), preferred_element_type=jnp.float32)
                 + _gs(g_ref, "ca_p_b"))
        h = _layer_norm(x, _gs(g_ref, "ca_ln3_g"), _gs(g_ref, "ca_ln3_b"))
        h = _gelu(jnp.dot(h, _gs(g_ref, "ca_fc_w"), preferred_element_type=jnp.float32)
                  + _gs(g_ref, "ca_fc_b"))
        x = x + (jnp.dot(h, _gs(g_ref, "ca_fp_w"), preferred_element_type=jnp.float32)
                 + _gs(g_ref, "ca_fp_b"))

        # --- Transformer: LAYERS ResidualAttentionBlocks (self-attention) ---
        for l in range(LAYERS):
            xn = _layer_norm(x, _ss(sa_ref, l, "ln1_g"), _ss(sa_ref, l, "ln1_b"))
            qkv = (jnp.dot(xn, _ss(sa_ref, l, "qkv_w"),
                           preferred_element_type=jnp.float32)
                   + _ss(sa_ref, l, "qkv_b"))
            att = _mha(qkv[:, :WIDTH], qkv[:, WIDTH:2 * WIDTH], qkv[:, 2 * WIDTH:],
                       bb, m, m)
            x = x + (jnp.dot(att, _ss(sa_ref, l, "p_w"),
                             preferred_element_type=jnp.float32)
                     + _ss(sa_ref, l, "p_b"))
            hn = _layer_norm(x, _ss(sa_ref, l, "ln2_g"), _ss(sa_ref, l, "ln2_b"))
            hn = _gelu(jnp.dot(hn, _ss(sa_ref, l, "fc_w"),
                               preferred_element_type=jnp.float32)
                       + _ss(sa_ref, l, "fc_b"))
            x = x + (jnp.dot(hn, _ss(sa_ref, l, "fp_w"),
                             preferred_element_type=jnp.float32)
                     + _ss(sa_ref, l, "fp_b"))

        # ln_post is None (use_ln_post=False); store (bb*m, W) directly.
        out_ref[...] = x.astype(out_ref.dtype)

    return encoder_kernel


# ---------------- weight packing (wrapper side) ----------------
def _pack_slab(layout, offs, total_rows, tensors):
    slab = jnp.zeros((total_rows, PAD_COLS), jnp.float32)
    for name, nr, nc in layout:
        r0, _, _ = offs[name]
        a = jnp.asarray(tensors[name], jnp.float32)
        assert a.shape == (nr, nc), (name, a.shape, (nr, nc))
        slab = slab.at[r0:r0 + nr, :nc].set(a)
    return slab


def pack_params(p):
    """Fold the attention scale into Q/K weights and pack all weights into two slabs."""
    scale = float(HEAD_DIM) ** -0.25

    # input_proj row split: [pc rows ; feats rows], sin rows, cos rows.
    in_w = p["in_w"]
    w_pf = jnp.concatenate([in_w[0:3], in_w[3 + 6 * NUM_FREQS:]], axis=0)   # (7, 32)
    w_sin = in_w[3:3 + 3 * NUM_FREQS]                                       # (24, 32)
    w_cos = in_w[3 + 3 * NUM_FREQS:3 + 6 * NUM_FREQS]                       # (24, 32)

    # host-baked Fourier frequency matrix (feats rows zero).
    freq = math.pi * (2.0 ** np.arange(NUM_FREQS, dtype=np.float32))
    fm = np.zeros((PF_DIM, FREQ_COLS), np.float32)
    for d in range(3):
        fm[d, d * NUM_FREQS:(d + 1) * NUM_FREQS] = freq

    # fold the double-sqrt attention scale into Q and K projection columns.
    ca_q_w = p["ca_q_w"] * scale
    ca_q_b = p["ca_q_b"] * scale
    kv_colscale = jnp.concatenate([jnp.full((WIDTH,), scale, jnp.float32),
                                   jnp.ones((WIDTH,), jnp.float32)])
    ca_kv_w = p["ca_kv_w"] * kv_colscale
    ca_kv_b = p["ca_kv_b"] * kv_colscale
    qkv_colscale = jnp.concatenate([jnp.full((2 * WIDTH,), scale, jnp.float32),
                                    jnp.ones((WIDTH,), jnp.float32)])
    sa_qkv_w = p["sa_qkv_w"] * qkv_colscale
    sa_qkv_b = p["sa_qkv_b"] * qkv_colscale

    g_tensors = {
        "freq_mat": jnp.asarray(fm),
        "w_pf": w_pf, "w_sin": w_sin, "w_cos": w_cos, "in_b": p["in_b"],
        "query": p["query"],
        "ca_ln1_g": p["ca_ln1_g"], "ca_ln1_b": p["ca_ln1_b"],
        "ca_ln2_g": p["ca_ln2_g"], "ca_ln2_b": p["ca_ln2_b"],
        "ca_q_w": ca_q_w, "ca_q_b": ca_q_b,
        "ca_kv_w": ca_kv_w, "ca_kv_b": ca_kv_b,
        "ca_p_w": p["ca_p_w"], "ca_p_b": p["ca_p_b"],
        "ca_ln3_g": p["ca_ln3_g"], "ca_ln3_b": p["ca_ln3_b"],
        "ca_fc_w": p["ca_fc_w"], "ca_fc_b": p["ca_fc_b"],
        "ca_fp_w": p["ca_fp_w"], "ca_fp_b": p["ca_fp_b"],
    }
    g_slab = _pack_slab(_G_LAYOUT, _G_OFFS, _G_ROWS, g_tensors)

    sa_layers = []
    for l in range(LAYERS):
        t = {
            "ln1_g": p["sa_ln1_g"][l], "ln1_b": p["sa_ln1_b"][l],
            "qkv_w": sa_qkv_w[l], "qkv_b": sa_qkv_b[l],
            "p_w": p["sa_p_w"][l], "p_b": p["sa_p_b"][l],
            "ln2_g": p["sa_ln2_g"][l], "ln2_b": p["sa_ln2_b"][l],
            "fc_w": p["sa_fc_w"][l], "fc_b": p["sa_fc_b"][l],
            "fp_w": p["sa_fp_w"][l], "fp_b": p["sa_fp_b"][l],
        }
        sa_layers.append(_pack_slab(_SA_LAYOUT, _SA_OFFS, _SA_ROWS, t))
    sa_slab = jnp.stack(sa_layers, axis=0)
    return g_slab, sa_slab


# ---------------- wrapper ----------------
def cross_attention_encoder(pc, feats, params, *, batch_block=None):
    """Returns (latents [B, num_latents, width], pc) — matches the torch module.

    batch_block: batch elements per grid step.  Default (None) folds the whole
    batch into a single grid step — best on all TPU generations at this size
    (per-batch compute is far below the ~0.35us per-step overhead).  Only
    shard the batch grid (e.g. batch_block=B//2 on v7x's two TensorCores) once
    per-batch work grows to >~1us.
    """
    B_, N_, _ = pc.shape
    bb = B_ if batch_block is None else batch_block
    assert B_ % bb == 0, "batch_block must divide the batch size"

    # pack pc+feats into one lane-packed streaming input, flattened over (B, N).
    inp = jnp.concatenate([pc, feats], axis=-1).reshape(B_ * N_, PF_DIM)
    g_slab, sa_slab = pack_params(params)

    out_flat = pl.pallas_call(
        _make_kernel(bb, N_),
        out_shape=jax.ShapeDtypeStruct((B_ * NUM_LATENTS, WIDTH), jnp.float32),
        grid=(B_ // bb,),
        in_specs=[
            pl.BlockSpec((bb * N_, PF_DIM), lambda i: (i, 0)),
            pl.BlockSpec(g_slab.shape, lambda i: (0, 0)),
            pl.BlockSpec(sa_slab.shape, lambda i: (0, 0, 0)),
        ],
        out_specs=pl.BlockSpec((bb * NUM_LATENTS, WIDTH), lambda i: (i, 0)),
        compiler_params=pltpu.CompilerParams(dimension_semantics=("parallel",)),
    )(inp, g_slab, sa_slab)

    latents = out_flat.reshape(B_, NUM_LATENTS, WIDTH)
    return latents, pc


# ---------------- deterministic parameter init ----------------
def _permute_kv(w):
    # torch c_kv column c = h*2hd + s*hd + j  ->  kernel column s*W + h*hd + j
    d = w.shape[0]
    return w.reshape(d, HEADS, 2, HEAD_DIM).transpose(0, 2, 1, 3).reshape(d, 2 * WIDTH)


def _permute_qkv(w):
    # torch c_qkv column c = h*3hd + s*hd + j  ->  kernel column s*W + h*hd + j
    d = w.shape[0]
    return w.reshape(d, HEADS, 3, HEAD_DIM).transpose(0, 2, 1, 3).reshape(d, 3 * WIDTH)


def init_params(key):
    keys = iter(jax.random.split(key, 64))
    rnd = lambda shape, std=0.02: std * jax.random.normal(next(keys), shape, jnp.float32)
    ones = lambda shape: jnp.ones(shape, jnp.float32)
    zeros = lambda shape: jnp.zeros(shape, jnp.float32)

    p = {}
    p["query"] = rnd((NUM_LATENTS, WIDTH))                # torch.randn(...) * 0.02
    p["in_w"] = rnd((D_IN, WIDTH))
    p["in_b"] = rnd((1, WIDTH))
    # residual cross-attention block
    p["ca_ln1_g"], p["ca_ln1_b"] = ones((1, WIDTH)), zeros((1, WIDTH))
    p["ca_ln2_g"], p["ca_ln2_b"] = ones((1, WIDTH)), zeros((1, WIDTH))
    p["ca_q_w"], p["ca_q_b"] = rnd((WIDTH, WIDTH)), rnd((1, WIDTH))
    p["ca_kv_w"] = _permute_kv(rnd((WIDTH, 2 * WIDTH)))
    p["ca_kv_b"] = _permute_kv(rnd((1, 2 * WIDTH)))
    p["ca_p_w"], p["ca_p_b"] = rnd((WIDTH, WIDTH)), rnd((1, WIDTH))
    p["ca_ln3_g"], p["ca_ln3_b"] = ones((1, WIDTH)), zeros((1, WIDTH))
    p["ca_fc_w"], p["ca_fc_b"] = rnd((WIDTH, 4 * WIDTH)), rnd((1, 4 * WIDTH))
    p["ca_fp_w"], p["ca_fp_b"] = rnd((4 * WIDTH, WIDTH)), rnd((1, WIDTH))
    # self-attention transformer (stacked over layers)
    p["sa_ln1_g"], p["sa_ln1_b"] = ones((LAYERS, 1, WIDTH)), zeros((LAYERS, 1, WIDTH))
    p["sa_qkv_w"] = jnp.stack([_permute_qkv(rnd((WIDTH, 3 * WIDTH))) for _ in range(LAYERS)])
    p["sa_qkv_b"] = jnp.stack([_permute_qkv(rnd((1, 3 * WIDTH))) for _ in range(LAYERS)])
    p["sa_p_w"] = jnp.stack([rnd((WIDTH, WIDTH)) for _ in range(LAYERS)])
    p["sa_p_b"] = jnp.stack([rnd((1, WIDTH)) for _ in range(LAYERS)])
    p["sa_ln2_g"], p["sa_ln2_b"] = ones((LAYERS, 1, WIDTH)), zeros((LAYERS, 1, WIDTH))
    p["sa_fc_w"] = jnp.stack([rnd((WIDTH, 4 * WIDTH)) for _ in range(LAYERS)])
    p["sa_fc_b"] = jnp.stack([rnd((1, 4 * WIDTH)) for _ in range(LAYERS)])
    p["sa_fp_w"] = jnp.stack([rnd((4 * WIDTH, WIDTH)) for _ in range(LAYERS)])
    p["sa_fp_b"] = jnp.stack([rnd((1, WIDTH)) for _ in range(LAYERS)])
    return p


# ---------------- pure-JAX reference (raw params, runtime scale) ----------------
def reference_forward(pc, feats, p):
    def ln(x, g, b):
        mu = x.mean(-1, keepdims=True)
        var = ((x - mu) ** 2).mean(-1, keepdims=True)
        return (x - mu) / jnp.sqrt(var + LN_EPS) * g + b

    def mha(q, k, v, pw, pb):
        scale = 1.0 / math.sqrt(math.sqrt(HEAD_DIM))
        outs = []
        for h in range(HEADS):
            sl = slice(h * HEAD_DIM, (h + 1) * HEAD_DIM)
            s = (q[:, sl] * scale) @ (k[:, sl] * scale).T
            outs.append(jax.nn.softmax(s, axis=-1) @ v[:, sl])
        return jnp.concatenate(outs, -1) @ pw + pb

    def one(pc_b, f_b):
        freqs = math.pi * (2.0 ** jnp.arange(NUM_FREQS, dtype=jnp.float32))
        emb = (pc_b[:, :, None] * freqs).reshape(pc_b.shape[0], -1)
        data = jnp.concatenate([pc_b, jnp.sin(emb), jnp.cos(emb), f_b], -1)
        data = data @ p["in_w"] + p["in_b"]
        x = p["query"]
        qn = ln(x, p["ca_ln1_g"], p["ca_ln1_b"])
        dn = ln(data, p["ca_ln2_g"], p["ca_ln2_b"])
        q = qn @ p["ca_q_w"] + p["ca_q_b"]
        kv = dn @ p["ca_kv_w"] + p["ca_kv_b"]
        x = x + mha(q, kv[:, :WIDTH], kv[:, WIDTH:], p["ca_p_w"], p["ca_p_b"])
        h = ln(x, p["ca_ln3_g"], p["ca_ln3_b"])
        h = jax.nn.gelu(h @ p["ca_fc_w"] + p["ca_fc_b"], approximate=True)
        x = x + h @ p["ca_fp_w"] + p["ca_fp_b"]
        for l in range(LAYERS):
            xn = ln(x, p["sa_ln1_g"][l], p["sa_ln1_b"][l])
            qkv = xn @ p["sa_qkv_w"][l] + p["sa_qkv_b"][l]
            x = x + mha(qkv[:, :WIDTH], qkv[:, WIDTH:2 * WIDTH], qkv[:, 2 * WIDTH:],
                        p["sa_p_w"][l], p["sa_p_b"][l])
            hn = ln(x, p["sa_ln2_g"][l], p["sa_ln2_b"][l])
            hn = jax.nn.gelu(hn @ p["sa_fc_w"][l] + p["sa_fc_b"][l], approximate=True)
            x = x + hn @ p["sa_fp_w"][l] + p["sa_fp_b"][l]
        return x

    return jax.vmap(one)(pc, feats), pc


if __name__ == "__main__":
    key = jax.random.PRNGKey(0)
    kp, kpc, kf = jax.random.split(key, 3)
    params = init_params(kp)
    pc = jax.random.uniform(kpc, (B, N, 3), jnp.float32, minval=-1.0, maxval=1.0)
    feats = jax.random.normal(kf, (B, N, C), dtype=jnp.float32)

    latents, pc_out = cross_attention_encoder(pc, feats, params)
    latents = jax.block_until_ready(latents)

    ref_latents, _ = reference_forward(pc, feats, params)
    np.testing.assert_allclose(np.asarray(latents), np.asarray(ref_latents),
                               rtol=2e-3, atol=2e-3)
    print("KERNEL_OK")
</pallas_src>

<mosaic_0001>
module attributes {stable_mosaic.version = 11 : i64} {
  func.func @encoder_kernel(%arg0: i32, %arg1: memref<32x7xf32, #tpu.memory_space<vmem>>, %arg2: memref<344x128xf32, #tpu.memory_space<vmem>>, %arg3: memref<2x232x128xf32, #tpu.memory_space<vmem>>, %arg4: memref<16x32xf32, #tpu.memory_space<vmem>>) attributes {dimension_semantics = [#tpu.dimension_semantics<parallel>], iteration_bounds = array<i64: 1>, scalar_prefetch = 0 : i64, scratch_operands = 0 : i64, tpu.core_type = #tpu.core_type<tc>, window_params = [{transform_indices = @transform_0, window_bounds = array<i64: 32, 7>}, {pipeline_mode = #tpu.pipeline_mode<synchronous>, transform_indices = @transform_1, window_bounds = array<i64: 344, 128>}, {pipeline_mode = #tpu.pipeline_mode<synchronous>, transform_indices = @transform_2, window_bounds = array<i64: 2, 232, 128>}, {transform_indices = @transform_3, window_bounds = array<i64: 16, 32>}]} {
    %c0 = arith.constant 0 : index
    %c0_0 = arith.constant 0 : index
    %0 = vector.load %arg1[%c0, %c0_0] : memref<32x7xf32, #tpu.memory_space<vmem>>, vector<32x7xf32>
    %c0_1 = arith.constant 0 : index
    %c0_2 = arith.constant 0 : index
    %1 = vector.load %arg2[%c0_1, %c0_2] : memref<344x128xf32, #tpu.memory_space<vmem>>, vector<7x24xf32>
    %cst = arith.constant dense<0.000000e+00> : vector<32x24xf32>
    %2 = tpu.matmul %0, %1, %cst {dimension_numbers = #tpu.dot_dimension_numbers<[1], [0], [0], [1], [0, 0, 1, 1], [], []>} : vector<32x7xf32>, vector<7x24xf32>, vector<32x24xf32> -> vector<32x24xf32>
    %c8 = arith.constant 8 : index
    %c0_3 = arith.constant 0 : index
    %3 = vector.load %arg2[%c8, %c0_3] : memref<344x128xf32, #tpu.memory_space<vmem>>, vector<7x32xf32>
    %cst_4 = arith.constant dense<0.000000e+00> : vector<32x32xf32>
    %4 = tpu.matmul %0, %3, %cst_4 {dimension_numbers = #tpu.dot_dimension_numbers<[1], [0], [0], [1], [0, 0, 1, 1], [], []>} : vector<32x7xf32>, vector<7x32xf32>, vector<32x32xf32> -> vector<32x32xf32>
    %5 = math.sin %2 : vector<32x24xf32>
    %c16 = arith.constant 16 : index
    %c0_5 = arith.constant 0 : index
    %6 = vector.load %arg2[%c16, %c0_5] : memref<344x128xf32, #tpu.memory_space<vmem>>, vector<24x32xf32>
    %cst_6 = arith.constant dense<0.000000e+00> : vector<32x32xf32>
    %7 = tpu.matmul %5, %6, %cst_6 {dimension_numbers = #tpu.dot_dimension_numbers<[1], [0], [0], [1], [0, 0, 1, 1], [], []>} : vector<32x24xf32>, vector<24x32xf32>, vector<32x32xf32> -> vector<32x32xf32>
    %8 = arith.addf %4, %7 : vector<32x32xf32>
    %9 = math.cos %2 : vector<32x24xf32>
    %c40 = arith.constant 40 : index
    %c0_7 = arith.constant 0 : index
    %10 = vector.load %arg2[%c40, %c0_7] : memref<344x128xf32, #tpu.memory_space<vmem>>, vector<24x32xf32>
    %cst_8 = arith.constant dense<0.000000e+00> : vector<32x32xf32>
    %11 = tpu.matmul %9, %10, %cst_8 {dimension_numbers = #tpu.dot_dimension_numbers<[1], [0], [0], [1], [0, 0, 1, 1], [], []>} : vector<32x24xf32>, vector<24x32xf32>, vector<32x32xf32> -> vector<32x32xf32>
    %12 = arith.addf %8, %11 : vector<32x32xf32>
    %c328 = arith.constant 328 : index
    %c0_9 = arith.constant 0 : index
    %13 = vector.load %arg2[%c328, %c0_9] : memref<344x128xf32, #tpu.memory_space<vmem>>, vector<1x32xf32>
    %14 = vector.broadcast %13 : vector<1x32xf32> to vector<32x32xf32>
    %15 = arith.addf %12, %14 : vector<32x32xf32>
    %c64 = arith.constant 64 : index
    %c0_10 = arith.constant 0 : index
    %16 = vector.load %arg2[%c64, %c0_10] : memref<344x128xf32, #tpu.memory_space<vmem>>, vector<8x32xf32>
    %17 = tpu.concatenate %16, %16 in 0 : vector<8x32xf32>, vector<8x32xf32> -> vector<16x32xf32>
    %c329 = arith.constant 329 : index
    %c0_11 = arith.constant 0 : index
    %18 = vector.load %arg2[%c329, %c0_11] : memref<344x128xf32, #tpu.memory_space<vmem>>, vector<1x32xf32>
    %c330 = arith.constant 330 : index
    %c0_12 = arith.constant 0 : index
    %19 = vector.load %arg2[%c330, %c0_12] : memref<344x128xf32, #tpu.memory_space<vmem>>, vector<1x32xf32>
    %cst_13 = arith.constant dense<0.000000e+00> : vector<16xf32>
    %20 = vector.multi_reduction <add>, %17, %cst_13 [1] : vector<16x32xf32> to vector<16xf32>
    %21 = vector.shape_cast %20 : vector<16xf32> to vector<16x1xf32>
    %cst_14 = arith.constant 3.200000e+01 : f32
    %22 = vector.broadcast %cst_14 : f32 to vector<16x1xf32>
    %23 = arith.divf %21, %22 : vector<16x1xf32>
    %24 = arith.mulf %17, %17 : vector<16x32xf32>
    %cst_15 = arith.constant dense<0.000000e+00> : vector<16xf32>
    %25 = vector.multi_reduction <add>, %24, %cst_15 [1] : vector<16x32xf32> to vector<16xf32>
    %26 = vector.shape_cast %25 : vector<16xf32> to vector<16x1xf32>
    %cst_16 = arith.constant 3.200000e+01 : f32
    %27 = vector.broadcast %cst_16 : f32 to vector<16x1xf32>
    %28 = arith.divf %26, %27 : vector<16x1xf32>
    %29 = arith.mulf %23, %23 : vector<16x1xf32>
    %30 = arith.subf %28, %29 : vector<16x1xf32>
    %31 = vector.broadcast %23 : vector<16x1xf32> to vector<16x32xf32>
    %32 = arith.subf %17, %31 : vector<16x32xf32>
    %cst_17 = arith.constant 9.99999974E-6 : f32
    %33 = vector.broadcast %cst_17 : f32 to vector<16x1xf32>
    %34 = arith.addf %30, %33 : vector<16x1xf32>
    %35 = math.rsqrt %34 : vector<16x1xf32>
    %36 = vector.broadcast %35 : vector<16x1xf32> to vector<16x32xf32>
    %37 = arith.mulf %32, %36 : vector<16x32xf32>
    %38 = vector.broadcast %18 : vector<1x32xf32> to vector<16x32xf32>
    %39 = arith.mulf %37, %38 : vector<16x32xf32>
    %40 = vector.broadcast %19 : vector<1x32xf32> to vector<16x32xf32>
    %41 = arith.addf %39, %40 : vector<16x32xf32>
    %c331 = arith.constant 331 : index
    %c0_18 = arith.constant 0 : index
    %42 = vector.load %arg2[%c331, %c0_18] : memref<344x128xf32, #tpu.memory_space<vmem>>, vector<1x32xf32>
    %c332 = arith.constant 332 : index
    %c0_19 = arith.constant 0 : index
    %43 = vector.load %arg2[%c332, %c0_19] : memref<344x128xf32, #tpu.memory_space<vmem>>, vector<1x32xf32>
    %cst_20 = arith.constant dense<0.000000e+00> : vector<32xf32>
    %44 = vector.multi_reduction <add>, %15, %cst_20 [1] : vector<32x32xf32> to vector<32xf32>
    %45 = vector.shape_cast %44 : vector<32xf32> to vector<32x1xf32>
    %cst_21 = arith.constant 3.200000e+01 : f32
    %46 = vector.broadcast %cst_21 : f32 to vector<32x1xf32>
    %47 = arith.divf %45, %46 : vector<32x1xf32>
    %48 = arith.mulf %15, %15 : vector<32x32xf32>
    %cst_22 = arith.constant dense<0.000000e+00> : vector<32xf32>
    %49 = vector.multi_reduction <add>, %48, %cst_22 [1] : vector<32x32xf32> to vector<32xf32>
    %50 = vector.shape_cast %49 : vector<32xf32> to vector<32x1xf32>
    %cst_23 = arith.constant 3.200000e+01 : f32
    %51 = vector.broadcast %cst_23 : f32 to vector<32x1xf32>
    %52 = arith.divf %50, %51 : vector<32x1xf32>
    %53 = arith.mulf %47, %47 : vector<32x1xf32>
    %54 = arith.subf %52, %53 : vector<32x1xf32>
    %55 = vector.broadcast %47 : vector<32x1xf32> to vector<32x32xf32>
    %56 = arith.subf %15, %55 : vector<32x32xf32>
    %cst_24 = arith.constant 9.99999974E-6 : f32
    %57 = vector.broadcast %cst_24 : f32 to vector<32x1xf32>
    %58 = arith.addf %54, %57 : vector<32x1xf32>
    %59 = math.rsqrt %58 : vector<32x1xf32>
    %60 = vector.broadcast %59 : vector<32x1xf32> to vector<32x32xf32>
    %61 = arith.mulf %56, %60 : vector<32x32xf32>
    %62 = vector.broadcast %42 : vector<1x32xf32> to vector<32x32xf32>
    %63 = arith.mulf %61, %62 : vector<32x32xf32>
    %64 = vector.broadcast %43 : vector<1x32xf32> to vector<32x32xf32>
    %65 = arith.addf %63, %64 : vector<32x32xf32>
    %c72 = arith.constant 72 : index
    %c0_25 = arith.constant 0 : index
    %66 = vector.load %arg2[%c72, %c0_25] : memref<344x128xf32, #tpu.memory_space<vmem>>, vector<32x32xf32>
    %cst_26 = arith.constant dense<0.000000e+00> : vector<16x32xf32>
    %67 = tpu.matmul %41, %66, %cst_26 {dimension_numbers = #tpu.dot_dimension_numbers<[1], [0], [0], [1], [0, 0, 1, 1], [], []>} : vector<16x32xf32>, vector<32x32xf32>, vector<16x32xf32> -> vector<16x32xf32>
    %c333 = arith.constant 333 : index
    %c0_27 = arith.constant 0 : index
    %68 = vector.load %arg2[%c333, %c0_27] : memref<344x128xf32, #tpu.memory_space<vmem>>, vector<1x32xf32>
    %69 = vector.broadcast %68 : vector<1x32xf32> to vector<16x32xf32>
    %70 = arith.addf %67, %69 : vector<16x32xf32>
    %c104 = arith.constant 104 : index
    %c0_28 = arith.constant 0 : index
    %71 = vector.load %arg2[%c104, %c0_28] : memref<344x128xf32, #tpu.memory_space<vmem>>, vector<32x64xf32>
    %cst_29 = arith.constant dense<0.000000e+00> : vector<32x64xf32>
    %72 = tpu.matmul %65, %71, %cst_29 {dimension_numbers = #tpu.dot_dimension_numbers<[1], [0], [0], [1], [0, 0, 1, 1], [], []>} : vector<32x32xf32>, vector<32x64xf32>, vector<32x64xf32> -> vector<32x64xf32>
    %c334 = arith.constant 334 : index
    %c0_30 = arith.constant 0 : index
    %73 = vector.load %arg2[%c334, %c0_30] : memref<344x128xf32, #tpu.memory_space<vmem>>, vector<1x64xf32>
    %74 = vector.broadcast %73 : vector<1x64xf32> to vector<32x64xf32>
    %75 = arith.addf %72, %74 : vector<32x64xf32>
    %76 = vector.extract_strided_slice %75 {offsets = [0, 0], sizes = [32, 32], strides = [1, 1]} : vector<32x64xf32> to vector<32x32xf32>
    %77 = vector.extract_strided_slice %75 {offsets = [0, 32], sizes = [32, 32], strides = [1, 1]} : vector<32x64xf32> to vector<32x32xf32>
    %78 = vector.shape_cast %70 : vector<16x32xf32> to vector<2x8x32xf32>
    %79 = vector.shape_cast %76 : vector<32x32xf32> to vector<2x16x32xf32>
    %80 = vector.shape_cast %77 : vector<32x32xf32> to vector<2x16x32xf32>
    %81 = vector.extract_strided_slice %78 {offsets = [0, 0, 0], sizes = [2, 8, 8], strides = [1, 1, 1]} : vector<2x8x32xf32> to vector<2x8x8xf32>
    %82 = vector.extract_strided_slice %78 {offsets = [0, 0, 8], sizes = [2, 8, 8], strides = [1, 1, 1]} : vector<2x8x32xf32> to vector<2x8x8xf32>
    %83 = vector.extract_strided_slice %78 {offsets = [0, 0, 16], sizes = [2, 8, 8], strides = [1, 1, 1]} : vector<2x8x32xf32> to vector<2x8x8xf32>
    %84 = vector.extract_strided_slice %78 {offsets = [0, 0, 24], sizes = [2, 8, 8], strides = [1, 1, 1]} : vector<2x8x32xf32> to vector<2x8x8xf32>
    %85 = tpu.concatenate %81, %82, %83, %84 in 0 : vector<2x8x8xf32>, vector<2x8x8xf32>, vector<2x8x8xf32>, vector<2x8x8xf32> -> vector<8x8x8xf32>
    %86 = vector.extract_strided_slice %79 {offsets = [0, 0, 0], sizes = [2, 16, 8], strides = [1, 1, 1]} : vector<2x16x32xf32> to vector<2x16x8xf32>
    %87 = vector.extract_strided_slice %79 {offsets = [0, 0, 8], sizes = [2, 16, 8], strides = [1, 1, 1]} : vector<2x16x32xf32> to vector<2x16x8xf32>
    %88 = vector.extract_strided_slice %79 {offsets = [0, 0, 16], sizes = [2, 16, 8], strides = [1, 1, 1]} : vector<2x16x32xf32> to vector<2x16x8xf32>
    %89 = vector.extract_strided_slice %79 {offsets = [0, 0, 24], sizes = [2, 16, 8], strides = [1, 1, 1]} : vector<2x16x32xf32> to vector<2x16x8xf32>
    %90 = tpu.concatenate %86, %87, %88, %89 in 0 : vector<2x16x8xf32>, vector<2x16x8xf32>, vector<2x16x8xf32>, vector<2x16x8xf32> -> vector<8x16x8xf32>
    %91 = vector.extract_strided_slice %80 {offsets = [0, 0, 0], sizes = [2, 16, 8], strides = [1, 1, 1]} : vector<2x16x32xf32> to vector<2x16x8xf32>
    %92 = vector.extract_strided_slice %80 {offsets = [0, 0, 8], sizes = [2, 16, 8], strides = [1, 1, 1]} : vector<2x16x32xf32> to vector<2x16x8xf32>
    %93 = vector.extract_strided_slice %80 {offsets = [0, 0, 16], sizes = [2, 16, 8], strides = [1, 1, 1]} : vector<2x16x32xf32> to vector<2x16x8xf32>
    %94 = vector.extract_strided_slice %80 {offsets = [0, 0, 24], sizes = [2, 16, 8], strides = [1, 1, 1]} : vector<2x16x32xf32> to vector<2x16x8xf32>
    %95 = tpu.concatenate %91, %92, %93, %94 in 0 : vector<2x16x8xf32>, vector<2x16x8xf32>, vector<2x16x8xf32>, vector<2x16x8xf32> -> vector<8x16x8xf32>
    "tpu.trace_start"() <{level = 10 : i32, message = "bqd,bkd->bqk"}> : () -> ()
    %cst_31 = arith.constant dense<0.000000e+00> : vector<8x8x16xf32>
    %96 = tpu.matmul %85, %90, %cst_31 {dimension_numbers = #tpu.dot_dimension_numbers<[2], [2], [1], [1], [0, 0, 0, 1, 1, 1], [0], [0]>} : vector<8x8x8xf32>, vector<8x16x8xf32>, vector<8x8x16xf32> -> vector<8x8x16xf32>
    "tpu.trace_stop"() : () -> ()
    %cst_32 = arith.constant dense<0xFF800000> : vector<8x8xf32>
    %97 = vector.multi_reduction <maximumf>, %96, %cst_32 [2] : vector<8x8x16xf32> to vector<8x8xf32>
    %98 = vector.shape_cast %97 : vector<8x8xf32> to vector<8x8x1xf32>
    %99 = vector.broadcast %98 : vector<8x8x1xf32> to vector<8x8x16xf32>
    %100 = arith.subf %96, %99 : vector<8x8x16xf32>
    %101 = math.exp %100 : vector<8x8x16xf32>
    %cst_33 = arith.constant dense<0.000000e+00> : vector<8x8xf32>
    %102 = vector.multi_reduction <add>, %101, %cst_33 [2] : vector<8x8x16xf32> to vector<8x8xf32>
    %103 = vector.shape_cast %102 : vector<8x8xf32> to vector<8x8x1xf32>
    %104 = tpu.reciprocal %103 : vector<8x8x1xf32> -> vector<8x8x1xf32>
    %105 = vector.broadcast %104 : vector<8x8x1xf32> to vector<8x8x16xf32>
    %106 = arith.mulf %101, %105 : vector<8x8x16xf32>
    "tpu.trace_start"() <{level = 10 : i32, message = "bqk,bkd->bqd"}> : () -> ()
    %cst_34 = arith.constant dense<0.000000e+00> : vector<8x8x8xf32>
    %107 = tpu.matmul %106, %95, %cst_34 {dimension_numbers = #tpu.dot_dimension_numbers<[2], [1], [1], [2], [0, 0, 0, 1, 1, 2], [0], [0]>} : vector<8x8x16xf32>, vector<8x16x8xf32>, vector<8x8x8xf32> -> vector<8x8x8xf32>
    "tpu.trace_stop"() : () -> ()
    %108 = vector.extract_strided_slice %107 {offsets = [0, 0, 0], sizes = [2, 8, 8], strides = [1, 1, 1]} : vector<8x8x8xf32> to vector<2x8x8xf32>
    %109 = vector.extract_strided_slice %107 {offsets = [2, 0, 0], sizes = [2, 8, 8], strides = [1, 1, 1]} : vector<8x8x8xf32> to vector<2x8x8xf32>
    %110 = vector.extract_strided_slice %107 {offsets = [4, 0, 0], sizes = [2, 8, 8], strides = [1, 1, 1]} : vector<8x8x8xf32> to vector<2x8x8xf32>
    %111 = vector.extract_strided_slice %107 {offsets = [6, 0, 0], sizes = [2, 8, 8], strides = [1, 1, 1]} : vector<8x8x8xf32> to vector<2x8x8xf32>
    %112 = tpu.concatenate %108, %109, %110, %111 in 2 : vector<2x8x8xf32>, vector<2x8x8xf32>, vector<2x8x8xf32>, vector<2x8x8xf32> -> vector<2x8x32xf32>
    %113 = vector.shape_cast %112 : vector<2x8x32xf32> to vector<16x32xf32>
    %c136 = arith.constant 136 : index
    %c0_35 = arith.constant 0 : index
    %114 = vector.load %arg2[%c136, %c0_35] : memref<344x128xf32, #tpu.memory_space<vmem>>, vector<32x32xf32>
    %cst_36 = arith.constant dense<0.000000e+00> : vector<16x32xf32>
    %115 = tpu.matmul %113, %114, %cst_36 {dimension_numbers = #tpu.dot_dimension_numbers<[1], [0], [0], [1], [0, 0, 1, 1], [], []>} : vector<16x32xf32>, vector<32x32xf32>, vector<16x32xf32> -> vector<16x32xf32>
    %c335 = arith.constant 335 : index
    %c0_37 = arith.constant 0 : index
    %116 = vector.load %arg2[%c335, %c0_37] : memref<344x128xf32, #tpu.memory_space<vmem>>, vector<1x32xf32>
    %117 = vector.broadcast %116 : vector<1x32xf32> to vector<16x32xf32>
    %118 = arith.addf %115, %117 : vector<16x32xf32>
    %119 = arith.addf %17, %118 : vector<16x32xf32>
    %c336 = arith.constant 336 : index
    %c0_38 = arith.constant 0 : index
    %120 = vector.load %arg2[%c336, %c0_38] : memref<344x128xf32, #tpu.memory_space<vmem>>, vector<1x32xf32>
    %c337 = arith.constant 337 : index
    %c0_39 = arith.constant 0 : index
    %121 = vector.load %arg2[%c337, %c0_39] : memref<344x128xf32, #tpu.memory_space<vmem>>, vector<1x32xf32>
    %cst_40 = arith.constant dense<0.000000e+00> : vector<16xf32>
    %122 = vector.multi_reduction <add>, %119, %cst_40 [1] : vector<16x32xf32> to vector<16xf32>
    %123 = vector.shape_cast %122 : vector<16xf32> to vector<16x1xf32>
    %cst_41 = arith.constant 3.200000e+01 : f32
    %124 = vector.broadcast %cst_41 : f32 to vector<16x1xf32>
    %125 = arith.divf %123, %124 : vector<16x1xf32>
    %126 = arith.mulf %119, %119 : vector<16x32xf32>
    %cst_42 = arith.constant dense<0.000000e+00> : vector<16xf32>
    %127 = vector.multi_reduction <add>, %126, %cst_42 [1] : vector<16x32xf32> to vector<16xf32>
    %128 = vector.shape_cast %127 : vector<16xf32> to vector<16x1xf32>
    %cst_43 = arith.constant 3.200000e+01 : f32
    %129 = vector.broadcast %cst_43 : f32 to vector<16x1xf32>
    %130 = arith.divf %128, %129 : vector<16x1xf32>
    %131 = arith.mulf %125, %125 : vector<16x1xf32>
    %132 = arith.subf %130, %131 : vector<16x1xf32>
    %133 = vector.broadcast %125 : vector<16x1xf32> to vector<16x32xf32>
    %134 = arith.subf %119, %133 : vector<16x32xf32>
    %cst_44 = arith.constant 9.99999974E-6 : f32
    %135 = vector.broadcast %cst_44 : f32 to vector<16x1xf32>
    %136 = arith.addf %132, %135 : vector<16x1xf32>
    %137 = math.rsqrt %136 : vector<16x1xf32>
    %138 = vector.broadcast %137 : vector<16x1xf32> to vector<16x32xf32>
    %139 = arith.mulf %134, %138 : vector<16x32xf32>
    %140 = vector.broadcast %120 : vector<1x32xf32> to vector<16x32xf32>
    %141 = arith.mulf %139, %140 : vector<16x32xf32>
    %142 = vector.broadcast %121 : vector<1x32xf32> to vector<16x32xf32>
    %143 = arith.addf %141, %142 : vector<16x32xf32>
    %c168 = arith.constant 168 : index
    %c0_45 = arith.constant 0 : index
    %144 = vector.load %arg2[%c168, %c0_45] : memref<344x128xf32, #tpu.memory_space<vmem>>, vector<32x128xf32>
    %cst_46 = arith.constant dense<0.000000e+00> : vector<16x128xf32>
    %145 = tpu.matmul %143, %144, %cst_46 {dimension_numbers = #tpu.dot_dimension_numbers<[1], [0], [0], [1], [0, 0, 1, 1], [], []>} : vector<16x32xf32>, vector<32x128xf32>, vector<16x128xf32> -> vector<16x128xf32>
    %c338 = arith.constant 338 : index
    %c0_47 = arith.constant 0 : index
    %146 = vector.load %arg2[%c338, %c0_47] : memref<344x128xf32, #tpu.memory_space<vmem>>, vector<1x128xf32>
    %147 = vector.broadcast %146 : vector<1x128xf32> to vector<16x128xf32>
    %148 = arith.addf %145, %147 : vector<16x128xf32>
    %149 = arith.mulf %148, %148 : vector<16x128xf32>
    %150 = arith.mulf %148, %149 : vector<16x128xf32>
    %cst_48 = arith.constant 4.471500e-02 : f32
    %151 = vector.broadcast %cst_48 : f32 to vector<16x128xf32>
    %152 = arith.mulf %151, %150 : vector<16x128xf32>
    %153 = arith.addf %148, %152 : vector<16x128xf32>
    %cst_49 = arith.constant 0.797884583 : f32
    %154 = vector.broadcast %cst_49 : f32 to vector<16x128xf32>
    %155 = arith.mulf %154, %153 : vector<16x128xf32>
    %156 = math.tanh %155 : vector<16x128xf32>
    %cst_50 = arith.constant 1.000000e+00 : f32
    %157 = vector.broadcast %cst_50 : f32 to vector<16x128xf32>
    %158 = arith.addf %157, %156 : vector<16x128xf32>
    %cst_51 = arith.constant 5.000000e-01 : f32
    %159 = vector.broadcast %cst_51 : f32 to vector<16x128xf32>
    %160 = arith.mulf %159, %158 : vector<16x128xf32>
    %161 = arith.mulf %148, %160 : vector<16x128xf32>
    %c200 = arith.constant 200 : index
    %c0_52 = arith.constant 0 : index
    %162 = vector.load %arg2[%c200, %c0_52] : memref<344x128xf32, #tpu.memory_space<vmem>>, vector<128x32xf32>
    %cst_53 = arith.constant dense<0.000000e+00> : vector<16x32xf32>
    %163 = tpu.matmul %161, %162, %cst_53 {dimension_numbers = #tpu.dot_dimension_numbers<[1], [0], [0], [1], [0, 0, 1, 1], [], []>} : vector<16x128xf32>, vector<128x32xf32>, vector<16x32xf32> -> vector<16x32xf32>
    %c339 = arith.constant 339 : index
    %c0_54 = arith.constant 0 : index
    %164 = vector.load %arg2[%c339, %c0_54] : memref<344x128xf32, #tpu.memory_space<vmem>>, vector<1x32xf32>
    %165 = vector.broadcast %164 : vector<1x32xf32> to vector<16x32xf32>
    %166 = arith.addf %163, %165 : vector<16x32xf32>
    %167 = arith.addf %119, %166 : vector<16x32xf32>
    %c0_55 = arith.constant 0 : index
    %c224 = arith.constant 224 : index
    %c0_56 = arith.constant 0 : index
    %168 = vector.load %arg3[%c0_55, %c224, %c0_56] : memref<2x232x128xf32, #tpu.memory_space<vmem>>, vector<1x1x32xf32>
    %169 = vector.shape_cast %168 : vector<1x1x32xf32> to vector<1x32xf32>
    %c0_57 = arith.constant 0 : index
    %c225 = arith.constant 225 : index
    %c0_58 = arith.constant 0 : index
    %170 = vector.load %arg3[%c0_57, %c225, %c0_58] : memref<2x232x128xf32, #tpu.memory_space<vmem>>, vector<1x1x32xf32>
    %171 = vector.shape_cast %170 : vector<1x1x32xf32> to vector<1x32xf32>
    %cst_59 = arith.constant dense<0.000000e+00> : vector<16xf32>
    %172 = vector.multi_reduction <add>, %167, %cst_59 [1] : vector<16x32xf32> to vector<16xf32>
    %173 = vector.shape_cast %172 : vector<16xf32> to vector<16x1xf32>
    %cst_60 = arith.constant 3.200000e+01 : f32
    %174 = vector.broadcast %cst_60 : f32 to vector<16x1xf32>
    %175 = arith.divf %173, %174 : vector<16x1xf32>
    %176 = arith.mulf %167, %167 : vector<16x32xf32>
    %cst_61 = arith.constant dense<0.000000e+00> : vector<16xf32>
    %177 = vector.multi_reduction <add>, %176, %cst_61 [1] : vector<16x32xf32> to vector<16xf32>
    %178 = vector.shape_cast %177 : vector<16xf32> to vector<16x1xf32>
    %cst_62 = arith.constant 3.200000e+01 : f32
    %179 = vector.broadcast %cst_62 : f32 to vector<16x1xf32>
    %180 = arith.divf %178, %179 : vector<16x1xf32>
    %181 = arith.mulf %175, %175 : vector<16x1xf32>
    %182 = arith.subf %180, %181 : vector<16x1xf32>
    %183 = vector.broadcast %175 : vector<16x1xf32> to vector<16x32xf32>
    %184 = arith.subf %167, %183 : vector<16x32xf32>
    %cst_63 = arith.constant 9.99999974E-6 : f32
    %185 = vector.broadcast %cst_63 : f32 to vector<16x1xf32>
    %186 = arith.addf %182, %185 : vector<16x1xf32>
    %187 = math.rsqrt %186 : vector<16x1xf32>
    %188 = vector.broadcast %187 : vector<16x1xf32> to vector<16x32xf32>
    %189 = arith.mulf %184, %188 : vector<16x32xf32>
    %190 = vector.broadcast %169 : vector<1x32xf32> to vector<16x32xf32>
    %191 = arith.mulf %189, %190 : vector<16x32xf32>
    %192 = vector.broadcast %171 : vector<1x32xf32> to vector<16x32xf32>
    %193 = arith.addf %191, %192 : vector<16x32xf32>
    %c0_64 = arith.constant 0 : index
    %c0_65 = arith.constant 0 : index
    %c0_66 = arith.constant 0 : index
    %194 = vector.load %arg3[%c0_64, %c0_65, %c0_66] : memref<2x232x128xf32, #tpu.memory_space<vmem>>, vector<1x32x96xf32>
    %195 = vector.shape_cast %194 : vector<1x32x96xf32> to vector<32x96xf32>
    %cst_67 = arith.constant dense<0.000000e+00> : vector<16x96xf32>
    %196 = tpu.matmul %193, %195, %cst_67 {dimension_numbers = #tpu.dot_dimension_numbers<[1], [0], [0], [1], [0, 0, 1, 1], [], []>} : vector<16x32xf32>, vector<32x96xf32>, vector<16x96xf32> -> vector<16x96xf32>
    %c0_68 = arith.constant 0 : index
    %c226 = arith.constant 226 : index
    %c0_69 = arith.constant 0 : index
    %197 = vector.load %arg3[%c0_68, %c226, %c0_69] : memref<2x232x128xf32, #tpu.memory_space<vmem>>, vector<1x1x96xf32>
    %198 = vector.shape_cast %197 : vector<1x1x96xf32> to vector<1x96xf32>
    %199 = vector.broadcast %198 : vector<1x96xf32> to vector<16x96xf32>
    %200 = arith.addf %196, %199 : vector<16x96xf32>
    %201 = vector.extract_strided_slice %200 {offsets = [0, 0], sizes = [16, 32], strides = [1, 1]} : vector<16x96xf32> to vector<16x32xf32>
    %202 = vector.extract_strided_slice %200 {offsets = [0, 32], sizes = [16, 32], strides = [1, 1]} : vector<16x96xf32> to vector<16x32xf32>
    %203 = vector.extract_strided_slice %200 {offsets = [0, 64], sizes = [16, 32], strides = [1, 1]} : vector<16x96xf32> to vector<16x32xf32>
    %204 = vector.shape_cast %201 : vector<16x32xf32> to vector<2x8x32xf32>
    %205 = vector.shape_cast %202 : vector<16x32xf32> to vector<2x8x32xf32>
    %206 = vector.shape_cast %203 : vector<16x32xf32> to vector<2x8x32xf32>
    %207 = vector.extract_strided_slice %204 {offsets = [0, 0, 0], sizes = [2, 8, 8], strides = [1, 1, 1]} : vector<2x8x32xf32> to vector<2x8x8xf32>
    %208 = vector.extract_strided_slice %204 {offsets = [0, 0, 8], sizes = [2, 8, 8], strides = [1, 1, 1]} : vector<2x8x32xf32> to vector<2x8x8xf32>
    %209 = vector.extract_strided_slice %204 {offsets = [0, 0, 16], sizes = [2, 8, 8], strides = [1, 1, 1]} : vector<2x8x32xf32> to vector<2x8x8xf32>
    %210 = vector.extract_strided_slice %204 {offsets = [0, 0, 24], sizes = [2, 8, 8], strides = [1, 1, 1]} : vector<2x8x32xf32> to vector<2x8x8xf32>
    %211 = tpu.concatenate %207, %208, %209, %210 in 0 : vector<2x8x8xf32>, vector<2x8x8xf32>, vector<2x8x8xf32>, vector<2x8x8xf32> -> vector<8x8x8xf32>
    %212 = vector.extract_strided_slice %205 {offsets = [0, 0, 0], sizes = [2, 8, 8], strides = [1, 1, 1]} : vector<2x8x32xf32> to vector<2x8x8xf32>
    %213 = vector.extract_strided_slice %205 {offsets = [0, 0, 8], sizes = [2, 8, 8], strides = [1, 1, 1]} : vector<2x8x32xf32> to vector<2x8x8xf32>
    %214 = vector.extract_strided_slice %205 {offsets = [0, 0, 16], sizes = [2, 8, 8], strides = [1, 1, 1]} : vector<2x8x32xf32> to vector<2x8x8xf32>
    %215 = vector.extract_strided_slice %205 {offsets = [0, 0, 24], sizes = [2, 8, 8], strides = [1, 1, 1]} : vector<2x8x32xf32> to vector<2x8x8xf32>
    %216 = tpu.concatenate %212, %213, %214, %215 in 0 : vector<2x8x8xf32>, vector<2x8x8xf32>, vector<2x8x8xf32>, vector<2x8x8xf32> -> vector<8x8x8xf32>
    %217 = vector.extract_strided_slice %206 {offsets = [0, 0, 0], sizes = [2, 8, 8], strides = [1, 1, 1]} : vector<2x8x32xf32> to vector<2x8x8xf32>
    %218 = vector.extract_strided_slice %206 {offsets = [0, 0, 8], sizes = [2, 8, 8], strides = [1, 1, 1]} : vector<2x8x32xf32> to vector<2x8x8xf32>
    %219 = vector.extract_strided_slice %206 {offsets = [0, 0, 16], sizes = [2, 8, 8], strides = [1, 1, 1]} : vector<2x8x32xf32> to vector<2x8x8xf32>
    %220 = vector.extract_strided_slice %206 {offsets = [0, 0, 24], sizes = [2, 8, 8], strides = [1, 1, 1]} : vector<2x8x32xf32> to vector<2x8x8xf32>
    %221 = tpu.concatenate %217, %218, %219, %220 in 0 : vector<2x8x8xf32>, vector<2x8x8xf32>, vector<2x8x8xf32>, vector<2x8x8xf32> -> vector<8x8x8xf32>
    "tpu.trace_start"() <{level = 10 : i32, message = "bqd,bkd->bqk"}> : () -> ()
    %cst_70 = arith.constant dense<0.000000e+00> : vector<8x8x8xf32>
    %222 = tpu.matmul %211, %216, %cst_70 {dimension_numbers = #tpu.dot_dimension_numbers<[2], [2], [1], [1], [0, 0, 0, 1, 1, 1], [0], [0]>} : vector<8x8x8xf32>, vector<8x8x8xf32>, vector<8x8x8xf32> -> vector<8x8x8xf32>
    "tpu.trace_stop"() : () -> ()
    %cst_71 = arith.constant dense<0xFF800000> : vector<8x8xf32>
    %223 = vector.multi_reduction <maximumf>, %222, %cst_71 [2] : vector<8x8x8xf32> to vector<8x8xf32>
    %224 = vector.shape_cast %223 : vector<8x8xf32> to vector<8x8x1xf32>
    %225 = vector.broadcast %224 : vector<8x8x1xf32> to vector<8x8x8xf32>
    %226 = arith.subf %222, %225 : vector<8x8x8xf32>
    %227 = math.exp %226 : vector<8x8x8xf32>
    %cst_72 = arith.constant dense<0.000000e+00> : vector<8x8xf32>
    %228 = vector.multi_reduction <add>, %227, %cst_72 [2] : vector<8x8x8xf32> to vector<8x8xf32>
    %229 = vector.shape_cast %228 : vector<8x8xf32> to vector<8x8x1xf32>
    %230 = tpu.reciprocal %229 : vector<8x8x1xf32> -> vector<8x8x1xf32>
    %231 = vector.broadcast %230 : vector<8x8x1xf32> to vector<8x8x8xf32>
    %232 = arith.mulf %227, %231 : vector<8x8x8xf32>
    "tpu.trace_start"() <{level = 10 : i32, message = "bqk,bkd->bqd"}> : () -> ()
    %cst_73 = arith.constant dense<0.000000e+00> : vector<8x8x8xf32>
    %233 = tpu.matmul %232, %221, %cst_73 {dimension_numbers = #tpu.dot_dimension_numbers<[2], [1], [1], [2], [0, 0, 0, 1, 1, 2], [0], [0]>} : vector<8x8x8xf32>, vector<8x8x8xf32>, vector<8x8x8xf32> -> vector<8x8x8xf32>
    "tpu.trace_stop"() : () -> ()
    %234 = vector.extract_strided_slice %233 {offsets = [0, 0, 0], sizes = [2, 8, 8], strides = [1, 1, 1]} : vector<8x8x8xf32> to vector<2x8x8xf32>
    %235 = vector.extract_strided_slice %233 {offsets = [2, 0, 0], sizes = [2, 8, 8], strides = [1, 1, 1]} : vector<8x8x8xf32> to vector<2x8x8xf32>
    %236 = vector.extract_strided_slice %233 {offsets = [4, 0, 0], sizes = [2, 8, 8], strides = [1, 1, 1]} : vector<8x8x8xf32> to vector<2x8x8xf32>
    %237 = vector.extract_strided_slice %233 {offsets = [6, 0, 0], sizes = [2, 8, 8], strides = [1, 1, 1]} : vector<8x8x8xf32> to vector<2x8x8xf32>
    %238 = tpu.concatenate %234, %235, %236, %237 in 2 : vector<2x8x8xf32>, vector<2x8x8xf32>, vector<2x8x8xf32>, vector<2x8x8xf32> -> vector<2x8x32xf32>
    %239 = vector.shape_cast %238 : vector<2x8x32xf32> to vector<16x32xf32>
    %c0_74 = arith.constant 0 : index
    %c32 = arith.constant 32 : index
    %c0_75 = arith.constant 0 : index
    %240 = vector.load %arg3[%c0_74, %c32, %c0_75] : memref<2x232x128xf32, #tpu.memory_space<vmem>>, vector<1x32x32xf32>
    %241 = vector.shape_cast %240 : vector<1x32x32xf32> to vector<32x32xf32>
    %cst_76 = arith.constant dense<0.000000e+00> : vector<16x32xf32>
    %242 = tpu.matmul %239, %241, %cst_76 {dimension_numbers = #tpu.dot_dimension_numbers<[1], [0], [0], [1], [0, 0, 1, 1], [], []>} : vector<16x32xf32>, vector<32x32xf32>, vector<16x32xf32> -> vector<16x32xf32>
    %c0_77 = arith.constant 0 : index
    %c227 = arith.constant 227 : index
    %c0_78 = arith.constant 0 : index
    %243 = vector.load %arg3[%c0_77, %c227, %c0_78] : memref<2x232x128xf32, #tpu.memory_space<vmem>>, vector<1x1x32xf32>
    %244 = vector.shape_cast %243 : vector<1x1x32xf32> to vector<1x32xf32>
    %245 = vector.broadcast %244 : vector<1x32xf32> to vector<16x32xf32>
    %246 = arith.addf %242, %245 : vector<16x32xf32>
    %247 = arith.addf %167, %246 : vector<16x32xf32>
    %c0_79 = arith.constant 0 : index
    %c228 = arith.constant 228 : index
    %c0_80 = arith.constant 0 : index
    %248 = vector.load %arg3[%c0_79, %c228, %c0_80] : memref<2x232x128xf32, #tpu.memory_space<vmem>>, vector<1x1x32xf32>
    %249 = vector.shape_cast %248 : vector<1x1x32xf32> to vector<1x32xf32>
    %c0_81 = arith.constant 0 : index
    %c229 = arith.constant 229 : index
    %c0_82 = arith.constant 0 : index
    %250 = vector.load %arg3[%c0_81, %c229, %c0_82] : memref<2x232x128xf32, #tpu.memory_space<vmem>>, vector<1x1x32xf32>
    %251 = vector.shape_cast %250 : vector<1x1x32xf32> to vector<1x32xf32>
    %cst_83 = arith.constant dense<0.000000e+00> : vector<16xf32>
    %252 = vector.multi_reduction <add>, %247, %cst_83 [1] : vector<16x32xf32> to vector<16xf32>
    %253 = vector.shape_cast %252 : vector<16xf32> to vector<16x1xf32>
    %cst_84 = arith.constant 3.200000e+01 : f32
    %254 = vector.broadcast %cst_84 : f32 to vector<16x1xf32>
    %255 = arith.divf %253, %254 : vector<16x1xf32>
    %256 = arith.mulf %247, %247 : vector<16x32xf32>
    %cst_85 = arith.constant dense<0.000000e+00> : vector<16xf32>
    %257 = vector.multi_reduction <add>, %256, %cst_85 [1] : vector<16x32xf32> to vector<16xf32>
    %258 = vector.shape_cast %257 : vector<16xf32> to vector<16x1xf32>
    %cst_86 = arith.constant 3.200000e+01 : f32
    %259 = vector.broadcast %cst_86 : f32 to vector<16x1xf32>
    %260 = arith.divf %258, %259 : vector<16x1xf32>
    %261 = arith.mulf %255, %255 : vector<16x1xf32>
    %262 = arith.subf %260, %261 : vector<16x1xf32>
    %263 = vector.broadcast %255 : vector<16x1xf32> to vector<16x32xf32>
    %264 = arith.subf %247, %263 : vector<16x32xf32>
    %cst_87 = arith.constant 9.99999974E-6 : f32
    %265 = vector.broadcast %cst_87 : f32 to vector<16x1xf32>
    %266 = arith.addf %262, %265 : vector<16x1xf32>
    %267 = math.rsqrt %266 : vector<16x1xf32>
    %268 = vector.broadcast %267 : vector<16x1xf32> to vector<16x32xf32>
    %269 = arith.mulf %264, %268 : vector<16x32xf32>
    %270 = vector.broadcast %249 : vector<1x32xf32> to vector<16x32xf32>
    %271 = arith.mulf %269, %270 : vector<16x32xf32>
    %272 = vector.broadcast %251 : vector<1x32xf32> to vector<16x32xf32>
    %273 = arith.addf %271, %272 : vector<16x32xf32>
    %c0_88 = arith.constant 0 : index
    %c64_89 = arith.constant 64 : index
    %c0_90 = arith.constant 0 : index
    %274 = vector.load %arg3[%c0_88, %c64_89, %c0_90] : memref<2x232x128xf32, #tpu.memory_space<vmem>>, vector<1x32x128xf32>
    %275 = vector.shape_cast %274 : vector<1x32x128xf32> to vector<32x128xf32>
    %cst_91 = arith.constant dense<0.000000e+00> : vector<16x128xf32>
    %276 = tpu.matmul %273, %275, %cst_91 {dimension_numbers = #tpu.dot_dimension_numbers<[1], [0], [0], [1], [0, 0, 1, 1], [], []>} : vector<16x32xf32>, vector<32x128xf32>, vector<16x128xf32> -> vector<16x128xf32>
    %c0_92 = arith.constant 0 : index
    %c230 = arith.constant 230 : index
    %c0_93 = arith.constant 0 : index
    %277 = vector.load %arg3[%c0_92, %c230, %c0_93] : memref<2x232x128xf32, #tpu.memory_space<vmem>>, vector<1x1x128xf32>
    %278 = vector.shape_cast %277 : vector<1x1x128xf32> to vector<1x128xf32>
    %279 = vector.broadcast %278 : vector<1x128xf32> to vector<16x128xf32>
    %280 = arith.addf %276, %279 : vector<16x128xf32>
    %281 = arith.mulf %280, %280 : vector<16x128xf32>
    %282 = arith.mulf %280, %281 : vector<16x128xf32>
    %cst_94 = arith.constant 4.471500e-02 : f32
    %283 = vector.broadcast %cst_94 : f32 to vector<16x128xf32>
    %284 = arith.mulf %283, %282 : vector<16x128xf32>
    %285 = arith.addf %280, %284 : vector<16x128xf32>
    %cst_95 = arith.constant 0.797884583 : f32
    %286 = vector.broadcast %cst_95 : f32 to vector<16x128xf32>
    %287 = arith.mulf %286, %285 : vector<16x128xf32>
    %288 = math.tanh %287 : vector<16x128xf32>
    %cst_96 = arith.constant 1.000000e+00 : f32
    %289 = vector.broadcast %cst_96 : f32 to vector<16x128xf32>
    %290 = arith.addf %289, %288 : vector<16x128xf32>
    %cst_97 = arith.constant 5.000000e-01 : f32
    %291 = vector.broadcast %cst_97 : f32 to vector<16x128xf32>
    %292 = arith.mulf %291, %290 : vector<16x128xf32>
    %293 = arith.mulf %280, %292 : vector<16x128xf32>
    %c0_98 = arith.constant 0 : index
    %c96 = arith.constant 96 : index
    %c0_99 = arith.constant 0 : index
    %294 = vector.load %arg3[%c0_98, %c96, %c0_99] : memref<2x232x128xf32, #tpu.memory_space<vmem>>, vector<1x128x32xf32>
    %295 = vector.shape_cast %294 : vector<1x128x32xf32> to vector<128x32xf32>
    %cst_100 = arith.constant dense<0.000000e+00> : vector<16x32xf32>
    %296 = tpu.matmul %293, %295, %cst_100 {dimension_numbers = #tpu.dot_dimension_numbers<[1], [0], [0], [1], [0, 0, 1, 1], [], []>} : vector<16x128xf32>, vector<128x32xf32>, vector<16x32xf32> -> vector<16x32xf32>
    %c0_101 = arith.constant 0 : index
    %c231 = arith.constant 231 : index
    %c0_102 = arith.constant 0 : index
    %297 = vector.load %arg3[%c0_101, %c231, %c0_102] : memref<2x232x128xf32, #tpu.memory_space<vmem>>, vector<1x1x32xf32>
    %298 = vector.shape_cast %297 : vector<1x1x32xf32> to vector<1x32xf32>
    %299 = vector.broadcast %298 : vector<1x32xf32> to vector<16x32xf32>
    %300 = arith.addf %296, %299 : vector<16x32xf32>
    %301 = arith.addf %247, %300 : vector<16x32xf32>
    %c1 = arith.constant 1 : index
    %c224_103 = arith.constant 224 : index
    %c0_104 = arith.constant 0 : index
    %302 = vector.load %arg3[%c1, %c224_103, %c0_104] : memref<2x232x128xf32, #tpu.memory_space<vmem>>, vector<1x1x32xf32>
    %303 = vector.shape_cast %302 : vector<1x1x32xf32> to vector<1x32xf32>
    %c1_105 = arith.constant 1 : index
    %c225_106 = arith.constant 225 : index
    %c0_107 = arith.constant 0 : index
    %304 = vector.load %arg3[%c1_105, %c225_106, %c0_107] : memref<2x232x128xf32, #tpu.memory_space<vmem>>, vector<1x1x32xf32>
    %305 = vector.shape_cast %304 : vector<1x1x32xf32> to vector<1x32xf32>
    %cst_108 = arith.constant dense<0.000000e+00> : vector<16xf32>
    %306 = vector.multi_reduction <add>, %301, %cst_108 [1] : vector<16x32xf32> to vector<16xf32>
    %307 = vector.shape_cast %306 : vector<16xf32> to vector<16x1xf32>
    %cst_109 = arith.constant 3.200000e+01 : f32
    %308 = vector.broadcast %cst_109 : f32 to vector<16x1xf32>
    %309 = arith.divf %307, %308 : vector<16x1xf32>
    %310 = arith.mulf %301, %301 : vector<16x32xf32>
    %cst_110 = arith.constant dense<0.000000e+00> : vector<16xf32>
    %311 = vector.multi_reduction <add>, %310, %cst_110 [1] : vector<16x32xf32> to vector<16xf32>
    %312 = vector.shape_cast %311 : vector<16xf32> to vector<16x1xf32>
    %cst_111 = arith.constant 3.200000e+01 : f32
    %313 = vector.broadcast %cst_111 : f32 to vector<16x1xf32>
    %314 = arith.divf %312, %313 : vector<16x1xf32>
    %315 = arith.mulf %309, %309 : vector<16x1xf32>
    %316 = arith.subf %314, %315 : vector<16x1xf32>
    %317 = vector.broadcast %309 : vector<16x1xf32> to vector<16x32xf32>
    %318 = arith.subf %301, %317 : vector<16x32xf32>
    %cst_112 = arith.constant 9.99999974E-6 : f32
    %319 = vector.broadcast %cst_112 : f32 to vector<16x1xf32>
    %320 = arith.addf %316, %319 : vector<16x1xf32>
    %321 = math.rsqrt %320 : vector<16x1xf32>
    %322 = vector.broadcast %321 : vector<16x1xf32> to vector<16x32xf32>
    %323 = arith.mulf %318, %322 : vector<16x32xf32>
    %324 = vector.broadcast %303 : vector<1x32xf32> to vector<16x32xf32>
    %325 = arith.mulf %323, %324 : vector<16x32xf32>
    %326 = vector.broadcast %305 : vector<1x32xf32> to vector<16x32xf32>
    %327 = arith.addf %325, %326 : vector<16x32xf32>
    %c1_113 = arith.constant 1 : index
    %c0_114 = arith.constant 0 : index
    %c0_115 = arith.constant 0 : index
    %328 = vector.load %arg3[%c1_113, %c0_114, %c0_115] : memref<2x232x128xf32, #tpu.memory_space<vmem>>, vector<1x32x96xf32>
    %329 = vector.shape_cast %328 : vector<1x32x96xf32> to vector<32x96xf32>
    %cst_116 = arith.constant dense<0.000000e+00> : vector<16x96xf32>
    %330 = tpu.matmul %327, %329, %cst_116 {dimension_numbers = #tpu.dot_dimension_numbers<[1], [0], [0], [1], [0, 0, 1, 1], [], []>} : vector<16x32xf32>, vector<32x96xf32>, vector<16x96xf32> -> vector<16x96xf32>
    %c1_117 = arith.constant 1 : index
    %c226_118 = arith.constant 226 : index
    %c0_119 = arith.constant 0 : index
    %331 = vector.load %arg3[%c1_117, %c226_118, %c0_119] : memref<2x232x128xf32, #tpu.memory_space<vmem>>, vector<1x1x96xf32>
    %332 = vector.shape_cast %331 : vector<1x1x96xf32> to vector<1x96xf32>
    %333 = vector.broadcast %332 : vector<1x96xf32> to vector<16x96xf32>
    %334 = arith.addf %330, %333 : vector<16x96xf32>
    %335 = vector.extract_strided_slice %334 {offsets = [0, 0], sizes = [16, 32], strides = [1, 1]} : vector<16x96xf32> to vector<16x32xf32>
    %336 = vector.extract_strided_slice %334 {offsets = [0, 32], sizes = [16, 32], strides = [1, 1]} : vector<16x96xf32> to vector<16x32xf32>
    %337 = vector.extract_strided_slice %334 {offsets = [0, 64], sizes = [16, 32], strides = [1, 1]} : vector<16x96xf32> to vector<16x32xf32>
    %338 = vector.shape_cast %335 : vector<16x32xf32> to vector<2x8x32xf32>
    %339 = vector.shape_cast %336 : vector<16x32xf32> to vector<2x8x32xf32>
    %340 = vector.shape_cast %337 : vector<16x32xf32> to vector<2x8x32xf32>
    %341 = vector.extract_strided_slice %338 {offsets = [0, 0, 0], sizes = [2, 8, 8], strides = [1, 1, 1]} : vector<2x8x32xf32> to vector<2x8x8xf32>
    %342 = vector.extract_strided_slice %338 {offsets = [0, 0, 8], sizes = [2, 8, 8], strides = [1, 1, 1]} : vector<2x8x32xf32> to vector<2x8x8xf32>
    %343 = vector.extract_strided_slice %338 {offsets = [0, 0, 16], sizes = [2, 8, 8], strides = [1, 1, 1]} : vector<2x8x32xf32> to vector<2x8x8xf32>
    %344 = vector.extract_strided_slice %338 {offsets = [0, 0, 24], sizes = [2, 8, 8], strides = [1, 1, 1]} : vector<2x8x32xf32> to vector<2x8x8xf32>
    %345 = tpu.concatenate %341, %342, %343, %344 in 0 : vector<2x8x8xf32>, vector<2x8x8xf32>, vector<2x8x8xf32>, vector<2x8x8xf32> -> vector<8x8x8xf32>
    %346 = vector.extract_strided_slice %339 {offsets = [0, 0, 0], sizes = [2, 8, 8], strides = [1, 1, 1]} : vector<2x8x32xf32> to vector<2x8x8xf32>
    %347 = vector.extract_strided_slice %339 {offsets = [0, 0, 8], sizes = [2, 8, 8], strides = [1, 1, 1]} : vector<2x8x32xf32> to vector<2x8x8xf32>
    %348 = vector.extract_strided_slice %339 {offsets = [0, 0, 16], sizes = [2, 8, 8], strides = [1, 1, 1]} : vector<2x8x32xf32> to vector<2x8x8xf32>
    %349 = vector.extract_strided_slice %339 {offsets = [0, 0, 24], sizes = [2, 8, 8], strides = [1, 1, 1]} : vector<2x8x32xf32> to vector<2x8x8xf32>
    %350 = tpu.concatenate %346, %347, %348, %349 in 0 : vector<2x8x8xf32>, vector<2x8x8xf32>, vector<2x8x8xf32>, vector<2x8x8xf32> -> vector<8x8x8xf32>
    %351 = vector.extract_strided_slice %340 {offsets = [0, 0, 0], sizes = [2, 8, 8], strides = [1, 1, 1]} : vector<2x8x32xf32> to vector<2x8x8xf32>
    %352 = vector.extract_strided_slice %340 {offsets = [0, 0, 8], sizes = [2, 8, 8], strides = [1, 1, 1]} : vector<2x8x32xf32> to vector<2x8x8xf32>
    %353 = vector.extract_strided_slice %340 {offsets = [0, 0, 16], sizes = [2, 8, 8], strides = [1, 1, 1]} : vector<2x8x32xf32> to vector<2x8x8xf32>
    %354 = vector.extract_strided_slice %340 {offsets = [0, 0, 24], sizes = [2, 8, 8], strides = [1, 1, 1]} : vector<2x8x32xf32> to vector<2x8x8xf32>
    %355 = tpu.concatenate %351, %352, %353, %354 in 0 : vector<2x8x8xf32>, vector<2x8x8xf32>, vector<2x8x8xf32>, vector<2x8x8xf32> -> vector<8x8x8xf32>
    "tpu.trace_start"() <{level = 10 : i32, message = "bqd,bkd->bqk"}> : () -> ()
    %cst_120 = arith.constant dense<0.000000e+00> : vector<8x8x8xf32>
    %356 = tpu.matmul %345, %350, %cst_120 {dimension_numbers = #tpu.dot_dimension_numbers<[2], [2], [1], [1], [0, 0, 0, 1, 1, 1], [0], [0]>} : vector<8x8x8xf32>, vector<8x8x8xf32>, vector<8x8x8xf32> -> vector<8x8x8xf32>
    "tpu.trace_stop"() : () -> ()
    %cst_121 = arith.constant dense<0xFF800000> : vector<8x8xf32>
    %357 = vector.multi_reduction <maximumf>, %356, %cst_121 [2] : vector<8x8x8xf32> to vector<8x8xf32>
    %358 = vector.shape_cast %357 : vector<8x8xf32> to vector<8x8x1xf32>
    %359 = vector.broadcast %358 : vector<8x8x1xf32> to vector<8x8x8xf32>
    %360 = arith.subf %356, %359 : vector<8x8x8xf32>
    %361 = math.exp %360 : vector<8x8x8xf32>
    %cst_122 = arith.constant dense<0.000000e+00> : vector<8x8xf32>
    %362 = vector.multi_reduction <add>, %361, %cst_122 [2] : vector<8x8x8xf32> to vector<8x8xf32>
    %363 = vector.shape_cast %362 : vector<8x8xf32> to vector<8x8x1xf32>
    %364 = tpu.reciprocal %363 : vector<8x8x1xf32> -> vector<8x8x1xf32>
    %365 = vector.broadcast %364 : vector<8x8x1xf32> to vector<8x8x8xf32>
    %366 = arith.mulf %361, %365 : vector<8x8x8xf32>
    "tpu.trace_start"() <{level = 10 : i32, message = "bqk,bkd->bqd"}> : () -> ()
    %cst_123 = arith.constant dense<0.000000e+00> : vector<8x8x8xf32>
    %367 = tpu.matmul %366, %355, %cst_123 {dimension_numbers = #tpu.dot_dimension_numbers<[2], [1], [1], [2], [0, 0, 0, 1, 1, 2], [0], [0]>} : vector<8x8x8xf32>, vector<8x8x8xf32>, vector<8x8x8xf32> -> vector<8x8x8xf32>
    "tpu.trace_stop"() : () -> ()
    %368 = vector.extract_strided_slice %367 {offsets = [0, 0, 0], sizes = [2, 8, 8], strides = [1, 1, 1]} : vector<8x8x8xf32> to vector<2x8x8xf32>
    %369 = vector.extract_strided_slice %367 {offsets = [2, 0, 0], sizes = [2, 8, 8], strides = [1, 1, 1]} : vector<8x8x8xf32> to vector<2x8x8xf32>
    %370 = vector.extract_strided_slice %367 {offsets = [4, 0, 0], sizes = [2, 8, 8], strides = [1, 1, 1]} : vector<8x8x8xf32> to vector<2x8x8xf32>
    %371 = vector.extract_strided_slice %367 {offsets = [6, 0, 0], sizes = [2, 8, 8], strides = [1, 1, 1]} : vector<8x8x8xf32> to vector<2x8x8xf32>
    %372 = tpu.concatenate %368, %369, %370, %371 in 2 : vector<2x8x8xf32>, vector<2x8x8xf32>, vector<2x8x8xf32>, vector<2x8x8xf32> -> vector<2x8x32xf32>
    %373 = vector.shape_cast %372 : vector<2x8x32xf32> to vector<16x32xf32>
    %c1_124 = arith.constant 1 : index
    %c32_125 = arith.constant 32 : index
    %c0_126 = arith.constant 0 : index
    %374 = vector.load %arg3[%c1_124, %c32_125, %c0_126] : memref<2x232x128xf32, #tpu.memory_space<vmem>>, vector<1x32x32xf32>
    %375 = vector.shape_cast %374 : vector<1x32x32xf32> to vector<32x32xf32>
    %cst_127 = arith.constant dense<0.000000e+00> : vector<16x32xf32>
    %376 = tpu.matmul %373, %375, %cst_127 {dimension_numbers = #tpu.dot_dimension_numbers<[1], [0], [0], [1], [0, 0, 1, 1], [], []>} : vector<16x32xf32>, vector<32x32xf32>, vector<16x32xf32> -> vector<16x32xf32>
    %c1_128 = arith.constant 1 : index
    %c227_129 = arith.constant 227 : index
    %c0_130 = arith.constant 0 : index
    %377 = vector.load %arg3[%c1_128, %c227_129, %c0_130] : memref<2x232x128xf32, #tpu.memory_space<vmem>>, vector<1x1x32xf32>
    %378 = vector.shape_cast %377 : vector<1x1x32xf32> to vector<1x32xf32>
    %379 = vector.broadcast %378 : vector<1x32xf32> to vector<16x32xf32>
    %380 = arith.addf %376, %379 : vector<16x32xf32>
    %381 = arith.addf %301, %380 : vector<16x32xf32>
    %c1_131 = arith.constant 1 : index
    %c228_132 = arith.constant 228 : index
    %c0_133 = arith.constant 0 : index
    %382 = vector.load %arg3[%c1_131, %c228_132, %c0_133] : memref<2x232x128xf32, #tpu.memory_space<vmem>>, vector<1x1x32xf32>
    %383 = vector.shape_cast %382 : vector<1x1x32xf32> to vector<1x32xf32>
    %c1_134 = arith.constant 1 : index
    %c229_135 = arith.constant 229 : index
    %c0_136 = arith.constant 0 : index
    %384 = vector.load %arg3[%c1_134, %c229_135, %c0_136] : memref<2x232x128xf32, #tpu.memory_space<vmem>>, vector<1x1x32xf32>
    %385 = vector.shape_cast %384 : vector<1x1x32xf32> to vector<1x32xf32>
    %cst_137 = arith.constant dense<0.000000e+00> : vector<16xf32>
    %386 = vector.multi_reduction <add>, %381, %cst_137 [1] : vector<16x32xf32> to vector<16xf32>
    %387 = vector.shape_cast %386 : vector<16xf32> to vector<16x1xf32>
    %cst_138 = arith.constant 3.200000e+01 : f32
    %388 = vector.broadcast %cst_138 : f32 to vector<16x1xf32>
    %389 = arith.divf %387, %388 : vector<16x1xf32>
    %390 = arith.mulf %381, %381 : vector<16x32xf32>
    %cst_139 = arith.constant dense<0.000000e+00> : vector<16xf32>
    %391 = vector.multi_reduction <add>, %390, %cst_139 [1] : vector<16x32xf32> to vector<16xf32>
    %392 = vector.shape_cast %391 : vector<16xf32> to vector<16x1xf32>
    %cst_140 = arith.constant 3.200000e+01 : f32
    %393 = vector.broadcast %cst_140 : f32 to vector<16x1xf32>
    %394 = arith.divf %392, %393 : vector<16x1xf32>
    %395 = arith.mulf %389, %389 : vector<16x1xf32>
    %396 = arith.subf %394, %395 : vector<16x1xf32>
    %397 = vector.broadcast %389 : vector<16x1xf32> to vector<16x32xf32>
    %398 = arith.subf %381, %397 : vector<16x32xf32>
    %cst_141 = arith.constant 9.99999974E-6 : f32
    %399 = vector.broadcast %cst_141 : f32 to vector<16x1xf32>
    %400 = arith.addf %396, %399 : vector<16x1xf32>
    %401 = math.rsqrt %400 : vector<16x1xf32>
    %402 = vector.broadcast %401 : vector<16x1xf32> to vector<16x32xf32>
    %403 = arith.mulf %398, %402 : vector<16x32xf32>
    %404 = vector.broadcast %383 : vector<1x32xf32> to vector<16x32xf32>
    %405 = arith.mulf %403, %404 : vector<16x32xf32>
    %406 = vector.broadcast %385 : vector<1x32xf32> to vector<16x32xf32>
    %407 = arith.addf %405, %406 : vector<16x32xf32>
    %c1_142 = arith.constant 1 : index
    %c64_143 = arith.constant 64 : index
    %c0_144 = arith.constant 0 : index
    %408 = vector.load %arg3[%c1_142, %c64_143, %c0_144] : memref<2x232x128xf32, #tpu.memory_space<vmem>>, vector<1x32x128xf32>
    %409 = vector.shape_cast %408 : vector<1x32x128xf32> to vector<32x128xf32>
    %cst_145 = arith.constant dense<0.000000e+00> : vector<16x128xf32>
    %410 = tpu.matmul %407, %409, %cst_145 {dimension_numbers = #tpu.dot_dimension_numbers<[1], [0], [0], [1], [0, 0, 1, 1], [], []>} : vector<16x32xf32>, vector<32x128xf32>, vector<16x128xf32> -> vector<16x128xf32>
    %c1_146 = arith.constant 1 : index
    %c230_147 = arith.constant 230 : index
    %c0_148 = arith.constant 0 : index
    %411 = vector.load %arg3[%c1_146, %c230_147, %c0_148] : memref<2x232x128xf32, #tpu.memory_space<vmem>>, vector<1x1x128xf32>
    %412 = vector.shape_cast %411 : vector<1x1x128xf32> to vector<1x128xf32>
    %413 = vector.broadcast %412 : vector<1x128xf32> to vector<16x128xf32>
    %414 = arith.addf %410, %413 : vector<16x128xf32>
    %415 = arith.mulf %414, %414 : vector<16x128xf32>
    %416 = arith.mulf %414, %415 : vector<16x128xf32>
    %cst_149 = arith.constant 4.471500e-02 : f32
    %417 = vector.broadcast %cst_149 : f32 to vector<16x128xf32>
    %418 = arith.mulf %417, %416 : vector<16x128xf32>
    %419 = arith.addf %414, %418 : vector<16x128xf32>
    %cst_150 = arith.constant 0.797884583 : f32
    %420 = vector.broadcast %cst_150 : f32 to vector<16x128xf32>
    %421 = arith.mulf %420, %419 : vector<16x128xf32>
    %422 = math.tanh %421 : vector<16x128xf32>
    %cst_151 = arith.constant 1.000000e+00 : f32
    %423 = vector.broadcast %cst_151 : f32 to vector<16x128xf32>
    %424 = arith.addf %423, %422 : vector<16x128xf32>
    %cst_152 = arith.constant 5.000000e-01 : f32
    %425 = vector.broadcast %cst_152 : f32 to vector<16x128xf32>
    %426 = arith.mulf %425, %424 : vector<16x128xf32>
    %427 = arith.mulf %414, %426 : vector<16x128xf32>
    %c1_153 = arith.constant 1 : index
    %c96_154 = arith.constant 96 : index
    %c0_155 = arith.constant 0 : index
    %428 = vector.load %arg3[%c1_153, %c96_154, %c0_155] : memref<2x232x128xf32, #tpu.memory_space<vmem>>, vector<1x128x32xf32>
    %429 = vector.shape_cast %428 : vector<1x128x32xf32> to vector<128x32xf32>
    %cst_156 = arith.constant dense<0.000000e+00> : vector<16x32xf32>
    %430 = tpu.matmul %427, %429, %cst_156 {dimension_numbers = #tpu.dot_dimension_numbers<[1], [0], [0], [1], [0, 0, 1, 1], [], []>} : vector<16x128xf32>, vector<128x32xf32>, vector<16x32xf32> -> vector<16x32xf32>
    %c1_157 = arith.constant 1 : index
    %c231_158 = arith.constant 231 : index
    %c0_159 = arith.constant 0 : index
    %431 = vector.load %arg3[%c1_157, %c231_158, %c0_159] : memref<2x232x128xf32, #tpu.memory_space<vmem>>, vector<1x1x32xf32>
    %432 = vector.shape_cast %431 : vector<1x1x32xf32> to vector<1x32xf32>
    %433 = vector.broadcast %432 : vector<1x32xf32> to vector<16x32xf32>
    %434 = arith.addf %430, %433 : vector<16x32xf32>
    %435 = arith.addf %381, %434 : vector<16x32xf32>
    %c0_160 = arith.constant 0 : index
    %c0_161 = arith.constant 0 : index
    %436 = vector.load %arg4[%c0_160, %c0_161] : memref<16x32xf32, #tpu.memory_space<vmem>>, vector<16x32xf32>
    tpu.vector_store %arg4[%c0_160, %c0_161], %435 {strides = array<i32>} : memref<16x32xf32, #tpu.memory_space<vmem>>, vector<16x32xf32>,
    return
  }
  func.func @transform_0(%arg0: i32) -> (i32, i32) {
    %c0_i32 = arith.constant 0 : i32
    %c0_i32_0 = arith.constant 0 : i32
    return %arg0, %c0_i32 : i32, i32
  }
  func.func @transform_1(%arg0: i32) -> (i32, i32) {
    %c0_i32 = arith.constant 0 : i32
    %c0_i32_0 = arith.constant 0 : i32
    %c0_i32_1 = arith.constant 0 : i32
    return %c0_i32, %c0_i32_0 : i32, i32
  }
  func.func @transform_2(%arg0: i32) -> (i32, i32, i32) {
    %c0_i32 = arith.constant 0 : i32
    %c0_i32_0 = arith.constant 0 : i32
    %c0_i32_1 = arith.constant 0 : i32
    %c0_i32_2 = arith.constant 0 : i32
    return %c0_i32, %c0_i32_0, %c0_i32_1 : i32, i32, i32
  }
  func.func @transform_3(%arg0: i32) -> (i32, i32) {
    %c0_i32 = arith.constant 0 : i32
    %c0_i32_0 = arith.constant 0 : i32
    return %arg0, %c0_i32 : i32, i32
  }
}

</mosaic_0001>

<llo_original>
// kernel: tpu_custom_call.1
$region0: #{tpu_custom_call.1}
  #allocation0 [shape = 'u32[]', space=smem, size = 0x4, offset = 0x4, fixed_abs, tag = 'smem constant byte address 0x4 - core index']
  #allocation1 [shape = 'u32[144,128]{1,0:T(1,128)}', space=vmem, size = 0x12000, scoped, tag = 'internal scratch']
  %s0 = inlined_call_operand.vmem [shape: f32[32,7], index: 0, kind: input, shape index: {}]
  %s1 = inlined_call_operand.hbm [shape: f32[344,128], index: 1, kind: input, shape index: {}]
  %s2 = inlined_call_operand.hbm [shape: f32[2,232,128], index: 2, kind: input, shape index: {}]
  %s3 = inlined_call_operand.hbm [shape: f32[16,32], index: 3, kind: output, shape index: {}]
  %s4 = sld [smem:[#allocation0]]
  $region30: #{tpu_custom_call.1} parent=0
    _
  %s6 = ssub.s32 1, %s4
  %s7 = scalar_select 0, %s6, %s4
  $region1: #{tpu_custom_call.1} parent=0
    #allocation2 [shape = 'u8[176128]{0}', space=vmem, size = 0x2b000, scoped, tag = 'input window, operand 1, single buffered']
    #allocation3 [shape = 's32[1]{0}', space=sflag, size = 0x4, scoped, tag = 'scoped memory for tpu_custom_call.1']
    #allocation4 [shape = 's32[1]{0}', space=sflag, size = 0x4, scoped, tag = 'scoped memory for tpu_custom_call.1']
    #allocation5 [shape = 'u8[237568]{0}', space=vmem, size = 0x3a000, scoped, tag = 'input window, operand 2, single buffered']
    #allocation6 [shape = 's32[1]{0}', space=sflag, size = 0x4, scoped, tag = 'scoped memory for tpu_custom_call.1']
    #allocation7 [shape = 'u8[8192]{0}', space=vmem, size = 0x2000, scoped, tag = 'output window, operand 0, single buffered']
    %8 = vsyncpa [#allocation3], 0
    %9 = vsyncpa [#allocation6], 0
    %10 = vsyncpa [#allocation4], 0
    // Predicated region
    $region2: #{tpu_custom_call.1} parent=1 // pred_check
      _
    $region3: #{tpu_custom_call.1} parent=1 // pred_check_branch
      %12 = sbr.rel (0) target = $region5
    $region4: #{tpu_custom_call.1} parent=1 // pred_region
      _
    $region5: #{tpu_custom_call.1} parent=1 // pred_fallthru
      _
    // Predicated region
    $region6: #{tpu_custom_call.1} parent=1 // pred_check
      _
    $region7: #{tpu_custom_call.1} parent=1 // pred_check_branch
      %14 = sbr.rel (0) target = $region9
    $region8: #{tpu_custom_call.1} parent=1 // pred_region
      %s16 = ssub.s32 5504, 5504
      %17 = vsyncadd [#allocation3], %s16
      %s18 = sshll.u32 [#allocation2], 4
      %s19 = int_to_ptr.vmem [resolvable:$true] %s18
      %24 = dma.hbm_to_vmem [thread:$0]  %s1, 5504, %s19, [#allocation3], 128, 128, 8
    $region9: #{tpu_custom_call.1} parent=1 // pred_fallthru
      _
    // Predicated region
    $region10: #{tpu_custom_call.1} parent=1 // pred_check
      _
    $region11: #{tpu_custom_call.1} parent=1 // pred_check_branch
      %26 = sbr.rel (0) target = $region13
    $region12: #{tpu_custom_call.1} parent=1 // pred_region
      %s28 = ssub.s32 7424, 7424
      %29 = vsyncadd [#allocation6], %s28
      %s30 = sshll.u32 [#allocation5], 4
      %s31 = int_to_ptr.vmem [resolvable:$true] %s30
      %36 = dma.hbm_to_vmem [thread:$0]  %s2, 7424, %s31, [#allocation6], 128, 128, 8
    $region13: #{tpu_custom_call.1} parent=1 // pred_fallthru
      _
    // Predicated region
    $region14: #{tpu_custom_call.1} parent=1 // pred_check
      _
    $region15: #{tpu_custom_call.1} parent=1 // pred_check_branch
      %38 = sbr.rel (0) target = $region17
    $region16: #{tpu_custom_call.1} parent=1 // pred_region
      %39 = dma.done [#allocation3], 5504
    $region17: #{tpu_custom_call.1} parent=1 // pred_fallthru
      _
    // Predicated region
    $region18: #{tpu_custom_call.1} parent=1 // pred_check
      _
    $region19: #{tpu_custom_call.1} parent=1 // pred_check_branch
      %41 = sbr.rel (0) target = $region21
    $region20: #{tpu_custom_call.1} parent=1 // pred_region
      %42 = dma.done [#allocation6], 7424
    $region21: #{tpu_custom_call.1} parent=1 // pred_fallthru
      _
    %v43 = vld [vmem:[%s0] sm:$0xff]
    %v44 = vld [vmem:[%s0 + $0x8] sm:$0xff]
    %v45 = vld [vmem:[%s0 + $0x10] sm:$0xff]
    %v46 = vld [vmem:[%s0 + $0x18] sm:$0xff]
    %v47 = vld [vmem:[#allocation2] sm:$0x7f]
    %vm48 = vcmask 56320
    %v50 = vsel %vm48, %v43, 0
    %v53 = vsel %vm48, %v44, 0
    %v56 = vsel %vm48, %v45, 0
    %v59 = vsel %vm48, %v46, 0
    %vm61 = vcmask 1046528
    %v63 = vsel %vm61, %v47, 0
    %65 = vmatprep.subr.mxu0 0.0
    %66 = vmatpush1.msra.mxu0 0.0
    %67 = vmatprep.subr.mxu0 0.0
    %68 = vmatpush1.msra.mxu0 0.0
    %69 = vmatprep.subr.mxu0 0.0
    %70 = vmatpush1.msra.mxu0 0.0
    %71 = vmatprep.subr.mxu0 0.0
    %72 = vmatpush1.msra.mxu0 0.0
    %73 = vmatprep.subr.mxu0 0.0
    %74 = vmatpush1.msra.mxu0 0.0
    %75 = vmatprep.subr.mxu0 0.0
    %76 = vmatpush1.msra.mxu0 0.0
    %77 = vmatprep.subr.mxu0 0.0
    %78 = vmatpush1.msra.mxu0 0.0
    %79 = vmatprep.subr.mxu0 0.0
    %80 = vmatpush1.msra.mxu0 0.0
    %81 = vmatprep.subr.mxu0 0.0
    %82 = vmatpush1.msra.mxu0 0.0
    %83 = vmatprep.subr.mxu0 0.0
    %84 = vmatpush1.msra.mxu0 0.0
    %85 = vmatprep.subr.mxu0 0.0
    %86 = vmatpush1.msra.mxu0 0.0
    %87 = vmatprep.subr.mxu0 0.0
    %88 = vmatpush1.msra.mxu0 0.0
    %89 = vmatprep.subr.mxu0 0.0
    %90 = vmatpush1.msra.mxu0 0.0
    %91 = vmatprep.subr.mxu0 0.0
    %92 = vmatpush1.msra.mxu0 0.0
    %93 = vmatprep.subr.mxu0 0.0
    %94 = vmatpush1.msra.mxu0 0.0
    %95 = vmatprep.subr.mxu0 0.0
    %96 = vmatpush1.msra.mxu0 %v63
    %97 = vmatprep.subr.mxu0 0.0
    %98 = vmatpush2.msra.mxu0 0.0
    %99 = vmatprep.subr.mxu0 0.0
    %100 = vmatpush2.msra.mxu0 0.0
    %101 = vmatprep.subr.mxu0 0.0
    %102 = vmatpush2.msra.mxu0 0.0
    %103 = vmatprep.subr.mxu0 0.0
    %104 = vmatpush2.msra.mxu0 0.0
    %105 = vmatprep.subr.mxu0 0.0
    %106 = vmatpush2.msra.mxu0 0.0
    %107 = vmatprep.subr.mxu0 0.0
    %108 = vmatpush2.msra.mxu0 0.0
    %109 = vmatprep.subr.mxu0 0.0
    %110 = vmatpush2.msra.mxu0 0.0
    %111 = vmatprep.subr.mxu0 0.0
    %112 = vmatpush2.msra.mxu0 0.0
    %113 = vmatprep.subr.mxu0 0.0
    %114 = vmatpush2.msra.mxu0 0.0
    %115 = vmatprep.subr.mxu0 0.0
    %116 = vmatpush2.msra.mxu0 0.0
    %117 = vmatprep.subr.mxu0 0.0
    %118 = vmatpush2.msra.mxu0 0.0
    %119 = vmatprep.subr.mxu0 0.0
    %120 = vmatpush2.msra.mxu0 0.0
    %121 = vmatprep.subr.mxu0 0.0
    %122 = vmatpush2.msra.mxu0 0.0
    %123 = vmatprep.subr.mxu0 0.0
    %124 = vmatpush2.msra.mxu0 0.0
    %125 = vmatprep.subr.mxu0 0.0
    %126 = vmatpush2.msra.mxu0 0.0
    %127 = vmatprep.subr.mxu0 0.0
    %128 = vmatpush2.msra.mxu0 0.0
    %129 = vmatprep.mubr.f32.mxu0 0.0
    %130 = vmatmul.mubr.f32.gmra.mxu0 %v50
    %v131 = vpop.f32.mrf.mxu0
    %v132 = vadd.f32 0.0, %v131
    %v133 = vpop.f32.mrf.mxu0
    %134 = vmatprep.mubr.f32.mxu0 0.0
    %135 = vmatmul.mubr.f32.gmra.mxu0 %v53
    %v136 = vpop.f32.mrf.mxu0
    %v137 = vadd.f32 0.0, %v136
    %v138 = vpop.f32.mrf.mxu0
    %139 = vmatprep.mubr.f32.mxu0 0.0
    %140 = vmatmul.mubr.f32.gmra.mxu0 %v56
    %v141 = vpop.f32.mrf.mxu0
    %v142 = vadd.f32 0.0, %v141
    %v143 = vpop.f32.mrf.mxu0
    %144 = vmatprep.mubr.f32.mxu0 0.0
    %145 = vmatmul.mubr.f32.gmra.mxu0 %v59
    %v146 = vpop.f32.mrf.mxu0
    %v147 = vadd.f32 0.0, %v146
    %v148 = vpop.f32.mrf.mxu0
    %149 = vdwg.mxu0
    %v150 = vld [vmem:[#allocation2 + $0x8] sm:$0x7f]
    %v151 = vand.u32 2147483647, %v132
    %vm152 = vcmp.le.f32.partialorder %v151, 0.7853982
    %vm153 = vcmp.lt.s32.totalorder %v132, 0
    %v154 = vand.u32 %v132, 2139095040
    %v155 = vshrl.u32 %v154, 23
    %v156 = vsub.s32 %v155, 127
    %v157 = vand.u32 2147483647, %v132
    %v158 = vand.u32 %v157, 8388607
    %v159 = vor.u32 %v158, 8388608
    %v160 = vsub.s32 0, %v159
    %v161 = vadd.s32 %v156, 1
    %vm162 = vcmp.gt.s32.totalorder %v161, 0
    %v163 = vsel %vm162, %v161, 0
    %v164 = vshrl.u32 %v163, 5
    %v165 = vand.u32 %v163, 31
    %v166 = vsub.s32 32, %v165
    %v167 = vshrl.u32 683565275, %v166
    %v168 = vshll.u32 683565275, %v165
    %v169 = vshrl.u32 2475754826, %v166
    %v170 = vor.u32 %v168, %v169
    %v171 = vshll.u32 2475754826, %v165
    %v172 = vshrl.u32 2131351028, %v166
    %v173 = vor.u32 %v171, %v172
    %v174 = vshll.u32 2131351028, %v165
    %v175 = vshrl.u32 2102212464, %v166
    %v176 = vor.u32 %v174, %v175
    %v177 = vshll.u32 2102212464, %v165
    %v178 = vshrl.u32 920167782, %v166
    %v179 = vor.u32 %v177, %v178
    %v180 = vshll.u32 920167782, %v165
    %v181 = vshrl.u32 1326507024, %v166
    %v182 = vor.u32 %v180, %v181
    %vm183 = vcmp.lt.s32.totalorder %v164, 1
    %vm184 = vcmp.lt.s32.totalorder %v164, 2
    %vm185 = vcmp.lt.s32.totalorder %v164, 3
    %vm186 = vcmp.lt.s32.totalorder %v164, 4
    %v187 = vsel %vm183, %v167, %v170
    %v188 = vsel %vm186, %v176, 2102212464
    %v189 = vsel %vm185, %v173, %v188
    %v190 = vsel %vm184, %v187, %v189
    %v191 = vsel %vm183, %v170, %v173
    %v192 = vsel %vm186, %v179, 920167782
    %v193 = vsel %vm185, %v176, %v192
    %v194 = vsel %vm184, %v191, %v193
    %v195 = vsel %vm183, %v173, %v176
    %v196 = vsel %vm186, %v182, 1326507024
    %v197 = vsel %vm185, %v179, %v196
    %v198 = vsel %vm184, %v195, %v197
    %v199 = vshll.u32 %v159, 8
    %v200 = vmul.u32.u64.compose %v199, %v198
    %v201 = vextract.low.u32 %v200
    %v202 = vextract.high.u32 %v200
    %v203 = vmul.u32.u64.compose %v199, %v194
    %v204 = vextract.low.u32 %v203
    %v205 = vextract.high.u32 %v203
    %v206 = vmul.u32 %v199, %v190
    %v207 = vadd.s32 %v202, %v204
    %vm208 = vc.u32 %v202, %v204
    %v209 = vadd.s32 %v205, 1
    %v210 = vsel %vm208, %v209, %v205
    %v211 = vadd.s32 %v206, %v210
    %v212 = vadd.s32 %v211, 536870912
    %v213 = vshrl.u32 %v212, 30
    %v214 = vshll.u32 %v213, 30
    %v215 = vsub.s32 %v211, %v214
    %vm216 = vcmp.lt.s32.totalorder %v215, 0
    %v217 = vsub.s32 0, %v215
    %v218 = vsel %vm216, %v217, %v215
    %v219 = vclz %v218
    %v220 = vsub.s32 %v219, 2
    %vm221 = vcmp.gt.s32.totalorder 0, %v220
    %v222 = vsel %vm221, 0, %v220
    %v223 = vsub.s32 32, %v222
    %v224 = vshll.u32 %v215, %v222
    %v225 = vshrl.u32 %v207, %v223
    %v226 = vor.u32 %v224, %v225
    %v227 = vsub.s32 4294967266, %v222
    %v228 = vadd.s32 %v227, 127
    %v229 = vshll.u32 %v228, 23
    %v230 = vor.u32 4788187, %v229
    %v231 = vand.u32 2147483647, %v230
    %v233 = vcvt.s32.f32 %v226
    %v234 = vmul.f32 %v233, %v231
    %v235 = vxor.u32 %v234, 2147483648
    %v236 = vsel %vm153, %v235, %v234
    %v237 = vsub.s32 4, %v213
    %v238 = vsel %vm153, %v237, %v213
    %v239 = vsel %vm152, %v132, %v236
    %v240 = vsel %vm152, 0, %v238
    %v241 = vcosq.f32.pop %v239
    %v242 = vsinq.f32.pop %v239
    %vm243 = vweird.f32 %v132
    %v244 = vadd.s32 %v240, 3
    %v245 = vand.u32 %v244, 3
    %vm246 = vcmp.lt.s32.totalorder %v245, 2
    %vm247 = vcmp.eq.s32.totalorder %v245, 0
    %v248 = vxor.u32 %v242, 2147483648
    %v249 = vsel %vm247, %v241, %v248
    %vm250 = vcmp.eq.s32.totalorder %v245, 2
    %v251 = vxor.u32 %v241, 2147483648
    %v252 = vsel %vm250, %v251, %v242
    %v253 = vsel %vm246, %v249, %v252
    %v254 = vsel %vm243, nan, %v253
    %v255 = vand.u32 2147483647, %v137
    %vm256 = vcmp.le.f32.partialorder %v255, 0.7853982
    %vm257 = vcmp.lt.s32.totalorder %v137, 0
    %v258 = vand.u32 %v137, 2139095040
    %v259 = vshrl.u32 %v258, 23
    %v260 = vsub.s32 %v259, 127
    %v261 = vand.u32 2147483647, %v137
    %v262 = vand.u32 %v261, 8388607
    %v263 = vor.u32 %v262, 8388608
    %v264 = vsub.s32 0, %v263
    %v265 = vadd.s32 %v260, 1
    %vm266 = vcmp.gt.s32.totalorder %v265, 0
    %v267 = vsel %vm266, %v265, 0
    %v268 = vshrl.u32 %v267, 5
    %v269 = vand.u32 %v267, 31
    %v270 = vsub.s32 32, %v269
    %v271 = vshrl.u32 683565275, %v270
    %v272 = vshll.u32 683565275, %v269
    %v273 = vshrl.u32 2475754826, %v270
    %v274 = vor.u32 %v272, %v273
    %v275 = vshll.u32 2475754826, %v269
    %v276 = vshrl.u32 2131351028, %v270
    %v277 = vor.u32 %v275, %v276
    %v278 = vshll.u32 2131351028, %v269
    %v279 = vshrl.u32 2102212464, %v270
    %v280 = vor.u32 %v278, %v279
    %v281 = vshll.u32 2102212464, %v269
    %v282 = vshrl.u32 920167782, %v270
    %v283 = vor.u32 %v281, %v282
    %v284 = vshll.u32 920167782, %v269
    %v285 = vshrl.u32 1326507024, %v270
    %v286 = vor.u32 %v284, %v285
    %vm287 = vcmp.lt.s32.totalorder %v268, 1
    %vm288 = vcmp.lt.s32.totalorder %v268, 2
    %vm289 = vcmp.lt.s32.totalorder %v268, 3
    %vm290 = vcmp.lt.s32.totalorder %v268, 4
    %v291 = vsel %vm287, %v271, %v274
    %v292 = vsel %vm290, %v280, 2102212464
    %v293 = vsel %vm289, %v277, %v292
    %v294 = vsel %vm288, %v291, %v293
    %v295 = vsel %vm287, %v274, %v277
    %v296 = vsel %vm290, %v283, 920167782
    %v297 = vsel %vm289, %v280, %v296
    %v298 = vsel %vm288, %v295, %v297
    %v299 = vsel %vm287, %v277, %v280
    %v300 = vsel %vm290, %v286, 1326507024
    %v301 = vsel %vm289, %v283, %v300
    %v302 = vsel %vm288, %v299, %v301
    %v303 = vshll.u32 %v263, 8
    %v304 = vmul.u32.u64.compose %v303, %v302
    %v305 = vextract.low.u32 %v304
    %v306 = vextract.high.u32 %v304
    %v307 = vmul.u32.u64.compose %v303, %v298
    %v308 = vextract.low.u32 %v307
    %v309 = vextract.high.u32 %v307
    %v310 = vmul.u32 %v303, %v294
    %v311 = vadd.s32 %v306, %v308
    %vm312 = vc.u32 %v306, %v308
    %v313 = vadd.s32 %v309, 1
    %v314 = vsel %vm312, %v313, %v309
    %v315 = vadd.s32 %v310, %v314
    %v316 = vadd.s32 %v315, 536870912
    %v317 = vshrl.u32 %v316, 30
    %v318 = vshll.u32 %v317, 30
    %v319 = vsub.s32 %v315, %v318
    %vm320 = vcmp.lt.s32.totalorder %v319, 0
    %v321 = vsub.s32 0, %v319
    %v322 = vsel %vm320, %v321, %v319
    %v323 = vclz %v322
    %v324 = vsub.s32 %v323, 2
    %vm325 = vcmp.gt.s32.totalorder 0, %v324
    %v326 = vsel %vm325, 0, %v324
    %v327 = vsub.s32 32, %v326
    %v328 = vshll.u32 %v319, %v326
    %v329 = vshrl.u32 %v311, %v327
    %v330 = vor.u32 %v328, %v329
    %v331 = vsub.s32 4294967266, %v326
    %v332 = vadd.s32 %v331, 127
    %v333 = vshll.u32 %v332, 23
    %v334 = vor.u32 4788187, %v333
    %v335 = vand.u32 2147483647, %v334
    %v337 = vcvt.s32.f32 %v330
    %v338 = vmul.f32 %v337, %v335
    %v339 = vxor.u32 %v338, 2147483648
    %v340 = vsel %vm257, %v339, %v338
    %v341 = vsub.s32 4, %v317
    %v342 = vsel %vm257, %v341, %v317
    %v343 = vsel %vm256, %v137, %v340
    %v344 = vsel %vm256, 0, %v342
    %v345 = vcosq.f32.pop %v343
    %v346 = vsinq.f32.pop %v343
    %vm347 = vweird.f32 %v137
    %v348 = vadd.s32 %v344, 3
    %v349 = vand.u32 %v348, 3
    %vm350 = vcmp.lt.s32.totalorder %v349, 2
    %vm351 = vcmp.eq.s32.totalorder %v349, 0
    %v352 = vxor.u32 %v346, 2147483648
    %v353 = vsel %vm351, %v345, %v352
    %vm354 = vcmp.eq.s32.totalorder %v349, 2
    %v355 = vxor.u32 %v345, 2147483648
    %v356 = vsel %vm354, %v355, %v346
    %v357 = vsel %vm350, %v353, %v356
    %v358 = vsel %vm347, nan, %v357
    %v359 = vand.u32 2147483647, %v142
    %vm360 = vcmp.le.f32.partialorder %v359, 0.7853982
    %vm361 = vcmp.lt.s32.totalorder %v142, 0
    %v362 = vand.u32 %v142, 2139095040
    %v363 = vshrl.u32 %v362, 23
    %v364 = vsub.s32 %v363, 127
    %v365 = vand.u32 2147483647, %v142
    %v366 = vand.u32 %v365, 8388607
    %v367 = vor.u32 %v366, 8388608
    %v368 = vsub.s32 0, %v367
    %v369 = vadd.s32 %v364, 1
    %vm370 = vcmp.gt.s32.totalorder %v369, 0
    %v371 = vsel %vm370, %v369, 0
    %v372 = vshrl.u32 %v371, 5
    %v373 = vand.u32 %v371, 31
    %v374 = vsub.s32 32, %v373
    %v375 = vshrl.u32 683565275, %v374
    %v376 = vshll.u32 683565275, %v373
    %v377 = vshrl.u32 2475754826, %v374
    %v378 = vor.u32 %v376, %v377
    %v379 = vshll.u32 2475754826, %v373
    %v380 = vshrl.u32 2131351028, %v374
    %v381 = vor.u32 %v379, %v380
    %v382 = vshll.u32 2131351028, %v373
    %v383 = vshrl.u32 2102212464, %v374
    %v384 = vor.u32 %v382, %v383
    %v385 = vshll.u32 2102212464, %v373
    %v386 = vshrl.u32 920167782, %v374
    %v387 = vor.u32 %v385, %v386
    %v388 = vshll.u32 920167782, %v373
    %v389 = vshrl.u32 1326507024, %v374
    %v390 = vor.u32 %v388, %v389
    %vm391 = vcmp.lt.s32.totalorder %v372, 1
    %vm392 = vcmp.lt.s32.totalorder %v372, 2
    %vm393 = vcmp.lt.s32.totalorder %v372, 3
    %vm394 = vcmp.lt.s32.totalorder %v372, 4
    %v395 = vsel %vm391, %v375, %v378
    %v396 = vsel %vm394, %v384, 2102212464
    %v397 = vsel %vm393, %v381, %v396
    %v398 = vsel %vm392, %v395, %v397
    %v399 = vsel %vm391, %v378, %v381
    %v400 = vsel %vm394, %v387, 920167782
    %v401 = vsel %vm393, %v384, %v400
    %v402 = vsel %vm392, %v399, %v401
    %v403 = vsel %vm391, %v381, %v384
    %v404 = vsel %vm394, %v390, 1326507024
    %v405 = vsel %vm393, %v387, %v404
    %v406 = vsel %vm392, %v403, %v405
    %v407 = vshll.u32 %v367, 8
    %v408 = vmul.u32.u64.compose %v407, %v406
    %v409 = vextract.low.u32 %v408
    %v410 = vextract.high.u32 %v408
    %v411 = vmul.u32.u64.compose %v407, %v402
    %v412 = vextract.low.u32 %v411
    %v413 = vextract.high.u32 %v411
    %v414 = vmul.u32 %v407, %v398
    %v415 = vadd.s32 %v410, %v412
    %vm416 = vc.u32 %v410, %v412
    %v417 = vadd.s32 %v413, 1
    %v418 = vsel %vm416, %v417, %v413
    %v419 = vadd.s32 %v414, %v418
    %v420 = vadd.s32 %v419, 536870912
    %v421 = vshrl.u32 %v420, 30
    %v422 = vshll.u32 %v421, 30
    %v423 = vsub.s32 %v419, %v422
    %vm424 = vcmp.lt.s32.totalorder %v423, 0
    %v425 = vsub.s32 0, %v423
    %v426 = vsel %vm424, %v425, %v423
    %v427 = vclz %v426
    %v428 = vsub.s32 %v427, 2
    %vm429 = vcmp.gt.s32.totalorder 0, %v428
    %v430 = vsel %vm429, 0, %v428
    %v431 = vsub.s32 32, %v430
    %v432 = vshll.u32 %v423, %v430
    %v433 = vshrl.u32 %v415, %v431
    %v434 = vor.u32 %v432, %v433
    %v435 = vsub.s32 4294967266, %v430
    %v436 = vadd.s32 %v435, 127
    %v437 = vshll.u32 %v436, 23
    %v438 = vor.u32 4788187, %v437
    %v439 = vand.u32 2147483647, %v438
    %v441 = vcvt.s32.f32 %v434
    %v442 = vmul.f32 %v441, %v439
    %v443 = vxor.u32 %v442, 2147483648
    %v444 = vsel %vm361, %v443, %v442
    %v445 = vsub.s32 4, %v421
    %v446 = vsel %vm361, %v445, %v421
    %v447 = vsel %vm360, %v142, %v444
    %v448 = vsel %vm360, 0, %v446
    %v449 = vcosq.f32.pop %v447
    %v450 = vsinq.f32.pop %v447
    %vm451 = vweird.f32 %v142
    %v452 = vadd.s32 %v448, 3
    %v453 = vand.u32 %v452, 3
    %vm454 = vcmp.lt.s32.totalorder %v453, 2
    %vm455 = vcmp.eq.s32.totalorder %v453, 0
    %v456 = vxor.u32 %v450, 2147483648
    %v457 = vsel %vm455, %v449, %v456
    %vm458 = vcmp.eq.s32.totalorder %v453, 2
    %v459 = vxor.u32 %v449, 2147483648
    %v460 = vsel %vm458, %v459, %v450
    %v461 = vsel %vm454, %v457, %v460
    %v462 = vsel %vm451, nan, %v461
    %v463 = vand.u32 2147483647, %v147
    %vm464 = vcmp.le.f32.partialorder %v463, 0.7853982
    %vm465 = vcmp.lt.s32.totalorder %v147, 0
    %v466 = vand.u32 %v147, 2139095040
    %v467 = vshrl.u32 %v466, 23
    %v468 = vsub.s32 %v467, 127
    %v469 = vand.u32 2147483647, %v147
    %v470 = vand.u32 %v469, 8388607
    %v471 = vor.u32 %v470, 8388608
    %v472 = vsub.s32 0, %v471
    %v473 = vadd.s32 %v468, 1
    %vm474 = vcmp.gt.s32.totalorder %v473, 0
    %v475 = vsel %vm474, %v473, 0
    %v476 = vshrl.u32 %v475, 5
    %v477 = vand.u32 %v475, 31
    %v478 = vsub.s32 32, %v477
    %v479 = vshrl.u32 683565275, %v478
    %v480 = vshll.u32 683565275, %v477
    %v481 = vshrl.u32 2475754826, %v478
    %v482 = vor.u32 %v480, %v481
    %v483 = vshll.u32 2475754826, %v477
    %v484 = vshrl.u32 2131351028, %v478
    %v485 = vor.u32 %v483, %v484
    %v486 = vshll.u32 2131351028, %v477
    %v487 = vshrl.u32 2102212464, %v478
    %v488 = vor.u32 %v486, %v487
    %v489 = vshll.u32 2102212464, %v477
    %v490 = vshrl.u32 920167782, %v478
    %v491 = vor.u32 %v489, %v490
    %v492 = vshll.u32 920167782, %v477
    %v493 = vshrl.u32 1326507024, %v478
    %v494 = vor.u32 %v492, %v493
    %vm495 = vcmp.lt.s32.totalorder %v476, 1
    %vm496 = vcmp.lt.s32.totalorder %v476, 2
    %vm497 = vcmp.lt.s32.totalorder %v476, 3
    %vm498 = vcmp.lt.s32.totalorder %v476, 4
    %v499 = vsel %vm495, %v479, %v482
    %v500 = vsel %vm498, %v488, 2102212464
    %v501 = vsel %vm497, %v485, %v500
    %v502 = vsel %vm496, %v499, %v501
    %v503 = vsel %vm495, %v482, %v485
    %v504 = vsel %vm498, %v491, 920167782
    %v505 = vsel %vm497, %v488, %v504
    %v506 = vsel %vm496, %v503, %v505
    %v507 = vsel %vm495, %v485, %v488
    %v508 = vsel %vm498, %v494, 1326507024
    %v509 = vsel %vm497, %v491, %v508
    %v510 = vsel %vm496, %v507, %v509
    %v511 = vshll.u32 %v471, 8
    %v512 = vmul.u32.u64.compose %v511, %v510
    %v513 = vextract.low.u32 %v512
    %v514 = vextract.high.u32 %v512
    %v515 = vmul.u32.u64.compose %v511, %v506
    %v516 = vextract.low.u32 %v515
    %v517 = vextract.high.u32 %v515
    %v518 = vmul.u32 %v511, %v502
    %v519 = vadd.s32 %v514, %v516
    %vm520 = vc.u32 %v514, %v516
    %v521 = vadd.s32 %v517, 1
    %v522 = vsel %vm520, %v521, %v517
    %v523 = vadd.s32 %v518, %v522
    %v524 = vadd.s32 %v523, 536870912
    %v525 = vshrl.u32 %v524, 30
    %v526 = vshll.u32 %v525, 30
    %v527 = vsub.s32 %v523, %v526
    %vm528 = vcmp.lt.s32.totalorder %v527, 0
    %v529 = vsub.s32 0, %v527
    %v530 = vsel %vm528, %v529, %v527
    %v531 = vclz %v530
    %v532 = vsub.s32 %v531, 2
    %vm533 = vcmp.gt.s32.totalorder 0, %v532
    %v534 = vsel %vm533, 0, %v532
    %v535 = vsub.s32 32, %v534
    %v536 = vshll.u32 %v527, %v534
    %v537 = vshrl.u32 %v519, %v535
    %v538 = vor.u32 %v536, %v537
    %v539 = vsub.s32 4294967266, %v534
    %v540 = vadd.s32 %v539, 127
    %v541 = vshll.u32 %v540, 23
    %v542 = vor.u32 4788187, %v541
    %v543 = vand.u32 2147483647, %v542
    %v545 = vcvt.s32.f32 %v538
    %v546 = vmul.f32 %v545, %v543
    %v547 = vxor.u32 %v546, 2147483648
    %v548 = vsel %vm465, %v547, %v546
    %v549 = vsub.s32 4, %v525
    %v550 = vsel %vm465, %v549, %v525
    %v551 = vsel %vm464, %v147, %v548
    %v552 = vsel %vm464, 0, %v550
    %v553 = vcosq.f32.pop %v551
    %v554 = vsinq.f32.pop %v551
    %vm555 = vweird.f32 %v147
    %v556 = vadd.s32 %v552, 3
    %v557 = vand.u32 %v556, 3
    %vm558 = vcmp.lt.s32.totalorder %v557, 2
    %vm559 = vcmp.eq.s32.totalorder %v557, 0
    %v560 = vxor.u32 %v554, 2147483648
    %v561 = vsel %vm559, %v553, %v560
    %vm562 = vcmp.eq.s32.totalorder %v557, 2
    %v563 = vxor.u32 %v553, 2147483648
    %v564 = vsel %vm562, %v563, %v554
    %v565 = vsel %vm558, %v561, %v564
    %v566 = vsel %vm555, nan, %v565
    %v567 = vld [vmem:[#allocation2 + $0x10] sm:$0xff]
    %v568 = vld [vmem:[#allocation2 + $0x18] sm:$0xff]
    %v569 = vld [vmem:[#allocation2 + $0x20] sm:$0xff]
    %vm570 = vcmask 195584
    %v572 = vsel %vm570, %v254, 0
    %v575 = vsel %vm570, %v358, 0
    %v578 = vsel %vm570, %v462, 0
    %v581 = vsel %vm570, %v566, 0
    %583 = vmatprep.subr.mxu0 0.0
    %584 = vmatpush1.msra.mxu0 0.0
    %585 = vmatprep.subr.mxu0 0.0
    %586 = vmatpush1.msra.mxu0 0.0
    %587 = vmatprep.subr.mxu0 0.0
    %588 = vmatpush1.msra.mxu0 0.0
    %589 = vmatprep.subr.mxu0 0.0
    %590 = vmatpush1.msra.mxu0 0.0
    %591 = vmatprep.subr.mxu0 0.0
    %592 = vmatpush1.msra.mxu0 0.0
    %593 = vmatprep.subr.mxu0 0.0
    %594 = vmatpush1.msra.mxu0 0.0
    %595 = vmatprep.subr.mxu0 0.0
    %596 = vmatpush1.msra.mxu0 0.0
    %597 = vmatprep.subr.mxu0 0.0
    %598 = vmatpush1.msra.mxu0 0.0
    %599 = vmatprep.subr.mxu0 0.0
    %600 = vmatpush1.msra.mxu0 0.0
    %601 = vmatprep.subr.mxu0 0.0
    %602 = vmatpush1.msra.mxu0 0.0
    %603 = vmatprep.subr.mxu0 0.0
    %604 = vmatpush1.msra.mxu0 0.0
    %605 = vmatprep.subr.mxu0 0.0
    %606 = vmatpush1.msra.mxu0 0.0
    %607 = vmatprep.subr.mxu0 0.0
    %608 = vmatpush1.msra.mxu0 0.0
    %609 = vmatprep.subr.mxu0 0.0
    %610 = vmatpush1.msra.mxu0 %v569
    %611 = vmatprep.subr.mxu0 0.0
    %612 = vmatpush1.msra.mxu0 %v568
    %613 = vmatprep.subr.mxu0 0.0
    %614 = vmatpush1.msra.mxu0 %v567
    %615 = vmatprep.subr.mxu0 0.0
    %616 = vmatpush2.msra.mxu0 0.0
    %617 = vmatprep.subr.mxu0 0.0
    %618 = vmatpush2.msra.mxu0 0.0
    %619 = vmatprep.subr.mxu0 0.0
    %620 = vmatpush2.msra.mxu0 0.0
    %621 = vmatprep.subr.mxu0 0.0
    %622 = vmatpush2.msra.mxu0 0.0
    %623 = vmatprep.subr.mxu0 0.0
    %624 = vmatpush2.msra.mxu0 0.0
    %625 = vmatprep.subr.mxu0 0.0
    %626 = vmatpush2.msra.mxu0 0.0
    %627 = vmatprep.subr.mxu0 0.0
    %628 = vmatpush2.msra.mxu0 0.0
    %629 = vmatprep.subr.mxu0 0.0
    %630 = vmatpush2.msra.mxu0 0.0
    %631 = vmatprep.subr.mxu0 0.0
    %632 = vmatpush2.msra.mxu0 0.0
    %633 = vmatprep.subr.mxu0 0.0
    %634 = vmatpush2.msra.mxu0 0.0
    %635 = vmatprep.subr.mxu0 0.0
    %636 = vmatpush2.msra.mxu0 0.0
    %637 = vmatprep.subr.mxu0 0.0
    %638 = vmatpush2.msra.mxu0 0.0
    %639 = vmatprep.subr.mxu0 0.0
    %640 = vmatpush2.msra.mxu0 0.0
    %641 = vmatprep.subr.mxu0 0.0
    %642 = vmatpush2.msra.mxu0 0.0
    %643 = vmatprep.subr.mxu0 0.0
    %644 = vmatpush2.msra.mxu0 0.0
    %645 = vmatprep.subr.mxu0 0.0
    %646 = vmatpush2.msra.mxu0 0.0
    %647 = vmatprep.mubr.f32.mxu0 0.0
    %648 = vmatmul.mubr.f32.gmra.mxu0 %v572
    %v649 = vpop.f32.mrf.mxu0
    %v650 = vadd.f32 0.0, %v649
    %v651 = vpop.f32.mrf.mxu0
    %652 = vmatprep.mubr.f32.mxu0 0.0
    %653 = vmatmul.mubr.f32.gmra.mxu0 %v575
    %v654 = vpop.f32.mrf.mxu0
    %v655 = vadd.f32 0.0, %v654
    %v656 = vpop.f32.mrf.mxu0
    %657 = vmatprep.mubr.f32.mxu0 0.0
    %658 = vmatmul.mubr.f32.gmra.mxu0 %v578
    %v659 = vpop.f32.mrf.mxu0
    %v660 = vadd.f32 0.0, %v659
    %v661 = vpop.f32.mrf.mxu0
    %662 = vmatprep.mubr.f32.mxu0 0.0
    %663 = vmatmul.mubr.f32.gmra.mxu0 %v581
    %v664 = vpop.f32.mrf.mxu0
    %v665 = vadd.f32 0.0, %v664
    %v666 = vpop.f32.mrf.mxu0
    %667 = vdwg.mxu0
    %v669 = vsel %vm61, %v150, 0
    %671 = vmatprep.subr.mxu0 0.0
    %672 = vmatpush1.msra.mxu0 0.0
    %673 = vmatprep.subr.mxu0 0.0
    %674 = vmatpush1.msra.mxu0 0.0
    %675 = vmatprep.subr.mxu0 0.0
    %676 = vmatpush1.msra.mxu0 0.0
    %677 = vmatprep.subr.mxu0 0.0
    %678 = vmatpush1.msra.mxu0 0.0
    %679 = vmatprep.subr.mxu0 0.0
    %680 = vmatpush1.msra.mxu0 0.0
    %681 = vmatprep.subr.mxu0 0.0
    %682 = vmatpush1.msra.mxu0 0.0
    %683 = vmatprep.subr.mxu0 0.0
    %684 = vmatpush1.msra.mxu0 0.0
    %685 = vmatprep.subr.mxu0 0.0
    %686 = vmatpush1.msra.mxu0 0.0
    %687 = vmatprep.subr.mxu0 0.0
    %688 = vmatpush1.msra.mxu0 0.0
    %689 = vmatprep.subr.mxu0 0.0
    %690 = vmatpush1.msra.mxu0 0.0
    %691 = vmatprep.subr.mxu0 0.0
    %692 = vmatpush1.msra.mxu0 0.0
    %693 = vmatprep.subr.mxu0 0.0
    %694 = vmatpush1.msra.mxu0 0.0
    %695 = vmatprep.subr.mxu0 0.0
    %696 = vmatpush1.msra.mxu0 0.0
    %697 = vmatprep.subr.mxu0 0.0
    %698 = vmatpush1.msra.mxu0 0.0
    %699 = vmatprep.subr.mxu0 0.0
    %700 = vmatpush1.msra.mxu0 0.0
    %701 = vmatprep.subr.mxu0 0.0
    %702 = vmatpush1.msra.mxu0 %v669
    %703 = vmatprep.subr.mxu0 0.0
    %704 = vmatpush2.msra.mxu0 0.0
    %705 = vmatprep.subr.mxu0 0.0
    %706 = vmatpush2.msra.mxu0 0.0
    %707 = vmatprep.subr.mxu0 0.0
    %708 = vmatpush2.msra.mxu0 0.0
    %709 = vmatprep.subr.mxu0 0.0
    %710 = vmatpush2.msra.mxu0 0.0
    %711 = vmatprep.subr.mxu0 0.0
    %712 = vmatpush2.msra.mxu0 0.0
    %713 = vmatprep.subr.mxu0 0.0
    %714 = vmatpush2.msra.mxu0 0.0
    %715 = vmatprep.subr.mxu0 0.0
    %716 = vmatpush2.msra.mxu0 0.0
    %717 = vmatprep.subr.mxu0 0.0
    %718 = vmatpush2.msra.mxu0 0.0
    %719 = vmatprep.subr.mxu0 0.0
    %720 = vmatpush2.msra.mxu0 0.0
    %721 = vmatprep.subr.mxu0 0.0
    %722 = vmatpush2.msra.mxu0 0.0
    %723 = vmatprep.subr.mxu0 0.0
    %724 = vmatpush2.msra.mxu0 0.0
    %725 = vmatprep.subr.mxu0 0.0
    %726 = vmatpush2.msra.mxu0 0.0
    %727 = vmatprep.subr.mxu0 0.0
    %728 = vmatpush2.msra.mxu0 0.0
    %729 = vmatprep.subr.mxu0 0.0
    %730 = vmatpush2.msra.mxu0 0.0
    %731 = vmatprep.subr.mxu0 0.0
    %732 = vmatpush2.msra.mxu0 0.0
    %733 = vmatprep.subr.mxu0 0.0
    %734 = vmatpush2.msra.mxu0 0.0
    %735 = vmatprep.mubr.f32.mxu0 0.0
    %736 = vmatmul.mubr.f32.gmra.mxu0 %v50
    %v737 = vpop.f32.mrf.mxu0
    %v738 = vadd.f32 %v650, %v737
    %v739 = vpop.f32.mrf.mxu0
    %740 = vmatprep.mubr.f32.mxu0 0.0
    %741 = vmatmul.mubr.f32.gmra.mxu0 %v53
    %v742 = vpop.f32.mrf.mxu0
    %v743 = vadd.f32 %v655, %v742
    %v744 = vpop.f32.mrf.mxu0
    %745 = vmatprep.mubr.f32.mxu0 0.0
    %746 = vmatmul.mubr.f32.gmra.mxu0 %v56
    %v747 = vpop.f32.mrf.mxu0
    %v748 = vadd.f32 %v660, %v747
    %v749 = vpop.f32.mrf.mxu0
    %750 = vmatprep.mubr.f32.mxu0 0.0
    %751 = vmatmul.mubr.f32.gmra.mxu0 %v59
    %v752 = vpop.f32.mrf.mxu0
    %v753 = vadd.f32 %v665, %v752
    %v754 = vpop.f32.mrf.mxu0
    %755 = vdwg.mxu0
    %v756 = vand.u32 2147483647, %v132
    %vm757 = vcmp.le.f32.partialorder %v756, 0.7853982
    %vm758 = vcmp.lt.s32.totalorder %v132, 0
    %v759 = vand.u32 %v132, 2139095040
    %v760 = vshrl.u32 %v759, 23
    %v761 = vsub.s32 %v760, 127
    %v762 = vand.u32 2147483647, %v132
    %v763 = vand.u32 %v762, 8388607
    %v764 = vor.u32 %v763, 8388608
    %v765 = vsub.s32 0, %v764
    %v766 = vadd.s32 %v761, 1
    %vm767 = vcmp.gt.s32.totalorder %v766, 0
    %v768 = vsel %vm767, %v766, 0
    %v769 = vshrl.u32 %v768, 5
    %v770 = vand.u32 %v768, 31
    %v771 = vsub.s32 32, %v770
    %v772 = vshrl.u32 683565275, %v771
    %v773 = vshll.u32 683565275, %v770
    %v774 = vshrl.u32 2475754826, %v771
    %v775 = vor.u32 %v773, %v774
    %v776 = vshll.u32 2475754826, %v770
    %v777 = vshrl.u32 2131351028, %v771
    %v778 = vor.u32 %v776, %v777
    %v779 = vshll.u32 2131351028, %v770
    %v780 = vshrl.u32 2102212464, %v771
    %v781 = vor.u32 %v779, %v780
    %v782 = vshll.u32 2102212464, %v770
    %v783 = vshrl.u32 920167782, %v771
    %v784 = vor.u32 %v782, %v783
    %v785 = vshll.u32 920167782, %v770
    %v786 = vshrl.u32 1326507024, %v771
    %v787 = vor.u32 %v785, %v786
    %vm788 = vcmp.lt.s32.totalorder %v769, 1
    %vm789 = vcmp.lt.s32.totalorder %v769, 2
    %vm790 = vcmp.lt.s32.totalorder %v769, 3
    %vm791 = vcmp.lt.s32.totalorder %v769, 4
    %v792 = vsel %vm788, %v772, %v775
    %v793 = vsel %vm791, %v781, 2102212464
    %v794 = vsel %vm790, %v778, %v793
    %v795 = vsel %vm789, %v792, %v794
    %v796 = vsel %vm788, %v775, %v778
    %v797 = vsel %vm791, %v784, 920167782
    %v798 = vsel %vm790, %v781, %v797
    %v799 = vsel %vm789, %v796, %v798
    %v800 = vsel %vm788, %v778, %v781
    %v801 = vsel %vm791, %v787, 1326507024
    %v802 = vsel %vm790, %v784, %v801
    %v803 = vsel %vm789, %v800, %v802
    %v804 = vshll.u32 %v764, 8
    %v805 = vmul.u32.u64.compose %v804, %v803
    %v806 = vextract.low.u32 %v805
    %v807 = vextract.high.u32 %v805
    %v808 = vmul.u32.u64.compose %v804, %v799
    %v809 = vextract.low.u32 %v808
    %v810 = vextract.high.u32 %v808
    %v811 = vmul.u32 %v804, %v795
    %v812 = vadd.s32 %v807, %v809
    %vm813 = vc.u32 %v807, %v809
    %v814 = vadd.s32 %v810, 1
    %v815 = vsel %vm813, %v814, %v810
    %v816 = vadd.s32 %v811, %v815
    %v817 = vadd.s32 %v816, 536870912
    %v818 = vshrl.u32 %v817, 30
    %v819 = vshll.u32 %v818, 30
    %v820 = vsub.s32 %v816, %v819
    %vm821 = vcmp.lt.s32.totalorder %v820, 0
    %v822 = vsub.s32 0, %v820
    %v823 = vsel %vm821, %v822, %v820
    %v824 = vclz %v823
    %v825 = vsub.s32 %v824, 2
    %vm826 = vcmp.gt.s32.totalorder 0, %v825
    %v827 = vsel %vm826, 0, %v825
    %v828 = vsub.s32 32, %v827
    %v829 = vshll.u32 %v820, %v827
    %v830 = vshrl.u32 %v812, %v828
    %v831 = vor.u32 %v829, %v830
    %v832 = vsub.s32 4294967266, %v827
    %v833 = vadd.s32 %v832, 127
    %v834 = vshll.u32 %v833, 23
    %v835 = vor.u32 4788187, %v834
    %v836 = vand.u32 2147483647, %v835
    %v838 = vcvt.s32.f32 %v831
    %v839 = vmul.f32 %v838, %v836
    %v840 = vxor.u32 %v839, 2147483648
    %v841 = vsel %vm758, %v840, %v839
    %v842 = vsub.s32 4, %v818
    %v843 = vsel %vm758, %v842, %v818
    %v844 = vsel %vm757, %v132, %v841
    %v845 = vsel %vm757, 0, %v843
    %v846 = vcosq.f32.pop %v844
    %v847 = vsinq.f32.pop %v844
    %vm848 = vweird.f32 %v132
    %v849 = vand.u32 %v845, 3
    %vm850 = vcmp.lt.s32.totalorder %v849, 2
    %vm851 = vcmp.eq.s32.totalorder %v849, 0
    %v852 = vxor.u32 %v847, 2147483648
    %v853 = vsel %vm851, %v846, %v852
    %vm854 = vcmp.eq.s32.totalorder %v849, 2
    %v855 = vxor.u32 %v846, 2147483648
    %v856 = vsel %vm854, %v855, %v847
    %v857 = vsel %vm850, %v853, %v856
    %v858 = vsel %vm848, nan, %v857
    %v859 = vand.u32 2147483647, %v137
    %vm860 = vcmp.le.f32.partialorder %v859, 0.7853982
    %vm861 = vcmp.lt.s32.totalorder %v137, 0
    %v862 = vand.u32 %v137, 2139095040
    %v863 = vshrl.u32 %v862, 23
    %v864 = vsub.s32 %v863, 127
    %v865 = vand.u32 2147483647, %v137
    %v866 = vand.u32 %v865, 8388607
    %v867 = vor.u32 %v866, 8388608
    %v868 = vsub.s32 0, %v867
    %v869 = vadd.s32 %v864, 1
    %vm870 = vcmp.gt.s32.totalorder %v869, 0
    %v871 = vsel %vm870, %v869, 0
    %v872 = vshrl.u32 %v871, 5
    %v873 = vand.u32 %v871, 31
    %v874 = vsub.s32 32, %v873
    %v875 = vshrl.u32 683565275, %v874
    %v876 = vshll.u32 683565275, %v873
    %v877 = vshrl.u32 2475754826, %v874
    %v878 = vor.u32 %v876, %v877
    %v879 = vshll.u32 2475754826, %v873
    %v880 = vshrl.u32 2131351028, %v874
    %v881 = vor.u32 %v879, %v880
    %v882 = vshll.u32 2131351028, %v873
    %v883 = vshrl.u32 2102212464, %v874
    %v884 = vor.u32 %v882, %v883
    %v885 = vshll.u32 2102212464, %v873
    %v886 = vshrl.u32 920167782, %v874
    %v887 = vor.u32 %v885, %v886
    %v888 = vshll.u32 920167782, %v873
    %v889 = vshrl.u32 1326507024, %v874
    %v890 = vor.u32 %v888, %v889
    %vm891 = vcmp.lt.s32.totalorder %v872, 1
    %vm892 = vcmp.lt.s32.totalorder %v872, 2
    %vm893 = vcmp.lt.s32.totalorder %v872, 3
    %vm894 = vcmp.lt.s32.totalorder %v872, 4
    %v895 = vsel %vm891, %v875, %v878
    %v896 = vsel %vm894, %v884, 2102212464
    %v897 = vsel %vm893, %v881, %v896
    %v898 = vsel %vm892, %v895, %v897
    %v899 = vsel %vm891, %v878, %v881
    %v900 = vsel %vm894, %v887, 920167782
    %v901 = vsel %vm893, %v884, %v900
    %v902 = vsel %vm892, %v899, %v901
    %v903 = vsel %vm891, %v881, %v884
    %v904 = vsel %vm894, %v890, 1326507024
    %v905 = vsel %vm893, %v887, %v904
    %v906 = vsel %vm892, %v903, %v905
    %v907 = vshll.u32 %v867, 8
    %v908 = vmul.u32.u64.compose %v907, %v906
    %v909 = vextract.low.u32 %v908
    %v910 = vextract.high.u32 %v908
    %v911 = vmul.u32.u64.compose %v907, %v902
    %v912 = vextract.low.u32 %v911
    %v913 = vextract.high.u32 %v911
    %v914 = vmul.u32 %v907, %v898
    %v915 = vadd.s32 %v910, %v912
    %vm916 = vc.u32 %v910, %v912
    %v917 = vadd.s32 %v913, 1
    %v918 = vsel %vm916, %v917, %v913
    %v919 = vadd.s32 %v914, %v918
    %v920 = vadd.s32 %v919, 536870912
    %v921 = vshrl.u32 %v920, 30
    %v922 = vshll.u32 %v921, 30
    %v923 = vsub.s32 %v919, %v922
    %vm924 = vcmp.lt.s32.totalorder %v923, 0
    %v925 = vsub.s32 0, %v923
    %v926 = vsel %vm924, %v925, %v923
    %v927 = vclz %v926
    %v928 = vsub.s32 %v927, 2
    %vm929 = vcmp.gt.s32.totalorder 0, %v928
    %v930 = vsel %vm929, 0, %v928
    %v931 = vsub.s32 32, %v930
    %v932 = vshll.u32 %v923, %v930
    %v933 = vshrl.u32 %v915, %v931
    %v934 = vor.u32 %v932, %v933
    %v935 = vsub.s32 4294967266, %v930
    %v936 = vadd.s32 %v935, 127
    %v937 = vshll.u32 %v936, 23
    %v938 = vor.u32 4788187, %v937
    %v939 = vand.u32 2147483647, %v938
    %v941 = vcvt.s32.f32 %v934
    %v942 = vmul.f32 %v941, %v939
    %v943 = vxor.u32 %v942, 2147483648
    %v944 = vsel %vm861, %v943, %v942
    %v945 = vsub.s32 4, %v921
    %v946 = vsel %vm861, %v945, %v921
    %v947 = vsel %vm860, %v137, %v944
    %v948 = vsel %vm860, 0, %v946
    %v949 = vcosq.f32.pop %v947
    %v950 = vsinq.f32.pop %v947
    %vm951 = vweird.f32 %v137
    %v952 = vand.u32 %v948, 3
    %vm953 = vcmp.lt.s32.totalorder %v952, 2
    %vm954 = vcmp.eq.s32.totalorder %v952, 0
    %v955 = vxor.u32 %v950, 2147483648
    %v956 = vsel %vm954, %v949, %v955
    %vm957 = vcmp.eq.s32.totalorder %v952, 2
    %v958 = vxor.u32 %v949, 2147483648
    %v959 = vsel %vm957, %v958, %v950
    %v960 = vsel %vm953, %v956, %v959
    %v961 = vsel %vm951, nan, %v960
    %v962 = vand.u32 2147483647, %v142
    %vm963 = vcmp.le.f32.partialorder %v962, 0.7853982
    %vm964 = vcmp.lt.s32.totalorder %v142, 0
    %v965 = vand.u32 %v142, 2139095040
    %v966 = vshrl.u32 %v965, 23
    %v967 = vsub.s32 %v966, 127
    %v968 = vand.u32 2147483647, %v142
    %v969 = vand.u32 %v968, 8388607
    %v970 = vor.u32 %v969, 8388608
    %v971 = vsub.s32 0, %v970
    %v972 = vadd.s32 %v967, 1
    %vm973 = vcmp.gt.s32.totalorder %v972, 0
    %v974 = vsel %vm973, %v972, 0
    %v975 = vshrl.u32 %v974, 5
    %v976 = vand.u32 %v974, 31
    %v977 = vsub.s32 32, %v976
    %v978 = vshrl.u32 683565275, %v977
    %v979 = vshll.u32 683565275, %v976
    %v980 = vshrl.u32 2475754826, %v977
    %v981 = vor.u32 %v979, %v980
    %v982 = vshll.u32 2475754826, %v976
    %v983 = vshrl.u32 2131351028, %v977
    %v984 = vor.u32 %v982, %v983
    %v985 = vshll.u32 2131351028, %v976
    %v986 = vshrl.u32 2102212464, %v977
    %v987 = vor.u32 %v985, %v986
    %v988 = vshll.u32 2102212464, %v976
    %v989 = vshrl.u32 920167782, %v977
    %v990 = vor.u32 %v988, %v989
    %v991 = vshll.u32 920167782, %v976
    %v992 = vshrl.u32 1326507024, %v977
    %v993 = vor.u32 %v991, %v992
    %vm994 = vcmp.lt.s32.totalorder %v975, 1
    %vm995 = vcmp.lt.s32.totalorder %v975, 2
    %vm996 = vcmp.lt.s32.totalorder %v975, 3
    %vm997 = vcmp.lt.s32.totalorder %v975, 4
    %v998 = vsel %vm994, %v978, %v981
    %v999 = vsel %vm997, %v987, 2102212464
    %v1000 = vsel %vm996, %v984, %v999
    %v1001 = vsel %vm995, %v998, %v1000
    %v1002 = vsel %vm994, %v981, %v984
    %v1003 = vsel %vm997, %v990, 920167782
    %v1004 = vsel %vm996, %v987, %v1003
    %v1005 = vsel %vm995, %v1002, %v1004
    %v1006 = vsel %vm994, %v984, %v987
    %v1007 = vsel %vm997, %v993, 1326507024
    %v1008 = vsel %vm996, %v990, %v1007
    %v1009 = vsel %vm995, %v1006, %v1008
    %v1010 = vshll.u32 %v970, 8
    %v1011 = vmul.u32.u64.compose %v1010, %v1009
    %v1012 = vextract.low.u32 %v1011
    %v1013 = vextract.high.u32 %v1011
    %v1014 = vmul.u32.u64.compose %v1010, %v1005
    %v1015 = vextract.low.u32 %v1014
    %v1016 = vextract.high.u32 %v1014
    %v1017 = vmul.u32 %v1010, %v1001
    %v1018 = vadd.s32 %v1013, %v1015
    %vm1019 = vc.u32 %v1013, %v1015
    %v1020 = vadd.s32 %v1016, 1
    %v1021 = vsel %vm1019, %v1020, %v1016
    %v1022 = vadd.s32 %v1017, %v1021
    %v1023 = vadd.s32 %v1022, 536870912
    %v1024 = vshrl.u32 %v1023, 30
    %v1025 = vshll.u32 %v1024, 30
    %v1026 = vsub.s32 %v1022, %v1025
    %vm1027 = vcmp.lt.s32.totalorder %v1026, 0
    %v1028 = vsub.s32 0, %v1026
    %v1029 = vsel %vm1027, %v1028, %v1026
    %v1030 = vclz %v1029
    %v1031 = vsub.s32 %v1030, 2
    %vm1032 = vcmp.gt.s32.totalorder 0, %v1031
    %v1033 = vsel %vm1032, 0, %v1031
    %v1034 = vsub.s32 32, %v1033
    %v1035 = vshll.u32 %v1026, %v1033
    %v1036 = vshrl.u32 %v1018, %v1034
    %v1037 = vor.u32 %v1035, %v1036
    %v1038 = vsub.s32 4294967266, %v1033
    %v1039 = vadd.s32 %v1038, 127
    %v1040 = vshll.u32 %v1039, 23
    %v1041 = vor.u32 4788187, %v1040
    %v1042 = vand.u32 2147483647, %v1041
    %v1044 = vcvt.s32.f32 %v1037
    %v1045 = vmul.f32 %v1044, %v1042
    %v1046 = vxor.u32 %v1045, 2147483648
    %v1047 = vsel %vm964, %v1046, %v1045
    %v1048 = vsub.s32 4, %v1024
    %v1049 = vsel %vm964, %v1048, %v1024
    %v1050 = vsel %vm963, %v142, %v1047
    %v1051 = vsel %vm963, 0, %v1049
    %v1052 = vcosq.f32.pop %v1050
    %v1053 = vsinq.f32.pop %v1050
    %vm1054 = vweird.f32 %v142
    %v1055 = vand.u32 %v1051, 3
    %vm1056 = vcmp.lt.s32.totalorder %v1055, 2
    %vm1057 = vcmp.eq.s32.totalorder %v1055, 0
    %v1058 = vxor.u32 %v1053, 2147483648
    %v1059 = vsel %vm1057, %v1052, %v1058
    %vm1060 = vcmp.eq.s32.totalorder %v1055, 2
    %v1061 = vxor.u32 %v1052, 2147483648
    %v1062 = vsel %vm1060, %v1061, %v1053
    %v1063 = vsel %vm1056, %v1059, %v1062
    %v1064 = vsel %vm1054, nan, %v1063
    %v1065 = vand.u32 2147483647, %v147
    %vm1066 = vcmp.le.f32.partialorder %v1065, 0.7853982
    %vm1067 = vcmp.lt.s32.totalorder %v147, 0
    %v1068 = vand.u32 %v147, 2139095040
    %v1069 = vshrl.u32 %v1068, 23
    %v1070 = vsub.s32 %v1069, 127
    %v1071 = vand.u32 2147483647, %v147
    %v1072 = vand.u32 %v1071, 8388607
    %v1073 = vor.u32 %v1072, 8388608
    %v1074 = vsub.s32 0, %v1073
    %v1075 = vadd.s32 %v1070, 1
    %vm1076 = vcmp.gt.s32.totalorder %v1075, 0
    %v1077 = vsel %vm1076, %v1075, 0
    %v1078 = vshrl.u32 %v1077, 5
    %v1079 = vand.u32 %v1077, 31
    %v1080 = vsub.s32 32, %v1079
    %v1081 = vshrl.u32 683565275, %v1080
    %v1082 = vshll.u32 683565275, %v1079
    %v1083 = vshrl.u32 2475754826, %v1080
    %v1084 = vor.u32 %v1082, %v1083
    %v1085 = vshll.u32 2475754826, %v1079
    %v1086 = vshrl.u32 2131351028, %v1080
    %v1087 = vor.u32 %v1085, %v1086
    %v1088 = vshll.u32 2131351028, %v1079
    %v1089 = vshrl.u32 2102212464, %v1080
    %v1090 = vor.u32 %v1088, %v1089
    %v1091 = vshll.u32 2102212464, %v1079
    %v1092 = vshrl.u32 920167782, %v1080
    %v1093 = vor.u32 %v1091, %v1092
    %v1094 = vshll.u32 920167782, %v1079
    %v1095 = vshrl.u32 1326507024, %v1080
    %v1096 = vor.u32 %v1094, %v1095
    %vm1097 = vcmp.lt.s32.totalorder %v1078, 1
    %vm1098 = vcmp.lt.s32.totalorder %v1078, 2
    %vm1099 = vcmp.lt.s32.totalorder %v1078, 3
    %vm1100 = vcmp.lt.s32.totalorder %v1078, 4
    %v1101 = vsel %vm1097, %v1081, %v1084
    %v1102 = vsel %vm1100, %v1090, 2102212464
    %v1103 = vsel %vm1099, %v1087, %v1102
    %v1104 = vsel %vm1098, %v1101, %v1103
    %v1105 = vsel %vm1097, %v1084, %v1087
    %v1106 = vsel %vm1100, %v1093, 920167782
    %v1107 = vsel %vm1099, %v1090, %v1106
    %v1108 = vsel %vm1098, %v1105, %v1107
    %v1109 = vsel %vm1097, %v1087, %v1090
    %v1110 = vsel %vm1100, %v1096, 1326507024
    %v1111 = vsel %vm1099, %v1093, %v1110
    %v1112 = vsel %vm1098, %v1109, %v1111
    %v1113 = vshll.u32 %v1073, 8
    %v1114 = vmul.u32.u64.compose %v1113, %v1112
    %v1115 = vextract.low.u32 %v1114
    %v1116 = vextract.high.u32 %v1114
    %v1117 = vmul.u32.u64.compose %v1113, %v1108
    %v1118 = vextract.low.u32 %v1117
    %v1119 = vextract.high.u32 %v1117
    %v1120 = vmul.u32 %v1113, %v1104
    %v1121 = vadd.s32 %v1116, %v1118
    %vm1122 = vc.u32 %v1116, %v1118
    %v1123 = vadd.s32 %v1119, 1
    %v1124 = vsel %vm1122, %v1123, %v1119
    %v1125 = vadd.s32 %v1120, %v1124
    %v1126 = vadd.s32 %v1125, 536870912
    %v1127 = vshrl.u32 %v1126, 30
    %v1128 = vshll.u32 %v1127, 30
    %v1129 = vsub.s32 %v1125, %v1128
    %vm1130 = vcmp.lt.s32.totalorder %v1129, 0
    %v1131 = vsub.s32 0, %v1129
    %v1132 = vsel %vm1130, %v1131, %v1129
    %v1133 = vclz %v1132
    %v1134 = vsub.s32 %v1133, 2
    %vm1135 = vcmp.gt.s32.totalorder 0, %v1134
    %v1136 = vsel %vm1135, 0, %v1134
    %v1137 = vsub.s32 32, %v1136
    %v1138 = vshll.u32 %v1129, %v1136
    %v1139 = vshrl.u32 %v1121, %v1137
    %v1140 = vor.u32 %v1138, %v1139
    %v1141 = vsub.s32 4294967266, %v1136
    %v1142 = vadd.s32 %v1141, 127
    %v1143 = vshll.u32 %v1142, 23
    %v1144 = vor.u32 4788187, %v1143
    %v1145 = vand.u32 2147483647, %v1144
    %v1147 = vcvt.s32.f32 %v1140
    %v1148 = vmul.f32 %v1147, %v1145
    %v1149 = vxor.u32 %v1148, 2147483648
    %v1150 = vsel %vm1067, %v1149, %v1148
    %v1151 = vsub.s32 4, %v1127
    %v1152 = vsel %vm1067, %v1151, %v1127
    %v1153 = vsel %vm1066, %v147, %v1150
    %v1154 = vsel %vm1066, 0, %v1152
    %v1155 = vcosq.f32.pop %v1153
    %v1156 = vsinq.f32.pop %v1153
    %vm1157 = vweird.f32 %v147
    %v1158 = vand.u32 %v1154, 3
    %vm1159 = vcmp.lt.s32.totalorder %v1158, 2
    %vm1160 = vcmp.eq.s32.totalorder %v1158, 0
    %v1161 = vxor.u32 %v1156, 2147483648
    %v1162 = vsel %vm1160, %v1155, %v1161
    %vm1163 = vcmp.eq.s32.totalorder %v1158, 2
    %v1164 = vxor.u32 %v1155, 2147483648
    %v1165 = vsel %vm1163, %v1164, %v1156
    %v1166 = vsel %vm1159, %v1162, %v1165
    %v1167 = vsel %vm1157, nan, %v1166
    %v1168 = vld [vmem:[#allocation2 + $0x28] sm:$0xff]
    %v1169 = vld [vmem:[#allocation2 + $0x30] sm:$0xff]
    %v1170 = vld [vmem:[#allocation2 + $0x38] sm:$0xff]
    %v1172 = vsel %vm570, %v858, 0
    %v1175 = vsel %vm570, %v961, 0
    %v1178 = vsel %vm570, %v1064, 0
    %v1181 = vsel %vm570, %v1167, 0
    %1183 = vmatprep.subr.mxu0 0.0
    %1184 = vmatpush1.msra.mxu0 0.0
    %1185 = vmatprep.subr.mxu0 0.0
    %1186 = vmatpush1.msra.mxu0 0.0
    %1187 = vmatprep.subr.mxu0 0.0
    %1188 = vmatpush1.msra.mxu0 0.0
    %1189 = vmatprep.subr.mxu0 0.0
    %1190 = vmatpush1.msra.mxu0 0.0
    %1191 = vmatprep.subr.mxu0 0.0
    %1192 = vmatpush1.msra.mxu0 0.0
    %1193 = vmatprep.subr.mxu0 0.0
    %1194 = vmatpush1.msra.mxu0 0.0
    %1195 = vmatprep.subr.mxu0 0.0
    %1196 = vmatpush1.msra.mxu0 0.0
    %1197 = vmatprep.subr.mxu0 0.0
    %1198 = vmatpush1.msra.mxu0 0.0
    %1199 = vmatprep.subr.mxu0 0.0
    %1200 = vmatpush1.msra.mxu0 0.0
    %1201 = vmatprep.subr.mxu0 0.0
    %1202 = vmatpush1.msra.mxu0 0.0
    %1203 = vmatprep.subr.mxu0 0.0
    %1204 = vmatpush1.msra.mxu0 0.0
    %1205 = vmatprep.subr.mxu0 0.0
    %1206 = vmatpush1.msra.mxu0 0.0
    %1207 = vmatprep.subr.mxu0 0.0
    %1208 = vmatpush1.msra.mxu0 0.0
    %1209 = vmatprep.subr.mxu0 0.0
    %1210 = vmatpush1.msra.mxu0 %v1170
    %1211 = vmatprep.subr.mxu0 0.0
    %1212 = vmatpush1.msra.mxu0 %v1169
    %1213 = vmatprep.subr.mxu0 0.0
    %1214 = vmatpush1.msra.mxu0 %v1168
    %1215 = vmatprep.subr.mxu0 0.0
    %1216 = vmatpush2.msra.mxu0 0.0
    %1217 = vmatprep.subr.mxu0 0.0
    %1218 = vmatpush2.msra.mxu0 0.0
    %1219 = vmatprep.subr.mxu0 0.0
    %1220 = vmatpush2.msra.mxu0 0.0
    %1221 = vmatprep.subr.mxu0 0.0
    %1222 = vmatpush2.msra.mxu0 0.0
    %1223 = vmatprep.subr.mxu0 0.0
    %1224 = vmatpush2.msra.mxu0 0.0
    %1225 = vmatprep.subr.mxu0 0.0
    %1226 = vmatpush2.msra.mxu0 0.0
    %1227 = vmatprep.subr.mxu0 0.0
    %1228 = vmatpush2.msra.mxu0 0.0
    %1229 = vmatprep.subr.mxu0 0.0
    %1230 = vmatpush2.msra.mxu0 0.0
    %1231 = vmatprep.subr.mxu0 0.0
    %1232 = vmatpush2.msra.mxu0 0.0
    %1233 = vmatprep.subr.mxu0 0.0
    %1234 = vmatpush2.msra.mxu0 0.0
    %1235 = vmatprep.subr.mxu0 0.0
    %1236 = vmatpush2.msra.mxu0 0.0
    %1237 = vmatprep.subr.mxu0 0.0
    %1238 = vmatpush2.msra.mxu0 0.0
    %1239 = vmatprep.subr.mxu0 0.0
    %1240 = vmatpush2.msra.mxu0 0.0
    %1241 = vmatprep.subr.mxu0 0.0
    %1242 = vmatpush2.msra.mxu0 0.0
    %1243 = vmatprep.subr.mxu0 0.0
    %1244 = vmatpush2.msra.mxu0 0.0
    %1245 = vmatprep.subr.mxu0 0.0
    %1246 = vmatpush2.msra.mxu0 0.0
    %1247 = vmatprep.mubr.f32.mxu0 0.0
    %1248 = vmatmul.mubr.f32.gmra.mxu0 %v1172
    %v1249 = vpop.f32.mrf.mxu0
    %v1250 = vadd.f32 0.0, %v1249
    %v1251 = vpop.f32.mrf.mxu0
    %1252 = vmatprep.mubr.f32.mxu0 0.0
    %1253 = vmatmul.mubr.f32.gmra.mxu0 %v1175
    %v1254 = vpop.f32.mrf.mxu0
    %v1255 = vadd.f32 0.0, %v1254
    %v1256 = vpop.f32.mrf.mxu0
    %1257 = vmatprep.mubr.f32.mxu0 0.0
    %1258 = vmatmul.mubr.f32.gmra.mxu0 %v1178
    %v1259 = vpop.f32.mrf.mxu0
    %v1260 = vadd.f32 0.0, %v1259
    %v1261 = vpop.f32.mrf.mxu0
    %1262 = vmatprep.mubr.f32.mxu0 0.0
    %1263 = vmatmul.mubr.f32.gmra.mxu0 %v1181
    %v1264 = vpop.f32.mrf.mxu0
    %v1265 = vadd.f32 0.0, %v1264
    %v1266 = vpop.f32.mrf.mxu0
    %1267 = vdwg.mxu0
    %v1268 = vadd.f32 %v738, %v1250
    %v1269 = vadd.f32 %v743, %v1255
    %v1270 = vadd.f32 %v748, %v1260
    %v1271 = vadd.f32 %v753, %v1265
    %v1272 = vld [vmem:[#allocation2 + $0x148] sm:$0x1]
    %v1273 = vlaneseq
    %v1274 = vshrl.u32 %v1273, 7
    %v1275 = vsub.s32 0, %v1274
    %v1276 = vrot.slane %v1272, %v1275
    %v1277 = vadd.f32 %v1268, %v1276
    %v1278 = vadd.f32 %v1269, %v1276
    %v1279 = vadd.f32 %v1270, %v1276
    %v1280 = vadd.f32 %v1271, %v1276
    %v1281 = vld [vmem:[#allocation2 + $0x40] sm:$0xff]
    %v1282 = vld [vmem:[#allocation2 + $0x149] sm:$0x1]
    %v1283 = vld [vmem:[#allocation2 + $0x14a] sm:$0x1]
    %vm1284 = vcmask 261120
    %v1285 = vsel %vm1284, %v1281, 0.0
    %1286 = vadd.xlane.f32.xlu0 %v1285
    %v1287 = vpop.xlane.xlu0 %1286
    %v1288 = vrcp.pop 32.0
    %v1289 = vmul.f32 %v1287, %v1288
    %v1290 = vmul.f32 %v1281, %v1281
    %v1291 = vsel %vm1284, %v1290, 0.0
    %1292 = vadd.xlane.f32.xlu0 %v1291
    %v1293 = vpop.xlane.xlu0 %1292
    %v1294 = vmul.f32 %v1293, %v1288
    %v1295 = vmul.f32 %v1289, %v1289
    %v1296 = vsub.f32 %v1294, %v1295
    %v1297 = vsub.f32 %v1281, %v1289
    %v1298 = vadd.f32 %v1296, 1e-05
    %v1299 = vrsqrt.pop %v1298
    %v1300 = vmul.f32 %v1297, %v1299
    %v1301 = vlaneseq
    %v1302 = vshrl.u32 %v1301, 7
    %v1303 = vsub.s32 0, %v1302
    %v1304 = vrot.slane %v1282, %v1303
    %v1305 = vmul.f32 %v1300, %v1304
    %v1306 = vlaneseq
    %v1307 = vshrl.u32 %v1306, 7
    %v1308 = vsub.s32 0, %v1307
    %v1309 = vrot.slane %v1283, %v1308
    %v1310 = vadd.f32 %v1305, %v1309
    %v1311 = vld [vmem:[#allocation2 + $0x14b] sm:$0x1]
    %v1312 = vld [vmem:[#allocation2 + $0x14c] sm:$0x1]
    %v1313 = vsel %vm1284, %v1277, 0.0
    %1314 = vadd.xlane.f32.xlu0 %v1313
    %v1315 = vpop.xlane.xlu0 %1314
    %v1316 = vsel %vm1284, %v1278, 0.0
    %1317 = vadd.xlane.f32.xlu0 %v1316
    %v1318 = vpop.xlane.xlu0 %1317
    %v1319 = vsel %vm1284, %v1279, 0.0
    %1320 = vadd.xlane.f32.xlu0 %v1319
    %v1321 = vpop.xlane.xlu0 %1320
    %v1322 = vsel %vm1284, %v1280, 0.0
    %1323 = vadd.xlane.f32.xlu0 %v1322
    %v1324 = vpop.xlane.xlu0 %1323
    %v1325 = vmul.f32 %v1315, %v1288
    %v1326 = vmul.f32 %v1318, %v1288
    %v1327 = vmul.f32 %v1321, %v1288
    %v1328 = vmul.f32 %v1324, %v1288
    %v1329 = vmul.f32 %v1277, %v1277
    %v1330 = vmul.f32 %v1278, %v1278
    %v1331 = vmul.f32 %v1279, %v1279
    %v1332 = vmul.f32 %v1280, %v1280
    %v1333 = vsel %vm1284, %v1329, 0.0
    %1334 = vadd.xlane.f32.xlu0 %v1333
    %v1335 = vpop.xlane.xlu0 %1334
    %v1336 = vsel %vm1284, %v1330, 0.0
    %1337 = vadd.xlane.f32.xlu0 %v1336
    %v1338 = vpop.xlane.xlu0 %1337
    %v1339 = vsel %vm1284, %v1331, 0.0
    %1340 = vadd.xlane.f32.xlu0 %v1339
    %v1341 = vpop.xlane.xlu0 %1340
    %v1342 = vsel %vm1284, %v1332, 0.0
    %1343 = vadd.xlane.f32.xlu0 %v1342
    %v1344 = vpop.xlane.xlu0 %1343
    %v1345 = vmul.f32 %v1335, %v1288
    %v1346 = vmul.f32 %v1338, %v1288
    %v1347 = vmul.f32 %v1341, %v1288
    %v1348 = vmul.f32 %v1344, %v1288
    %v1349 = vmul.f32 %v1325, %v1325
    %v1350 = vmul.f32 %v1326, %v1326
    %v1351 = vmul.f32 %v1327, %v1327
    %v1352 = vmul.f32 %v1328, %v1328
    %v1353 = vsub.f32 %v1345, %v1349
    %v1354 = vsub.f32 %v1346, %v1350
    %v1355 = vsub.f32 %v1347, %v1351
    %v1356 = vsub.f32 %v1348, %v1352
    %v1357 = vsub.f32 %v1277, %v1325
    %v1358 = vsub.f32 %v1278, %v1326
    %v1359 = vsub.f32 %v1279, %v1327
    %v1360 = vsub.f32 %v1280, %v1328
    %v1361 = vadd.f32 %v1353, 1e-05
    %v1362 = vadd.f32 %v1354, 1e-05
    %v1363 = vadd.f32 %v1355, 1e-05
    %v1364 = vadd.f32 %v1356, 1e-05
    %v1365 = vrsqrt.pop %v1361
    %v1366 = vrsqrt.pop %v1362
    %v1367 = vrsqrt.pop %v1363
    %v1368 = vrsqrt.pop %v1364
    %v1369 = vmul.f32 %v1357, %v1365
    %v1370 = vmul.f32 %v1358, %v1366
    %v1371 = vmul.f32 %v1359, %v1367
    %v1372 = vmul.f32 %v1360, %v1368
    %v1373 = vlaneseq
    %v1374 = vshrl.u32 %v1373, 7
    %v1375 = vsub.s32 0, %v1374
    %v1376 = vrot.slane %v1311, %v1375
    %v1377 = vmul.f32 %v1369, %v1376
    %v1378 = vmul.f32 %v1370, %v1376
    %v1379 = vmul.f32 %v1371, %v1376
    %v1380 = vmul.f32 %v1372, %v1376
    %v1381 = vlaneseq
    %v1382 = vshrl.u32 %v1381, 7
    %v1383 = vsub.s32 0, %v1382
    %v1384 = vrot.slane %v1312, %v1383
    %v1385 = vadd.f32 %v1377, %v1384
    %v1386 = vadd.f32 %v1378, %v1384
    %v1387 = vadd.f32 %v1379, %v1384
    %v1388 = vadd.f32 %v1380, %v1384
    %v1389 = vld [vmem:[#allocation2 + $0x48] sm:$0xff]
    %v1390 = vld [vmem:[#allocation2 + $0x50] sm:$0xff]
    %v1391 = vld [vmem:[#allocation2 + $0x58] sm:$0xff]
    %v1392 = vld [vmem:[#allocation2 + $0x60] sm:$0xff]
    %v1393 = vld [vmem:[#allocation2 + $0x14d] sm:$0x1]
    %v1394 = vlaneseq
    %v1395 = vshrl.u32 %v1394, 7
    %v1396 = vsub.s32 0, %v1395
    %v1397 = vrot.slane %v1393, %v1396
    %v1399 = vsel %vm1284, %v1310, 0
    %1401 = vmatprep.subr.mxu0 0.0
    %1402 = vmatpush1.msra.mxu0 0.0
    %1403 = vmatprep.subr.mxu0 0.0
    %1404 = vmatpush1.msra.mxu0 0.0
    %1405 = vmatprep.subr.mxu0 0.0
    %1406 = vmatpush1.msra.mxu0 0.0
    %1407 = vmatprep.subr.mxu0 0.0
    %1408 = vmatpush1.msra.mxu0 0.0
    %1409 = vmatprep.subr.mxu0 0.0
    %1410 = vmatpush1.msra.mxu0 0.0
    %1411 = vmatprep.subr.mxu0 0.0
    %1412 = vmatpush1.msra.mxu0 0.0
    %1413 = vmatprep.subr.mxu0 0.0
    %1414 = vmatpush1.msra.mxu0 0.0
    %1415 = vmatprep.subr.mxu0 0.0
    %1416 = vmatpush1.msra.mxu0 0.0
    %1417 = vmatprep.subr.mxu0 0.0
    %1418 = vmatpush1.msra.mxu0 0.0
    %1419 = vmatprep.subr.mxu0 0.0
    %1420 = vmatpush1.msra.mxu0 0.0
    %1421 = vmatprep.subr.mxu0 0.0
    %1422 = vmatpush1.msra.mxu0 0.0
    %1423 = vmatprep.subr.mxu0 0.0
    %1424 = vmatpush1.msra.mxu0 0.0
    %1425 = vmatprep.subr.mxu0 0.0
    %1426 = vmatpush1.msra.mxu0 %v1392
    %1427 = vmatprep.subr.mxu0 0.0
    %1428 = vmatpush1.msra.mxu0 %v1391
    %1429 = vmatprep.subr.mxu0 0.0
    %1430 = vmatpush1.msra.mxu0 %v1390
    %1431 = vmatprep.subr.mxu0 0.0
    %1432 = vmatpush1.msra.mxu0 %v1389
    %1433 = vmatprep.subr.mxu0 0.0
    %1434 = vmatpush2.msra.mxu0 0.0
    %1435 = vmatprep.subr.mxu0 0.0
    %1436 = vmatpush2.msra.mxu0 0.0
    %1437 = vmatprep.subr.mxu0 0.0
    %1438 = vmatpush2.msra.mxu0 0.0
    %1439 = vmatprep.subr.mxu0 0.0
    %1440 = vmatpush2.msra.mxu0 0.0
    %1441 = vmatprep.subr.mxu0 0.0
    %1442 = vmatpush2.msra.mxu0 0.0
    %1443 = vmatprep.subr.mxu0 0.0
    %1444 = vmatpush2.msra.mxu0 0.0
    %1445 = vmatprep.subr.mxu0 0.0
    %1446 = vmatpush2.msra.mxu0 0.0
    %1447 = vmatprep.subr.mxu0 0.0
    %1448 = vmatpush2.msra.mxu0 0.0
    %1449 = vmatprep.subr.mxu0 0.0
    %1450 = vmatpush2.msra.mxu0 0.0
    %1451 = vmatprep.subr.mxu0 0.0
    %1452 = vmatpush2.msra.mxu0 0.0
    %1453 = vmatprep.subr.mxu0 0.0
    %1454 = vmatpush2.msra.mxu0 0.0
    %1455 = vmatprep.subr.mxu0 0.0
    %1456 = vmatpush2.msra.mxu0 0.0
    %1457 = vmatprep.subr.mxu0 0.0
    %1458 = vmatpush2.msra.mxu0 0.0
    %1459 = vmatprep.subr.mxu0 0.0
    %1460 = vmatpush2.msra.mxu0 0.0
    %1461 = vmatprep.subr.mxu0 0.0
    %1462 = vmatpush2.msra.mxu0 0.0
    %1463 = vmatprep.subr.mxu0 0.0
    %1464 = vmatpush2.msra.mxu0 0.0
    %1465 = vmatprep.mubr.f32.mxu0 0.0
    %1466 = vmatmul.mubr.f32.gmra.mxu0 %v1399
    %v1467 = vpop.f32.mrf.mxu0
    %v1468 = vadd.f32 %v1397, %v1467
    %v1469 = vpop.f32.mrf.mxu0
    %1470 = vmatprep.mubr.f32.mxu0 0.0
    %1471 = vmatmul.mubr.f32.gmra.mxu0 %v1399
    %v1472 = vpop.f32.mrf.mxu0
    %v1473 = vadd.f32 %v1397, %v1472
    %v1474 = vpop.f32.mrf.mxu0
    %1475 = vdwg.mxu0
    %v1476 = vld [vmem:[#allocation2 + $0x68] sm:$0xff]
    %v1477 = vld [vmem:[#allocation2 + $0x70] sm:$0xff]
    %v1478 = vld [vmem:[#allocation2 + $0x78] sm:$0xff]
    %v1479 = vld [vmem:[#allocation2 + $0x80] sm:$0xff]
    %v1480 = vld [vmem:[#allocation2 + $0x14e] sm:$0x1]
    %v1481 = vlaneseq
    %v1482 = vshrl.u32 %v1481, 7
    %v1483 = vsub.s32 0, %v1482
    %v1484 = vrot.slane %v1480, %v1483
    %v1486 = vsel %vm1284, %v1385, 0
    %v1489 = vsel %vm1284, %v1386, 0
    %v1492 = vsel %vm1284, %v1387, 0
    %v1495 = vsel %vm1284, %v1388, 0
    %1497 = vmatprep.subr.mxu0 0.0
    %1498 = vmatpush1.msra.mxu0 0.0
    %1499 = vmatprep.subr.mxu0 0.0
    %1500 = vmatpush1.msra.mxu0 0.0
    %1501 = vmatprep.subr.mxu0 0.0
    %1502 = vmatpush1.msra.mxu0 0.0
    %1503 = vmatprep.subr.mxu0 0.0
    %1504 = vmatpush1.msra.mxu0 0.0
    %1505 = vmatprep.subr.mxu0 0.0
    %1506 = vmatpush1.msra.mxu0 0.0
    %1507 = vmatprep.subr.mxu0 0.0
    %1508 = vmatpush1.msra.mxu0 0.0
    %1509 = vmatprep.subr.mxu0 0.0
    %1510 = vmatpush1.msra.mxu0 0.0
    %1511 = vmatprep.subr.mxu0 0.0
    %1512 = vmatpush1.msra.mxu0 0.0
    %1513 = vmatprep.subr.mxu0 0.0
    %1514 = vmatpush1.msra.mxu0 0.0
    %1515 = vmatprep.subr.mxu0 0.0
    %1516 = vmatpush1.msra.mxu0 0.0
    %1517 = vmatprep.subr.mxu0 0.0
    %1518 = vmatpush1.msra.mxu0 0.0
    %1519 = vmatprep.subr.mxu0 0.0
    %1520 = vmatpush1.msra.mxu0 0.0
    %1521 = vmatprep.subr.mxu0 0.0
    %1522 = vmatpush1.msra.mxu0 %v1479
    %1523 = vmatprep.subr.mxu0 0.0
    %1524 = vmatpush1.msra.mxu0 %v1478
    %1525 = vmatprep.subr.mxu0 0.0
    %1526 = vmatpush1.msra.mxu0 %v1477
    %1527 = vmatprep.subr.mxu0 0.0
    %1528 = vmatpush1.msra.mxu0 %v1476
    %1529 = vmatprep.subr.mxu0 0.0
    %1530 = vmatpush2.msra.mxu0 0.0
    %1531 = vmatprep.subr.mxu0 0.0
    %1532 = vmatpush2.msra.mxu0 0.0
    %1533 = vmatprep.subr.mxu0 0.0
    %1534 = vmatpush2.msra.mxu0 0.0
    %1535 = vmatprep.subr.mxu0 0.0
    %1536 = vmatpush2.msra.mxu0 0.0
    %1537 = vmatprep.subr.mxu0 0.0
    %1538 = vmatpush2.msra.mxu0 0.0
    %1539 = vmatprep.subr.mxu0 0.0
    %1540 = vmatpush2.msra.mxu0 0.0
    %1541 = vmatprep.subr.mxu0 0.0
    %1542 = vmatpush2.msra.mxu0 0.0
    %1543 = vmatprep.subr.mxu0 0.0
    %1544 = vmatpush2.msra.mxu0 0.0
    %1545 = vmatprep.subr.mxu0 0.0
    %1546 = vmatpush2.msra.mxu0 0.0
    %1547 = vmatprep.subr.mxu0 0.0
    %1548 = vmatpush2.msra.mxu0 0.0
    %1549 = vmatprep.subr.mxu0 0.0
    %1550 = vmatpush2.msra.mxu0 0.0
    %1551 = vmatprep.subr.mxu0 0.0
    %1552 = vmatpush2.msra.mxu0 0.0
    %1553 = vmatprep.subr.mxu0 0.0
    %1554 = vmatpush2.msra.mxu0 0.0
    %1555 = vmatprep.subr.mxu0 0.0
    %1556 = vmatpush2.msra.mxu0 0.0
    %1557 = vmatprep.subr.mxu0 0.0
    %1558 = vmatpush2.msra.mxu0 0.0
    %1559 = vmatprep.subr.mxu0 0.0
    %1560 = vmatpush2.msra.mxu0 0.0
    %1561 = vmatprep.mubr.f32.mxu0 0.0
    %1562 = vmatmul.mubr.f32.gmra.mxu0 %v1486
    %v1563 = vpop.f32.mrf.mxu0
    %v1564 = vadd.f32 %v1484, %v1563
    %v1565 = vpop.f32.mrf.mxu0
    %1566 = vmatprep.mubr.f32.mxu0 0.0
    %1567 = vmatmul.mubr.f32.gmra.mxu0 %v1489
    %v1568 = vpop.f32.mrf.mxu0
    %v1569 = vadd.f32 %v1484, %v1568
    %v1570 = vpop.f32.mrf.mxu0
    %1571 = vmatprep.mubr.f32.mxu0 0.0
    %1572 = vmatmul.mubr.f32.gmra.mxu0 %v1492
    %v1573 = vpop.f32.mrf.mxu0
    %v1574 = vadd.f32 %v1484, %v1573
    %v1575 = vpop.f32.mrf.mxu0
    %1576 = vmatprep.mubr.f32.mxu0 0.0
    %1577 = vmatmul.mubr.f32.gmra.mxu0 %v1495
    %v1578 = vpop.f32.mrf.mxu0
    %v1579 = vadd.f32 %v1484, %v1578
    %v1580 = vpop.f32.mrf.mxu0
    %1581 = vdwg.mxu0
    %1584 = vrot.lane.b32.xlu0 %v1468, 120
    %v1585 = vpop.permute.xlu0 %1584
    %1586 = vrot.lane.b32.xlu0 %v1473, 120
    %v1587 = vpop.permute.xlu0 %1586
    %1588 = vrot.lane.b32.xlu0 %v1468, 112
    %v1589 = vpop.permute.xlu0 %1588
    %1590 = vrot.lane.b32.xlu0 %v1473, 112
    %v1591 = vpop.permute.xlu0 %1590
    %1592 = vrot.lane.b32.xlu0 %v1468, 104
    %v1593 = vpop.permute.xlu0 %1592
    %1594 = vrot.lane.b32.xlu0 %v1473, 104
    %v1595 = vpop.permute.xlu0 %1594
    %1600 = vrot.lane.b32.xlu0 %v1564, 120
    %v1601 = vpop.permute.xlu0 %1600
    %1602 = vrot.lane.b32.xlu0 %v1569, 120
    %v1603 = vpop.permute.xlu0 %1602
    %1604 = vrot.lane.b32.xlu0 %v1574, 120
    %v1605 = vpop.permute.xlu0 %1604
    %1606 = vrot.lane.b32.xlu0 %v1579, 120
    %v1607 = vpop.permute.xlu0 %1606
    %1608 = vrot.lane.b32.xlu0 %v1564, 112
    %v1609 = vpop.permute.xlu0 %1608
    %1610 = vrot.lane.b32.xlu0 %v1569, 112
    %v1611 = vpop.permute.xlu0 %1610
    %1612 = vrot.lane.b32.xlu0 %v1574, 112
    %v1613 = vpop.permute.xlu0 %1612
    %1614 = vrot.lane.b32.xlu0 %v1579, 112
    %v1615 = vpop.permute.xlu0 %1614
    %1616 = vrot.lane.b32.xlu0 %v1564, 104
    %v1617 = vpop.permute.xlu0 %1616
    %1618 = vrot.lane.b32.xlu0 %v1569, 104
    %v1619 = vpop.permute.xlu0 %1618
    %1620 = vrot.lane.b32.xlu0 %v1574, 104
    %v1621 = vpop.permute.xlu0 %1620
    %1622 = vrot.lane.b32.xlu0 %v1579, 104
    %v1623 = vpop.permute.xlu0 %1622
    %vm1624 = vcmask 64512
    %v1625 = vsel %vm1624, %v1468, 0
    %v1627 = vsel %vm1624, %v1564, 0
    %v1629 = vsel %vm1624, %v1569, 0
    %1631 = vmatprep.subr.mxu0 0.0
    %1632 = vmatpush1.xpose.msra.mxu0 0.0
    %1633 = vmatprep.subr.mxu0 0.0
    %1634 = vmatpush1.xpose.msra.mxu0 0.0
    %1635 = vmatprep.subr.mxu0 0.0
    %1636 = vmatpush1.xpose.msra.mxu0 0.0
    %1637 = vmatprep.subr.mxu0 0.0
    %1638 = vmatpush1.xpose.msra.mxu0 0.0
    %1639 = vmatprep.subr.mxu0 0.0
    %1640 = vmatpush1.xpose.msra.mxu0 0.0
    %1641 = vmatprep.subr.mxu0 0.0
    %1642 = vmatpush1.xpose.msra.mxu0 0.0
    %1643 = vmatprep.subr.mxu0 0.0
    %1644 = vmatpush1.xpose.msra.mxu0 0.0
    %1645 = vmatprep.subr.mxu0 0.0
    %1646 = vmatpush1.xpose.msra.mxu0 0.0
    %1647 = vmatprep.subr.mxu0 0.0
    %1648 = vmatpush1.xpose.msra.mxu0 0.0
    %1649 = vmatprep.subr.mxu0 0.0
    %1650 = vmatpush1.xpose.msra.mxu0 0.0
    %1651 = vmatprep.subr.mxu0 0.0
    %1652 = vmatpush1.xpose.msra.mxu0 0.0
    %1653 = vmatprep.subr.mxu0 0.0
    %1654 = vmatpush1.xpose.msra.mxu0 0.0
    %1655 = vmatprep.subr.mxu0 0.0
    %1656 = vmatpush1.xpose.msra.mxu0 0.0
    %1657 = vmatprep.subr.mxu0 0.0
    %1658 = vmatpush1.xpose.msra.mxu0 0.0
    %1659 = vmatprep.subr.mxu0 0.0
    %1660 = vmatpush1.xpose.msra.mxu0 %v1629
    %1661 = vmatprep.subr.mxu0 0.0
    %1662 = vmatpush1.xpose.msra.mxu0 %v1627
    %1663 = vmatprep.subr.mxu0 0.0
    %1664 = vmatpush2.xpose.msra.mxu0 0.0
    %1665 = vmatprep.subr.mxu0 0.0
    %1666 = vmatpush2.xpose.msra.mxu0 0.0
    %1667 = vmatprep.subr.mxu0 0.0
    %1668 = vmatpush2.xpose.msra.mxu0 0.0
    %1669 = vmatprep.subr.mxu0 0.0
    %1670 = vmatpush2.xpose.msra.mxu0 0.0
    %1671 = vmatprep.subr.mxu0 0.0
    %1672 = vmatpush2.xpose.msra.mxu0 0.0
    %1673 = vmatprep.subr.mxu0 0.0
    %1674 = vmatpush2.xpose.msra.mxu0 0.0
    %1675 = vmatprep.subr.mxu0 0.0
    %1676 = vmatpush2.xpose.msra.mxu0 0.0
    %1677 = vmatprep.subr.mxu0 0.0
    %1678 = vmatpush2.xpose.msra.mxu0 0.0
    %1679 = vmatprep.subr.mxu0 0.0
    %1680 = vmatpush2.xpose.msra.mxu0 0.0
    %1681 = vmatprep.subr.mxu0 0.0
    %1682 = vmatpush2.xpose.msra.mxu0 0.0
    %1683 = vmatprep.subr.mxu0 0.0
    %1684 = vmatpush2.xpose.msra.mxu0 0.0
    %1685 = vmatprep.subr.mxu0 0.0
    %1686 = vmatpush2.xpose.msra.mxu0 0.0
    %1687 = vmatprep.subr.mxu0 0.0
    %1688 = vmatpush2.xpose.msra.mxu0 0.0
    %1689 = vmatprep.subr.mxu0 0.0
    %1690 = vmatpush2.xpose.msra.mxu0 0.0
    %1691 = vmatprep.subr.mxu0 0.0
    %1692 = vmatpush2.xpose.msra.mxu0 0.0
    %1693 = vmatprep.subr.mxu0 0.0
    %1694 = vmatpush2.xpose.msra.mxu0 0.0
    %1695 = vmatprep.mubr.f32.mxu0 0.0
    %1696 = vmatmul.mubr.f32.gmra.mxu0 %v1625
    %v1697 = vpop.f32.mrf.mxu0
    %v1698 = vadd.f32 0.0, %v1697
    %v1699 = vpop.f32.mrf.mxu0
    %1700 = vdwg.mxu0
    %v1701 = vsel %vm1624, %v1473, 0
    %v1703 = vsel %vm1624, %v1574, 0
    %v1705 = vsel %vm1624, %v1579, 0
    %1707 = vmatprep.subr.mxu0 0.0
    %1708 = vmatpush1.xpose.msra.mxu0 0.0
    %1709 = vmatprep.subr.mxu0 0.0
    %1710 = vmatpush1.xpose.msra.mxu0 0.0
    %1711 = vmatprep.subr.mxu0 0.0
    %1712 = vmatpush1.xpose.msra.mxu0 0.0
    %1713 = vmatprep.subr.mxu0 0.0
    %1714 = vmatpush1.xpose.msra.mxu0 0.0
    %1715 = vmatprep.subr.mxu0 0.0
    %1716 = vmatpush1.xpose.msra.mxu0 0.0
    %1717 = vmatprep.subr.mxu0 0.0
    %1718 = vmatpush1.xpose.msra.mxu0 0.0
    %1719 = vmatprep.subr.mxu0 0.0
    %1720 = vmatpush1.xpose.msra.mxu0 0.0
    %1721 = vmatprep.subr.mxu0 0.0
    %1722 = vmatpush1.xpose.msra.mxu0 0.0
    %1723 = vmatprep.subr.mxu0 0.0
    %1724 = vmatpush1.xpose.msra.mxu0 0.0
    %1725 = vmatprep.subr.mxu0 0.0
    %1726 = vmatpush1.xpose.msra.mxu0 0.0
    %1727 = vmatprep.subr.mxu0 0.0
    %1728 = vmatpush1.xpose.msra.mxu0 0.0
    %1729 = vmatprep.subr.mxu0 0.0
    %1730 = vmatpush1.xpose.msra.mxu0 0.0
    %1731 = vmatprep.subr.mxu0 0.0
    %1732 = vmatpush1.xpose.msra.mxu0 0.0
    %1733 = vmatprep.subr.mxu0 0.0
    %1734 = vmatpush1.xpose.msra.mxu0 0.0
    %1735 = vmatprep.subr.mxu0 0.0
    %1736 = vmatpush1.xpose.msra.mxu0 %v1705
    %1737 = vmatprep.subr.mxu0 0.0
    %1738 = vmatpush1.xpose.msra.mxu0 %v1703
    %1739 = vmatprep.subr.mxu0 0.0
    %1740 = vmatpush2.xpose.msra.mxu0 0.0
    %1741 = vmatprep.subr.mxu0 0.0
    %1742 = vmatpush2.xpose.msra.mxu0 0.0
    %1743 = vmatprep.subr.mxu0 0.0
    %1744 = vmatpush2.xpose.msra.mxu0 0.0
    %1745 = vmatprep.subr.mxu0 0.0
    %1746 = vmatpush2.xpose.msra.mxu0 0.0
    %1747 = vmatprep.subr.mxu0 0.0
    %1748 = vmatpush2.xpose.msra.mxu0 0.0
    %1749 = vmatprep.subr.mxu0 0.0
    %1750 = vmatpush2.xpose.msra.mxu0 0.0
    %1751 = vmatprep.subr.mxu0 0.0
    %1752 = vmatpush2.xpose.msra.mxu0 0.0
    %1753 = vmatprep.subr.mxu0 0.0
    %1754 = vmatpush2.xpose.msra.mxu0 0.0
    %1755 = vmatprep.subr.mxu0 0.0
    %1756 = vmatpush2.xpose.msra.mxu0 0.0
    %1757 = vmatprep.subr.mxu0 0.0
    %1758 = vmatpush2.xpose.msra.mxu0 0.0
    %1759 = vmatprep.subr.mxu0 0.0
    %1760 = vmatpush2.xpose.msra.mxu0 0.0
    %1761 = vmatprep.subr.mxu0 0.0
    %1762 = vmatpush2.xpose.msra.mxu0 0.0
    %1763 = vmatprep.subr.mxu0 0.0
    %1764 = vmatpush2.xpose.msra.mxu0 0.0
    %1765 = vmatprep.subr.mxu0 0.0
    %1766 = vmatpush2.xpose.msra.mxu0 0.0
    %1767 = vmatprep.subr.mxu0 0.0
    %1768 = vmatpush2.xpose.msra.mxu0 0.0
    %1769 = vmatprep.subr.mxu0 0.0
    %1770 = vmatpush2.xpose.msra.mxu0 0.0
    %1771 = vmatprep.mubr.f32.mxu0 0.0
    %1772 = vmatmul.mubr.f32.gmra.mxu0 %v1701
    %v1773 = vpop.f32.mrf.mxu0
    %v1774 = vadd.f32 0.0, %v1773
    %v1775 = vpop.f32.mrf.mxu0
    %1776 = vdwg.mxu0
    %v1777 = vsel %vm1624, %v1585, 0
    %v1779 = vsel %vm1624, %v1601, 0
    %v1781 = vsel %vm1624, %v1603, 0
    %1783 = vmatprep.subr.mxu0 0.0
    %1784 = vmatpush1.xpose.msra.mxu0 0.0
    %1785 = vmatprep.subr.mxu0 0.0
    %1786 = vmatpush1.xpose.msra.mxu0 0.0
    %1787 = vmatprep.subr.mxu0 0.0
    %1788 = vmatpush1.xpose.msra.mxu0 0.0
    %1789 = vmatprep.subr.mxu0 0.0
    %1790 = vmatpush1.xpose.msra.mxu0 0.0
    %1791 = vmatprep.subr.mxu0 0.0
    %1792 = vmatpush1.xpose.msra.mxu0 0.0
    %1793 = vmatprep.subr.mxu0 0.0
    %1794 = vmatpush1.xpose.msra.mxu0 0.0
    %1795 = vmatprep.subr.mxu0 0.0
    %1796 = vmatpush1.xpose.msra.mxu0 0.0
    %1797 = vmatprep.subr.mxu0 0.0
    %1798 = vmatpush1.xpose.msra.mxu0 0.0
    %1799 = vmatprep.subr.mxu0 0.0
    %1800 = vmatpush1.xpose.msra.mxu0 0.0
    %1801 = vmatprep.subr.mxu0 0.0
    %1802 = vmatpush1.xpose.msra.mxu0 0.0
    %1803 = vmatprep.subr.mxu0 0.0
    %1804 = vmatpush1.xpose.msra.mxu0 0.0
    %1805 = vmatprep.subr.mxu0 0.0
    %1806 = vmatpush1.xpose.msra.mxu0 0.0
    %1807 = vmatprep.subr.mxu0 0.0
    %1808 = vmatpush1.xpose.msra.mxu0 0.0
    %1809 = vmatprep.subr.mxu0 0.0
    %1810 = vmatpush1.xpose.msra.mxu0 0.0
    %1811 = vmatprep.subr.mxu0 0.0
    %1812 = vmatpush1.xpose.msra.mxu0 %v1781
    %1813 = vmatprep.subr.mxu0 0.0
    %1814 = vmatpush1.xpose.msra.mxu0 %v1779
    %1815 = vmatprep.subr.mxu0 0.0
    %1816 = vmatpush2.xpose.msra.mxu0 0.0
    %1817 = vmatprep.subr.mxu0 0.0
    %1818 = vmatpush2.xpose.msra.mxu0 0.0
    %1819 = vmatprep.subr.mxu0 0.0
    %1820 = vmatpush2.xpose.msra.mxu0 0.0
    %1821 = vmatprep.subr.mxu0 0.0
    %1822 = vmatpush2.xpose.msra.mxu0 0.0
    %1823 = vmatprep.subr.mxu0 0.0
    %1824 = vmatpush2.xpose.msra.mxu0 0.0
    %1825 = vmatprep.subr.mxu0 0.0
    %1826 = vmatpush2.xpose.msra.mxu0 0.0
    %1827 = vmatprep.subr.mxu0 0.0
    %1828 = vmatpush2.xpose.msra.mxu0 0.0
    %1829 = vmatprep.subr.mxu0 0.0
    %1830 = vmatpush2.xpose.msra.mxu0 0.0
    %1831 = vmatprep.subr.mxu0 0.0
    %1832 = vmatpush2.xpose.msra.mxu0 0.0
    %1833 = vmatprep.subr.mxu0 0.0
    %1834 = vmatpush2.xpose.msra.mxu0 0.0
    %1835 = vmatprep.subr.mxu0 0.0
    %1836 = vmatpush2.xpose.msra.mxu0 0.0
    %1837 = vmatprep.subr.mxu0 0.0
    %1838 = vmatpush2.xpose.msra.mxu0 0.0
    %1839 = vmatprep.subr.mxu0 0.0
    %1840 = vmatpush2.xpose.msra.mxu0 0.0
    %1841 = vmatprep.subr.mxu0 0.0
    %1842 = vmatpush2.xpose.msra.mxu0 0.0
    %1843 = vmatprep.subr.mxu0 0.0
    %1844 = vmatpush2.xpose.msra.mxu0 0.0
    %1845 = vmatprep.subr.mxu0 0.0
    %1846 = vmatpush2.xpose.msra.mxu0 0.0
    %1847 = vmatprep.mubr.f32.mxu0 0.0
    %1848 = vmatmul.mubr.f32.gmra.mxu0 %v1777
    %v1849 = vpop.f32.mrf.mxu0
    %v1850 = vadd.f32 0.0, %v1849
    %v1851 = vpop.f32.mrf.mxu0
    %1852 = vdwg.mxu0
    %v1853 = vsel %vm1624, %v1587, 0
    %v1855 = vsel %vm1624, %v1605, 0
    %v1857 = vsel %vm1624, %v1607, 0
    %1859 = vmatprep.subr.mxu0 0.0
    %1860 = vmatpush1.xpose.msra.mxu0 0.0
    %1861 = vmatprep.subr.mxu0 0.0
    %1862 = vmatpush1.xpose.msra.mxu0 0.0
    %1863 = vmatprep.subr.mxu0 0.0
    %1864 = vmatpush1.xpose.msra.mxu0 0.0
    %1865 = vmatprep.subr.mxu0 0.0
    %1866 = vmatpush1.xpose.msra.mxu0 0.0
    %1867 = vmatprep.subr.mxu0 0.0
    %1868 = vmatpush1.xpose.msra.mxu0 0.0
    %1869 = vmatprep.subr.mxu0 0.0
    %1870 = vmatpush1.xpose.msra.mxu0 0.0
    %1871 = vmatprep.subr.mxu0 0.0
    %1872 = vmatpush1.xpose.msra.mxu0 0.0
    %1873 = vmatprep.subr.mxu0 0.0
    %1874 = vmatpush1.xpose.msra.mxu0 0.0
    %1875 = vmatprep.subr.mxu0 0.0
    %1876 = vmatpush1.xpose.msra.mxu0 0.0
    %1877 = vmatprep.subr.mxu0 0.0
    %1878 = vmatpush1.xpose.msra.mxu0 0.0
    %1879 = vmatprep.subr.mxu0 0.0
    %1880 = vmatpush1.xpose.msra.mxu0 0.0
    %1881 = vmatprep.subr.mxu0 0.0
    %1882 = vmatpush1.xpose.msra.mxu0 0.0
    %1883 = vmatprep.subr.mxu0 0.0
    %1884 = vmatpush1.xpose.msra.mxu0 0.0
    %1885 = vmatprep.subr.mxu0 0.0
    %1886 = vmatpush1.xpose.msra.mxu0 0.0
    %1887 = vmatprep.subr.mxu0 0.0
    %1888 = vmatpush1.xpose.msra.mxu0 %v1857
    %1889 = vmatprep.subr.mxu0 0.0
    %1890 = vmatpush1.xpose.msra.mxu0 %v1855
    %1891 = vmatprep.subr.mxu0 0.0
    %1892 = vmatpush2.xpose.msra.mxu0 0.0
    %1893 = vmatprep.subr.mxu0 0.0
    %1894 = vmatpush2.xpose.msra.mxu0 0.0
    %1895 = vmatprep.subr.mxu0 0.0
    %1896 = vmatpush2.xpose.msra.mxu0 0.0
    %1897 = vmatprep.subr.mxu0 0.0
    %1898 = vmatpush2.xpose.msra.mxu0 0.0
    %1899 = vmatprep.subr.mxu0 0.0
    %1900 = vmatpush2.xpose.msra.mxu0 0.0
    %1901 = vmatprep.subr.mxu0 0.0
    %1902 = vmatpush2.xpose.msra.mxu0 0.0
    %1903 = vmatprep.subr.mxu0 0.0
    %1904 = vmatpush2.xpose.msra.mxu0 0.0
    %1905 = vmatprep.subr.mxu0 0.0
    %1906 = vmatpush2.xpose.msra.mxu0 0.0
    %1907 = vmatprep.subr.mxu0 0.0
    %1908 = vmatpush2.xpose.msra.mxu0 0.0
    %1909 = vmatprep.subr.mxu0 0.0
    %1910 = vmatpush2.xpose.msra.mxu0 0.0
    %1911 = vmatprep.subr.mxu0 0.0
    %1912 = vmatpush2.xpose.msra.mxu0 0.0
    %1913 = vmatprep.subr.mxu0 0.0
    %1914 = vmatpush2.xpose.msra.mxu0 0.0
    %1915 = vmatprep.subr.mxu0 0.0
    %1916 = vmatpush2.xpose.msra.mxu0 0.0
    %1917 = vmatprep.subr.mxu0 0.0
    %1918 = vmatpush2.xpose.msra.mxu0 0.0
    %1919 = vmatprep.subr.mxu0 0.0
    %1920 = vmatpush2.xpose.msra.mxu0 0.0
    %1921 = vmatprep.subr.mxu0 0.0
    %1922 = vmatpush2.xpose.msra.mxu0 0.0
    %1923 = vmatprep.mubr.f32.mxu0 0.0
    %1924 = vmatmul.mubr.f32.gmra.mxu0 %v1853
    %v1925 = vpop.f32.mrf.mxu0
    %v1926 = vadd.f32 0.0, %v1925
    %v1927 = vpop.f32.mrf.mxu0
    %1928 = vdwg.mxu0
    %v1929 = vsel %vm1624, %v1589, 0
    %v1931 = vsel %vm1624, %v1609, 0
    %v1933 = vsel %vm1624, %v1611, 0
    %1935 = vmatprep.subr.mxu0 0.0
    %1936 = vmatpush1.xpose.msra.mxu0 0.0
    %1937 = vmatprep.subr.mxu0 0.0
    %1938 = vmatpush1.xpose.msra.mxu0 0.0
    %1939 = vmatprep.subr.mxu0 0.0
    %1940 = vmatpush1.xpose.msra.mxu0 0.0
    %1941 = vmatprep.subr.mxu0 0.0
    %1942 = vmatpush1.xpose.msra.mxu0 0.0
    %1943 = vmatprep.subr.mxu0 0.0
    %1944 = vmatpush1.xpose.msra.mxu0 0.0
    %1945 = vmatprep.subr.mxu0 0.0
    %1946 = vmatpush1.xpose.msra.mxu0 0.0
    %1947 = vmatprep.subr.mxu0 0.0
    %1948 = vmatpush1.xpose.msra.mxu0 0.0
    %1949 = vmatprep.subr.mxu0 0.0
    %1950 = vmatpush1.xpose.msra.mxu0 0.0
    %1951 = vmatprep.subr.mxu0 0.0
    %1952 = vmatpush1.xpose.msra.mxu0 0.0
    %1953 = vmatprep.subr.mxu0 0.0
    %1954 = vmatpush1.xpose.msra.mxu0 0.0
    %1955 = vmatprep.subr.mxu0 0.0
    %1956 = vmatpush1.xpose.msra.mxu0 0.0
    %1957 = vmatprep.subr.mxu0 0.0
    %1958 = vmatpush1.xpose.msra.mxu0 0.0
    %1959 = vmatprep.subr.mxu0 0.0
    %1960 = vmatpush1.xpose.msra.mxu0 0.0
    %1961 = vmatprep.subr.mxu0 0.0
    %1962 = vmatpush1.xpose.msra.mxu0 0.0
    %1963 = vmatprep.subr.mxu0 0.0
    %1964 = vmatpush1.xpose.msra.mxu0 %v1933
    %1965 = vmatprep.subr.mxu0 0.0
    %1966 = vmatpush1.xpose.msra.mxu0 %v1931
    %1967 = vmatprep.subr.mxu0 0.0
    %1968 = vmatpush2.xpose.msra.mxu0 0.0
    %1969 = vmatprep.subr.mxu0 0.0
    %1970 = vmatpush2.xpose.msra.mxu0 0.0
    %1971 = vmatprep.subr.mxu0 0.0
    %1972 = vmatpush2.xpose.msra.mxu0 0.0
    %1973 = vmatprep.subr.mxu0 0.0
    %1974 = vmatpush2.xpose.msra.mxu0 0.0
    %1975 = vmatprep.subr.mxu0 0.0
    %1976 = vmatpush2.xpose.msra.mxu0 0.0
    %1977 = vmatprep.subr.mxu0 0.0
    %1978 = vmatpush2.xpose.msra.mxu0 0.0
    %1979 = vmatprep.subr.mxu0 0.0
    %1980 = vmatpush2.xpose.msra.mxu0 0.0
    %1981 = vmatprep.subr.mxu0 0.0
    %1982 = vmatpush2.xpose.msra.mxu0 0.0
    %1983 = vmatprep.subr.mxu0 0.0
    %1984 = vmatpush2.xpose.msra.mxu0 0.0
    %1985 = vmatprep.subr.mxu0 0.0
    %1986 = vmatpush2.xpose.msra.mxu0 0.0
    %1987 = vmatprep.subr.mxu0 0.0
    %1988 = vmatpush2.xpose.msra.mxu0 0.0
    %1989 = vmatprep.subr.mxu0 0.0
    %1990 = vmatpush2.xpose.msra.mxu0 0.0
    %1991 = vmatprep.subr.mxu0 0.0
    %1992 = vmatpush2.xpose.msra.mxu0 0.0
    %1993 = vmatprep.subr.mxu0 0.0
    %1994 = vmatpush2.xpose.msra.mxu0 0.0
    %1995 = vmatprep.subr.mxu0 0.0
    %1996 = vmatpush2.xpose.msra.mxu0 0.0
    %1997 = vmatprep.subr.mxu0 0.0
    %1998 = vmatpush2.xpose.msra.mxu0 0.0
    %1999 = vmatprep.mubr.f32.mxu0 0.0
    %2000 = vmatmul.mubr.f32.gmra.mxu0 %v1929
    %v2001 = vpop.f32.mrf.mxu0
    %v2002 = vadd.f32 0.0, %v2001
    %v2003 = vpop.f32.mrf.mxu0
    %2004 = vdwg.mxu0
    %v2005 = vsel %vm1624, %v1591, 0
    %v2007 = vsel %vm1624, %v1613, 0
    %v2009 = vsel %vm1624, %v1615, 0
    %2011 = vmatprep.subr.mxu0 0.0
    %2012 = vmatpush1.xpose.msra.mxu0 0.0
    %2013 = vmatprep.subr.mxu0 0.0
    %2014 = vmatpush1.xpose.msra.mxu0 0.0
    %2015 = vmatprep.subr.mxu0 0.0
    %2016 = vmatpush1.xpose.msra.mxu0 0.0
    %2017 = vmatprep.subr.mxu0 0.0
    %2018 = vmatpush1.xpose.msra.mxu0 0.0
    %2019 = vmatprep.subr.mxu0 0.0
    %2020 = vmatpush1.xpose.msra.mxu0 0.0
    %2021 = vmatprep.subr.mxu0 0.0
    %2022 = vmatpush1.xpose.msra.mxu0 0.0
    %2023 = vmatprep.subr.mxu0 0.0
    %2024 = vmatpush1.xpose.msra.mxu0 0.0
    %2025 = vmatprep.subr.mxu0 0.0
    %2026 = vmatpush1.xpose.msra.mxu0 0.0
    %2027 = vmatprep.subr.mxu0 0.0
    %2028 = vmatpush1.xpose.msra.mxu0 0.0
    %2029 = vmatprep.subr.mxu0 0.0
    %2030 = vmatpush1.xpose.msra.mxu0 0.0
    %2031 = vmatprep.subr.mxu0 0.0
    %2032 = vmatpush1.xpose.msra.mxu0 0.0
    %2033 = vmatprep.subr.mxu0 0.0
    %2034 = vmatpush1.xpose.msra.mxu0 0.0
    %2035 = vmatprep.subr.mxu0 0.0
    %2036 = vmatpush1.xpose.msra.mxu0 0.0
    %2037 = vmatprep.subr.mxu0 0.0
    %2038 = vmatpush1.xpose.msra.mxu0 0.0
    %2039 = vmatprep.subr.mxu0 0.0
    %2040 = vmatpush1.xpose.msra.mxu0 %v2009
    %2041 = vmatprep.subr.mxu0 0.0
    %2042 = vmatpush1.xpose.msra.mxu0 %v2007
    %2043 = vmatprep.subr.mxu0 0.0
    %2044 = vmatpush2.xpose.msra.mxu0 0.0
    %2045 = vmatprep.subr.mxu0 0.0
    %2046 = vmatpush2.xpose.msra.mxu0 0.0
    %2047 = vmatprep.subr.mxu0 0.0
    %2048 = vmatpush2.xpose.msra.mxu0 0.0
    %2049 = vmatprep.subr.mxu0 0.0
    %2050 = vmatpush2.xpose.msra.mxu0 0.0
    %2051 = vmatprep.subr.mxu0 0.0
    %2052 = vmatpush2.xpose.msra.mxu0 0.0
    %2053 = vmatprep.subr.mxu0 0.0
    %2054 = vmatpush2.xpose.msra.mxu0 0.0
    %2055 = vmatprep.subr.mxu0 0.0
    %2056 = vmatpush2.xpose.msra.mxu0 0.0
    %2057 = vmatprep.subr.mxu0 0.0
    %2058 = vmatpush2.xpose.msra.mxu0 0.0
    %2059 = vmatprep.subr.mxu0 0.0
    %2060 = vmatpush2.xpose.msra.mxu0 0.0
    %2061 = vmatprep.subr.mxu0 0.0
    %2062 = vmatpush2.xpose.msra.mxu0 0.0
    %2063 = vmatprep.subr.mxu0 0.0
    %2064 = vmatpush2.xpose.msra.mxu0 0.0
    %2065 = vmatprep.subr.mxu0 0.0
    %2066 = vmatpush2.xpose.msra.mxu0 0.0
    %2067 = vmatprep.subr.mxu0 0.0
    %2068 = vmatpush2.xpose.msra.mxu0 0.0
    %2069 = vmatprep.subr.mxu0 0.0
    %2070 = vmatpush2.xpose.msra.mxu0 0.0
    %2071 = vmatprep.subr.mxu0 0.0
    %2072 = vmatpush2.xpose.msra.mxu0 0.0
    %2073 = vmatprep.subr.mxu0 0.0
    %2074 = vmatpush2.xpose.msra.mxu0 0.0
    %2075 = vmatprep.mubr.f32.mxu0 0.0
    %2076 = vmatmul.mubr.f32.gmra.mxu0 %v2005
    %v2077 = vpop.f32.mrf.mxu0
    %v2078 = vadd.f32 0.0, %v2077
    %v2079 = vpop.f32.mrf.mxu0
    %2080 = vdwg.mxu0
    %v2081 = vsel %vm1624, %v1593, 0
    %v2083 = vsel %vm1624, %v1617, 0
    %v2085 = vsel %vm1624, %v1619, 0
    %2087 = vmatprep.subr.mxu0 0.0
    %2088 = vmatpush1.xpose.msra.mxu0 0.0
    %2089 = vmatprep.subr.mxu0 0.0
    %2090 = vmatpush1.xpose.msra.mxu0 0.0
    %2091 = vmatprep.subr.mxu0 0.0
    %2092 = vmatpush1.xpose.msra.mxu0 0.0
    %2093 = vmatprep.subr.mxu0 0.0
    %2094 = vmatpush1.xpose.msra.mxu0 0.0
    %2095 = vmatprep.subr.mxu0 0.0
    %2096 = vmatpush1.xpose.msra.mxu0 0.0
    %2097 = vmatprep.subr.mxu0 0.0
    %2098 = vmatpush1.xpose.msra.mxu0 0.0
    %2099 = vmatprep.subr.mxu0 0.0
    %2100 = vmatpush1.xpose.msra.mxu0 0.0
    %2101 = vmatprep.subr.mxu0 0.0
    %2102 = vmatpush1.xpose.msra.mxu0 0.0
    %2103 = vmatprep.subr.mxu0 0.0
    %2104 = vmatpush1.xpose.msra.mxu0 0.0
    %2105 = vmatprep.subr.mxu0 0.0
    %2106 = vmatpush1.xpose.msra.mxu0 0.0
    %2107 = vmatprep.subr.mxu0 0.0
    %2108 = vmatpush1.xpose.msra.mxu0 0.0
    %2109 = vmatprep.subr.mxu0 0.0
    %2110 = vmatpush1.xpose.msra.mxu0 0.0
    %2111 = vmatprep.subr.mxu0 0.0
    %2112 = vmatpush1.xpose.msra.mxu0 0.0
    %2113 = vmatprep.subr.mxu0 0.0
    %2114 = vmatpush1.xpose.msra.mxu0 0.0
    %2115 = vmatprep.subr.mxu0 0.0
    %2116 = vmatpush1.xpose.msra.mxu0 %v2085
    %2117 = vmatprep.subr.mxu0 0.0
    %2118 = vmatpush1.xpose.msra.mxu0 %v2083
    %2119 = vmatprep.subr.mxu0 0.0
    %2120 = vmatpush2.xpose.msra.mxu0 0.0
    %2121 = vmatprep.subr.mxu0 0.0
    %2122 = vmatpush2.xpose.msra.mxu0 0.0
    %2123 = vmatprep.subr.mxu0 0.0
    %2124 = vmatpush2.xpose.msra.mxu0 0.0
    %2125 = vmatprep.subr.mxu0 0.0
    %2126 = vmatpush2.xpose.msra.mxu0 0.0
    %2127 = vmatprep.subr.mxu0 0.0
    %2128 = vmatpush2.xpose.msra.mxu0 0.0
    %2129 = vmatprep.subr.mxu0 0.0
    %2130 = vmatpush2.xpose.msra.mxu0 0.0
    %2131 = vmatprep.subr.mxu0 0.0
    %2132 = vmatpush2.xpose.msra.mxu0 0.0
    %2133 = vmatprep.subr.mxu0 0.0
    %2134 = vmatpush2.xpose.msra.mxu0 0.0
    %2135 = vmatprep.subr.mxu0 0.0
    %2136 = vmatpush2.xpose.msra.mxu0 0.0
    %2137 = vmatprep.subr.mxu0 0.0
    %2138 = vmatpush2.xpose.msra.mxu0 0.0
    %2139 = vmatprep.subr.mxu0 0.0
    %2140 = vmatpush2.xpose.msra.mxu0 0.0
    %2141 = vmatprep.subr.mxu0 0.0
    %2142 = vmatpush2.xpose.msra.mxu0 0.0
    %2143 = vmatprep.subr.mxu0 0.0
    %2144 = vmatpush2.xpose.msra.mxu0 0.0
    %2145 = vmatprep.subr.mxu0 0.0
    %2146 = vmatpush2.xpose.msra.mxu0 0.0
    %2147 = vmatprep.subr.mxu0 0.0
    %2148 = vmatpush2.xpose.msra.mxu0 0.0
    %2149 = vmatprep.subr.mxu0 0.0
    %2150 = vmatpush2.xpose.msra.mxu0 0.0
    %2151 = vmatprep.mubr.f32.mxu0 0.0
    %2152 = vmatmul.mubr.f32.gmra.mxu0 %v2081
    %v2153 = vpop.f32.mrf.mxu0
    %v2154 = vadd.f32 0.0, %v2153
    %v2155 = vpop.f32.mrf.mxu0
    %2156 = vdwg.mxu0
    %v2157 = vsel %vm1624, %v1595, 0
    %v2159 = vsel %vm1624, %v1621, 0
    %v2161 = vsel %vm1624, %v1623, 0
    %2163 = vmatprep.subr.mxu0 0.0
    %2164 = vmatpush1.xpose.msra.mxu0 0.0
    %2165 = vmatprep.subr.mxu0 0.0
    %2166 = vmatpush1.xpose.msra.mxu0 0.0
    %2167 = vmatprep.subr.mxu0 0.0
    %2168 = vmatpush1.xpose.msra.mxu0 0.0
    %2169 = vmatprep.subr.mxu0 0.0
    %2170 = vmatpush1.xpose.msra.mxu0 0.0
    %2171 = vmatprep.subr.mxu0 0.0
    %2172 = vmatpush1.xpose.msra.mxu0 0.0
    %2173 = vmatprep.subr.mxu0 0.0
    %2174 = vmatpush1.xpose.msra.mxu0 0.0
    %2175 = vmatprep.subr.mxu0 0.0
    %2176 = vmatpush1.xpose.msra.mxu0 0.0
    %2177 = vmatprep.subr.mxu0 0.0
    %2178 = vmatpush1.xpose.msra.mxu0 0.0
    %2179 = vmatprep.subr.mxu0 0.0
    %2180 = vmatpush1.xpose.msra.mxu0 0.0
    %2181 = vmatprep.subr.mxu0 0.0
    %2182 = vmatpush1.xpose.msra.mxu0 0.0
    %2183 = vmatprep.subr.mxu0 0.0
    %2184 = vmatpush1.xpose.msra.mxu0 0.0
    %2185 = vmatprep.subr.mxu0 0.0
    %2186 = vmatpush1.xpose.msra.mxu0 0.0
    %2187 = vmatprep.subr.mxu0 0.0
    %2188 = vmatpush1.xpose.msra.mxu0 0.0
    %2189 = vmatprep.subr.mxu0 0.0
    %2190 = vmatpush1.xpose.msra.mxu0 0.0
    %2191 = vmatprep.subr.mxu0 0.0
    %2192 = vmatpush1.xpose.msra.mxu0 %v2161
    %2193 = vmatprep.subr.mxu0 0.0
    %2194 = vmatpush1.xpose.msra.mxu0 %v2159
    %2195 = vmatprep.subr.mxu0 0.0
    %2196 = vmatpush2.xpose.msra.mxu0 0.0
    %2197 = vmatprep.subr.mxu0 0.0
    %2198 = vmatpush2.xpose.msra.mxu0 0.0
    %2199 = vmatprep.subr.mxu0 0.0
    %2200 = vmatpush2.xpose.msra.mxu0 0.0
    %2201 = vmatprep.subr.mxu0 0.0
    %2202 = vmatpush2.xpose.msra.mxu0 0.0
    %2203 = vmatprep.subr.mxu0 0.0
    %2204 = vmatpush2.xpose.msra.mxu0 0.0
    %2205 = vmatprep.subr.mxu0 0.0
    %2206 = vmatpush2.xpose.msra.mxu0 0.0
    %2207 = vmatprep.subr.mxu0 0.0
    %2208 = vmatpush2.xpose.msra.mxu0 0.0
    %2209 = vmatprep.subr.mxu0 0.0
    %2210 = vmatpush2.xpose.msra.mxu0 0.0
    %2211 = vmatprep.subr.mxu0 0.0
    %2212 = vmatpush2.xpose.msra.mxu0 0.0
    %2213 = vmatprep.subr.mxu0 0.0
    %2214 = vmatpush2.xpose.msra.mxu0 0.0
    %2215 = vmatprep.subr.mxu0 0.0
    %2216 = vmatpush2.xpose.msra.mxu0 0.0
    %2217 = vmatprep.subr.mxu0 0.0
    %2218 = vmatpush2.xpose.msra.mxu0 0.0
    %2219 = vmatprep.subr.mxu0 0.0
    %2220 = vmatpush2.xpose.msra.mxu0 0.0
    %2221 = vmatprep.subr.mxu0 0.0
    %2222 = vmatpush2.xpose.msra.mxu0 0.0
    %2223 = vmatprep.subr.mxu0 0.0
    %2224 = vmatpush2.xpose.msra.mxu0 0.0
    %2225 = vmatprep.subr.mxu0 0.0
    %2226 = vmatpush2.xpose.msra.mxu0 0.0
    %2227 = vmatprep.mubr.f32.mxu0 0.0
    %2228 = vmatmul.mubr.f32.gmra.mxu0 %v2157
    %v2229 = vpop.f32.mrf.mxu0
    %v2230 = vadd.f32 0.0, %v2229
    %v2231 = vpop.f32.mrf.mxu0
    %2232 = vdwg.mxu0
    %vm2233 = vcmask 130048
    %v2234 = vsel %vm2233, %v1698, -inf
    %2235 = vmax.xlane.f32.xlu0 %v2234
    %v2236 = vpop.xlane.xlu0 %2235
    %v2237 = vsel %vm2233, %v1774, -inf
    %2238 = vmax.xlane.f32.xlu0 %v2237
    %v2239 = vpop.xlane.xlu0 %2238
    %v2240 = vsel %vm2233, %v1850, -inf
    %2241 = vmax.xlane.f32.xlu0 %v2240
    %v2242 = vpop.xlane.xlu0 %2241
    %v2243 = vsel %vm2233, %v1926, -inf
    %2244 = vmax.xlane.f32.xlu0 %v2243
    %v2245 = vpop.xlane.xlu0 %2244
    %v2246 = vsel %vm2233, %v2002, -inf
    %2247 = vmax.xlane.f32.xlu0 %v2246
    %v2248 = vpop.xlane.xlu0 %2247
    %v2249 = vsel %vm2233, %v2078, -inf
    %2250 = vmax.xlane.f32.xlu0 %v2249
    %v2251 = vpop.xlane.xlu0 %2250
    %v2252 = vsel %vm2233, %v2154, -inf
    %2253 = vmax.xlane.f32.xlu0 %v2252
    %v2254 = vpop.xlane.xlu0 %2253
    %v2255 = vsel %vm2233, %v2230, -inf
    %2256 = vmax.xlane.f32.xlu0 %v2255
    %v2257 = vpop.xlane.xlu0 %2256
    %v2258 = vsub.f32 %v1698, %v2236
    %v2259 = vsub.f32 %v1774, %v2239
    %v2260 = vsub.f32 %v1850, %v2242
    %v2261 = vsub.f32 %v1926, %v2245
    %v2262 = vsub.f32 %v2002, %v2248
    %v2263 = vsub.f32 %v2078, %v2251
    %v2264 = vsub.f32 %v2154, %v2254
    %v2265 = vsub.f32 %v2230, %v2257
    %v2266 = vmul.f32 %v2258, 1.442695
    %v2267 = vpow.pop %v2266
    %v2268 = vmul.f32 %v2259, 1.442695
    %v2269 = vpow.pop %v2268
    %v2270 = vmul.f32 %v2260, 1.442695
    %v2271 = vpow.pop %v2270
    %v2272 = vmul.f32 %v2261, 1.442695
    %v2273 = vpow.pop %v2272
    %v2274 = vmul.f32 %v2262, 1.442695
    %v2275 = vpow.pop %v2274
    %v2276 = vmul.f32 %v2263, 1.442695
    %v2277 = vpow.pop %v2276
    %v2278 = vmul.f32 %v2264, 1.442695
    %v2279 = vpow.pop %v2278
    %v2280 = vmul.f32 %v2265, 1.442695
    %v2281 = vpow.pop %v2280
    %v2282 = vsel %vm2233, %v2267, 0.0
    %2283 = vadd.xlane.f32.xlu0 %v2282
    %v2284 = vpop.xlane.xlu0 %2283
    %v2285 = vsel %vm2233, %v2269, 0.0
    %2286 = vadd.xlane.f32.xlu0 %v2285
    %v2287 = vpop.xlane.xlu0 %2286
    %v2288 = vsel %vm2233, %v2271, 0.0
    %2289 = vadd.xlane.f32.xlu0 %v2288
    %v2290 = vpop.xlane.xlu0 %2289
    %v2291 = vsel %vm2233, %v2273, 0.0
    %2292 = vadd.xlane.f32.xlu0 %v2291
    %v2293 = vpop.xlane.xlu0 %2292
    %v2294 = vsel %vm2233, %v2275, 0.0
    %2295 = vadd.xlane.f32.xlu0 %v2294
    %v2296 = vpop.xlane.xlu0 %2295
    %v2297 = vsel %vm2233, %v2277, 0.0
    %2298 = vadd.xlane.f32.xlu0 %v2297
    %v2299 = vpop.xlane.xlu0 %2298
    %v2300 = vsel %vm2233, %v2279, 0.0
    %2301 = vadd.xlane.f32.xlu0 %v2300
    %v2302 = vpop.xlane.xlu0 %2301
    %v2303 = vsel %vm2233, %v2281, 0.0
    %2304 = vadd.xlane.f32.xlu0 %v2303
    %v2305 = vpop.xlane.xlu0 %2304
    %v2306 = vrcp.pop %v2284
    %v2307 = vrcp.pop %v2287
    %v2308 = vrcp.pop %v2290
    %v2309 = vrcp.pop %v2293
    %v2310 = vrcp.pop %v2296
    %v2311 = vrcp.pop %v2299
    %v2312 = vrcp.pop %v2302
    %v2313 = vrcp.pop %v2305
    %v2314 = vmul.f32 %v2267, %v2306
    %v2315 = vmul.f32 %v2269, %v2307
    %v2316 = vmul.f32 %v2271, %v2308
    %v2317 = vmul.f32 %v2273, %v2309
    %v2318 = vmul.f32 %v2275, %v2310
    %v2319 = vmul.f32 %v2277, %v2311
    %v2320 = vmul.f32 %v2279, %v2312
    %v2321 = vmul.f32 %v2281, %v2313
    %2322 = vrot.lane.b32.xlu0 %v1564, 96
    %v2323 = vpop.permute.xlu0 %2322
    %2324 = vrot.lane.b32.xlu0 %v1569, 96
    %v2325 = vpop.permute.xlu0 %2324
    %v2329 = vsel %vm2233, %v2314, 0
    %2331 = vmatprep.subr.mxu0 0.0
    %2332 = vmatpush1.msra.mxu0 0.0
    %2333 = vmatprep.subr.mxu0 0.0
    %2334 = vmatpush1.msra.mxu0 0.0
    %2335 = vmatprep.subr.mxu0 0.0
    %2336 = vmatpush1.msra.mxu0 0.0
    %2337 = vmatprep.subr.mxu0 0.0
    %2338 = vmatpush1.msra.mxu0 0.0
    %2339 = vmatprep.subr.mxu0 0.0
    %2340 = vmatpush1.msra.mxu0 0.0
    %2341 = vmatprep.subr.mxu0 0.0
    %2342 = vmatpush1.msra.mxu0 0.0
    %2343 = vmatprep.subr.mxu0 0.0
    %2344 = vmatpush1.msra.mxu0 0.0
    %2345 = vmatprep.subr.mxu0 0.0
    %2346 = vmatpush1.msra.mxu0 0.0
    %2347 = vmatprep.subr.mxu0 0.0
    %2348 = vmatpush1.msra.mxu0 0.0
    %2349 = vmatprep.subr.mxu0 0.0
    %2350 = vmatpush1.msra.mxu0 0.0
    %2351 = vmatprep.subr.mxu0 0.0
    %2352 = vmatpush1.msra.mxu0 0.0
    %2353 = vmatprep.subr.mxu0 0.0
    %2354 = vmatpush1.msra.mxu0 0.0
    %2355 = vmatprep.subr.mxu0 0.0
    %2356 = vmatpush1.msra.mxu0 0.0
    %2357 = vmatprep.subr.mxu0 0.0
    %2358 = vmatpush1.msra.mxu0 0.0
    %2359 = vmatprep.subr.mxu0 0.0
    %2360 = vmatpush1.msra.mxu0 %v2325
    %2361 = vmatprep.subr.mxu0 0.0
    %2362 = vmatpush1.msra.mxu0 %v2323
    %2363 = vmatprep.subr.mxu0 0.0
    %2364 = vmatpush2.msra.mxu0 0.0
    %2365 = vmatprep.subr.mxu0 0.0
    %2366 = vmatpush2.msra.mxu0 0.0
    %2367 = vmatprep.subr.mxu0 0.0
    %2368 = vmatpush2.msra.mxu0 0.0
    %2369 = vmatprep.subr.mxu0 0.0
    %2370 = vmatpush2.msra.mxu0 0.0
    %2371 = vmatprep.subr.mxu0 0.0
    %2372 = vmatpush2.msra.mxu0 0.0
    %2373 = vmatprep.subr.mxu0 0.0
    %2374 = vmatpush2.msra.mxu0 0.0
    %2375 = vmatprep.subr.mxu0 0.0
    %2376 = vmatpush2.msra.mxu0 0.0
    %2377 = vmatprep.subr.mxu0 0.0
    %2378 = vmatpush2.msra.mxu0 0.0
    %2379 = vmatprep.subr.mxu0 0.0
    %2380 = vmatpush2.msra.mxu0 0.0
    %2381 = vmatprep.subr.mxu0 0.0
    %2382 = vmatpush2.msra.mxu0 0.0
    %2383 = vmatprep.subr.mxu0 0.0
    %2384 = vmatpush2.msra.mxu0 0.0
    %2385 = vmatprep.subr.mxu0 0.0
    %2386 = vmatpush2.msra.mxu0 0.0
    %2387 = vmatprep.subr.mxu0 0.0
    %2388 = vmatpush2.msra.mxu0 0.0
    %2389 = vmatprep.subr.mxu0 0.0
    %2390 = vmatpush2.msra.mxu0 0.0
    %2391 = vmatprep.subr.mxu0 0.0
    %2392 = vmatpush2.msra.mxu0 0.0
    %2393 = vmatprep.subr.mxu0 0.0
    %2394 = vmatpush2.msra.mxu0 0.0
    %2395 = vmatprep.mubr.f32.mxu0 0.0
    %2396 = vmatmul.mubr.f32.gmra.mxu0 %v2329
    %v2397 = vpop.f32.mrf.mxu0
    %v2398 = vadd.f32 0.0, %v2397
    %v2399 = vpop.f32.mrf.mxu0
    %2400 = vdwg.mxu0
    %2401 = vrot.lane.b32.xlu0 %v1574, 96
    %v2402 = vpop.permute.xlu0 %2401
    %2403 = vrot.lane.b32.xlu0 %v1579, 96
    %v2404 = vpop.permute.xlu0 %2403
    %v2408 = vsel %vm2233, %v2315, 0
    %2410 = vmatprep.subr.mxu0 0.0
    %2411 = vmatpush1.msra.mxu0 0.0
    %2412 = vmatprep.subr.mxu0 0.0
    %2413 = vmatpush1.msra.mxu0 0.0
    %2414 = vmatprep.subr.mxu0 0.0
    %2415 = vmatpush1.msra.mxu0 0.0
    %2416 = vmatprep.subr.mxu0 0.0
    %2417 = vmatpush1.msra.mxu0 0.0
    %2418 = vmatprep.subr.mxu0 0.0
    %2419 = vmatpush1.msra.mxu0 0.0
    %2420 = vmatprep.subr.mxu0 0.0
    %2421 = vmatpush1.msra.mxu0 0.0
    %2422 = vmatprep.subr.mxu0 0.0
    %2423 = vmatpush1.msra.mxu0 0.0
    %2424 = vmatprep.subr.mxu0 0.0
    %2425 = vmatpush1.msra.mxu0 0.0
    %2426 = vmatprep.subr.mxu0 0.0
    %2427 = vmatpush1.msra.mxu0 0.0
    %2428 = vmatprep.subr.mxu0 0.0
    %2429 = vmatpush1.msra.mxu0 0.0
    %2430 = vmatprep.subr.mxu0 0.0
    %2431 = vmatpush1.msra.mxu0 0.0
    %2432 = vmatprep.subr.mxu0 0.0
    %2433 = vmatpush1.msra.mxu0 0.0
    %2434 = vmatprep.subr.mxu0 0.0
    %2435 = vmatpush1.msra.mxu0 0.0
    %2436 = vmatprep.subr.mxu0 0.0
    %2437 = vmatpush1.msra.mxu0 0.0
    %2438 = vmatprep.subr.mxu0 0.0
    %2439 = vmatpush1.msra.mxu0 %v2404
    %2440 = vmatprep.subr.mxu0 0.0
    %2441 = vmatpush1.msra.mxu0 %v2402
    %2442 = vmatprep.subr.mxu0 0.0
    %2443 = vmatpush2.msra.mxu0 0.0
    %2444 = vmatprep.subr.mxu0 0.0
    %2445 = vmatpush2.msra.mxu0 0.0
    %2446 = vmatprep.subr.mxu0 0.0
    %2447 = vmatpush2.msra.mxu0 0.0
    %2448 = vmatprep.subr.mxu0 0.0
    %2449 = vmatpush2.msra.mxu0 0.0
    %2450 = vmatprep.subr.mxu0 0.0
    %2451 = vmatpush2.msra.mxu0 0.0
    %2452 = vmatprep.subr.mxu0 0.0
    %2453 = vmatpush2.msra.mxu0 0.0
    %2454 = vmatprep.subr.mxu0 0.0
    %2455 = vmatpush2.msra.mxu0 0.0
    %2456 = vmatprep.subr.mxu0 0.0
    %2457 = vmatpush2.msra.mxu0 0.0
    %2458 = vmatprep.subr.mxu0 0.0
    %2459 = vmatpush2.msra.mxu0 0.0
    %2460 = vmatprep.subr.mxu0 0.0
    %2461 = vmatpush2.msra.mxu0 0.0
    %2462 = vmatprep.subr.mxu0 0.0
    %2463 = vmatpush2.msra.mxu0 0.0
    %2464 = vmatprep.subr.mxu0 0.0
    %2465 = vmatpush2.msra.mxu0 0.0
    %2466 = vmatprep.subr.mxu0 0.0
    %2467 = vmatpush2.msra.mxu0 0.0
    %2468 = vmatprep.subr.mxu0 0.0
    %2469 = vmatpush2.msra.mxu0 0.0
    %2470 = vmatprep.subr.mxu0 0.0
    %2471 = vmatpush2.msra.mxu0 0.0
    %2472 = vmatprep.subr.mxu0 0.0
    %2473 = vmatpush2.msra.mxu0 0.0
    %2474 = vmatprep.mubr.f32.mxu0 0.0
    %2475 = vmatmul.mubr.f32.gmra.mxu0 %v2408
    %v2476 = vpop.f32.mrf.mxu0
    %v2477 = vadd.f32 0.0, %v2476
    %v2478 = vpop.f32.mrf.mxu0
    %2479 = vdwg.mxu0
    %2480 = vrot.lane.b32.xlu0 %v1601, 96
    %v2481 = vpop.permute.xlu0 %2480
    %2482 = vrot.lane.b32.xlu0 %v1603, 96
    %v2483 = vpop.permute.xlu0 %2482
    %v2487 = vsel %vm2233, %v2316, 0
    %2489 = vmatprep.subr.mxu0 0.0
    %2490 = vmatpush1.msra.mxu0 0.0
    %2491 = vmatprep.subr.mxu0 0.0
    %2492 = vmatpush1.msra.mxu0 0.0
    %2493 = vmatprep.subr.mxu0 0.0
    %2494 = vmatpush1.msra.mxu0 0.0
    %2495 = vmatprep.subr.mxu0 0.0
    %2496 = vmatpush1.msra.mxu0 0.0
    %2497 = vmatprep.subr.mxu0 0.0
    %2498 = vmatpush1.msra.mxu0 0.0
    %2499 = vmatprep.subr.mxu0 0.0
    %2500 = vmatpush1.msra.mxu0 0.0
    %2501 = vmatprep.subr.mxu0 0.0
    %2502 = vmatpush1.msra.mxu0 0.0
    %2503 = vmatprep.subr.mxu0 0.0
    %2504 = vmatpush1.msra.mxu0 0.0
    %2505 = vmatprep.subr.mxu0 0.0
    %2506 = vmatpush1.msra.mxu0 0.0
    %2507 = vmatprep.subr.mxu0 0.0
    %2508 = vmatpush1.msra.mxu0 0.0
    %2509 = vmatprep.subr.mxu0 0.0
    %2510 = vmatpush1.msra.mxu0 0.0
    %2511 = vmatprep.subr.mxu0 0.0
    %2512 = vmatpush1.msra.mxu0 0.0
    %2513 = vmatprep.subr.mxu0 0.0
    %2514 = vmatpush1.msra.mxu0 0.0
    %2515 = vmatprep.subr.mxu0 0.0
    %2516 = vmatpush1.msra.mxu0 0.0
    %2517 = vmatprep.subr.mxu0 0.0
    %2518 = vmatpush1.msra.mxu0 %v2483
    %2519 = vmatprep.subr.mxu0 0.0
    %2520 = vmatpush1.msra.mxu0 %v2481
    %2521 = vmatprep.subr.mxu0 0.0
    %2522 = vmatpush2.msra.mxu0 0.0
    %2523 = vmatprep.subr.mxu0 0.0
    %2524 = vmatpush2.msra.mxu0 0.0
    %2525 = vmatprep.subr.mxu0 0.0
    %2526 = vmatpush2.msra.mxu0 0.0
    %2527 = vmatprep.subr.mxu0 0.0
    %2528 = vmatpush2.msra.mxu0 0.0
    %2529 = vmatprep.subr.mxu0 0.0
    %2530 = vmatpush2.msra.mxu0 0.0
    %2531 = vmatprep.subr.mxu0 0.0
    %2532 = vmatpush2.msra.mxu0 0.0
    %2533 = vmatprep.subr.mxu0 0.0
    %2534 = vmatpush2.msra.mxu0 0.0
    %2535 = vmatprep.subr.mxu0 0.0
    %2536 = vmatpush2.msra.mxu0 0.0
    %2537 = vmatprep.subr.mxu0 0.0
    %2538 = vmatpush2.msra.mxu0 0.0
    %2539 = vmatprep.subr.mxu0 0.0
    %2540 = vmatpush2.msra.mxu0 0.0
    %2541 = vmatprep.subr.mxu0 0.0
    %2542 = vmatpush2.msra.mxu0 0.0
    %2543 = vmatprep.subr.mxu0 0.0
    %2544 = vmatpush2.msra.mxu0 0.0
    %2545 = vmatprep.subr.mxu0 0.0
    %2546 = vmatpush2.msra.mxu0 0.0
    %2547 = vmatprep.subr.mxu0 0.0
    %2548 = vmatpush2.msra.mxu0 0.0
    %2549 = vmatprep.subr.mxu0 0.0
    %2550 = vmatpush2.msra.mxu0 0.0
    %2551 = vmatprep.subr.mxu0 0.0
    %2552 = vmatpush2.msra.mxu0 0.0
    %2553 = vmatprep.mubr.f32.mxu0 0.0
    %2554 = vmatmul.mubr.f32.gmra.mxu0 %v2487
    %v2555 = vpop.f32.mrf.mxu0
    %v2556 = vadd.f32 0.0, %v2555
    %v2557 = vpop.f32.mrf.mxu0
    %2558 = vdwg.mxu0
    %2559 = vrot.lane.b32.xlu0 %v1605, 96
    %v2560 = vpop.permute.xlu0 %2559
    %2561 = vrot.lane.b32.xlu0 %v1607, 96
    %v2562 = vpop.permute.xlu0 %2561
    %v2566 = vsel %vm2233, %v2317, 0
    %2568 = vmatprep.subr.mxu0 0.0
    %2569 = vmatpush1.msra.mxu0 0.0
    %2570 = vmatprep.subr.mxu0 0.0
    %2571 = vmatpush1.msra.mxu0 0.0
    %2572 = vmatprep.subr.mxu0 0.0
    %2573 = vmatpush1.msra.mxu0 0.0
    %2574 = vmatprep.subr.mxu0 0.0
    %2575 = vmatpush1.msra.mxu0 0.0
    %2576 = vmatprep.subr.mxu0 0.0
    %2577 = vmatpush1.msra.mxu0 0.0
    %2578 = vmatprep.subr.mxu0 0.0
    %2579 = vmatpush1.msra.mxu0 0.0
    %2580 = vmatprep.subr.mxu0 0.0
    %2581 = vmatpush1.msra.mxu0 0.0
    %2582 = vmatprep.subr.mxu0 0.0
    %2583 = vmatpush1.msra.mxu0 0.0
    %2584 = vmatprep.subr.mxu0 0.0
    %2585 = vmatpush1.msra.mxu0 0.0
    %2586 = vmatprep.subr.mxu0 0.0
    %2587 = vmatpush1.msra.mxu0 0.0
    %2588 = vmatprep.subr.mxu0 0.0
    %2589 = vmatpush1.msra.mxu0 0.0
    %2590 = vmatprep.subr.mxu0 0.0
    %2591 = vmatpush1.msra.mxu0 0.0
    %2592 = vmatprep.subr.mxu0 0.0
    %2593 = vmatpush1.msra.mxu0 0.0
    %2594 = vmatprep.subr.mxu0 0.0
    %2595 = vmatpush1.msra.mxu0 0.0
    %2596 = vmatprep.subr.mxu0 0.0
    %2597 = vmatpush1.msra.mxu0 %v2562
    %2598 = vmatprep.subr.mxu0 0.0
    %2599 = vmatpush1.msra.mxu0 %v2560
    %2600 = vmatprep.subr.mxu0 0.0
    %2601 = vmatpush2.msra.mxu0 0.0
    %2602 = vmatprep.subr.mxu0 0.0
    %2603 = vmatpush2.msra.mxu0 0.0
    %2604 = vmatprep.subr.mxu0 0.0
    %2605 = vmatpush2.msra.mxu0 0.0
    %2606 = vmatprep.subr.mxu0 0.0
    %2607 = vmatpush2.msra.mxu0 0.0
    %2608 = vmatprep.subr.mxu0 0.0
    %2609 = vmatpush2.msra.mxu0 0.0
    %2610 = vmatprep.subr.mxu0 0.0
    %2611 = vmatpush2.msra.mxu0 0.0
    %2612 = vmatprep.subr.mxu0 0.0
    %2613 = vmatpush2.msra.mxu0 0.0
    %2614 = vmatprep.subr.mxu0 0.0
    %2615 = vmatpush2.msra.mxu0 0.0
    %2616 = vmatprep.subr.mxu0 0.0
    %2617 = vmatpush2.msra.mxu0 0.0
    %2618 = vmatprep.subr.mxu0 0.0
    %2619 = vmatpush2.msra.mxu0 0.0
    %2620 = vmatprep.subr.mxu0 0.0
    %2621 = vmatpush2.msra.mxu0 0.0
    %2622 = vmatprep.subr.mxu0 0.0
    %2623 = vmatpush2.msra.mxu0 0.0
    %2624 = vmatprep.subr.mxu0 0.0
    %2625 = vmatpush2.msra.mxu0 0.0
    %2626 = vmatprep.subr.mxu0 0.0
    %2627 = vmatpush2.msra.mxu0 0.0
    %2628 = vmatprep.subr.mxu0 0.0
    %2629 = vmatpush2.msra.mxu0 0.0
    %2630 = vmatprep.subr.mxu0 0.0
    %2631 = vmatpush2.msra.mxu0 0.0
    %2632 = vmatprep.mubr.f32.mxu0 0.0
    %2633 = vmatmul.mubr.f32.gmra.mxu0 %v2566
    %v2634 = vpop.f32.mrf.mxu0
    %v2635 = vadd.f32 0.0, %v2634
    %v2636 = vpop.f32.mrf.mxu0
    %2637 = vdwg.mxu0
    %2638 = vrot.lane.b32.xlu0 %v1609, 96
    %v2639 = vpop.permute.xlu0 %2638
    %2640 = vrot.lane.b32.xlu0 %v1611, 96
    %v2641 = vpop.permute.xlu0 %2640
    %v2645 = vsel %vm2233, %v2318, 0
    %2647 = vmatprep.subr.mxu0 0.0
    %2648 = vmatpush1.msra.mxu0 0.0
    %2649 = vmatprep.subr.mxu0 0.0
    %2650 = vmatpush1.msra.mxu0 0.0
    %2651 = vmatprep.subr.mxu0 0.0
    %2652 = vmatpush1.msra.mxu0 0.0
    %2653 = vmatprep.subr.mxu0 0.0
    %2654 = vmatpush1.msra.mxu0 0.0
    %2655 = vmatprep.subr.mxu0 0.0
    %2656 = vmatpush1.msra.mxu0 0.0
    %2657 = vmatprep.subr.mxu0 0.0
    %2658 = vmatpush1.msra.mxu0 0.0
    %2659 = vmatprep.subr.mxu0 0.0
    %2660 = vmatpush1.msra.mxu0 0.0
    %2661 = vmatprep.subr.mxu0 0.0
    %2662 = vmatpush1.msra.mxu0 0.0
    %2663 = vmatprep.subr.mxu0 0.0
    %2664 = vmatpush1.msra.mxu0 0.0
    %2665 = vmatprep.subr.mxu0 0.0
    %2666 = vmatpush1.msra.mxu0 0.0
    %2667 = vmatprep.subr.mxu0 0.0
    %2668 = vmatpush1.msra.mxu0 0.0
    %2669 = vmatprep.subr.mxu0 0.0
    %2670 = vmatpush1.msra.mxu0 0.0
    %2671 = vmatprep.subr.mxu0 0.0
    %2672 = vmatpush1.msra.mxu0 0.0
    %2673 = vmatprep.subr.mxu0 0.0
    %2674 = vmatpush1.msra.mxu0 0.0
    %2675 = vmatprep.subr.mxu0 0.0
    %2676 = vmatpush1.msra.mxu0 %v2641
    %2677 = vmatprep.subr.mxu0 0.0
    %2678 = vmatpush1.msra.mxu0 %v2639
    %2679 = vmatprep.subr.mxu0 0.0
    %2680 = vmatpush2.msra.mxu0 0.0
    %2681 = vmatprep.subr.mxu0 0.0
    %2682 = vmatpush2.msra.mxu0 0.0
    %2683 = vmatprep.subr.mxu0 0.0
    %2684 = vmatpush2.msra.mxu0 0.0
    %2685 = vmatprep.subr.mxu0 0.0
    %2686 = vmatpush2.msra.mxu0 0.0
    %2687 = vmatprep.subr.mxu0 0.0
    %2688 = vmatpush2.msra.mxu0 0.0
    %2689 = vmatprep.subr.mxu0 0.0
    %2690 = vmatpush2.msra.mxu0 0.0
    %2691 = vmatprep.subr.mxu0 0.0
    %2692 = vmatpush2.msra.mxu0 0.0
    %2693 = vmatprep.subr.mxu0 0.0
    %2694 = vmatpush2.msra.mxu0 0.0
    %2695 = vmatprep.subr.mxu0 0.0
    %2696 = vmatpush2.msra.mxu0 0.0
    %2697 = vmatprep.subr.mxu0 0.0
    %2698 = vmatpush2.msra.mxu0 0.0
    %2699 = vmatprep.subr.mxu0 0.0
    %2700 = vmatpush2.msra.mxu0 0.0
    %2701 = vmatprep.subr.mxu0 0.0
    %2702 = vmatpush2.msra.mxu0 0.0
    %2703 = vmatprep.subr.mxu0 0.0
    %2704 = vmatpush2.msra.mxu0 0.0
    %2705 = vmatprep.subr.mxu0 0.0
    %2706 = vmatpush2.msra.mxu0 0.0
    %2707 = vmatprep.subr.mxu0 0.0
    %2708 = vmatpush2.msra.mxu0 0.0
    %2709 = vmatprep.subr.mxu0 0.0
    %2710 = vmatpush2.msra.mxu0 0.0
    %2711 = vmatprep.mubr.f32.mxu0 0.0
    %2712 = vmatmul.mubr.f32.gmra.mxu0 %v2645
    %v2713 = vpop.f32.mrf.mxu0
    %v2714 = vadd.f32 0.0, %v2713
    %v2715 = vpop.f32.mrf.mxu0
    %2716 = vdwg.mxu0
    %2717 = vrot.lane.b32.xlu0 %v1613, 96
    %v2718 = vpop.permute.xlu0 %2717
    %2719 = vrot.lane.b32.xlu0 %v1615, 96
    %v2720 = vpop.permute.xlu0 %2719
    %v2724 = vsel %vm2233, %v2319, 0
    %2726 = vmatprep.subr.mxu0 0.0
    %2727 = vmatpush1.msra.mxu0 0.0
    %2728 = vmatprep.subr.mxu0 0.0
    %2729 = vmatpush1.msra.mxu0 0.0
    %2730 = vmatprep.subr.mxu0 0.0
    %2731 = vmatpush1.msra.mxu0 0.0
    %2732 = vmatprep.subr.mxu0 0.0
    %2733 = vmatpush1.msra.mxu0 0.0
    %2734 = vmatprep.subr.mxu0 0.0
    %2735 = vmatpush1.msra.mxu0 0.0
    %2736 = vmatprep.subr.mxu0 0.0
    %2737 = vmatpush1.msra.mxu0 0.0
    %2738 = vmatprep.subr.mxu0 0.0
    %2739 = vmatpush1.msra.mxu0 0.0
    %2740 = vmatprep.subr.mxu0 0.0
    %2741 = vmatpush1.msra.mxu0 0.0
    %2742 = vmatprep.subr.mxu0 0.0
    %2743 = vmatpush1.msra.mxu0 0.0
    %2744 = vmatprep.subr.mxu0 0.0
    %2745 = vmatpush1.msra.mxu0 0.0
    %2746 = vmatprep.subr.mxu0 0.0
    %2747 = vmatpush1.msra.mxu0 0.0
    %2748 = vmatprep.subr.mxu0 0.0
    %2749 = vmatpush1.msra.mxu0 0.0
    %2750 = vmatprep.subr.mxu0 0.0
    %2751 = vmatpush1.msra.mxu0 0.0
    %2752 = vmatprep.subr.mxu0 0.0
    %2753 = vmatpush1.msra.mxu0 0.0
    %2754 = vmatprep.subr.mxu0 0.0
    %2755 = vmatpush1.msra.mxu0 %v2720
    %2756 = vmatprep.subr.mxu0 0.0
    %2757 = vmatpush1.msra.mxu0 %v2718
    %2758 = vmatprep.subr.mxu0 0.0
    %2759 = vmatpush2.msra.mxu0 0.0
    %2760 = vmatprep.subr.mxu0 0.0
    %2761 = vmatpush2.msra.mxu0 0.0
    %2762 = vmatprep.subr.mxu0 0.0
    %2763 = vmatpush2.msra.mxu0 0.0
    %2764 = vmatprep.subr.mxu0 0.0
    %2765 = vmatpush2.msra.mxu0 0.0
    %2766 = vmatprep.subr.mxu0 0.0
    %2767 = vmatpush2.msra.mxu0 0.0
    %2768 = vmatprep.subr.mxu0 0.0
    %2769 = vmatpush2.msra.mxu0 0.0
    %2770 = vmatprep.subr.mxu0 0.0
    %2771 = vmatpush2.msra.mxu0 0.0
    %2772 = vmatprep.subr.mxu0 0.0
    %2773 = vmatpush2.msra.mxu0 0.0
    %2774 = vmatprep.subr.mxu0 0.0
    %2775 = vmatpush2.msra.mxu0 0.0
    %2776 = vmatprep.subr.mxu0 0.0
    %2777 = vmatpush2.msra.mxu0 0.0
    %2778 = vmatprep.subr.mxu0 0.0
    %2779 = vmatpush2.msra.mxu0 0.0
    %2780 = vmatprep.subr.mxu0 0.0
    %2781 = vmatpush2.msra.mxu0 0.0
    %2782 = vmatprep.subr.mxu0 0.0
    %2783 = vmatpush2.msra.mxu0 0.0
    %2784 = vmatprep.subr.mxu0 0.0
    %2785 = vmatpush2.msra.mxu0 0.0
    %2786 = vmatprep.subr.mxu0 0.0
    %2787 = vmatpush2.msra.mxu0 0.0
    %2788 = vmatprep.subr.mxu0 0.0
    %2789 = vmatpush2.msra.mxu0 0.0
    %2790 = vmatprep.mubr.f32.mxu0 0.0
    %2791 = vmatmul.mubr.f32.gmra.mxu0 %v2724
    %v2792 = vpop.f32.mrf.mxu0
    %v2793 = vadd.f32 0.0, %v2792
    %v2794 = vpop.f32.mrf.mxu0
    %2795 = vdwg.mxu0
    %2796 = vrot.lane.b32.xlu0 %v1617, 96
    %v2797 = vpop.permute.xlu0 %2796
    %2798 = vrot.lane.b32.xlu0 %v1619, 96
    %v2799 = vpop.permute.xlu0 %2798
    %v2803 = vsel %vm2233, %v2320, 0
    %2805 = vmatprep.subr.mxu0 0.0
    %2806 = vmatpush1.msra.mxu0 0.0
    %2807 = vmatprep.subr.mxu0 0.0
    %2808 = vmatpush1.msra.mxu0 0.0
    %2809 = vmatprep.subr.mxu0 0.0
    %2810 = vmatpush1.msra.mxu0 0.0
    %2811 = vmatprep.subr.mxu0 0.0
    %2812 = vmatpush1.msra.mxu0 0.0
    %2813 = vmatprep.subr.mxu0 0.0
    %2814 = vmatpush1.msra.mxu0 0.0
    %2815 = vmatprep.subr.mxu0 0.0
    %2816 = vmatpush1.msra.mxu0 0.0
    %2817 = vmatprep.subr.mxu0 0.0
    %2818 = vmatpush1.msra.mxu0 0.0
    %2819 = vmatprep.subr.mxu0 0.0
    %2820 = vmatpush1.msra.mxu0 0.0
    %2821 = vmatprep.subr.mxu0 0.0
    %2822 = vmatpush1.msra.mxu0 0.0
    %2823 = vmatprep.subr.mxu0 0.0
    %2824 = vmatpush1.msra.mxu0 0.0
    %2825 = vmatprep.subr.mxu0 0.0
    %2826 = vmatpush1.msra.mxu0 0.0
    %2827 = vmatprep.subr.mxu0 0.0
    %2828 = vmatpush1.msra.mxu0 0.0
    %2829 = vmatprep.subr.mxu0 0.0
    %2830 = vmatpush1.msra.mxu0 0.0
    %2831 = vmatprep.subr.mxu0 0.0
    %2832 = vmatpush1.msra.mxu0 0.0
    %2833 = vmatprep.subr.mxu0 0.0
    %2834 = vmatpush1.msra.mxu0 %v2799
    %2835 = vmatprep.subr.mxu0 0.0
    %2836 = vmatpush1.msra.mxu0 %v2797
    %2837 = vmatprep.subr.mxu0 0.0
    %2838 = vmatpush2.msra.mxu0 0.0
    %2839 = vmatprep.subr.mxu0 0.0
    %2840 = vmatpush2.msra.mxu0 0.0
    %2841 = vmatprep.subr.mxu0 0.0
    %2842 = vmatpush2.msra.mxu0 0.0
    %2843 = vmatprep.subr.mxu0 0.0
    %2844 = vmatpush2.msra.mxu0 0.0
    %2845 = vmatprep.subr.mxu0 0.0
    %2846 = vmatpush2.msra.mxu0 0.0
    %2847 = vmatprep.subr.mxu0 0.0
    %2848 = vmatpush2.msra.mxu0 0.0
    %2849 = vmatprep.subr.mxu0 0.0
    %2850 = vmatpush2.msra.mxu0 0.0
    %2851 = vmatprep.subr.mxu0 0.0
    %2852 = vmatpush2.msra.mxu0 0.0
    %2853 = vmatprep.subr.mxu0 0.0
    %2854 = vmatpush2.msra.mxu0 0.0
    %2855 = vmatprep.subr.mxu0 0.0
    %2856 = vmatpush2.msra.mxu0 0.0
    %2857 = vmatprep.subr.mxu0 0.0
    %2858 = vmatpush2.msra.mxu0 0.0
    %2859 = vmatprep.subr.mxu0 0.0
    %2860 = vmatpush2.msra.mxu0 0.0
    %2861 = vmatprep.subr.mxu0 0.0
    %2862 = vmatpush2.msra.mxu0 0.0
    %2863 = vmatprep.subr.mxu0 0.0
    %2864 = vmatpush2.msra.mxu0 0.0
    %2865 = vmatprep.subr.mxu0 0.0
    %2866 = vmatpush2.msra.mxu0 0.0
    %2867 = vmatprep.subr.mxu0 0.0
    %2868 = vmatpush2.msra.mxu0 0.0
    %2869 = vmatprep.mubr.f32.mxu0 0.0
    %2870 = vmatmul.mubr.f32.gmra.mxu0 %v2803
    %v2871 = vpop.f32.mrf.mxu0
    %v2872 = vadd.f32 0.0, %v2871
    %v2873 = vpop.f32.mrf.mxu0
    %2874 = vdwg.mxu0
    %2875 = vrot.lane.b32.xlu0 %v1621, 96
    %v2876 = vpop.permute.xlu0 %2875
    %2877 = vrot.lane.b32.xlu0 %v1623, 96
    %v2878 = vpop.permute.xlu0 %2877
    %v2882 = vsel %vm2233, %v2321, 0
    %2884 = vmatprep.subr.mxu0 0.0
    %2885 = vmatpush1.msra.mxu0 0.0
    %2886 = vmatprep.subr.mxu0 0.0
    %2887 = vmatpush1.msra.mxu0 0.0
    %2888 = vmatprep.subr.mxu0 0.0
    %2889 = vmatpush1.msra.mxu0 0.0
    %2890 = vmatprep.subr.mxu0 0.0
    %2891 = vmatpush1.msra.mxu0 0.0
    %2892 = vmatprep.subr.mxu0 0.0
    %2893 = vmatpush1.msra.mxu0 0.0
    %2894 = vmatprep.subr.mxu0 0.0
    %2895 = vmatpush1.msra.mxu0 0.0
    %2896 = vmatprep.subr.mxu0 0.0
    %2897 = vmatpush1.msra.mxu0 0.0
    %2898 = vmatprep.subr.mxu0 0.0
    %2899 = vmatpush1.msra.mxu0 0.0
    %2900 = vmatprep.subr.mxu0 0.0
    %2901 = vmatpush1.msra.mxu0 0.0
    %2902 = vmatprep.subr.mxu0 0.0
    %2903 = vmatpush1.msra.mxu0 0.0
    %2904 = vmatprep.subr.mxu0 0.0
    %2905 = vmatpush1.msra.mxu0 0.0
    %2906 = vmatprep.subr.mxu0 0.0
    %2907 = vmatpush1.msra.mxu0 0.0
    %2908 = vmatprep.subr.mxu0 0.0
    %2909 = vmatpush1.msra.mxu0 0.0
    %2910 = vmatprep.subr.mxu0 0.0
    %2911 = vmatpush1.msra.mxu0 0.0
    %2912 = vmatprep.subr.mxu0 0.0
    %2913 = vmatpush1.msra.mxu0 %v2878
    %2914 = vmatprep.subr.mxu0 0.0
    %2915 = vmatpush1.msra.mxu0 %v2876
    %2916 = vmatprep.subr.mxu0 0.0
    %2917 = vmatpush2.msra.mxu0 0.0
    %2918 = vmatprep.subr.mxu0 0.0
    %2919 = vmatpush2.msra.mxu0 0.0
    %2920 = vmatprep.subr.mxu0 0.0
    %2921 = vmatpush2.msra.mxu0 0.0
    %2922 = vmatprep.subr.mxu0 0.0
    %2923 = vmatpush2.msra.mxu0 0.0
    %2924 = vmatprep.subr.mxu0 0.0
    %2925 = vmatpush2.msra.mxu0 0.0
    %2926 = vmatprep.subr.mxu0 0.0
    %2927 = vmatpush2.msra.mxu0 0.0
    %2928 = vmatprep.subr.mxu0 0.0
    %2929 = vmatpush2.msra.mxu0 0.0
    %2930 = vmatprep.subr.mxu0 0.0
    %2931 = vmatpush2.msra.mxu0 0.0
    %2932 = vmatprep.subr.mxu0 0.0
    %2933 = vmatpush2.msra.mxu0 0.0
    %2934 = vmatprep.subr.mxu0 0.0
    %2935 = vmatpush2.msra.mxu0 0.0
    %2936 = vmatprep.subr.mxu0 0.0
    %2937 = vmatpush2.msra.mxu0 0.0
    %2938 = vmatprep.subr.mxu0 0.0
    %2939 = vmatpush2.msra.mxu0 0.0
    %2940 = vmatprep.subr.mxu0 0.0
    %2941 = vmatpush2.msra.mxu0 0.0
    %2942 = vmatprep.subr.mxu0 0.0
    %2943 = vmatpush2.msra.mxu0 0.0
    %2944 = vmatprep.subr.mxu0 0.0
    %2945 = vmatpush2.msra.mxu0 0.0
    %2946 = vmatprep.subr.mxu0 0.0
    %2947 = vmatpush2.msra.mxu0 0.0
    %2948 = vmatprep.mubr.f32.mxu0 0.0
    %2949 = vmatmul.mubr.f32.gmra.mxu0 %v2882
    %v2950 = vpop.f32.mrf.mxu0
    %v2951 = vadd.f32 0.0, %v2950
    %v2952 = vpop.f32.mrf.mxu0
    %2953 = vdwg.mxu0
    %2956 = vrot.lane.b32.xlu0 %v2556, 8
    %v2957 = vpop.permute.xlu0 %2956
    %2958 = vrot.lane.b32.xlu0 %v2635, 8
    %v2959 = vpop.permute.xlu0 %2958
    %2964 = vrot.lane.b32.xlu0 %v2714, 16
    %v2965 = vpop.permute.xlu0 %2964
    %2966 = vrot.lane.b32.xlu0 %v2793, 16
    %v2967 = vpop.permute.xlu0 %2966
    %2972 = vrot.lane.b32.xlu0 %v2872, 24
    %v2973 = vpop.permute.xlu0 %2972
    %2974 = vrot.lane.b32.xlu0 %v2951, 24
    %v2975 = vpop.permute.xlu0 %2974
    %v2978 = vsel %vm1624, %v2398, %v2957
    %v2979 = vsel %vm1624, %v2477, %v2959
    %v2980 = vsel %vm2233, %v2978, %v2965
    %v2981 = vsel %vm2233, %v2979, %v2967
    %v2982 = vsel %vm570, %v2980, %v2973
    %v2983 = vsel %vm570, %v2981, %v2975
    %v2984 = vld [vmem:[#allocation2 + $0x88] sm:$0xff]
    %v2985 = vld [vmem:[#allocation2 + $0x90] sm:$0xff]
    %v2986 = vld [vmem:[#allocation2 + $0x98] sm:$0xff]
    %v2987 = vld [vmem:[#allocation2 + $0xa0] sm:$0xff]
    %v2988 = vld [vmem:[#allocation2 + $0x14f] sm:$0x1]
    %v2989 = vlaneseq
    %v2990 = vshrl.u32 %v2989, 7
    %v2991 = vsub.s32 0, %v2990
    %v2992 = vrot.slane %v2988, %v2991
    %v2994 = vsel %vm1284, %v2982, 0
    %v2997 = vsel %vm1284, %v2983, 0
    %2999 = vmatprep.subr.mxu0 0.0
    %3000 = vmatpush1.msra.mxu0 0.0
    %3001 = vmatprep.subr.mxu0 0.0
    %3002 = vmatpush1.msra.mxu0 0.0
    %3003 = vmatprep.subr.mxu0 0.0
    %3004 = vmatpush1.msra.mxu0 0.0
    %3005 = vmatprep.subr.mxu0 0.0
    %3006 = vmatpush1.msra.mxu0 0.0
    %3007 = vmatprep.subr.mxu0 0.0
    %3008 = vmatpush1.msra.mxu0 0.0
    %3009 = vmatprep.subr.mxu0 0.0
    %3010 = vmatpush1.msra.mxu0 0.0
    %3011 = vmatprep.subr.mxu0 0.0
    %3012 = vmatpush1.msra.mxu0 0.0
    %3013 = vmatprep.subr.mxu0 0.0
    %3014 = vmatpush1.msra.mxu0 0.0
    %3015 = vmatprep.subr.mxu0 0.0
    %3016 = vmatpush1.msra.mxu0 0.0
    %3017 = vmatprep.subr.mxu0 0.0
    %3018 = vmatpush1.msra.mxu0 0.0
    %3019 = vmatprep.subr.mxu0 0.0
    %3020 = vmatpush1.msra.mxu0 0.0
    %3021 = vmatprep.subr.mxu0 0.0
    %3022 = vmatpush1.msra.mxu0 0.0
    %3023 = vmatprep.subr.mxu0 0.0
    %3024 = vmatpush1.msra.mxu0 %v2987
    %3025 = vmatprep.subr.mxu0 0.0
    %3026 = vmatpush1.msra.mxu0 %v2986
    %3027 = vmatprep.subr.mxu0 0.0
    %3028 = vmatpush1.msra.mxu0 %v2985
    %3029 = vmatprep.subr.mxu0 0.0
    %3030 = vmatpush1.msra.mxu0 %v2984
    %3031 = vmatprep.subr.mxu0 0.0
    %3032 = vmatpush2.msra.mxu0 0.0
    %3033 = vmatprep.subr.mxu0 0.0
    %3034 = vmatpush2.msra.mxu0 0.0
    %3035 = vmatprep.subr.mxu0 0.0
    %3036 = vmatpush2.msra.mxu0 0.0
    %3037 = vmatprep.subr.mxu0 0.0
    %3038 = vmatpush2.msra.mxu0 0.0
    %3039 = vmatprep.subr.mxu0 0.0
    %3040 = vmatpush2.msra.mxu0 0.0
    %3041 = vmatprep.subr.mxu0 0.0
    %3042 = vmatpush2.msra.mxu0 0.0
    %3043 = vmatprep.subr.mxu0 0.0
    %3044 = vmatpush2.msra.mxu0 0.0
    %3045 = vmatprep.subr.mxu0 0.0
    %3046 = vmatpush2.msra.mxu0 0.0
    %3047 = vmatprep.subr.mxu0 0.0
    %3048 = vmatpush2.msra.mxu0 0.0
    %3049 = vmatprep.subr.mxu0 0.0
    %3050 = vmatpush2.msra.mxu0 0.0
    %3051 = vmatprep.subr.mxu0 0.0
    %3052 = vmatpush2.msra.mxu0 0.0
    %3053 = vmatprep.subr.mxu0 0.0
    %3054 = vmatpush2.msra.mxu0 0.0
    %3055 = vmatprep.subr.mxu0 0.0
    %3056 = vmatpush2.msra.mxu0 0.0
    %3057 = vmatprep.subr.mxu0 0.0
    %3058 = vmatpush2.msra.mxu0 0.0
    %3059 = vmatprep.subr.mxu0 0.0
    %3060 = vmatpush2.msra.mxu0 0.0
    %3061 = vmatprep.subr.mxu0 0.0
    %3062 = vmatpush2.msra.mxu0 0.0
    %3063 = vmatprep.mubr.f32.mxu0 0.0
    %3064 = vmatmul.mubr.f32.gmra.mxu0 %v2994
    %v3065 = vpop.f32.mrf.mxu0
    %v3066 = vadd.f32 %v2992, %v3065
    %v3067 = vpop.f32.mrf.mxu0
    %3068 = vmatprep.mubr.f32.mxu0 0.0
    %3069 = vmatmul.mubr.f32.gmra.mxu0 %v2997
    %v3070 = vpop.f32.mrf.mxu0
    %v3071 = vadd.f32 %v2992, %v3070
    %v3072 = vpop.f32.mrf.mxu0
    %3073 = vdwg.mxu0
    %v3074 = vadd.f32 %v1281, %v3066
    %v3075 = vadd.f32 %v1281, %v3071
    %v3076 = vld [vmem:[#allocation2 + $0x150] sm:$0x1]
    %v3077 = vld [vmem:[#allocation2 + $0x151] sm:$0x1]
    %v3078 = vsel %vm1284, %v3074, 0.0
    %3079 = vadd.xlane.f32.xlu0 %v3078
    %v3080 = vpop.xlane.xlu0 %3079
    %v3081 = vsel %vm1284, %v3075, 0.0
    %3082 = vadd.xlane.f32.xlu0 %v3081
    %v3083 = vpop.xlane.xlu0 %3082
    %v3084 = vmul.f32 %v3080, %v1288
    %v3085 = vmul.f32 %v3083, %v1288
    %v3086 = vmul.f32 %v3074, %v3074
    %v3087 = vmul.f32 %v3075, %v3075
    %v3088 = vsel %vm1284, %v3086, 0.0
    %3089 = vadd.xlane.f32.xlu0 %v3088
    %v3090 = vpop.xlane.xlu0 %3089
    %v3091 = vsel %vm1284, %v3087, 0.0
    %3092 = vadd.xlane.f32.xlu0 %v3091
    %v3093 = vpop.xlane.xlu0 %3092
    %v3094 = vmul.f32 %v3090, %v1288
    %v3095 = vmul.f32 %v3093, %v1288
    %v3096 = vmul.f32 %v3084, %v3084
    %v3097 = vmul.f32 %v3085, %v3085
    %v3098 = vsub.f32 %v3094, %v3096
    %v3099 = vsub.f32 %v3095, %v3097
    %v3100 = vsub.f32 %v3074, %v3084
    %v3101 = vsub.f32 %v3075, %v3085
    %v3102 = vadd.f32 %v3098, 1e-05
    %v3103 = vadd.f32 %v3099, 1e-05
    %v3104 = vrsqrt.pop %v3102
    %v3105 = vrsqrt.pop %v3103
    %v3106 = vmul.f32 %v3100, %v3104
    %v3107 = vmul.f32 %v3101, %v3105
    %v3108 = vlaneseq
    %v3109 = vshrl.u32 %v3108, 7
    %v3110 = vsub.s32 0, %v3109
    %v3111 = vrot.slane %v3076, %v3110
    %v3112 = vmul.f32 %v3106, %v3111
    %v3113 = vmul.f32 %v3107, %v3111
    %v3114 = vlaneseq
    %v3115 = vshrl.u32 %v3114, 7
    %v3116 = vsub.s32 0, %v3115
    %v3117 = vrot.slane %v3077, %v3116
    %v3118 = vadd.f32 %v3112, %v3117
    %v3119 = vadd.f32 %v3113, %v3117
    %v3120 = vld [vmem:[#allocation2 + $0xa8] sm:$0xff]
    %v3121 = vld [vmem:[#allocation2 + $0xb0] sm:$0xff]
    %v3122 = vld [vmem:[#allocation2 + $0xb8] sm:$0xff]
    %v3123 = vld [vmem:[#allocation2 + $0xc0] sm:$0xff]
    %v3124 = vld [vmem:[#allocation2 + $0x152] sm:$0x1]
    %v3125 = vlaneseq
    %v3126 = vshrl.u32 %v3125, 7
    %v3127 = vsub.s32 0, %v3126
    %v3128 = vrot.slane %v3124, %v3127
    %v3130 = vsel %vm1284, %v3118, 0
    %v3133 = vsel %vm1284, %v3119, 0
    %3135 = vmatprep.subr.mxu0 0.0
    %3136 = vmatpush1.msra.mxu0 0.0
    %3137 = vmatprep.subr.mxu0 0.0
    %3138 = vmatpush1.msra.mxu0 0.0
    %3139 = vmatprep.subr.mxu0 0.0
    %3140 = vmatpush1.msra.mxu0 0.0
    %3141 = vmatprep.subr.mxu0 0.0
    %3142 = vmatpush1.msra.mxu0 0.0
    %3143 = vmatprep.subr.mxu0 0.0
    %3144 = vmatpush1.msra.mxu0 0.0
    %3145 = vmatprep.subr.mxu0 0.0
    %3146 = vmatpush1.msra.mxu0 0.0
    %3147 = vmatprep.subr.mxu0 0.0
    %3148 = vmatpush1.msra.mxu0 0.0
    %3149 = vmatprep.subr.mxu0 0.0
    %3150 = vmatpush1.msra.mxu0 0.0
    %3151 = vmatprep.subr.mxu0 0.0
    %3152 = vmatpush1.msra.mxu0 0.0
    %3153 = vmatprep.subr.mxu0 0.0
    %3154 = vmatpush1.msra.mxu0 0.0
    %3155 = vmatprep.subr.mxu0 0.0
    %3156 = vmatpush1.msra.mxu0 0.0
    %3157 = vmatprep.subr.mxu0 0.0
    %3158 = vmatpush1.msra.mxu0 0.0
    %3159 = vmatprep.subr.mxu0 0.0
    %3160 = vmatpush1.msra.mxu0 %v3123
    %3161 = vmatprep.subr.mxu0 0.0
    %3162 = vmatpush1.msra.mxu0 %v3122
    %3163 = vmatprep.subr.mxu0 0.0
    %3164 = vmatpush1.msra.mxu0 %v3121
    %3165 = vmatprep.subr.mxu0 0.0
    %3166 = vmatpush1.msra.mxu0 %v3120
    %3167 = vmatprep.subr.mxu0 0.0
    %3168 = vmatpush2.msra.mxu0 0.0
    %3169 = vmatprep.subr.mxu0 0.0
    %3170 = vmatpush2.msra.mxu0 0.0
    %3171 = vmatprep.subr.mxu0 0.0
    %3172 = vmatpush2.msra.mxu0 0.0
    %3173 = vmatprep.subr.mxu0 0.0
    %3174 = vmatpush2.msra.mxu0 0.0
    %3175 = vmatprep.subr.mxu0 0.0
    %3176 = vmatpush2.msra.mxu0 0.0
    %3177 = vmatprep.subr.mxu0 0.0
    %3178 = vmatpush2.msra.mxu0 0.0
    %3179 = vmatprep.subr.mxu0 0.0
    %3180 = vmatpush2.msra.mxu0 0.0
    %3181 = vmatprep.subr.mxu0 0.0
    %3182 = vmatpush2.msra.mxu0 0.0
    %3183 = vmatprep.subr.mxu0 0.0
    %3184 = vmatpush2.msra.mxu0 0.0
    %3185 = vmatprep.subr.mxu0 0.0
    %3186 = vmatpush2.msra.mxu0 0.0
    %3187 = vmatprep.subr.mxu0 0.0
    %3188 = vmatpush2.msra.mxu0 0.0
    %3189 = vmatprep.subr.mxu0 0.0
    %3190 = vmatpush2.msra.mxu0 0.0
    %3191 = vmatprep.subr.mxu0 0.0
    %3192 = vmatpush2.msra.mxu0 0.0
    %3193 = vmatprep.subr.mxu0 0.0
    %3194 = vmatpush2.msra.mxu0 0.0
    %3195 = vmatprep.subr.mxu0 0.0
    %3196 = vmatpush2.msra.mxu0 0.0
    %3197 = vmatprep.subr.mxu0 0.0
    %3198 = vmatpush2.msra.mxu0 0.0
    %3199 = vmatprep.mubr.f32.mxu0 0.0
    %3200 = vmatmul.mubr.f32.gmra.mxu0 %v3130
    %v3201 = vpop.f32.mrf.mxu0
    %v3202 = vadd.f32 %v3128, %v3201
    %v3203 = vpop.f32.mrf.mxu0
    %3204 = vmatprep.mubr.f32.mxu0 0.0
    %3205 = vmatmul.mubr.f32.gmra.mxu0 %v3133
    %v3206 = vpop.f32.mrf.mxu0
    %v3207 = vadd.f32 %v3128, %v3206
    %v3208 = vpop.f32.mrf.mxu0
    %3209 = vdwg.mxu0
    %v3210 = vmul.f32 %v3202, %v3202
    %v3211 = vmul.f32 %v3207, %v3207
    %v3212 = vmul.f32 %v3202, %v3210
    %v3213 = vmul.f32 %v3207, %v3211
    %v3214 = vmul.f32 %v3212, 0.044715
    %v3215 = vmul.f32 %v3213, 0.044715
    %v3216 = vadd.f32 %v3202, %v3214
    %v3217 = vadd.f32 %v3207, %v3215
    %v3218 = vmul.f32 %v3216, 0.7978846
    %v3219 = vmul.f32 %v3217, 0.7978846
    %v3220 = vtanh.pop %v3218
    %v3221 = vtanh.pop %v3219
    %v3222 = vadd.f32 %v3220, 1.0
    %v3223 = vadd.f32 %v3221, 1.0
    %v3224 = vmul.f32 %v3222, 0.5
    %v3225 = vmul.f32 %v3223, 0.5
    %v3226 = vmul.f32 %v3202, %v3224
    %v3227 = vmul.f32 %v3207, %v3225
    %v3228 = vld [vmem:[#allocation2 + $0xc8] sm:$0xff]
    %v3229 = vld [vmem:[#allocation2 + $0xd0] sm:$0xff]
    %v3230 = vld [vmem:[#allocation2 + $0xd8] sm:$0xff]
    %v3231 = vld [vmem:[#allocation2 + $0xe0] sm:$0xff]
    %v3232 = vld [vmem:[#allocation2 + $0xe8] sm:$0xff]
    %v3233 = vld [vmem:[#allocation2 + $0xf0] sm:$0xff]
    %v3234 = vld [vmem:[#allocation2 + $0xf8] sm:$0xff]
    %v3235 = vld [vmem:[#allocation2 + $0x100] sm:$0xff]
    %v3236 = vld [vmem:[#allocation2 + $0x108] sm:$0xff]
    %v3237 = vld [vmem:[#allocation2 + $0x110] sm:$0xff]
    %v3238 = vld [vmem:[#allocation2 + $0x118] sm:$0xff]
    %v3239 = vld [vmem:[#allocation2 + $0x120] sm:$0xff]
    %v3240 = vld [vmem:[#allocation2 + $0x128] sm:$0xff]
    %v3241 = vld [vmem:[#allocation2 + $0x130] sm:$0xff]
    %v3242 = vld [vmem:[#allocation2 + $0x138] sm:$0xff]
    %v3243 = vld [vmem:[#allocation2 + $0x140] sm:$0xff]
    %v3244 = vld [vmem:[#allocation2 + $0x153] sm:$0x1]
    %v3245 = vlaneseq
    %v3246 = vshrl.u32 %v3245, 7
    %v3247 = vsub.s32 0, %v3246
    %v3248 = vrot.slane %v3244, %v3247
    %3249 = vmatprep.subr.mxu0 0.0
    %3250 = vmatpush1.msra.mxu0 %v3243
    %3251 = vmatprep.subr.mxu0 0.0
    %3252 = vmatpush1.msra.mxu0 %v3242
    %3253 = vmatprep.subr.mxu0 0.0
    %3254 = vmatpush1.msra.mxu0 %v3241
    %3255 = vmatprep.subr.mxu0 0.0
    %3256 = vmatpush1.msra.mxu0 %v3240
    %3257 = vmatprep.subr.mxu0 0.0
    %3258 = vmatpush1.msra.mxu0 %v3239
    %3259 = vmatprep.subr.mxu0 0.0
    %3260 = vmatpush1.msra.mxu0 %v3238
    %3261 = vmatprep.subr.mxu0 0.0
    %3262 = vmatpush1.msra.mxu0 %v3237
    %3263 = vmatprep.subr.mxu0 0.0
    %3264 = vmatpush1.msra.mxu0 %v3236
    %3265 = vmatprep.subr.mxu0 0.0
    %3266 = vmatpush1.msra.mxu0 %v3235
    %3267 = vmatprep.subr.mxu0 0.0
    %3268 = vmatpush1.msra.mxu0 %v3234
    %3269 = vmatprep.subr.mxu0 0.0
    %3270 = vmatpush1.msra.mxu0 %v3233
    %3271 = vmatprep.subr.mxu0 0.0
    %3272 = vmatpush1.msra.mxu0 %v3232
    %3273 = vmatprep.subr.mxu0 0.0
    %3274 = vmatpush1.msra.mxu0 %v3231
    %3275 = vmatprep.subr.mxu0 0.0
    %3276 = vmatpush1.msra.mxu0 %v3230
    %3277 = vmatprep.subr.mxu0 0.0
    %3278 = vmatpush1.msra.mxu0 %v3229
    %3279 = vmatprep.subr.mxu0 0.0
    %3280 = vmatpush1.msra.mxu0 %v3228
    %3281 = vmatprep.subr.mxu0 0.0
    %3282 = vmatpush2.msra.mxu0 0.0
    %3283 = vmatprep.subr.mxu0 0.0
    %3284 = vmatpush2.msra.mxu0 0.0
    %3285 = vmatprep.subr.mxu0 0.0
    %3286 = vmatpush2.msra.mxu0 0.0
    %3287 = vmatprep.subr.mxu0 0.0
    %3288 = vmatpush2.msra.mxu0 0.0
    %3289 = vmatprep.subr.mxu0 0.0
    %3290 = vmatpush2.msra.mxu0 0.0
    %3291 = vmatprep.subr.mxu0 0.0
    %3292 = vmatpush2.msra.mxu0 0.0
    %3293 = vmatprep.subr.mxu0 0.0
    %3294 = vmatpush2.msra.mxu0 0.0
    %3295 = vmatprep.subr.mxu0 0.0
    %3296 = vmatpush2.msra.mxu0 0.0
    %3297 = vmatprep.subr.mxu0 0.0
    %3298 = vmatpush2.msra.mxu0 0.0
    %3299 = vmatprep.subr.mxu0 0.0
    %3300 = vmatpush2.msra.mxu0 0.0
    %3301 = vmatprep.subr.mxu0 0.0
    %3302 = vmatpush2.msra.mxu0 0.0
    %3303 = vmatprep.subr.mxu0 0.0
    %3304 = vmatpush2.msra.mxu0 0.0
    %3305 = vmatprep.subr.mxu0 0.0
    %3306 = vmatpush2.msra.mxu0 0.0
    %3307 = vmatprep.subr.mxu0 0.0
    %3308 = vmatpush2.msra.mxu0 0.0
    %3309 = vmatprep.subr.mxu0 0.0
    %3310 = vmatpush2.msra.mxu0 0.0
    %3311 = vmatprep.subr.mxu0 0.0
    %3312 = vmatpush2.msra.mxu0 0.0
    %3313 = vmatprep.mubr.f32.mxu0 0.0
    %3314 = vmatmul.mubr.f32.gmra.mxu0 %v3226
    %v3315 = vpop.f32.mrf.mxu0
    %v3316 = vadd.f32 %v3248, %v3315
    %v3317 = vpop.f32.mrf.mxu0
    %3318 = vmatprep.mubr.f32.mxu0 0.0
    %3319 = vmatmul.mubr.f32.gmra.mxu0 %v3227
    %v3320 = vpop.f32.mrf.mxu0
    %v3321 = vadd.f32 %v3248, %v3320
    %v3322 = vpop.f32.mrf.mxu0
    %3323 = vdwg.mxu0
    %v3324 = vadd.f32 %v3074, %v3316
    %v3325 = vadd.f32 %v3075, %v3321
    %v3326 = vld [vmem:[#allocation5 + $0xe0] sm:$0x1]
    %v3327 = vld [vmem:[#allocation5 + $0xe1] sm:$0x1]
    %v3328 = vsel %vm1284, %v3324, 0.0
    %3329 = vadd.xlane.f32.xlu0 %v3328
    %v3330 = vpop.xlane.xlu0 %3329
    %v3331 = vsel %vm1284, %v3325, 0.0
    %3332 = vadd.xlane.f32.xlu0 %v3331
    %v3333 = vpop.xlane.xlu0 %3332
    %v3334 = vmul.f32 %v3330, %v1288
    %v3335 = vmul.f32 %v3333, %v1288
    %v3336 = vmul.f32 %v3324, %v3324
    %v3337 = vmul.f32 %v3325, %v3325
    %v3338 = vsel %vm1284, %v3336, 0.0
    %3339 = vadd.xlane.f32.xlu0 %v3338
    %v3340 = vpop.xlane.xlu0 %3339
    %v3341 = vsel %vm1284, %v3337, 0.0
    %3342 = vadd.xlane.f32.xlu0 %v3341
    %v3343 = vpop.xlane.xlu0 %3342
    %v3344 = vmul.f32 %v3340, %v1288
    %v3345 = vmul.f32 %v3343, %v1288
    %v3346 = vmul.f32 %v3334, %v3334
    %v3347 = vmul.f32 %v3335, %v3335
    %v3348 = vsub.f32 %v3344, %v3346
    %v3349 = vsub.f32 %v3345, %v3347
    %v3350 = vsub.f32 %v3324, %v3334
    %v3351 = vsub.f32 %v3325, %v3335
    %v3352 = vadd.f32 %v3348, 1e-05
    %v3353 = vadd.f32 %v3349, 1e-05
    %v3354 = vrsqrt.pop %v3352
    %v3355 = vrsqrt.pop %v3353
    %v3356 = vmul.f32 %v3350, %v3354
    %v3357 = vmul.f32 %v3351, %v3355
    %v3358 = vlaneseq
    %v3359 = vshrl.u32 %v3358, 7
    %v3360 = vsub.s32 0, %v3359
    %v3361 = vrot.slane %v3326, %v3360
    %v3362 = vmul.f32 %v3356, %v3361
    %v3363 = vmul.f32 %v3357, %v3361
    %v3364 = vlaneseq
    %v3365 = vshrl.u32 %v3364, 7
    %v3366 = vsub.s32 0, %v3365
    %v3367 = vrot.slane %v3327, %v3366
    %v3368 = vadd.f32 %v3362, %v3367
    %v3369 = vadd.f32 %v3363, %v3367
    %v3370 = vld [vmem:[#allocation5] sm:$0xff]
    %v3371 = vld [vmem:[#allocation5 + $0x8] sm:$0xff]
    %v3372 = vld [vmem:[#allocation5 + $0x10] sm:$0xff]
    %v3373 = vld [vmem:[#allocation5 + $0x18] sm:$0xff]
    %v3374 = vld [vmem:[#allocation5 + $0xe2] sm:$0x1]
    %v3375 = vlaneseq
    %v3376 = vshrl.u32 %v3375, 7
    %v3377 = vsub.s32 0, %v3376
    %v3378 = vrot.slane %v3374, %v3377
    %v3380 = vsel %vm1284, %v3368, 0
    %v3383 = vsel %vm1284, %v3369, 0
    %3385 = vmatprep.subr.mxu0 0.0
    %3386 = vmatpush1.msra.mxu0 0.0
    %3387 = vmatprep.subr.mxu0 0.0
    %3388 = vmatpush1.msra.mxu0 0.0
    %3389 = vmatprep.subr.mxu0 0.0
    %3390 = vmatpush1.msra.mxu0 0.0
    %3391 = vmatprep.subr.mxu0 0.0
    %3392 = vmatpush1.msra.mxu0 0.0
    %3393 = vmatprep.subr.mxu0 0.0
    %3394 = vmatpush1.msra.mxu0 0.0
    %3395 = vmatprep.subr.mxu0 0.0
    %3396 = vmatpush1.msra.mxu0 0.0
    %3397 = vmatprep.subr.mxu0 0.0
    %3398 = vmatpush1.msra.mxu0 0.0
    %3399 = vmatprep.subr.mxu0 0.0
    %3400 = vmatpush1.msra.mxu0 0.0
    %3401 = vmatprep.subr.mxu0 0.0
    %3402 = vmatpush1.msra.mxu0 0.0
    %3403 = vmatprep.subr.mxu0 0.0
    %3404 = vmatpush1.msra.mxu0 0.0
    %3405 = vmatprep.subr.mxu0 0.0
    %3406 = vmatpush1.msra.mxu0 0.0
    %3407 = vmatprep.subr.mxu0 0.0
    %3408 = vmatpush1.msra.mxu0 0.0
    %3409 = vmatprep.subr.mxu0 0.0
    %3410 = vmatpush1.msra.mxu0 %v3373
    %3411 = vmatprep.subr.mxu0 0.0
    %3412 = vmatpush1.msra.mxu0 %v3372
    %3413 = vmatprep.subr.mxu0 0.0
    %3414 = vmatpush1.msra.mxu0 %v3371
    %3415 = vmatprep.subr.mxu0 0.0
    %3416 = vmatpush1.msra.mxu0 %v3370
    %3417 = vmatprep.subr.mxu0 0.0
    %3418 = vmatpush2.msra.mxu0 0.0
    %3419 = vmatprep.subr.mxu0 0.0
    %3420 = vmatpush2.msra.mxu0 0.0
    %3421 = vmatprep.subr.mxu0 0.0
    %3422 = vmatpush2.msra.mxu0 0.0
    %3423 = vmatprep.subr.mxu0 0.0
    %3424 = vmatpush2.msra.mxu0 0.0
    %3425 = vmatprep.subr.mxu0 0.0
    %3426 = vmatpush2.msra.mxu0 0.0
    %3427 = vmatprep.subr.mxu0 0.0
    %3428 = vmatpush2.msra.mxu0 0.0
    %3429 = vmatprep.subr.mxu0 0.0
    %3430 = vmatpush2.msra.mxu0 0.0
    %3431 = vmatprep.subr.mxu0 0.0
    %3432 = vmatpush2.msra.mxu0 0.0
    %3433 = vmatprep.subr.mxu0 0.0
    %3434 = vmatpush2.msra.mxu0 0.0
    %3435 = vmatprep.subr.mxu0 0.0
    %3436 = vmatpush2.msra.mxu0 0.0
    %3437 = vmatprep.subr.mxu0 0.0
    %3438 = vmatpush2.msra.mxu0 0.0
    %3439 = vmatprep.subr.mxu0 0.0
    %3440 = vmatpush2.msra.mxu0 0.0
    %3441 = vmatprep.subr.mxu0 0.0
    %3442 = vmatpush2.msra.mxu0 0.0
    %3443 = vmatprep.subr.mxu0 0.0
    %3444 = vmatpush2.msra.mxu0 0.0
    %3445 = vmatprep.subr.mxu0 0.0
    %3446 = vmatpush2.msra.mxu0 0.0
    %3447 = vmatprep.subr.mxu0 0.0
    %3448 = vmatpush2.msra.mxu0 0.0
    %3449 = vmatprep.mubr.f32.mxu0 0.0
    %3450 = vmatmul.mubr.f32.gmra.mxu0 %v3380
    %v3451 = vpop.f32.mrf.mxu0
    %v3452 = vadd.f32 %v3378, %v3451
    %v3453 = vpop.f32.mrf.mxu0
    %3454 = vmatprep.mubr.f32.mxu0 0.0
    %3455 = vmatmul.mubr.f32.gmra.mxu0 %v3383
    %v3456 = vpop.f32.mrf.mxu0
    %v3457 = vadd.f32 %v3378, %v3456
    %v3458 = vpop.f32.mrf.mxu0
    %3459 = vdwg.mxu0
    %3462 = vrot.lane.b32.xlu0 %v3452, 120
    %v3463 = vpop.permute.xlu0 %3462
    %3464 = vrot.lane.b32.xlu0 %v3457, 120
    %v3465 = vpop.permute.xlu0 %3464
    %3466 = vrot.lane.b32.xlu0 %v3452, 112
    %v3467 = vpop.permute.xlu0 %3466
    %3468 = vrot.lane.b32.xlu0 %v3457, 112
    %v3469 = vpop.permute.xlu0 %3468
    %3470 = vrot.lane.b32.xlu0 %v3452, 104
    %v3471 = vpop.permute.xlu0 %3470
    %3472 = vrot.lane.b32.xlu0 %v3457, 104
    %v3473 = vpop.permute.xlu0 %3472
    %3474 = vrot.lane.b32.xlu0 %v3452, 96
    %v3475 = vpop.permute.xlu0 %3474
    %v3476 = vsel %vm1624, %v3452, 0
    %v3478 = vsel %vm1624, %v3475, 0
    %3480 = vmatprep.subr.mxu0 0.0
    %3481 = vmatpush1.xpose.msra.mxu0 0.0
    %3482 = vmatprep.subr.mxu0 0.0
    %3483 = vmatpush1.xpose.msra.mxu0 0.0
    %3484 = vmatprep.subr.mxu0 0.0
    %3485 = vmatpush1.xpose.msra.mxu0 0.0
    %3486 = vmatprep.subr.mxu0 0.0
    %3487 = vmatpush1.xpose.msra.mxu0 0.0
    %3488 = vmatprep.subr.mxu0 0.0
    %3489 = vmatpush1.xpose.msra.mxu0 0.0
    %3490 = vmatprep.subr.mxu0 0.0
    %3491 = vmatpush1.xpose.msra.mxu0 0.0
    %3492 = vmatprep.subr.mxu0 0.0
    %3493 = vmatpush1.xpose.msra.mxu0 0.0
    %3494 = vmatprep.subr.mxu0 0.0
    %3495 = vmatpush1.xpose.msra.mxu0 0.0
    %3496 = vmatprep.subr.mxu0 0.0
    %3497 = vmatpush1.xpose.msra.mxu0 0.0
    %3498 = vmatprep.subr.mxu0 0.0
    %3499 = vmatpush1.xpose.msra.mxu0 0.0
    %3500 = vmatprep.subr.mxu0 0.0
    %3501 = vmatpush1.xpose.msra.mxu0 0.0
    %3502 = vmatprep.subr.mxu0 0.0
    %3503 = vmatpush1.xpose.msra.mxu0 0.0
    %3504 = vmatprep.subr.mxu0 0.0
    %3505 = vmatpush1.xpose.msra.mxu0 0.0
    %3506 = vmatprep.subr.mxu0 0.0
    %3507 = vmatpush1.xpose.msra.mxu0 0.0
    %3508 = vmatprep.subr.mxu0 0.0
    %3509 = vmatpush1.xpose.msra.mxu0 0.0
    %3510 = vmatprep.subr.mxu0 0.0
    %3511 = vmatpush1.xpose.msra.mxu0 %v3478
    %3512 = vmatprep.subr.mxu0 0.0
    %3513 = vmatpush2.xpose.msra.mxu0 0.0
    %3514 = vmatprep.subr.mxu0 0.0
    %3515 = vmatpush2.xpose.msra.mxu0 0.0
    %3516 = vmatprep.subr.mxu0 0.0
    %3517 = vmatpush2.xpose.msra.mxu0 0.0
    %3518 = vmatprep.subr.mxu0 0.0
    %3519 = vmatpush2.xpose.msra.mxu0 0.0
    %3520 = vmatprep.subr.mxu0 0.0
    %3521 = vmatpush2.xpose.msra.mxu0 0.0
    %3522 = vmatprep.subr.mxu0 0.0
    %3523 = vmatpush2.xpose.msra.mxu0 0.0
    %3524 = vmatprep.subr.mxu0 0.0
    %3525 = vmatpush2.xpose.msra.mxu0 0.0
    %3526 = vmatprep.subr.mxu0 0.0
    %3527 = vmatpush2.xpose.msra.mxu0 0.0
    %3528 = vmatprep.subr.mxu0 0.0
    %3529 = vmatpush2.xpose.msra.mxu0 0.0
    %3530 = vmatprep.subr.mxu0 0.0
    %3531 = vmatpush2.xpose.msra.mxu0 0.0
    %3532 = vmatprep.subr.mxu0 0.0
    %3533 = vmatpush2.xpose.msra.mxu0 0.0
    %3534 = vmatprep.subr.mxu0 0.0
    %3535 = vmatpush2.xpose.msra.mxu0 0.0
    %3536 = vmatprep.subr.mxu0 0.0
    %3537 = vmatpush2.xpose.msra.mxu0 0.0
    %3538 = vmatprep.subr.mxu0 0.0
    %3539 = vmatpush2.xpose.msra.mxu0 0.0
    %3540 = vmatprep.subr.mxu0 0.0
    %3541 = vmatpush2.xpose.msra.mxu0 0.0
    %3542 = vmatprep.subr.mxu0 0.0
    %3543 = vmatpush2.xpose.msra.mxu0 0.0
    %3544 = vmatprep.mubr.f32.mxu0 0.0
    %3545 = vmatmul.mubr.f32.gmra.mxu0 %v3476
    %v3546 = vpop.f32.mrf.mxu0
    %v3547 = vadd.f32 0.0, %v3546
    %v3548 = vpop.f32.mrf.mxu0
    %3549 = vdwg.mxu0
    %3550 = vrot.lane.b32.xlu0 %v3457, 96
    %v3551 = vpop.permute.xlu0 %3550
    %v3552 = vsel %vm1624, %v3457, 0
    %v3554 = vsel %vm1624, %v3551, 0
    %3556 = vmatprep.subr.mxu0 0.0
    %3557 = vmatpush1.xpose.msra.mxu0 0.0
    %3558 = vmatprep.subr.mxu0 0.0
    %3559 = vmatpush1.xpose.msra.mxu0 0.0
    %3560 = vmatprep.subr.mxu0 0.0
    %3561 = vmatpush1.xpose.msra.mxu0 0.0
    %3562 = vmatprep.subr.mxu0 0.0
    %3563 = vmatpush1.xpose.msra.mxu0 0.0
    %3564 = vmatprep.subr.mxu0 0.0
    %3565 = vmatpush1.xpose.msra.mxu0 0.0
    %3566 = vmatprep.subr.mxu0 0.0
    %3567 = vmatpush1.xpose.msra.mxu0 0.0
    %3568 = vmatprep.subr.mxu0 0.0
    %3569 = vmatpush1.xpose.msra.mxu0 0.0
    %3570 = vmatprep.subr.mxu0 0.0
    %3571 = vmatpush1.xpose.msra.mxu0 0.0
    %3572 = vmatprep.subr.mxu0 0.0
    %3573 = vmatpush1.xpose.msra.mxu0 0.0
    %3574 = vmatprep.subr.mxu0 0.0
    %3575 = vmatpush1.xpose.msra.mxu0 0.0
    %3576 = vmatprep.subr.mxu0 0.0
    %3577 = vmatpush1.xpose.msra.mxu0 0.0
    %3578 = vmatprep.subr.mxu0 0.0
    %3579 = vmatpush1.xpose.msra.mxu0 0.0
    %3580 = vmatprep.subr.mxu0 0.0
    %3581 = vmatpush1.xpose.msra.mxu0 0.0
    %3582 = vmatprep.subr.mxu0 0.0
    %3583 = vmatpush1.xpose.msra.mxu0 0.0
    %3584 = vmatprep.subr.mxu0 0.0
    %3585 = vmatpush1.xpose.msra.mxu0 0.0
    %3586 = vmatprep.subr.mxu0 0.0
    %3587 = vmatpush1.xpose.msra.mxu0 %v3554
    %3588 = vmatprep.subr.mxu0 0.0
    %3589 = vmatpush2.xpose.msra.mxu0 0.0
    %3590 = vmatprep.subr.mxu0 0.0
    %3591 = vmatpush2.xpose.msra.mxu0 0.0
    %3592 = vmatprep.subr.mxu0 0.0
    %3593 = vmatpush2.xpose.msra.mxu0 0.0
    %3594 = vmatprep.subr.mxu0 0.0
    %3595 = vmatpush2.xpose.msra.mxu0 0.0
    %3596 = vmatprep.subr.mxu0 0.0
    %3597 = vmatpush2.xpose.msra.mxu0 0.0
    %3598 = vmatprep.subr.mxu0 0.0
    %3599 = vmatpush2.xpose.msra.mxu0 0.0
    %3600 = vmatprep.subr.mxu0 0.0
    %3601 = vmatpush2.xpose.msra.mxu0 0.0
    %3602 = vmatprep.subr.mxu0 0.0
    %3603 = vmatpush2.xpose.msra.mxu0 0.0
    %3604 = vmatprep.subr.mxu0 0.0
    %3605 = vmatpush2.xpose.msra.mxu0 0.0
    %3606 = vmatprep.subr.mxu0 0.0
    %3607 = vmatpush2.xpose.msra.mxu0 0.0
    %3608 = vmatprep.subr.mxu0 0.0
    %3609 = vmatpush2.xpose.msra.mxu0 0.0
    %3610 = vmatprep.subr.mxu0 0.0
    %3611 = vmatpush2.xpose.msra.mxu0 0.0
    %3612 = vmatprep.subr.mxu0 0.0
    %3613 = vmatpush2.xpose.msra.mxu0 0.0
    %3614 = vmatprep.subr.mxu0 0.0
    %3615 = vmatpush2.xpose.msra.mxu0 0.0
    %3616 = vmatprep.subr.mxu0 0.0
    %3617 = vmatpush2.xpose.msra.mxu0 0.0
    %3618 = vmatprep.subr.mxu0 0.0
    %3619 = vmatpush2.xpose.msra.mxu0 0.0
    %3620 = vmatprep.mubr.f32.mxu0 0.0
    %3621 = vmatmul.mubr.f32.gmra.mxu0 %v3552
    %v3622 = vpop.f32.mrf.mxu0
    %v3623 = vadd.f32 0.0, %v3622
    %v3624 = vpop.f32.mrf.mxu0
    %3625 = vdwg.mxu0
    %3626 = vrot.lane.b32.xlu0 %v3463, 96
    %v3627 = vpop.permute.xlu0 %3626
    %v3628 = vsel %vm1624, %v3463, 0
    %v3630 = vsel %vm1624, %v3627, 0
    %3632 = vmatprep.subr.mxu0 0.0
    %3633 = vmatpush1.xpose.msra.mxu0 0.0
    %3634 = vmatprep.subr.mxu0 0.0
    %3635 = vmatpush1.xpose.msra.mxu0 0.0
    %3636 = vmatprep.subr.mxu0 0.0
    %3637 = vmatpush1.xpose.msra.mxu0 0.0
    %3638 = vmatprep.subr.mxu0 0.0
    %3639 = vmatpush1.xpose.msra.mxu0 0.0
    %3640 = vmatprep.subr.mxu0 0.0
    %3641 = vmatpush1.xpose.msra.mxu0 0.0
    %3642 = vmatprep.subr.mxu0 0.0
    %3643 = vmatpush1.xpose.msra.mxu0 0.0
    %3644 = vmatprep.subr.mxu0 0.0
    %3645 = vmatpush1.xpose.msra.mxu0 0.0
    %3646 = vmatprep.subr.mxu0 0.0
    %3647 = vmatpush1.xpose.msra.mxu0 0.0
    %3648 = vmatprep.subr.mxu0 0.0
    %3649 = vmatpush1.xpose.msra.mxu0 0.0
    %3650 = vmatprep.subr.mxu0 0.0
    %3651 = vmatpush1.xpose.msra.mxu0 0.0
    %3652 = vmatprep.subr.mxu0 0.0
    %3653 = vmatpush1.xpose.msra.mxu0 0.0
    %3654 = vmatprep.subr.mxu0 0.0
    %3655 = vmatpush1.xpose.msra.mxu0 0.0
    %3656 = vmatprep.subr.mxu0 0.0
    %3657 = vmatpush1.xpose.msra.mxu0 0.0
    %3658 = vmatprep.subr.mxu0 0.0
    %3659 = vmatpush1.xpose.msra.mxu0 0.0
    %3660 = vmatprep.subr.mxu0 0.0
    %3661 = vmatpush1.xpose.msra.mxu0 0.0
    %3662 = vmatprep.subr.mxu0 0.0
    %3663 = vmatpush1.xpose.msra.mxu0 %v3630
    %3664 = vmatprep.subr.mxu0 0.0
    %3665 = vmatpush2.xpose.msra.mxu0 0.0
    %3666 = vmatprep.subr.mxu0 0.0
    %3667 = vmatpush2.xpose.msra.mxu0 0.0
    %3668 = vmatprep.subr.mxu0 0.0
    %3669 = vmatpush2.xpose.msra.mxu0 0.0
    %3670 = vmatprep.subr.mxu0 0.0
    %3671 = vmatpush2.xpose.msra.mxu0 0.0
    %3672 = vmatprep.subr.mxu0 0.0
    %3673 = vmatpush2.xpose.msra.mxu0 0.0
    %3674 = vmatprep.subr.mxu0 0.0
    %3675 = vmatpush2.xpose.msra.mxu0 0.0
    %3676 = vmatprep.subr.mxu0 0.0
    %3677 = vmatpush2.xpose.msra.mxu0 0.0
    %3678 = vmatprep.subr.mxu0 0.0
    %3679 = vmatpush2.xpose.msra.mxu0 0.0
    %3680 = vmatprep.subr.mxu0 0.0
    %3681 = vmatpush2.xpose.msra.mxu0 0.0
    %3682 = vmatprep.subr.mxu0 0.0
    %3683 = vmatpush2.xpose.msra.mxu0 0.0
    %3684 = vmatprep.subr.mxu0 0.0
    %3685 = vmatpush2.xpose.msra.mxu0 0.0
    %3686 = vmatprep.subr.mxu0 0.0
    %3687 = vmatpush2.xpose.msra.mxu0 0.0
    %3688 = vmatprep.subr.mxu0 0.0
    %3689 = vmatpush2.xpose.msra.mxu0 0.0
    %3690 = vmatprep.subr.mxu0 0.0
    %3691 = vmatpush2.xpose.msra.mxu0 0.0
    %3692 = vmatprep.subr.mxu0 0.0
    %3693 = vmatpush2.xpose.msra.mxu0 0.0
    %3694 = vmatprep.subr.mxu0 0.0
    %3695 = vmatpush2.xpose.msra.mxu0 0.0
    %3696 = vmatprep.mubr.f32.mxu0 0.0
    %3697 = vmatmul.mubr.f32.gmra.mxu0 %v3628
    %v3698 = vpop.f32.mrf.mxu0
    %v3699 = vadd.f32 0.0, %v3698
    %v3700 = vpop.f32.mrf.mxu0
    %3701 = vdwg.mxu0
    %3702 = vrot.lane.b32.xlu0 %v3465, 96
    %v3703 = vpop.permute.xlu0 %3702
    %v3704 = vsel %vm1624, %v3465, 0
    %v3706 = vsel %vm1624, %v3703, 0
    %3708 = vmatprep.subr.mxu0 0.0
    %3709 = vmatpush1.xpose.msra.mxu0 0.0
    %3710 = vmatprep.subr.mxu0 0.0
    %3711 = vmatpush1.xpose.msra.mxu0 0.0
    %3712 = vmatprep.subr.mxu0 0.0
    %3713 = vmatpush1.xpose.msra.mxu0 0.0
    %3714 = vmatprep.subr.mxu0 0.0
    %3715 = vmatpush1.xpose.msra.mxu0 0.0
    %3716 = vmatprep.subr.mxu0 0.0
    %3717 = vmatpush1.xpose.msra.mxu0 0.0
    %3718 = vmatprep.subr.mxu0 0.0
    %3719 = vmatpush1.xpose.msra.mxu0 0.0
    %3720 = vmatprep.subr.mxu0 0.0
    %3721 = vmatpush1.xpose.msra.mxu0 0.0
    %3722 = vmatprep.subr.mxu0 0.0
    %3723 = vmatpush1.xpose.msra.mxu0 0.0
    %3724 = vmatprep.subr.mxu0 0.0
    %3725 = vmatpush1.xpose.msra.mxu0 0.0
    %3726 = vmatprep.subr.mxu0 0.0
    %3727 = vmatpush1.xpose.msra.mxu0 0.0
    %3728 = vmatprep.subr.mxu0 0.0
    %3729 = vmatpush1.xpose.msra.mxu0 0.0
    %3730 = vmatprep.subr.mxu0 0.0
    %3731 = vmatpush1.xpose.msra.mxu0 0.0
    %3732 = vmatprep.subr.mxu0 0.0
    %3733 = vmatpush1.xpose.msra.mxu0 0.0
    %3734 = vmatprep.subr.mxu0 0.0
    %3735 = vmatpush1.xpose.msra.mxu0 0.0
    %3736 = vmatprep.subr.mxu0 0.0
    %3737 = vmatpush1.xpose.msra.mxu0 0.0
    %3738 = vmatprep.subr.mxu0 0.0
    %3739 = vmatpush1.xpose.msra.mxu0 %v3706
    %3740 = vmatprep.subr.mxu0 0.0
    %3741 = vmatpush2.xpose.msra.mxu0 0.0
    %3742 = vmatprep.subr.mxu0 0.0
    %3743 = vmatpush2.xpose.msra.mxu0 0.0
    %3744 = vmatprep.subr.mxu0 0.0
    %3745 = vmatpush2.xpose.msra.mxu0 0.0
    %3746 = vmatprep.subr.mxu0 0.0
    %3747 = vmatpush2.xpose.msra.mxu0 0.0
    %3748 = vmatprep.subr.mxu0 0.0
    %3749 = vmatpush2.xpose.msra.mxu0 0.0
    %3750 = vmatprep.subr.mxu0 0.0
    %3751 = vmatpush2.xpose.msra.mxu0 0.0
    %3752 = vmatprep.subr.mxu0 0.0
    %3753 = vmatpush2.xpose.msra.mxu0 0.0
    %3754 = vmatprep.subr.mxu0 0.0
    %3755 = vmatpush2.xpose.msra.mxu0 0.0
    %3756 = vmatprep.subr.mxu0 0.0
    %3757 = vmatpush2.xpose.msra.mxu0 0.0
    %3758 = vmatprep.subr.mxu0 0.0
    %3759 = vmatpush2.xpose.msra.mxu0 0.0
    %3760 = vmatprep.subr.mxu0 0.0
    %3761 = vmatpush2.xpose.msra.mxu0 0.0
    %3762 = vmatprep.subr.mxu0 0.0
    %3763 = vmatpush2.xpose.msra.mxu0 0.0
    %3764 = vmatprep.subr.mxu0 0.0
    %3765 = vmatpush2.xpose.msra.mxu0 0.0
    %3766 = vmatprep.subr.mxu0 0.0
    %3767 = vmatpush2.xpose.msra.mxu0 0.0
    %3768 = vmatprep.subr.mxu0 0.0
    %3769 = vmatpush2.xpose.msra.mxu0 0.0
    %3770 = vmatprep.subr.mxu0 0.0
    %3771 = vmatpush2.xpose.msra.mxu0 0.0
    %3772 = vmatprep.mubr.f32.mxu0 0.0
    %3773 = vmatmul.mubr.f32.gmra.mxu0 %v3704
    %v3774 = vpop.f32.mrf.mxu0
    %v3775 = vadd.f32 0.0, %v3774
    %v3776 = vpop.f32.mrf.mxu0
    %3777 = vdwg.mxu0
    %3778 = vrot.lane.b32.xlu0 %v3467, 96
    %v3779 = vpop.permute.xlu0 %3778
    %v3780 = vsel %vm1624, %v3467, 0
    %v3782 = vsel %vm1624, %v3779, 0
    %3784 = vmatprep.subr.mxu0 0.0
    %3785 = vmatpush1.xpose.msra.mxu0 0.0
    %3786 = vmatprep.subr.mxu0 0.0
    %3787 = vmatpush1.xpose.msra.mxu0 0.0
    %3788 = vmatprep.subr.mxu0 0.0
    %3789 = vmatpush1.xpose.msra.mxu0 0.0
    %3790 = vmatprep.subr.mxu0 0.0
    %3791 = vmatpush1.xpose.msra.mxu0 0.0
    %3792 = vmatprep.subr.mxu0 0.0
    %3793 = vmatpush1.xpose.msra.mxu0 0.0
    %3794 = vmatprep.subr.mxu0 0.0
    %3795 = vmatpush1.xpose.msra.mxu0 0.0
    %3796 = vmatprep.subr.mxu0 0.0
    %3797 = vmatpush1.xpose.msra.mxu0 0.0
    %3798 = vmatprep.subr.mxu0 0.0
    %3799 = vmatpush1.xpose.msra.mxu0 0.0
    %3800 = vmatprep.subr.mxu0 0.0
    %3801 = vmatpush1.xpose.msra.mxu0 0.0
    %3802 = vmatprep.subr.mxu0 0.0
    %3803 = vmatpush1.xpose.msra.mxu0 0.0
    %3804 = vmatprep.subr.mxu0 0.0
    %3805 = vmatpush1.xpose.msra.mxu0 0.0
    %3806 = vmatprep.subr.mxu0 0.0
    %3807 = vmatpush1.xpose.msra.mxu0 0.0
    %3808 = vmatprep.subr.mxu0 0.0
    %3809 = vmatpush1.xpose.msra.mxu0 0.0
    %3810 = vmatprep.subr.mxu0 0.0
    %3811 = vmatpush1.xpose.msra.mxu0 0.0
    %3812 = vmatprep.subr.mxu0 0.0
    %3813 = vmatpush1.xpose.msra.mxu0 0.0
    %3814 = vmatprep.subr.mxu0 0.0
    %3815 = vmatpush1.xpose.msra.mxu0 %v3782
    %3816 = vmatprep.subr.mxu0 0.0
    %3817 = vmatpush2.xpose.msra.mxu0 0.0
    %3818 = vmatprep.subr.mxu0 0.0
    %3819 = vmatpush2.xpose.msra.mxu0 0.0
    %3820 = vmatprep.subr.mxu0 0.0
    %3821 = vmatpush2.xpose.msra.mxu0 0.0
    %3822 = vmatprep.subr.mxu0 0.0
    %3823 = vmatpush2.xpose.msra.mxu0 0.0
    %3824 = vmatprep.subr.mxu0 0.0
    %3825 = vmatpush2.xpose.msra.mxu0 0.0
    %3826 = vmatprep.subr.mxu0 0.0
    %3827 = vmatpush2.xpose.msra.mxu0 0.0
    %3828 = vmatprep.subr.mxu0 0.0
    %3829 = vmatpush2.xpose.msra.mxu0 0.0
    %3830 = vmatprep.subr.mxu0 0.0
    %3831 = vmatpush2.xpose.msra.mxu0 0.0
    %3832 = vmatprep.subr.mxu0 0.0
    %3833 = vmatpush2.xpose.msra.mxu0 0.0
    %3834 = vmatprep.subr.mxu0 0.0
    %3835 = vmatpush2.xpose.msra.mxu0 0.0
    %3836 = vmatprep.subr.mxu0 0.0
    %3837 = vmatpush2.xpose.msra.mxu0 0.0
    %3838 = vmatprep.subr.mxu0 0.0
    %3839 = vmatpush2.xpose.msra.mxu0 0.0
    %3840 = vmatprep.subr.mxu0 0.0
    %3841 = vmatpush2.xpose.msra.mxu0 0.0
    %3842 = vmatprep.subr.mxu0 0.0
    %3843 = vmatpush2.xpose.msra.mxu0 0.0
    %3844 = vmatprep.subr.mxu0 0.0
    %3845 = vmatpush2.xpose.msra.mxu0 0.0
    %3846 = vmatprep.subr.mxu0 0.0
    %3847 = vmatpush2.xpose.msra.mxu0 0.0
    %3848 = vmatprep.mubr.f32.mxu0 0.0
    %3849 = vmatmul.mubr.f32.gmra.mxu0 %v3780
    %v3850 = vpop.f32.mrf.mxu0
    %v3851 = vadd.f32 0.0, %v3850
    %v3852 = vpop.f32.mrf.mxu0
    %3853 = vdwg.mxu0
    %3854 = vrot.lane.b32.xlu0 %v3469, 96
    %v3855 = vpop.permute.xlu0 %3854
    %v3856 = vsel %vm1624, %v3469, 0
    %v3858 = vsel %vm1624, %v3855, 0
    %3860 = vmatprep.subr.mxu0 0.0
    %3861 = vmatpush1.xpose.msra.mxu0 0.0
    %3862 = vmatprep.subr.mxu0 0.0
    %3863 = vmatpush1.xpose.msra.mxu0 0.0
    %3864 = vmatprep.subr.mxu0 0.0
    %3865 = vmatpush1.xpose.msra.mxu0 0.0
    %3866 = vmatprep.subr.mxu0 0.0
    %3867 = vmatpush1.xpose.msra.mxu0 0.0
    %3868 = vmatprep.subr.mxu0 0.0
    %3869 = vmatpush1.xpose.msra.mxu0 0.0
    %3870 = vmatprep.subr.mxu0 0.0
    %3871 = vmatpush1.xpose.msra.mxu0 0.0
    %3872 = vmatprep.subr.mxu0 0.0
    %3873 = vmatpush1.xpose.msra.mxu0 0.0
    %3874 = vmatprep.subr.mxu0 0.0
    %3875 = vmatpush1.xpose.msra.mxu0 0.0
    %3876 = vmatprep.subr.mxu0 0.0
    %3877 = vmatpush1.xpose.msra.mxu0 0.0
    %3878 = vmatprep.subr.mxu0 0.0
    %3879 = vmatpush1.xpose.msra.mxu0 0.0
    %3880 = vmatprep.subr.mxu0 0.0
    %3881 = vmatpush1.xpose.msra.mxu0 0.0
    %3882 = vmatprep.subr.mxu0 0.0
    %3883 = vmatpush1.xpose.msra.mxu0 0.0
    %3884 = vmatprep.subr.mxu0 0.0
    %3885 = vmatpush1.xpose.msra.mxu0 0.0
    %3886 = vmatprep.subr.mxu0 0.0
    %3887 = vmatpush1.xpose.msra.mxu0 0.0
    %3888 = vmatprep.subr.mxu0 0.0
    %3889 = vmatpush1.xpose.msra.mxu0 0.0
    %3890 = vmatprep.subr.mxu0 0.0
    %3891 = vmatpush1.xpose.msra.mxu0 %v3858
    %3892 = vmatprep.subr.mxu0 0.0
    %3893 = vmatpush2.xpose.msra.mxu0 0.0
    %3894 = vmatprep.subr.mxu0 0.0
    %3895 = vmatpush2.xpose.msra.mxu0 0.0
    %3896 = vmatprep.subr.mxu0 0.0
    %3897 = vmatpush2.xpose.msra.mxu0 0.0
    %3898 = vmatprep.subr.mxu0 0.0
    %3899 = vmatpush2.xpose.msra.mxu0 0.0
    %3900 = vmatprep.subr.mxu0 0.0
    %3901 = vmatpush2.xpose.msra.mxu0 0.0
    %3902 = vmatprep.subr.mxu0 0.0
    %3903 = vmatpush2.xpose.msra.mxu0 0.0
    %3904 = vmatprep.subr.mxu0 0.0
    %3905 = vmatpush2.xpose.msra.mxu0 0.0
    %3906 = vmatprep.subr.mxu0 0.0
    %3907 = vmatpush2.xpose.msra.mxu0 0.0
    %3908 = vmatprep.subr.mxu0 0.0
    %3909 = vmatpush2.xpose.msra.mxu0 0.0
    %3910 = vmatprep.subr.mxu0 0.0
    %3911 = vmatpush2.xpose.msra.mxu0 0.0
    %3912 = vmatprep.subr.mxu0 0.0
    %3913 = vmatpush2.xpose.msra.mxu0 0.0
    %3914 = vmatprep.subr.mxu0 0.0
    %3915 = vmatpush2.xpose.msra.mxu0 0.0
    %3916 = vmatprep.subr.mxu0 0.0
    %3917 = vmatpush2.xpose.msra.mxu0 0.0
    %3918 = vmatprep.subr.mxu0 0.0
    %3919 = vmatpush2.xpose.msra.mxu0 0.0
    %3920 = vmatprep.subr.mxu0 0.0
    %3921 = vmatpush2.xpose.msra.mxu0 0.0
    %3922 = vmatprep.subr.mxu0 0.0
    %3923 = vmatpush2.xpose.msra.mxu0 0.0
    %3924 = vmatprep.mubr.f32.mxu0 0.0
    %3925 = vmatmul.mubr.f32.gmra.mxu0 %v3856
    %v3926 = vpop.f32.mrf.mxu0
    %v3927 = vadd.f32 0.0, %v3926
    %v3928 = vpop.f32.mrf.mxu0
    %3929 = vdwg.mxu0
    %3930 = vrot.lane.b32.xlu0 %v3471, 96
    %v3931 = vpop.permute.xlu0 %3930
    %v3932 = vsel %vm1624, %v3471, 0
    %v3934 = vsel %vm1624, %v3931, 0
    %3936 = vmatprep.subr.mxu0 0.0
    %3937 = vmatpush1.xpose.msra.mxu0 0.0
    %3938 = vmatprep.subr.mxu0 0.0
    %3939 = vmatpush1.xpose.msra.mxu0 0.0
    %3940 = vmatprep.subr.mxu0 0.0
    %3941 = vmatpush1.xpose.msra.mxu0 0.0
    %3942 = vmatprep.subr.mxu0 0.0
    %3943 = vmatpush1.xpose.msra.mxu0 0.0
    %3944 = vmatprep.subr.mxu0 0.0
    %3945 = vmatpush1.xpose.msra.mxu0 0.0
    %3946 = vmatprep.subr.mxu0 0.0
    %3947 = vmatpush1.xpose.msra.mxu0 0.0
    %3948 = vmatprep.subr.mxu0 0.0
    %3949 = vmatpush1.xpose.msra.mxu0 0.0
    %3950 = vmatprep.subr.mxu0 0.0
    %3951 = vmatpush1.xpose.msra.mxu0 0.0
    %3952 = vmatprep.subr.mxu0 0.0
    %3953 = vmatpush1.xpose.msra.mxu0 0.0
    %3954 = vmatprep.subr.mxu0 0.0
    %3955 = vmatpush1.xpose.msra.mxu0 0.0
    %3956 = vmatprep.subr.mxu0 0.0
    %3957 = vmatpush1.xpose.msra.mxu0 0.0
    %3958 = vmatprep.subr.mxu0 0.0
    %3959 = vmatpush1.xpose.msra.mxu0 0.0
    %3960 = vmatprep.subr.mxu0 0.0
    %3961 = vmatpush1.xpose.msra.mxu0 0.0
    %3962 = vmatprep.subr.mxu0 0.0
    %3963 = vmatpush1.xpose.msra.mxu0 0.0
    %3964 = vmatprep.subr.mxu0 0.0
    %3965 = vmatpush1.xpose.msra.mxu0 0.0
    %3966 = vmatprep.subr.mxu0 0.0
    %3967 = vmatpush1.xpose.msra.mxu0 %v3934
    %3968 = vmatprep.subr.mxu0 0.0
    %3969 = vmatpush2.xpose.msra.mxu0 0.0
    %3970 = vmatprep.subr.mxu0 0.0
    %3971 = vmatpush2.xpose.msra.mxu0 0.0
    %3972 = vmatprep.subr.mxu0 0.0
    %3973 = vmatpush2.xpose.msra.mxu0 0.0
    %3974 = vmatprep.subr.mxu0 0.0
    %3975 = vmatpush2.xpose.msra.mxu0 0.0
    %3976 = vmatprep.subr.mxu0 0.0
    %3977 = vmatpush2.xpose.msra.mxu0 0.0
    %3978 = vmatprep.subr.mxu0 0.0
    %3979 = vmatpush2.xpose.msra.mxu0 0.0
    %3980 = vmatprep.subr.mxu0 0.0
    %3981 = vmatpush2.xpose.msra.mxu0 0.0
    %3982 = vmatprep.subr.mxu0 0.0
    %3983 = vmatpush2.xpose.msra.mxu0 0.0
    %3984 = vmatprep.subr.mxu0 0.0
    %3985 = vmatpush2.xpose.msra.mxu0 0.0
    %3986 = vmatprep.subr.mxu0 0.0
    %3987 = vmatpush2.xpose.msra.mxu0 0.0
    %3988 = vmatprep.subr.mxu0 0.0
    %3989 = vmatpush2.xpose.msra.mxu0 0.0
    %3990 = vmatprep.subr.mxu0 0.0
    %3991 = vmatpush2.xpose.msra.mxu0 0.0
    %3992 = vmatprep.subr.mxu0 0.0
    %3993 = vmatpush2.xpose.msra.mxu0 0.0
    %3994 = vmatprep.subr.mxu0 0.0
    %3995 = vmatpush2.xpose.msra.mxu0 0.0
    %3996 = vmatprep.subr.mxu0 0.0
    %3997 = vmatpush2.xpose.msra.mxu0 0.0
    %3998 = vmatprep.subr.mxu0 0.0
    %3999 = vmatpush2.xpose.msra.mxu0 0.0
    %4000 = vmatprep.mubr.f32.mxu0 0.0
    %4001 = vmatmul.mubr.f32.gmra.mxu0 %v3932
    %v4002 = vpop.f32.mrf.mxu0
    %v4003 = vadd.f32 0.0, %v4002
    %v4004 = vpop.f32.mrf.mxu0
    %4005 = vdwg.mxu0
    %4006 = vrot.lane.b32.xlu0 %v3473, 96
    %v4007 = vpop.permute.xlu0 %4006
    %v4008 = vsel %vm1624, %v3473, 0
    %v4010 = vsel %vm1624, %v4007, 0
    %4012 = vmatprep.subr.mxu0 0.0
    %4013 = vmatpush1.xpose.msra.mxu0 0.0
    %4014 = vmatprep.subr.mxu0 0.0
    %4015 = vmatpush1.xpose.msra.mxu0 0.0
    %4016 = vmatprep.subr.mxu0 0.0
    %4017 = vmatpush1.xpose.msra.mxu0 0.0
    %4018 = vmatprep.subr.mxu0 0.0
    %4019 = vmatpush1.xpose.msra.mxu0 0.0
    %4020 = vmatprep.subr.mxu0 0.0
    %4021 = vmatpush1.xpose.msra.mxu0 0.0
    %4022 = vmatprep.subr.mxu0 0.0
    %4023 = vmatpush1.xpose.msra.mxu0 0.0
    %4024 = vmatprep.subr.mxu0 0.0
    %4025 = vmatpush1.xpose.msra.mxu0 0.0
    %4026 = vmatprep.subr.mxu0 0.0
    %4027 = vmatpush1.xpose.msra.mxu0 0.0
    %4028 = vmatprep.subr.mxu0 0.0
    %4029 = vmatpush1.xpose.msra.mxu0 0.0
    %4030 = vmatprep.subr.mxu0 0.0
    %4031 = vmatpush1.xpose.msra.mxu0 0.0
    %4032 = vmatprep.subr.mxu0 0.0
    %4033 = vmatpush1.xpose.msra.mxu0 0.0
    %4034 = vmatprep.subr.mxu0 0.0
    %4035 = vmatpush1.xpose.msra.mxu0 0.0
    %4036 = vmatprep.subr.mxu0 0.0
    %4037 = vmatpush1.xpose.msra.mxu0 0.0
    %4038 = vmatprep.subr.mxu0 0.0
    %4039 = vmatpush1.xpose.msra.mxu0 0.0
    %4040 = vmatprep.subr.mxu0 0.0
    %4041 = vmatpush1.xpose.msra.mxu0 0.0
    %4042 = vmatprep.subr.mxu0 0.0
    %4043 = vmatpush1.xpose.msra.mxu0 %v4010
    %4044 = vmatprep.subr.mxu0 0.0
    %4045 = vmatpush2.xpose.msra.mxu0 0.0
    %4046 = vmatprep.subr.mxu0 0.0
    %4047 = vmatpush2.xpose.msra.mxu0 0.0
    %4048 = vmatprep.subr.mxu0 0.0
    %4049 = vmatpush2.xpose.msra.mxu0 0.0
    %4050 = vmatprep.subr.mxu0 0.0
    %4051 = vmatpush2.xpose.msra.mxu0 0.0
    %4052 = vmatprep.subr.mxu0 0.0
    %4053 = vmatpush2.xpose.msra.mxu0 0.0
    %4054 = vmatprep.subr.mxu0 0.0
    %4055 = vmatpush2.xpose.msra.mxu0 0.0
    %4056 = vmatprep.subr.mxu0 0.0
    %4057 = vmatpush2.xpose.msra.mxu0 0.0
    %4058 = vmatprep.subr.mxu0 0.0
    %4059 = vmatpush2.xpose.msra.mxu0 0.0
    %4060 = vmatprep.subr.mxu0 0.0
    %4061 = vmatpush2.xpose.msra.mxu0 0.0
    %4062 = vmatprep.subr.mxu0 0.0
    %4063 = vmatpush2.xpose.msra.mxu0 0.0
    %4064 = vmatprep.subr.mxu0 0.0
    %4065 = vmatpush2.xpose.msra.mxu0 0.0
    %4066 = vmatprep.subr.mxu0 0.0
    %4067 = vmatpush2.xpose.msra.mxu0 0.0
    %4068 = vmatprep.subr.mxu0 0.0
    %4069 = vmatpush2.xpose.msra.mxu0 0.0
    %4070 = vmatprep.subr.mxu0 0.0
    %4071 = vmatpush2.xpose.msra.mxu0 0.0
    %4072 = vmatprep.subr.mxu0 0.0
    %4073 = vmatpush2.xpose.msra.mxu0 0.0
    %4074 = vmatprep.subr.mxu0 0.0
    %4075 = vmatpush2.xpose.msra.mxu0 0.0
    %4076 = vmatprep.mubr.f32.mxu0 0.0
    %4077 = vmatmul.mubr.f32.gmra.mxu0 %v4008
    %v4078 = vpop.f32.mrf.mxu0
    %v4079 = vadd.f32 0.0, %v4078
    %v4080 = vpop.f32.mrf.mxu0
    %4081 = vdwg.mxu0
    %v4082 = vsel %vm1624, %v3547, -inf
    %4083 = vmax.xlane.f32.xlu0 %v4082
    %v4084 = vpop.xlane.xlu0 %4083
    %v4085 = vsel %vm1624, %v3623, -inf
    %4086 = vmax.xlane.f32.xlu0 %v4085
    %v4087 = vpop.xlane.xlu0 %4086
    %v4088 = vsel %vm1624, %v3699, -inf
    %4089 = vmax.xlane.f32.xlu0 %v4088
    %v4090 = vpop.xlane.xlu0 %4089
    %v4091 = vsel %vm1624, %v3775, -inf
    %4092 = vmax.xlane.f32.xlu0 %v4091
    %v4093 = vpop.xlane.xlu0 %4092
    %v4094 = vsel %vm1624, %v3851, -inf
    %4095 = vmax.xlane.f32.xlu0 %v4094
    %v4096 = vpop.xlane.xlu0 %4095
    %v4097 = vsel %vm1624, %v3927, -inf
    %4098 = vmax.xlane.f32.xlu0 %v4097
    %v4099 = vpop.xlane.xlu0 %4098
    %v4100 = vsel %vm1624, %v4003, -inf
    %4101 = vmax.xlane.f32.xlu0 %v4100
    %v4102 = vpop.xlane.xlu0 %4101
    %v4103 = vsel %vm1624, %v4079, -inf
    %4104 = vmax.xlane.f32.xlu0 %v4103
    %v4105 = vpop.xlane.xlu0 %4104
    %v4106 = vsub.f32 %v3547, %v4084
    %v4107 = vsub.f32 %v3623, %v4087
    %v4108 = vsub.f32 %v3699, %v4090
    %v4109 = vsub.f32 %v3775, %v4093
    %v4110 = vsub.f32 %v3851, %v4096
    %v4111 = vsub.f32 %v3927, %v4099
    %v4112 = vsub.f32 %v4003, %v4102
    %v4113 = vsub.f32 %v4079, %v4105
    %v4114 = vmul.f32 %v4106, 1.442695
    %v4115 = vpow.pop %v4114
    %v4116 = vmul.f32 %v4107, 1.442695
    %v4117 = vpow.pop %v4116
    %v4118 = vmul.f32 %v4108, 1.442695
    %v4119 = vpow.pop %v4118
    %v4120 = vmul.f32 %v4109, 1.442695
    %v4121 = vpow.pop %v4120
    %v4122 = vmul.f32 %v4110, 1.442695
    %v4123 = vpow.pop %v4122
    %v4124 = vmul.f32 %v4111, 1.442695
    %v4125 = vpow.pop %v4124
    %v4126 = vmul.f32 %v4112, 1.442695
    %v4127 = vpow.pop %v4126
    %v4128 = vmul.f32 %v4113, 1.442695
    %v4129 = vpow.pop %v4128
    %v4130 = vsel %vm1624, %v4115, 0.0
    %4131 = vadd.xlane.f32.xlu0 %v4130
    %v4132 = vpop.xlane.xlu0 %4131
    %v4133 = vsel %vm1624, %v4117, 0.0
    %4134 = vadd.xlane.f32.xlu0 %v4133
    %v4135 = vpop.xlane.xlu0 %4134
    %v4136 = vsel %vm1624, %v4119, 0.0
    %4137 = vadd.xlane.f32.xlu0 %v4136
    %v4138 = vpop.xlane.xlu0 %4137
    %v4139 = vsel %vm1624, %v4121, 0.0
    %4140 = vadd.xlane.f32.xlu0 %v4139
    %v4141 = vpop.xlane.xlu0 %4140
    %v4142 = vsel %vm1624, %v4123, 0.0
    %4143 = vadd.xlane.f32.xlu0 %v4142
    %v4144 = vpop.xlane.xlu0 %4143
    %v4145 = vsel %vm1624, %v4125, 0.0
    %4146 = vadd.xlane.f32.xlu0 %v4145
    %v4147 = vpop.xlane.xlu0 %4146
    %v4148 = vsel %vm1624, %v4127, 0.0
    %4149 = vadd.xlane.f32.xlu0 %v4148
    %v4150 = vpop.xlane.xlu0 %4149
    %v4151 = vsel %vm1624, %v4129, 0.0
    %4152 = vadd.xlane.f32.xlu0 %v4151
    %v4153 = vpop.xlane.xlu0 %4152
    %v4154 = vrcp.pop %v4132
    %v4155 = vrcp.pop %v4135
    %v4156 = vrcp.pop %v4138
    %v4157 = vrcp.pop %v4141
    %v4158 = vrcp.pop %v4144
    %v4159 = vrcp.pop %v4147
    %v4160 = vrcp.pop %v4150
    %v4161 = vrcp.pop %v4153
    %v4162 = vmul.f32 %v4115, %v4154
    %v4163 = vmul.f32 %v4117, %v4155
    %v4164 = vmul.f32 %v4119, %v4156
    %v4165 = vmul.f32 %v4121, %v4157
    %v4166 = vmul.f32 %v4123, %v4158
    %v4167 = vmul.f32 %v4125, %v4159
    %v4168 = vmul.f32 %v4127, %v4160
    %v4169 = vmul.f32 %v4129, %v4161
    %4170 = vrot.lane.b32.xlu0 %v3452, 64
    %v4171 = vpop.permute.xlu0 %4170
    %v4174 = vsel %vm1624, %v4162, 0
    %4176 = vmatprep.subr.mxu0 0.0
    %4177 = vmatpush1.msra.mxu0 0.0
    %4178 = vmatprep.subr.mxu0 0.0
    %4179 = vmatpush1.msra.mxu0 0.0
    %4180 = vmatprep.subr.mxu0 0.0
    %4181 = vmatpush1.msra.mxu0 0.0
    %4182 = vmatprep.subr.mxu0 0.0
    %4183 = vmatpush1.msra.mxu0 0.0
    %4184 = vmatprep.subr.mxu0 0.0
    %4185 = vmatpush1.msra.mxu0 0.0
    %4186 = vmatprep.subr.mxu0 0.0
    %4187 = vmatpush1.msra.mxu0 0.0
    %4188 = vmatprep.subr.mxu0 0.0
    %4189 = vmatpush1.msra.mxu0 0.0
    %4190 = vmatprep.subr.mxu0 0.0
    %4191 = vmatpush1.msra.mxu0 0.0
    %4192 = vmatprep.subr.mxu0 0.0
    %4193 = vmatpush1.msra.mxu0 0.0
    %4194 = vmatprep.subr.mxu0 0.0
    %4195 = vmatpush1.msra.mxu0 0.0
    %4196 = vmatprep.subr.mxu0 0.0
    %4197 = vmatpush1.msra.mxu0 0.0
    %4198 = vmatprep.subr.mxu0 0.0
    %4199 = vmatpush1.msra.mxu0 0.0
    %4200 = vmatprep.subr.mxu0 0.0
    %4201 = vmatpush1.msra.mxu0 0.0
    %4202 = vmatprep.subr.mxu0 0.0
    %4203 = vmatpush1.msra.mxu0 0.0
    %4204 = vmatprep.subr.mxu0 0.0
    %4205 = vmatpush1.msra.mxu0 0.0
    %4206 = vmatprep.subr.mxu0 0.0
    %4207 = vmatpush1.msra.mxu0 %v4171
    %4208 = vmatprep.subr.mxu0 0.0
    %4209 = vmatpush2.msra.mxu0 0.0
    %4210 = vmatprep.subr.mxu0 0.0
    %4211 = vmatpush2.msra.mxu0 0.0
    %4212 = vmatprep.subr.mxu0 0.0
    %4213 = vmatpush2.msra.mxu0 0.0
    %4214 = vmatprep.subr.mxu0 0.0
    %4215 = vmatpush2.msra.mxu0 0.0
    %4216 = vmatprep.subr.mxu0 0.0
    %4217 = vmatpush2.msra.mxu0 0.0
    %4218 = vmatprep.subr.mxu0 0.0
    %4219 = vmatpush2.msra.mxu0 0.0
    %4220 = vmatprep.subr.mxu0 0.0
    %4221 = vmatpush2.msra.mxu0 0.0
    %4222 = vmatprep.subr.mxu0 0.0
    %4223 = vmatpush2.msra.mxu0 0.0
    %4224 = vmatprep.subr.mxu0 0.0
    %4225 = vmatpush2.msra.mxu0 0.0
    %4226 = vmatprep.subr.mxu0 0.0
    %4227 = vmatpush2.msra.mxu0 0.0
    %4228 = vmatprep.subr.mxu0 0.0
    %4229 = vmatpush2.msra.mxu0 0.0
    %4230 = vmatprep.subr.mxu0 0.0
    %4231 = vmatpush2.msra.mxu0 0.0
    %4232 = vmatprep.subr.mxu0 0.0
    %4233 = vmatpush2.msra.mxu0 0.0
    %4234 = vmatprep.subr.mxu0 0.0
    %4235 = vmatpush2.msra.mxu0 0.0
    %4236 = vmatprep.subr.mxu0 0.0
    %4237 = vmatpush2.msra.mxu0 0.0
    %4238 = vmatprep.subr.mxu0 0.0
    %4239 = vmatpush2.msra.mxu0 0.0
    %4240 = vmatprep.mubr.f32.mxu0 0.0
    %4241 = vmatmul.mubr.f32.gmra.mxu0 %v4174
    %v4242 = vpop.f32.mrf.mxu0
    %v4243 = vadd.f32 0.0, %v4242
    %v4244 = vpop.f32.mrf.mxu0
    %4245 = vdwg.mxu0
    %4246 = vrot.lane.b32.xlu0 %v3457, 64
    %v4247 = vpop.permute.xlu0 %4246
    %v4250 = vsel %vm1624, %v4163, 0
    %4252 = vmatprep.subr.mxu0 0.0
    %4253 = vmatpush1.msra.mxu0 0.0
    %4254 = vmatprep.subr.mxu0 0.0
    %4255 = vmatpush1.msra.mxu0 0.0
    %4256 = vmatprep.subr.mxu0 0.0
    %4257 = vmatpush1.msra.mxu0 0.0
    %4258 = vmatprep.subr.mxu0 0.0
    %4259 = vmatpush1.msra.mxu0 0.0
    %4260 = vmatprep.subr.mxu0 0.0
    %4261 = vmatpush1.msra.mxu0 0.0
    %4262 = vmatprep.subr.mxu0 0.0
    %4263 = vmatpush1.msra.mxu0 0.0
    %4264 = vmatprep.subr.mxu0 0.0
    %4265 = vmatpush1.msra.mxu0 0.0
    %4266 = vmatprep.subr.mxu0 0.0
    %4267 = vmatpush1.msra.mxu0 0.0
    %4268 = vmatprep.subr.mxu0 0.0
    %4269 = vmatpush1.msra.mxu0 0.0
    %4270 = vmatprep.subr.mxu0 0.0
    %4271 = vmatpush1.msra.mxu0 0.0
    %4272 = vmatprep.subr.mxu0 0.0
    %4273 = vmatpush1.msra.mxu0 0.0
    %4274 = vmatprep.subr.mxu0 0.0
    %4275 = vmatpush1.msra.mxu0 0.0
    %4276 = vmatprep.subr.mxu0 0.0
    %4277 = vmatpush1.msra.mxu0 0.0
    %4278 = vmatprep.subr.mxu0 0.0
    %4279 = vmatpush1.msra.mxu0 0.0
    %4280 = vmatprep.subr.mxu0 0.0
    %4281 = vmatpush1.msra.mxu0 0.0
    %4282 = vmatprep.subr.mxu0 0.0
    %4283 = vmatpush1.msra.mxu0 %v4247
    %4284 = vmatprep.subr.mxu0 0.0
    %4285 = vmatpush2.msra.mxu0 0.0
    %4286 = vmatprep.subr.mxu0 0.0
    %4287 = vmatpush2.msra.mxu0 0.0
    %4288 = vmatprep.subr.mxu0 0.0
    %4289 = vmatpush2.msra.mxu0 0.0
    %4290 = vmatprep.subr.mxu0 0.0
    %4291 = vmatpush2.msra.mxu0 0.0
    %4292 = vmatprep.subr.mxu0 0.0
    %4293 = vmatpush2.msra.mxu0 0.0
    %4294 = vmatprep.subr.mxu0 0.0
    %4295 = vmatpush2.msra.mxu0 0.0
    %4296 = vmatprep.subr.mxu0 0.0
    %4297 = vmatpush2.msra.mxu0 0.0
    %4298 = vmatprep.subr.mxu0 0.0
    %4299 = vmatpush2.msra.mxu0 0.0
    %4300 = vmatprep.subr.mxu0 0.0
    %4301 = vmatpush2.msra.mxu0 0.0
    %4302 = vmatprep.subr.mxu0 0.0
    %4303 = vmatpush2.msra.mxu0 0.0
    %4304 = vmatprep.subr.mxu0 0.0
    %4305 = vmatpush2.msra.mxu0 0.0
    %4306 = vmatprep.subr.mxu0 0.0
    %4307 = vmatpush2.msra.mxu0 0.0
    %4308 = vmatprep.subr.mxu0 0.0
    %4309 = vmatpush2.msra.mxu0 0.0
    %4310 = vmatprep.subr.mxu0 0.0
    %4311 = vmatpush2.msra.mxu0 0.0
    %4312 = vmatprep.subr.mxu0 0.0
    %4313 = vmatpush2.msra.mxu0 0.0
    %4314 = vmatprep.subr.mxu0 0.0
    %4315 = vmatpush2.msra.mxu0 0.0
    %4316 = vmatprep.mubr.f32.mxu0 0.0
    %4317 = vmatmul.mubr.f32.gmra.mxu0 %v4250
    %v4318 = vpop.f32.mrf.mxu0
    %v4319 = vadd.f32 0.0, %v4318
    %v4320 = vpop.f32.mrf.mxu0
    %4321 = vdwg.mxu0
    %4322 = vrot.lane.b32.xlu0 %v3463, 64
    %v4323 = vpop.permute.xlu0 %4322
    %v4326 = vsel %vm1624, %v4164, 0
    %4328 = vmatprep.subr.mxu0 0.0
    %4329 = vmatpush1.msra.mxu0 0.0
    %4330 = vmatprep.subr.mxu0 0.0
    %4331 = vmatpush1.msra.mxu0 0.0
    %4332 = vmatprep.subr.mxu0 0.0
    %4333 = vmatpush1.msra.mxu0 0.0
    %4334 = vmatprep.subr.mxu0 0.0
    %4335 = vmatpush1.msra.mxu0 0.0
    %4336 = vmatprep.subr.mxu0 0.0
    %4337 = vmatpush1.msra.mxu0 0.0
    %4338 = vmatprep.subr.mxu0 0.0
    %4339 = vmatpush1.msra.mxu0 0.0
    %4340 = vmatprep.subr.mxu0 0.0
    %4341 = vmatpush1.msra.mxu0 0.0
    %4342 = vmatprep.subr.mxu0 0.0
    %4343 = vmatpush1.msra.mxu0 0.0
    %4344 = vmatprep.subr.mxu0 0.0
    %4345 = vmatpush1.msra.mxu0 0.0
    %4346 = vmatprep.subr.mxu0 0.0
    %4347 = vmatpush1.msra.mxu0 0.0
    %4348 = vmatprep.subr.mxu0 0.0
    %4349 = vmatpush1.msra.mxu0 0.0
    %4350 = vmatprep.subr.mxu0 0.0
    %4351 = vmatpush1.msra.mxu0 0.0
    %4352 = vmatprep.subr.mxu0 0.0
    %4353 = vmatpush1.msra.mxu0 0.0
    %4354 = vmatprep.subr.mxu0 0.0
    %4355 = vmatpush1.msra.mxu0 0.0
    %4356 = vmatprep.subr.mxu0 0.0
    %4357 = vmatpush1.msra.mxu0 0.0
    %4358 = vmatprep.subr.mxu0 0.0
    %4359 = vmatpush1.msra.mxu0 %v4323
    %4360 = vmatprep.subr.mxu0 0.0
    %4361 = vmatpush2.msra.mxu0 0.0
    %4362 = vmatprep.subr.mxu0 0.0
    %4363 = vmatpush2.msra.mxu0 0.0
    %4364 = vmatprep.subr.mxu0 0.0
    %4365 = vmatpush2.msra.mxu0 0.0
    %4366 = vmatprep.subr.mxu0 0.0
    %4367 = vmatpush2.msra.mxu0 0.0
    %4368 = vmatprep.subr.mxu0 0.0
    %4369 = vmatpush2.msra.mxu0 0.0
    %4370 = vmatprep.subr.mxu0 0.0
    %4371 = vmatpush2.msra.mxu0 0.0
    %4372 = vmatprep.subr.mxu0 0.0
    %4373 = vmatpush2.msra.mxu0 0.0
    %4374 = vmatprep.subr.mxu0 0.0
    %4375 = vmatpush2.msra.mxu0 0.0
    %4376 = vmatprep.subr.mxu0 0.0
    %4377 = vmatpush2.msra.mxu0 0.0
    %4378 = vmatprep.subr.mxu0 0.0
    %4379 = vmatpush2.msra.mxu0 0.0
    %4380 = vmatprep.subr.mxu0 0.0
    %4381 = vmatpush2.msra.mxu0 0.0
    %4382 = vmatprep.subr.mxu0 0.0
    %4383 = vmatpush2.msra.mxu0 0.0
    %4384 = vmatprep.subr.mxu0 0.0
    %4385 = vmatpush2.msra.mxu0 0.0
    %4386 = vmatprep.subr.mxu0 0.0
    %4387 = vmatpush2.msra.mxu0 0.0
    %4388 = vmatprep.subr.mxu0 0.0
    %4389 = vmatpush2.msra.mxu0 0.0
    %4390 = vmatprep.subr.mxu0 0.0
    %4391 = vmatpush2.msra.mxu0 0.0
    %4392 = vmatprep.mubr.f32.mxu0 0.0
    %4393 = vmatmul.mubr.f32.gmra.mxu0 %v4326
    %v4394 = vpop.f32.mrf.mxu0
    %v4395 = vadd.f32 0.0, %v4394
    %v4396 = vpop.f32.mrf.mxu0
    %4397 = vdwg.mxu0
    %4398 = vrot.lane.b32.xlu0 %v3465, 64
    %v4399 = vpop.permute.xlu0 %4398
    %v4402 = vsel %vm1624, %v4165, 0
    %4404 = vmatprep.subr.mxu0 0.0
    %4405 = vmatpush1.msra.mxu0 0.0
    %4406 = vmatprep.subr.mxu0 0.0
    %4407 = vmatpush1.msra.mxu0 0.0
    %4408 = vmatprep.subr.mxu0 0.0
    %4409 = vmatpush1.msra.mxu0 0.0
    %4410 = vmatprep.subr.mxu0 0.0
    %4411 = vmatpush1.msra.mxu0 0.0
    %4412 = vmatprep.subr.mxu0 0.0
    %4413 = vmatpush1.msra.mxu0 0.0
    %4414 = vmatprep.subr.mxu0 0.0
    %4415 = vmatpush1.msra.mxu0 0.0
    %4416 = vmatprep.subr.mxu0 0.0
    %4417 = vmatpush1.msra.mxu0 0.0
    %4418 = vmatprep.subr.mxu0 0.0
    %4419 = vmatpush1.msra.mxu0 0.0
    %4420 = vmatprep.subr.mxu0 0.0
    %4421 = vmatpush1.msra.mxu0 0.0
    %4422 = vmatprep.subr.mxu0 0.0
    %4423 = vmatpush1.msra.mxu0 0.0
    %4424 = vmatprep.subr.mxu0 0.0
    %4425 = vmatpush1.msra.mxu0 0.0
    %4426 = vmatprep.subr.mxu0 0.0
    %4427 = vmatpush1.msra.mxu0 0.0
    %4428 = vmatprep.subr.mxu0 0.0
    %4429 = vmatpush1.msra.mxu0 0.0
    %4430 = vmatprep.subr.mxu0 0.0
    %4431 = vmatpush1.msra.mxu0 0.0
    %4432 = vmatprep.subr.mxu0 0.0
    %4433 = vmatpush1.msra.mxu0 0.0
    %4434 = vmatprep.subr.mxu0 0.0
    %4435 = vmatpush1.msra.mxu0 %v4399
    %4436 = vmatprep.subr.mxu0 0.0
    %4437 = vmatpush2.msra.mxu0 0.0
    %4438 = vmatprep.subr.mxu0 0.0
    %4439 = vmatpush2.msra.mxu0 0.0
    %4440 = vmatprep.subr.mxu0 0.0
    %4441 = vmatpush2.msra.mxu0 0.0
    %4442 = vmatprep.subr.mxu0 0.0
    %4443 = vmatpush2.msra.mxu0 0.0
    %4444 = vmatprep.subr.mxu0 0.0
    %4445 = vmatpush2.msra.mxu0 0.0
    %4446 = vmatprep.subr.mxu0 0.0
    %4447 = vmatpush2.msra.mxu0 0.0
    %4448 = vmatprep.subr.mxu0 0.0
    %4449 = vmatpush2.msra.mxu0 0.0
    %4450 = vmatprep.subr.mxu0 0.0
    %4451 = vmatpush2.msra.mxu0 0.0
    %4452 = vmatprep.subr.mxu0 0.0
    %4453 = vmatpush2.msra.mxu0 0.0
    %4454 = vmatprep.subr.mxu0 0.0
    %4455 = vmatpush2.msra.mxu0 0.0
    %4456 = vmatprep.subr.mxu0 0.0
    %4457 = vmatpush2.msra.mxu0 0.0
    %4458 = vmatprep.subr.mxu0 0.0
    %4459 = vmatpush2.msra.mxu0 0.0
    %4460 = vmatprep.subr.mxu0 0.0
    %4461 = vmatpush2.msra.mxu0 0.0
    %4462 = vmatprep.subr.mxu0 0.0
    %4463 = vmatpush2.msra.mxu0 0.0
    %4464 = vmatprep.subr.mxu0 0.0
    %4465 = vmatpush2.msra.mxu0 0.0
    %4466 = vmatprep.subr.mxu0 0.0
    %4467 = vmatpush2.msra.mxu0 0.0
    %4468 = vmatprep.mubr.f32.mxu0 0.0
    %4469 = vmatmul.mubr.f32.gmra.mxu0 %v4402
    %v4470 = vpop.f32.mrf.mxu0
    %v4471 = vadd.f32 0.0, %v4470
    %v4472 = vpop.f32.mrf.mxu0
    %4473 = vdwg.mxu0
    %4474 = vrot.lane.b32.xlu0 %v3467, 64
    %v4475 = vpop.permute.xlu0 %4474
    %v4478 = vsel %vm1624, %v4166, 0
    %4480 = vmatprep.subr.mxu0 0.0
    %4481 = vmatpush1.msra.mxu0 0.0
    %4482 = vmatprep.subr.mxu0 0.0
    %4483 = vmatpush1.msra.mxu0 0.0
    %4484 = vmatprep.subr.mxu0 0.0
    %4485 = vmatpush1.msra.mxu0 0.0
    %4486 = vmatprep.subr.mxu0 0.0
    %4487 = vmatpush1.msra.mxu0 0.0
    %4488 = vmatprep.subr.mxu0 0.0
    %4489 = vmatpush1.msra.mxu0 0.0
    %4490 = vmatprep.subr.mxu0 0.0
    %4491 = vmatpush1.msra.mxu0 0.0
    %4492 = vmatprep.subr.mxu0 0.0
    %4493 = vmatpush1.msra.mxu0 0.0
    %4494 = vmatprep.subr.mxu0 0.0
    %4495 = vmatpush1.msra.mxu0 0.0
    %4496 = vmatprep.subr.mxu0 0.0
    %4497 = vmatpush1.msra.mxu0 0.0
    %4498 = vmatprep.subr.mxu0 0.0
    %4499 = vmatpush1.msra.mxu0 0.0
    %4500 = vmatprep.subr.mxu0 0.0
    %4501 = vmatpush1.msra.mxu0 0.0
    %4502 = vmatprep.subr.mxu0 0.0
    %4503 = vmatpush1.msra.mxu0 0.0
    %4504 = vmatprep.subr.mxu0 0.0
    %4505 = vmatpush1.msra.mxu0 0.0
    %4506 = vmatprep.subr.mxu0 0.0
    %4507 = vmatpush1.msra.mxu0 0.0
    %4508 = vmatprep.subr.mxu0 0.0
    %4509 = vmatpush1.msra.mxu0 0.0
    %4510 = vmatprep.subr.mxu0 0.0
    %4511 = vmatpush1.msra.mxu0 %v4475
    %4512 = vmatprep.subr.mxu0 0.0
    %4513 = vmatpush2.msra.mxu0 0.0
    %4514 = vmatprep.subr.mxu0 0.0
    %4515 = vmatpush2.msra.mxu0 0.0
    %4516 = vmatprep.subr.mxu0 0.0
    %4517 = vmatpush2.msra.mxu0 0.0
    %4518 = vmatprep.subr.mxu0 0.0
    %4519 = vmatpush2.msra.mxu0 0.0
    %4520 = vmatprep.subr.mxu0 0.0
    %4521 = vmatpush2.msra.mxu0 0.0
    %4522 = vmatprep.subr.mxu0 0.0
    %4523 = vmatpush2.msra.mxu0 0.0
    %4524 = vmatprep.subr.mxu0 0.0
    %4525 = vmatpush2.msra.mxu0 0.0
    %4526 = vmatprep.subr.mxu0 0.0
    %4527 = vmatpush2.msra.mxu0 0.0
    %4528 = vmatprep.subr.mxu0 0.0
    %4529 = vmatpush2.msra.mxu0 0.0
    %4530 = vmatprep.subr.mxu0 0.0
    %4531 = vmatpush2.msra.mxu0 0.0
    %4532 = vmatprep.subr.mxu0 0.0
    %4533 = vmatpush2.msra.mxu0 0.0
    %4534 = vmatprep.subr.mxu0 0.0
    %4535 = vmatpush2.msra.mxu0 0.0
    %4536 = vmatprep.subr.mxu0 0.0
    %4537 = vmatpush2.msra.mxu0 0.0
    %4538 = vmatprep.subr.mxu0 0.0
    %4539 = vmatpush2.msra.mxu0 0.0
    %4540 = vmatprep.subr.mxu0 0.0
    %4541 = vmatpush2.msra.mxu0 0.0
    %4542 = vmatprep.subr.mxu0 0.0
    %4543 = vmatpush2.msra.mxu0 0.0
    %4544 = vmatprep.mubr.f32.mxu0 0.0
    %4545 = vmatmul.mubr.f32.gmra.mxu0 %v4478
    %v4546 = vpop.f32.mrf.mxu0
    %v4547 = vadd.f32 0.0, %v4546
    %v4548 = vpop.f32.mrf.mxu0
    %4549 = vdwg.mxu0
    %4550 = vrot.lane.b32.xlu0 %v3469, 64
    %v4551 = vpop.permute.xlu0 %4550
    %v4554 = vsel %vm1624, %v4167, 0
    %4556 = vmatprep.subr.mxu0 0.0
    %4557 = vmatpush1.msra.mxu0 0.0
    %4558 = vmatprep.subr.mxu0 0.0
    %4559 = vmatpush1.msra.mxu0 0.0
    %4560 = vmatprep.subr.mxu0 0.0
    %4561 = vmatpush1.msra.mxu0 0.0
    %4562 = vmatprep.subr.mxu0 0.0
    %4563 = vmatpush1.msra.mxu0 0.0
    %4564 = vmatprep.subr.mxu0 0.0
    %4565 = vmatpush1.msra.mxu0 0.0
    %4566 = vmatprep.subr.mxu0 0.0
    %4567 = vmatpush1.msra.mxu0 0.0
    %4568 = vmatprep.subr.mxu0 0.0
    %4569 = vmatpush1.msra.mxu0 0.0
    %4570 = vmatprep.subr.mxu0 0.0
    %4571 = vmatpush1.msra.mxu0 0.0
    %4572 = vmatprep.subr.mxu0 0.0
    %4573 = vmatpush1.msra.mxu0 0.0
    %4574 = vmatprep.subr.mxu0 0.0
    %4575 = vmatpush1.msra.mxu0 0.0
    %4576 = vmatprep.subr.mxu0 0.0
    %4577 = vmatpush1.msra.mxu0 0.0
    %4578 = vmatprep.subr.mxu0 0.0
    %4579 = vmatpush1.msra.mxu0 0.0
    %4580 = vmatprep.subr.mxu0 0.0
    %4581 = vmatpush1.msra.mxu0 0.0
    %4582 = vmatprep.subr.mxu0 0.0
    %4583 = vmatpush1.msra.mxu0 0.0
    %4584 = vmatprep.subr.mxu0 0.0
    %4585 = vmatpush1.msra.mxu0 0.0
    %4586 = vmatprep.subr.mxu0 0.0
    %4587 = vmatpush1.msra.mxu0 %v4551
    %4588 = vmatprep.subr.mxu0 0.0
    %4589 = vmatpush2.msra.mxu0 0.0
    %4590 = vmatprep.subr.mxu0 0.0
    %4591 = vmatpush2.msra.mxu0 0.0
    %4592 = vmatprep.subr.mxu0 0.0
    %4593 = vmatpush2.msra.mxu0 0.0
    %4594 = vmatprep.subr.mxu0 0.0
    %4595 = vmatpush2.msra.mxu0 0.0
    %4596 = vmatprep.subr.mxu0 0.0
    %4597 = vmatpush2.msra.mxu0 0.0
    %4598 = vmatprep.subr.mxu0 0.0
    %4599 = vmatpush2.msra.mxu0 0.0
    %4600 = vmatprep.subr.mxu0 0.0
    %4601 = vmatpush2.msra.mxu0 0.0
    %4602 = vmatprep.subr.mxu0 0.0
    %4603 = vmatpush2.msra.mxu0 0.0
    %4604 = vmatprep.subr.mxu0 0.0
    %4605 = vmatpush2.msra.mxu0 0.0
    %4606 = vmatprep.subr.mxu0 0.0
    %4607 = vmatpush2.msra.mxu0 0.0
    %4608 = vmatprep.subr.mxu0 0.0
    %4609 = vmatpush2.msra.mxu0 0.0
    %4610 = vmatprep.subr.mxu0 0.0
    %4611 = vmatpush2.msra.mxu0 0.0
    %4612 = vmatprep.subr.mxu0 0.0
    %4613 = vmatpush2.msra.mxu0 0.0
    %4614 = vmatprep.subr.mxu0 0.0
    %4615 = vmatpush2.msra.mxu0 0.0
    %4616 = vmatprep.subr.mxu0 0.0
    %4617 = vmatpush2.msra.mxu0 0.0
    %4618 = vmatprep.subr.mxu0 0.0
    %4619 = vmatpush2.msra.mxu0 0.0
    %4620 = vmatprep.mubr.f32.mxu0 0.0
    %4621 = vmatmul.mubr.f32.gmra.mxu0 %v4554
    %v4622 = vpop.f32.mrf.mxu0
    %v4623 = vadd.f32 0.0, %v4622
    %v4624 = vpop.f32.mrf.mxu0
    %4625 = vdwg.mxu0
    %4626 = vrot.lane.b32.xlu0 %v3471, 64
    %v4627 = vpop.permute.xlu0 %4626
    %v4630 = vsel %vm1624, %v4168, 0
    %4632 = vmatprep.subr.mxu0 0.0
    %4633 = vmatpush1.msra.mxu0 0.0
    %4634 = vmatprep.subr.mxu0 0.0
    %4635 = vmatpush1.msra.mxu0 0.0
    %4636 = vmatprep.subr.mxu0 0.0
    %4637 = vmatpush1.msra.mxu0 0.0
    %4638 = vmatprep.subr.mxu0 0.0
    %4639 = vmatpush1.msra.mxu0 0.0
    %4640 = vmatprep.subr.mxu0 0.0
    %4641 = vmatpush1.msra.mxu0 0.0
    %4642 = vmatprep.subr.mxu0 0.0
    %4643 = vmatpush1.msra.mxu0 0.0
    %4644 = vmatprep.subr.mxu0 0.0
    %4645 = vmatpush1.msra.mxu0 0.0
    %4646 = vmatprep.subr.mxu0 0.0
    %4647 = vmatpush1.msra.mxu0 0.0
    %4648 = vmatprep.subr.mxu0 0.0
    %4649 = vmatpush1.msra.mxu0 0.0
    %4650 = vmatprep.subr.mxu0 0.0
    %4651 = vmatpush1.msra.mxu0 0.0
    %4652 = vmatprep.subr.mxu0 0.0
    %4653 = vmatpush1.msra.mxu0 0.0
    %4654 = vmatprep.subr.mxu0 0.0
    %4655 = vmatpush1.msra.mxu0 0.0
    %4656 = vmatprep.subr.mxu0 0.0
    %4657 = vmatpush1.msra.mxu0 0.0
    %4658 = vmatprep.subr.mxu0 0.0
    %4659 = vmatpush1.msra.mxu0 0.0
    %4660 = vmatprep.subr.mxu0 0.0
    %4661 = vmatpush1.msra.mxu0 0.0
    %4662 = vmatprep.subr.mxu0 0.0
    %4663 = vmatpush1.msra.mxu0 %v4627
    %4664 = vmatprep.subr.mxu0 0.0
    %4665 = vmatpush2.msra.mxu0 0.0
    %4666 = vmatprep.subr.mxu0 0.0
    %4667 = vmatpush2.msra.mxu0 0.0
    %4668 = vmatprep.subr.mxu0 0.0
    %4669 = vmatpush2.msra.mxu0 0.0
    %4670 = vmatprep.subr.mxu0 0.0
    %4671 = vmatpush2.msra.mxu0 0.0
    %4672 = vmatprep.subr.mxu0 0.0
    %4673 = vmatpush2.msra.mxu0 0.0
    %4674 = vmatprep.subr.mxu0 0.0
    %4675 = vmatpush2.msra.mxu0 0.0
    %4676 = vmatprep.subr.mxu0 0.0
    %4677 = vmatpush2.msra.mxu0 0.0
    %4678 = vmatprep.subr.mxu0 0.0
    %4679 = vmatpush2.msra.mxu0 0.0
    %4680 = vmatprep.subr.mxu0 0.0
    %4681 = vmatpush2.msra.mxu0 0.0
    %4682 = vmatprep.subr.mxu0 0.0
    %4683 = vmatpush2.msra.mxu0 0.0
    %4684 = vmatprep.subr.mxu0 0.0
    %4685 = vmatpush2.msra.mxu0 0.0
    %4686 = vmatprep.subr.mxu0 0.0
    %4687 = vmatpush2.msra.mxu0 0.0
    %4688 = vmatprep.subr.mxu0 0.0
    %4689 = vmatpush2.msra.mxu0 0.0
    %4690 = vmatprep.subr.mxu0 0.0
    %4691 = vmatpush2.msra.mxu0 0.0
    %4692 = vmatprep.subr.mxu0 0.0
    %4693 = vmatpush2.msra.mxu0 0.0
    %4694 = vmatprep.subr.mxu0 0.0
    %4695 = vmatpush2.msra.mxu0 0.0
    %4696 = vmatprep.mubr.f32.mxu0 0.0
    %4697 = vmatmul.mubr.f32.gmra.mxu0 %v4630
    %v4698 = vpop.f32.mrf.mxu0
    %v4699 = vadd.f32 0.0, %v4698
    %v4700 = vpop.f32.mrf.mxu0
    %4701 = vdwg.mxu0
    %4702 = vrot.lane.b32.xlu0 %v3473, 64
    %v4703 = vpop.permute.xlu0 %4702
    %v4706 = vsel %vm1624, %v4169, 0
    %4708 = vmatprep.subr.mxu0 0.0
    %4709 = vmatpush1.msra.mxu0 0.0
    %4710 = vmatprep.subr.mxu0 0.0
    %4711 = vmatpush1.msra.mxu0 0.0
    %4712 = vmatprep.subr.mxu0 0.0
    %4713 = vmatpush1.msra.mxu0 0.0
    %4714 = vmatprep.subr.mxu0 0.0
    %4715 = vmatpush1.msra.mxu0 0.0
    %4716 = vmatprep.subr.mxu0 0.0
    %4717 = vmatpush1.msra.mxu0 0.0
    %4718 = vmatprep.subr.mxu0 0.0
    %4719 = vmatpush1.msra.mxu0 0.0
    %4720 = vmatprep.subr.mxu0 0.0
    %4721 = vmatpush1.msra.mxu0 0.0
    %4722 = vmatprep.subr.mxu0 0.0
    %4723 = vmatpush1.msra.mxu0 0.0
    %4724 = vmatprep.subr.mxu0 0.0
    %4725 = vmatpush1.msra.mxu0 0.0
    %4726 = vmatprep.subr.mxu0 0.0
    %4727 = vmatpush1.msra.mxu0 0.0
    %4728 = vmatprep.subr.mxu0 0.0
    %4729 = vmatpush1.msra.mxu0 0.0
    %4730 = vmatprep.subr.mxu0 0.0
    %4731 = vmatpush1.msra.mxu0 0.0
    %4732 = vmatprep.subr.mxu0 0.0
    %4733 = vmatpush1.msra.mxu0 0.0
    %4734 = vmatprep.subr.mxu0 0.0
    %4735 = vmatpush1.msra.mxu0 0.0
    %4736 = vmatprep.subr.mxu0 0.0
    %4737 = vmatpush1.msra.mxu0 0.0
    %4738 = vmatprep.subr.mxu0 0.0
    %4739 = vmatpush1.msra.mxu0 %v4703
    %4740 = vmatprep.subr.mxu0 0.0
    %4741 = vmatpush2.msra.mxu0 0.0
    %4742 = vmatprep.subr.mxu0 0.0
    %4743 = vmatpush2.msra.mxu0 0.0
    %4744 = vmatprep.subr.mxu0 0.0
    %4745 = vmatpush2.msra.mxu0 0.0
    %4746 = vmatprep.subr.mxu0 0.0
    %4747 = vmatpush2.msra.mxu0 0.0
    %4748 = vmatprep.subr.mxu0 0.0
    %4749 = vmatpush2.msra.mxu0 0.0
    %4750 = vmatprep.subr.mxu0 0.0
    %4751 = vmatpush2.msra.mxu0 0.0
    %4752 = vmatprep.subr.mxu0 0.0
    %4753 = vmatpush2.msra.mxu0 0.0
    %4754 = vmatprep.subr.mxu0 0.0
    %4755 = vmatpush2.msra.mxu0 0.0
    %4756 = vmatprep.subr.mxu0 0.0
    %4757 = vmatpush2.msra.mxu0 0.0
    %4758 = vmatprep.subr.mxu0 0.0
    %4759 = vmatpush2.msra.mxu0 0.0
    %4760 = vmatprep.subr.mxu0 0.0
    %4761 = vmatpush2.msra.mxu0 0.0
    %4762 = vmatprep.subr.mxu0 0.0
    %4763 = vmatpush2.msra.mxu0 0.0
    %4764 = vmatprep.subr.mxu0 0.0
    %4765 = vmatpush2.msra.mxu0 0.0
    %4766 = vmatprep.subr.mxu0 0.0
    %4767 = vmatpush2.msra.mxu0 0.0
    %4768 = vmatprep.subr.mxu0 0.0
    %4769 = vmatpush2.msra.mxu0 0.0
    %4770 = vmatprep.subr.mxu0 0.0
    %4771 = vmatpush2.msra.mxu0 0.0
    %4772 = vmatprep.mubr.f32.mxu0 0.0
    %4773 = vmatmul.mubr.f32.gmra.mxu0 %v4706
    %v4774 = vpop.f32.mrf.mxu0
    %v4775 = vadd.f32 0.0, %v4774
    %v4776 = vpop.f32.mrf.mxu0
    %4777 = vdwg.mxu0
    %4780 = vrot.lane.b32.xlu0 %v4395, 8
    %v4781 = vpop.permute.xlu0 %4780
    %4782 = vrot.lane.b32.xlu0 %v4471, 8
    %v4783 = vpop.permute.xlu0 %4782
    %4788 = vrot.lane.b32.xlu0 %v4547, 16
    %v4789 = vpop.permute.xlu0 %4788
    %4790 = vrot.lane.b32.xlu0 %v4623, 16
    %v4791 = vpop.permute.xlu0 %4790
    %4796 = vrot.lane.b32.xlu0 %v4699, 24
    %v4797 = vpop.permute.xlu0 %4796
    %4798 = vrot.lane.b32.xlu0 %v4775, 24
    %v4799 = vpop.permute.xlu0 %4798
    %v4802 = vsel %vm1624, %v4243, %v4781
    %v4803 = vsel %vm1624, %v4319, %v4783
    %v4804 = vsel %vm2233, %v4802, %v4789
    %v4805 = vsel %vm2233, %v4803, %v4791
    %v4806 = vsel %vm570, %v4804, %v4797
    %v4807 = vsel %vm570, %v4805, %v4799
    %v4808 = vld [vmem:[#allocation5 + $0x20] sm:$0xff]
    %v4809 = vld [vmem:[#allocation5 + $0x28] sm:$0xff]
    %v4810 = vld [vmem:[#allocation5 + $0x30] sm:$0xff]
    %v4811 = vld [vmem:[#allocation5 + $0x38] sm:$0xff]
    %v4812 = vld [vmem:[#allocation5 + $0xe3] sm:$0x1]
    %v4813 = vlaneseq
    %v4814 = vshrl.u32 %v4813, 7
    %v4815 = vsub.s32 0, %v4814
    %v4816 = vrot.slane %v4812, %v4815
    %v4818 = vsel %vm1284, %v4806, 0
    %v4821 = vsel %vm1284, %v4807, 0
    %4823 = vmatprep.subr.mxu0 0.0
    %4824 = vmatpush1.msra.mxu0 0.0
    %4825 = vmatprep.subr.mxu0 0.0
    %4826 = vmatpush1.msra.mxu0 0.0
    %4827 = vmatprep.subr.mxu0 0.0
    %4828 = vmatpush1.msra.mxu0 0.0
    %4829 = vmatprep.subr.mxu0 0.0
    %4830 = vmatpush1.msra.mxu0 0.0
    %4831 = vmatprep.subr.mxu0 0.0
    %4832 = vmatpush1.msra.mxu0 0.0
    %4833 = vmatprep.subr.mxu0 0.0
    %4834 = vmatpush1.msra.mxu0 0.0
    %4835 = vmatprep.subr.mxu0 0.0
    %4836 = vmatpush1.msra.mxu0 0.0
    %4837 = vmatprep.subr.mxu0 0.0
    %4838 = vmatpush1.msra.mxu0 0.0
    %4839 = vmatprep.subr.mxu0 0.0
    %4840 = vmatpush1.msra.mxu0 0.0
    %4841 = vmatprep.subr.mxu0 0.0
    %4842 = vmatpush1.msra.mxu0 0.0
    %4843 = vmatprep.subr.mxu0 0.0
    %4844 = vmatpush1.msra.mxu0 0.0
    %4845 = vmatprep.subr.mxu0 0.0
    %4846 = vmatpush1.msra.mxu0 0.0
    %4847 = vmatprep.subr.mxu0 0.0
    %4848 = vmatpush1.msra.mxu0 %v4811
    %4849 = vmatprep.subr.mxu0 0.0
    %4850 = vmatpush1.msra.mxu0 %v4810
    %4851 = vmatprep.subr.mxu0 0.0
    %4852 = vmatpush1.msra.mxu0 %v4809
    %4853 = vmatprep.subr.mxu0 0.0
    %4854 = vmatpush1.msra.mxu0 %v4808
    %4855 = vmatprep.subr.mxu0 0.0
    %4856 = vmatpush2.msra.mxu0 0.0
    %4857 = vmatprep.subr.mxu0 0.0
    %4858 = vmatpush2.msra.mxu0 0.0
    %4859 = vmatprep.subr.mxu0 0.0
    %4860 = vmatpush2.msra.mxu0 0.0
    %4861 = vmatprep.subr.mxu0 0.0
    %4862 = vmatpush2.msra.mxu0 0.0
    %4863 = vmatprep.subr.mxu0 0.0
    %4864 = vmatpush2.msra.mxu0 0.0
    %4865 = vmatprep.subr.mxu0 0.0
    %4866 = vmatpush2.msra.mxu0 0.0
    %4867 = vmatprep.subr.mxu0 0.0
    %4868 = vmatpush2.msra.mxu0 0.0
    %4869 = vmatprep.subr.mxu0 0.0
    %4870 = vmatpush2.msra.mxu0 0.0
    %4871 = vmatprep.subr.mxu0 0.0
    %4872 = vmatpush2.msra.mxu0 0.0
    %4873 = vmatprep.subr.mxu0 0.0
    %4874 = vmatpush2.msra.mxu0 0.0
    %4875 = vmatprep.subr.mxu0 0.0
    %4876 = vmatpush2.msra.mxu0 0.0
    %4877 = vmatprep.subr.mxu0 0.0
    %4878 = vmatpush2.msra.mxu0 0.0
    %4879 = vmatprep.subr.mxu0 0.0
    %4880 = vmatpush2.msra.mxu0 0.0
    %4881 = vmatprep.subr.mxu0 0.0
    %4882 = vmatpush2.msra.mxu0 0.0
    %4883 = vmatprep.subr.mxu0 0.0
    %4884 = vmatpush2.msra.mxu0 0.0
    %4885 = vmatprep.subr.mxu0 0.0
    %4886 = vmatpush2.msra.mxu0 0.0
    %4887 = vmatprep.mubr.f32.mxu0 0.0
    %4888 = vmatmul.mubr.f32.gmra.mxu0 %v4818
    %v4889 = vpop.f32.mrf.mxu0
    %v4890 = vadd.f32 %v4816, %v4889
    %v4891 = vpop.f32.mrf.mxu0
    %4892 = vmatprep.mubr.f32.mxu0 0.0
    %4893 = vmatmul.mubr.f32.gmra.mxu0 %v4821
    %v4894 = vpop.f32.mrf.mxu0
    %v4895 = vadd.f32 %v4816, %v4894
    %v4896 = vpop.f32.mrf.mxu0
    %4897 = vdwg.mxu0
    %v4898 = vadd.f32 %v3324, %v4890
    %v4899 = vadd.f32 %v3325, %v4895
    %v4900 = vld [vmem:[#allocation5 + $0xe4] sm:$0x1]
    %v4901 = vld [vmem:[#allocation5 + $0xe5] sm:$0x1]
    %v4902 = vsel %vm1284, %v4898, 0.0
    %4903 = vadd.xlane.f32.xlu0 %v4902
    %v4904 = vpop.xlane.xlu0 %4903
    %v4905 = vsel %vm1284, %v4899, 0.0
    %4906 = vadd.xlane.f32.xlu0 %v4905
    %v4907 = vpop.xlane.xlu0 %4906
    %v4908 = vmul.f32 %v4904, %v1288
    %v4909 = vmul.f32 %v4907, %v1288
    %v4910 = vmul.f32 %v4898, %v4898
    %v4911 = vmul.f32 %v4899, %v4899
    %v4912 = vsel %vm1284, %v4910, 0.0
    %4913 = vadd.xlane.f32.xlu0 %v4912
    %v4914 = vpop.xlane.xlu0 %4913
    %v4915 = vsel %vm1284, %v4911, 0.0
    %4916 = vadd.xlane.f32.xlu0 %v4915
    %v4917 = vpop.xlane.xlu0 %4916
    %v4918 = vmul.f32 %v4914, %v1288
    %v4919 = vmul.f32 %v4917, %v1288
    %v4920 = vmul.f32 %v4908, %v4908
    %v4921 = vmul.f32 %v4909, %v4909
    %v4922 = vsub.f32 %v4918, %v4920
    %v4923 = vsub.f32 %v4919, %v4921
    %v4924 = vsub.f32 %v4898, %v4908
    %v4925 = vsub.f32 %v4899, %v4909
    %v4926 = vadd.f32 %v4922, 1e-05
    %v4927 = vadd.f32 %v4923, 1e-05
    %v4928 = vrsqrt.pop %v4926
    %v4929 = vrsqrt.pop %v4927
    %v4930 = vmul.f32 %v4924, %v4928
    %v4931 = vmul.f32 %v4925, %v4929
    %v4932 = vlaneseq
    %v4933 = vshrl.u32 %v4932, 7
    %v4934 = vsub.s32 0, %v4933
    %v4935 = vrot.slane %v4900, %v4934
    %v4936 = vmul.f32 %v4930, %v4935
    %v4937 = vmul.f32 %v4931, %v4935
    %v4938 = vlaneseq
    %v4939 = vshrl.u32 %v4938, 7
    %v4940 = vsub.s32 0, %v4939
    %v4941 = vrot.slane %v4901, %v4940
    %v4942 = vadd.f32 %v4936, %v4941
    %v4943 = vadd.f32 %v4937, %v4941
    %v4944 = vld [vmem:[#allocation5 + $0x40] sm:$0xff]
    %v4945 = vld [vmem:[#allocation5 + $0x48] sm:$0xff]
    %v4946 = vld [vmem:[#allocation5 + $0x50] sm:$0xff]
    %v4947 = vld [vmem:[#allocation5 + $0x58] sm:$0xff]
    %v4948 = vld [vmem:[#allocation5 + $0xe6] sm:$0x1]
    %v4949 = vlaneseq
    %v4950 = vshrl.u32 %v4949, 7
    %v4951 = vsub.s32 0, %v4950
    %v4952 = vrot.slane %v4948, %v4951
    %v4954 = vsel %vm1284, %v4942, 0
    %v4957 = vsel %vm1284, %v4943, 0
    %4959 = vmatprep.subr.mxu0 0.0
    %4960 = vmatpush1.msra.mxu0 0.0
    %4961 = vmatprep.subr.mxu0 0.0
    %4962 = vmatpush1.msra.mxu0 0.0
    %4963 = vmatprep.subr.mxu0 0.0
    %4964 = vmatpush1.msra.mxu0 0.0
    %4965 = vmatprep.subr.mxu0 0.0
    %4966 = vmatpush1.msra.mxu0 0.0
    %4967 = vmatprep.subr.mxu0 0.0
    %4968 = vmatpush1.msra.mxu0 0.0
    %4969 = vmatprep.subr.mxu0 0.0
    %4970 = vmatpush1.msra.mxu0 0.0
    %4971 = vmatprep.subr.mxu0 0.0
    %4972 = vmatpush1.msra.mxu0 0.0
    %4973 = vmatprep.subr.mxu0 0.0
    %4974 = vmatpush1.msra.mxu0 0.0
    %4975 = vmatprep.subr.mxu0 0.0
    %4976 = vmatpush1.msra.mxu0 0.0
    %4977 = vmatprep.subr.mxu0 0.0
    %4978 = vmatpush1.msra.mxu0 0.0
    %4979 = vmatprep.subr.mxu0 0.0
    %4980 = vmatpush1.msra.mxu0 0.0
    %4981 = vmatprep.subr.mxu0 0.0
    %4982 = vmatpush1.msra.mxu0 0.0
    %4983 = vmatprep.subr.mxu0 0.0
    %4984 = vmatpush1.msra.mxu0 %v4947
    %4985 = vmatprep.subr.mxu0 0.0
    %4986 = vmatpush1.msra.mxu0 %v4946
    %4987 = vmatprep.subr.mxu0 0.0
    %4988 = vmatpush1.msra.mxu0 %v4945
    %4989 = vmatprep.subr.mxu0 0.0
    %4990 = vmatpush1.msra.mxu0 %v4944
    %4991 = vmatprep.subr.mxu0 0.0
    %4992 = vmatpush2.msra.mxu0 0.0
    %4993 = vmatprep.subr.mxu0 0.0
    %4994 = vmatpush2.msra.mxu0 0.0
    %4995 = vmatprep.subr.mxu0 0.0
    %4996 = vmatpush2.msra.mxu0 0.0
    %4997 = vmatprep.subr.mxu0 0.0
    %4998 = vmatpush2.msra.mxu0 0.0
    %4999 = vmatprep.subr.mxu0 0.0
    %5000 = vmatpush2.msra.mxu0 0.0
    %5001 = vmatprep.subr.mxu0 0.0
    %5002 = vmatpush2.msra.mxu0 0.0
    %5003 = vmatprep.subr.mxu0 0.0
    %5004 = vmatpush2.msra.mxu0 0.0
    %5005 = vmatprep.subr.mxu0 0.0
    %5006 = vmatpush2.msra.mxu0 0.0
    %5007 = vmatprep.subr.mxu0 0.0
    %5008 = vmatpush2.msra.mxu0 0.0
    %5009 = vmatprep.subr.mxu0 0.0
    %5010 = vmatpush2.msra.mxu0 0.0
    %5011 = vmatprep.subr.mxu0 0.0
    %5012 = vmatpush2.msra.mxu0 0.0
    %5013 = vmatprep.subr.mxu0 0.0
    %5014 = vmatpush2.msra.mxu0 0.0
    %5015 = vmatprep.subr.mxu0 0.0
    %5016 = vmatpush2.msra.mxu0 0.0
    %5017 = vmatprep.subr.mxu0 0.0
    %5018 = vmatpush2.msra.mxu0 0.0
    %5019 = vmatprep.subr.mxu0 0.0
    %5020 = vmatpush2.msra.mxu0 0.0
    %5021 = vmatprep.subr.mxu0 0.0
    %5022 = vmatpush2.msra.mxu0 0.0
    %5023 = vmatprep.mubr.f32.mxu0 0.0
    %5024 = vmatmul.mubr.f32.gmra.mxu0 %v4954
    %v5025 = vpop.f32.mrf.mxu0
    %v5026 = vadd.f32 %v4952, %v5025
    %v5027 = vpop.f32.mrf.mxu0
    %5028 = vmatprep.mubr.f32.mxu0 0.0
    %5029 = vmatmul.mubr.f32.gmra.mxu0 %v4957
    %v5030 = vpop.f32.mrf.mxu0
    %v5031 = vadd.f32 %v4952, %v5030
    %v5032 = vpop.f32.mrf.mxu0
    %5033 = vdwg.mxu0
    %v5034 = vmul.f32 %v5026, %v5026
    %v5035 = vmul.f32 %v5031, %v5031
    %v5036 = vmul.f32 %v5026, %v5034
    %v5037 = vmul.f32 %v5031, %v5035
    %v5038 = vmul.f32 %v5036, 0.044715
    %v5039 = vmul.f32 %v5037, 0.044715
    %v5040 = vadd.f32 %v5026, %v5038
    %v5041 = vadd.f32 %v5031, %v5039
    %v5042 = vmul.f32 %v5040, 0.7978846
    %v5043 = vmul.f32 %v5041, 0.7978846
    %v5044 = vtanh.pop %v5042
    %v5045 = vtanh.pop %v5043
    %v5046 = vadd.f32 %v5044, 1.0
    %v5047 = vadd.f32 %v5045, 1.0
    %v5048 = vmul.f32 %v5046, 0.5
    %v5049 = vmul.f32 %v5047, 0.5
    %v5050 = vmul.f32 %v5026, %v5048
    %v5051 = vmul.f32 %v5031, %v5049
    %v5052 = vld [vmem:[#allocation5 + $0x60] sm:$0xff]
    %v5053 = vld [vmem:[#allocation5 + $0x68] sm:$0xff]
    %v5054 = vld [vmem:[#allocation5 + $0x70] sm:$0xff]
    %v5055 = vld [vmem:[#allocation5 + $0x78] sm:$0xff]
    %v5056 = vld [vmem:[#allocation5 + $0x80] sm:$0xff]
    %v5057 = vld [vmem:[#allocation5 + $0x88] sm:$0xff]
    %v5058 = vld [vmem:[#allocation5 + $0x90] sm:$0xff]
    %v5059 = vld [vmem:[#allocation5 + $0x98] sm:$0xff]
    %v5060 = vld [vmem:[#allocation5 + $0xa0] sm:$0xff]
    %v5061 = vld [vmem:[#allocation5 + $0xa8] sm:$0xff]
    %v5062 = vld [vmem:[#allocation5 + $0xb0] sm:$0xff]
    %v5063 = vld [vmem:[#allocation5 + $0xb8] sm:$0xff]
    %v5064 = vld [vmem:[#allocation5 + $0xc0] sm:$0xff]
    %v5065 = vld [vmem:[#allocation5 + $0xc8] sm:$0xff]
    %v5066 = vld [vmem:[#allocation5 + $0xd0] sm:$0xff]
    %v5067 = vld [vmem:[#allocation5 + $0xd8] sm:$0xff]
    %v5068 = vld [vmem:[#allocation5 + $0xe7] sm:$0x1]
    %v5069 = vlaneseq
    %v5070 = vshrl.u32 %v5069, 7
    %v5071 = vsub.s32 0, %v5070
    %v5072 = vrot.slane %v5068, %v5071
    %5073 = vmatprep.subr.mxu0 0.0
    %5074 = vmatpush1.msra.mxu0 %v5067
    %5075 = vmatprep.subr.mxu0 0.0
    %5076 = vmatpush1.msra.mxu0 %v5066
    %5077 = vmatprep.subr.mxu0 0.0
    %5078 = vmatpush1.msra.mxu0 %v5065
    %5079 = vmatprep.subr.mxu0 0.0
    %5080 = vmatpush1.msra.mxu0 %v5064
    %5081 = vmatprep.subr.mxu0 0.0
    %5082 = vmatpush1.msra.mxu0 %v5063
    %5083 = vmatprep.subr.mxu0 0.0
    %5084 = vmatpush1.msra.mxu0 %v5062
    %5085 = vmatprep.subr.mxu0 0.0
    %5086 = vmatpush1.msra.mxu0 %v5061
    %5087 = vmatprep.subr.mxu0 0.0
    %5088 = vmatpush1.msra.mxu0 %v5060
    %5089 = vmatprep.subr.mxu0 0.0
    %5090 = vmatpush1.msra.mxu0 %v5059
    %5091 = vmatprep.subr.mxu0 0.0
    %5092 = vmatpush1.msra.mxu0 %v5058
    %5093 = vmatprep.subr.mxu0 0.0
    %5094 = vmatpush1.msra.mxu0 %v5057
    %5095 = vmatprep.subr.mxu0 0.0
    %5096 = vmatpush1.msra.mxu0 %v5056
    %5097 = vmatprep.subr.mxu0 0.0
    %5098 = vmatpush1.msra.mxu0 %v5055
    %5099 = vmatprep.subr.mxu0 0.0
    %5100 = vmatpush1.msra.mxu0 %v5054
    %5101 = vmatprep.subr.mxu0 0.0
    %5102 = vmatpush1.msra.mxu0 %v5053
    %5103 = vmatprep.subr.mxu0 0.0
    %5104 = vmatpush1.msra.mxu0 %v5052
    %5105 = vmatprep.subr.mxu0 0.0
    %5106 = vmatpush2.msra.mxu0 0.0
    %5107 = vmatprep.subr.mxu0 0.0
    %5108 = vmatpush2.msra.mxu0 0.0
    %5109 = vmatprep.subr.mxu0 0.0
    %5110 = vmatpush2.msra.mxu0 0.0
    %5111 = vmatprep.subr.mxu0 0.0
    %5112 = vmatpush2.msra.mxu0 0.0
    %5113 = vmatprep.subr.mxu0 0.0
    %5114 = vmatpush2.msra.mxu0 0.0
    %5115 = vmatprep.subr.mxu0 0.0
    %5116 = vmatpush2.msra.mxu0 0.0
    %5117 = vmatprep.subr.mxu0 0.0
    %5118 = vmatpush2.msra.mxu0 0.0
    %5119 = vmatprep.subr.mxu0 0.0
    %5120 = vmatpush2.msra.mxu0 0.0
    %5121 = vmatprep.subr.mxu0 0.0
    %5122 = vmatpush2.msra.mxu0 0.0
    %5123 = vmatprep.subr.mxu0 0.0
    %5124 = vmatpush2.msra.mxu0 0.0
    %5125 = vmatprep.subr.mxu0 0.0
    %5126 = vmatpush2.msra.mxu0 0.0
    %5127 = vmatprep.subr.mxu0 0.0
    %5128 = vmatpush2.msra.mxu0 0.0
    %5129 = vmatprep.subr.mxu0 0.0
    %5130 = vmatpush2.msra.mxu0 0.0
    %5131 = vmatprep.subr.mxu0 0.0
    %5132 = vmatpush2.msra.mxu0 0.0
    %5133 = vmatprep.subr.mxu0 0.0
    %5134 = vmatpush2.msra.mxu0 0.0
    %5135 = vmatprep.subr.mxu0 0.0
    %5136 = vmatpush2.msra.mxu0 0.0
    %5137 = vmatprep.mubr.f32.mxu0 0.0
    %5138 = vmatmul.mubr.f32.gmra.mxu0 %v5050
    %v5139 = vpop.f32.mrf.mxu0
    %v5140 = vadd.f32 %v5072, %v5139
    %v5141 = vpop.f32.mrf.mxu0
    %5142 = vmatprep.mubr.f32.mxu0 0.0
    %5143 = vmatmul.mubr.f32.gmra.mxu0 %v5051
    %v5144 = vpop.f32.mrf.mxu0
    %v5145 = vadd.f32 %v5072, %v5144
    %v5146 = vpop.f32.mrf.mxu0
    %5147 = vdwg.mxu0
    %v5148 = vadd.f32 %v4898, %v5140
    %v5149 = vadd.f32 %v4899, %v5145
    %s5150 = scalar_lea.vmem [#allocation5], 232
    %v5151 = vld [vmem:[%s5150 + $0xe0] sm:$0x1]
    %v5152 = vld [vmem:[%s5150 + $0xe1] sm:$0x1]
    %v5153 = vsel %vm1284, %v5148, 0.0
    %5154 = vadd.xlane.f32.xlu0 %v5153
    %v5155 = vpop.xlane.xlu0 %5154
    %v5156 = vsel %vm1284, %v5149, 0.0
    %5157 = vadd.xlane.f32.xlu0 %v5156
    %v5158 = vpop.xlane.xlu0 %5157
    %v5159 = vmul.f32 %v5155, %v1288
    %v5160 = vmul.f32 %v5158, %v1288
    %v5161 = vmul.f32 %v5148, %v5148
    %v5162 = vmul.f32 %v5149, %v5149
    %v5163 = vsel %vm1284, %v5161, 0.0
    %5164 = vadd.xlane.f32.xlu0 %v5163
    %v5165 = vpop.xlane.xlu0 %5164
    %v5166 = vsel %vm1284, %v5162, 0.0
    %5167 = vadd.xlane.f32.xlu0 %v5166
    %v5168 = vpop.xlane.xlu0 %5167
    %v5169 = vmul.f32 %v5165, %v1288
    %v5170 = vmul.f32 %v5168, %v1288
    %v5171 = vmul.f32 %v5159, %v5159
    %v5172 = vmul.f32 %v5160, %v5160
    %v5173 = vsub.f32 %v5169, %v5171
    %v5174 = vsub.f32 %v5170, %v5172
    %v5175 = vsub.f32 %v5148, %v5159
    %v5176 = vsub.f32 %v5149, %v5160
    %v5177 = vadd.f32 %v5173, 1e-05
    %v5178 = vadd.f32 %v5174, 1e-05
    %v5179 = vrsqrt.pop %v5177
    %v5180 = vrsqrt.pop %v5178
    %v5181 = vmul.f32 %v5175, %v5179
    %v5182 = vmul.f32 %v5176, %v5180
    %v5183 = vlaneseq
    %v5184 = vshrl.u32 %v5183, 7
    %v5185 = vsub.s32 0, %v5184
    %v5186 = vrot.slane %v5151, %v5185
    %v5187 = vmul.f32 %v5181, %v5186
    %v5188 = vmul.f32 %v5182, %v5186
    %v5189 = vlaneseq
    %v5190 = vshrl.u32 %v5189, 7
    %v5191 = vsub.s32 0, %v5190
    %v5192 = vrot.slane %v5152, %v5191
    %v5193 = vadd.f32 %v5187, %v5192
    %v5194 = vadd.f32 %v5188, %v5192
    %v5195 = vld [vmem:[%s5150] sm:$0xff]
    %v5196 = vld [vmem:[%s5150 + $0x8] sm:$0xff]
    %v5197 = vld [vmem:[%s5150 + $0x10] sm:$0xff]
    %v5198 = vld [vmem:[%s5150 + $0x18] sm:$0xff]
    %v5199 = vld [vmem:[%s5150 + $0xe2] sm:$0x1]
    %v5200 = vlaneseq
    %v5201 = vshrl.u32 %v5200, 7
    %v5202 = vsub.s32 0, %v5201
    %v5203 = vrot.slane %v5199, %v5202
    %v5205 = vsel %vm1284, %v5193, 0
    %v5208 = vsel %vm1284, %v5194, 0
    %5210 = vmatprep.subr.mxu0 0.0
    %5211 = vmatpush1.msra.mxu0 0.0
    %5212 = vmatprep.subr.mxu0 0.0
    %5213 = vmatpush1.msra.mxu0 0.0
    %5214 = vmatprep.subr.mxu0 0.0
    %5215 = vmatpush1.msra.mxu0 0.0
    %5216 = vmatprep.subr.mxu0 0.0
    %5217 = vmatpush1.msra.mxu0 0.0
    %5218 = vmatprep.subr.mxu0 0.0
    %5219 = vmatpush1.msra.mxu0 0.0
    %5220 = vmatprep.subr.mxu0 0.0
    %5221 = vmatpush1.msra.mxu0 0.0
    %5222 = vmatprep.subr.mxu0 0.0
    %5223 = vmatpush1.msra.mxu0 0.0
    %5224 = vmatprep.subr.mxu0 0.0
    %5225 = vmatpush1.msra.mxu0 0.0
    %5226 = vmatprep.subr.mxu0 0.0
    %5227 = vmatpush1.msra.mxu0 0.0
    %5228 = vmatprep.subr.mxu0 0.0
    %5229 = vmatpush1.msra.mxu0 0.0
    %5230 = vmatprep.subr.mxu0 0.0
    %5231 = vmatpush1.msra.mxu0 0.0
    %5232 = vmatprep.subr.mxu0 0.0
    %5233 = vmatpush1.msra.mxu0 0.0
    %5234 = vmatprep.subr.mxu0 0.0
    %5235 = vmatpush1.msra.mxu0 %v5198
    %5236 = vmatprep.subr.mxu0 0.0
    %5237 = vmatpush1.msra.mxu0 %v5197
    %5238 = vmatprep.subr.mxu0 0.0
    %5239 = vmatpush1.msra.mxu0 %v5196
    %5240 = vmatprep.subr.mxu0 0.0
    %5241 = vmatpush1.msra.mxu0 %v5195
    %5242 = vmatprep.subr.mxu0 0.0
    %5243 = vmatpush2.msra.mxu0 0.0
    %5244 = vmatprep.subr.mxu0 0.0
    %5245 = vmatpush2.msra.mxu0 0.0
    %5246 = vmatprep.subr.mxu0 0.0
    %5247 = vmatpush2.msra.mxu0 0.0
    %5248 = vmatprep.subr.mxu0 0.0
    %5249 = vmatpush2.msra.mxu0 0.0
    %5250 = vmatprep.subr.mxu0 0.0
    %5251 = vmatpush2.msra.mxu0 0.0
    %5252 = vmatprep.subr.mxu0 0.0
    %5253 = vmatpush2.msra.mxu0 0.0
    %5254 = vmatprep.subr.mxu0 0.0
    %5255 = vmatpush2.msra.mxu0 0.0
    %5256 = vmatprep.subr.mxu0 0.0
    %5257 = vmatpush2.msra.mxu0 0.0
    %5258 = vmatprep.subr.mxu0 0.0
    %5259 = vmatpush2.msra.mxu0 0.0
    %5260 = vmatprep.subr.mxu0 0.0
    %5261 = vmatpush2.msra.mxu0 0.0
    %5262 = vmatprep.subr.mxu0 0.0
    %5263 = vmatpush2.msra.mxu0 0.0
    %5264 = vmatprep.subr.mxu0 0.0
    %5265 = vmatpush2.msra.mxu0 0.0
    %5266 = vmatprep.subr.mxu0 0.0
    %5267 = vmatpush2.msra.mxu0 0.0
    %5268 = vmatprep.subr.mxu0 0.0
    %5269 = vmatpush2.msra.mxu0 0.0
    %5270 = vmatprep.subr.mxu0 0.0
    %5271 = vmatpush2.msra.mxu0 0.0
    %5272 = vmatprep.subr.mxu0 0.0
    %5273 = vmatpush2.msra.mxu0 0.0
    %5274 = vmatprep.mubr.f32.mxu0 0.0
    %5275 = vmatmul.mubr.f32.gmra.mxu0 %v5205
    %v5276 = vpop.f32.mrf.mxu0
    %v5277 = vadd.f32 %v5203, %v5276
    %v5278 = vpop.f32.mrf.mxu0
    %5279 = vmatprep.mubr.f32.mxu0 0.0
    %5280 = vmatmul.mubr.f32.gmra.mxu0 %v5208
    %v5281 = vpop.f32.mrf.mxu0
    %v5282 = vadd.f32 %v5203, %v5281
    %v5283 = vpop.f32.mrf.mxu0
    %5284 = vdwg.mxu0
    %5287 = vrot.lane.b32.xlu0 %v5277, 120
    %v5288 = vpop.permute.xlu0 %5287
    %5289 = vrot.lane.b32.xlu0 %v5282, 120
    %v5290 = vpop.permute.xlu0 %5289
    %5291 = vrot.lane.b32.xlu0 %v5277, 112
    %v5292 = vpop.permute.xlu0 %5291
    %5293 = vrot.lane.b32.xlu0 %v5282, 112
    %v5294 = vpop.permute.xlu0 %5293
    %5295 = vrot.lane.b32.xlu0 %v5277, 104
    %v5296 = vpop.permute.xlu0 %5295
    %5297 = vrot.lane.b32.xlu0 %v5282, 104
    %v5298 = vpop.permute.xlu0 %5297
    %5299 = vrot.lane.b32.xlu0 %v5277, 96
    %v5300 = vpop.permute.xlu0 %5299
    %v5301 = vsel %vm1624, %v5277, 0
    %v5303 = vsel %vm1624, %v5300, 0
    %5305 = vmatprep.subr.mxu0 0.0
    %5306 = vmatpush1.xpose.msra.mxu0 0.0
    %5307 = vmatprep.subr.mxu0 0.0
    %5308 = vmatpush1.xpose.msra.mxu0 0.0
    %5309 = vmatprep.subr.mxu0 0.0
    %5310 = vmatpush1.xpose.msra.mxu0 0.0
    %5311 = vmatprep.subr.mxu0 0.0
    %5312 = vmatpush1.xpose.msra.mxu0 0.0
    %5313 = vmatprep.subr.mxu0 0.0
    %5314 = vmatpush1.xpose.msra.mxu0 0.0
    %5315 = vmatprep.subr.mxu0 0.0
    %5316 = vmatpush1.xpose.msra.mxu0 0.0
    %5317 = vmatprep.subr.mxu0 0.0
    %5318 = vmatpush1.xpose.msra.mxu0 0.0
    %5319 = vmatprep.subr.mxu0 0.0
    %5320 = vmatpush1.xpose.msra.mxu0 0.0
    %5321 = vmatprep.subr.mxu0 0.0
    %5322 = vmatpush1.xpose.msra.mxu0 0.0
    %5323 = vmatprep.subr.mxu0 0.0
    %5324 = vmatpush1.xpose.msra.mxu0 0.0
    %5325 = vmatprep.subr.mxu0 0.0
    %5326 = vmatpush1.xpose.msra.mxu0 0.0
    %5327 = vmatprep.subr.mxu0 0.0
    %5328 = vmatpush1.xpose.msra.mxu0 0.0
    %5329 = vmatprep.subr.mxu0 0.0
    %5330 = vmatpush1.xpose.msra.mxu0 0.0
    %5331 = vmatprep.subr.mxu0 0.0
    %5332 = vmatpush1.xpose.msra.mxu0 0.0
    %5333 = vmatprep.subr.mxu0 0.0
    %5334 = vmatpush1.xpose.msra.mxu0 0.0
    %5335 = vmatprep.subr.mxu0 0.0
    %5336 = vmatpush1.xpose.msra.mxu0 %v5303
    %5337 = vmatprep.subr.mxu0 0.0
    %5338 = vmatpush2.xpose.msra.mxu0 0.0
    %5339 = vmatprep.subr.mxu0 0.0
    %5340 = vmatpush2.xpose.msra.mxu0 0.0
    %5341 = vmatprep.subr.mxu0 0.0
    %5342 = vmatpush2.xpose.msra.mxu0 0.0
    %5343 = vmatprep.subr.mxu0 0.0
    %5344 = vmatpush2.xpose.msra.mxu0 0.0
    %5345 = vmatprep.subr.mxu0 0.0
    %5346 = vmatpush2.xpose.msra.mxu0 0.0
    %5347 = vmatprep.subr.mxu0 0.0
    %5348 = vmatpush2.xpose.msra.mxu0 0.0
    %5349 = vmatprep.subr.mxu0 0.0
    %5350 = vmatpush2.xpose.msra.mxu0 0.0
    %5351 = vmatprep.subr.mxu0 0.0
    %5352 = vmatpush2.xpose.msra.mxu0 0.0
    %5353 = vmatprep.subr.mxu0 0.0
    %5354 = vmatpush2.xpose.msra.mxu0 0.0
    %5355 = vmatprep.subr.mxu0 0.0
    %5356 = vmatpush2.xpose.msra.mxu0 0.0
    %5357 = vmatprep.subr.mxu0 0.0
    %5358 = vmatpush2.xpose.msra.mxu0 0.0
    %5359 = vmatprep.subr.mxu0 0.0
    %5360 = vmatpush2.xpose.msra.mxu0 0.0
    %5361 = vmatprep.subr.mxu0 0.0
    %5362 = vmatpush2.xpose.msra.mxu0 0.0
    %5363 = vmatprep.subr.mxu0 0.0
    %5364 = vmatpush2.xpose.msra.mxu0 0.0
    %5365 = vmatprep.subr.mxu0 0.0
    %5366 = vmatpush2.xpose.msra.mxu0 0.0
    %5367 = vmatprep.subr.mxu0 0.0
    %5368 = vmatpush2.xpose.msra.mxu0 0.0
    %5369 = vmatprep.mubr.f32.mxu0 0.0
    %5370 = vmatmul.mubr.f32.gmra.mxu0 %v5301
    %v5371 = vpop.f32.mrf.mxu0
    %v5372 = vadd.f32 0.0, %v5371
    %v5373 = vpop.f32.mrf.mxu0
    %5374 = vdwg.mxu0
    %5375 = vrot.lane.b32.xlu0 %v5282, 96
    %v5376 = vpop.permute.xlu0 %5375
    %v5377 = vsel %vm1624, %v5282, 0
    %v5379 = vsel %vm1624, %v5376, 0
    %5381 = vmatprep.subr.mxu0 0.0
    %5382 = vmatpush1.xpose.msra.mxu0 0.0
    %5383 = vmatprep.subr.mxu0 0.0
    %5384 = vmatpush1.xpose.msra.mxu0 0.0
    %5385 = vmatprep.subr.mxu0 0.0
    %5386 = vmatpush1.xpose.msra.mxu0 0.0
    %5387 = vmatprep.subr.mxu0 0.0
    %5388 = vmatpush1.xpose.msra.mxu0 0.0
    %5389 = vmatprep.subr.mxu0 0.0
    %5390 = vmatpush1.xpose.msra.mxu0 0.0
    %5391 = vmatprep.subr.mxu0 0.0
    %5392 = vmatpush1.xpose.msra.mxu0 0.0
    %5393 = vmatprep.subr.mxu0 0.0
    %5394 = vmatpush1.xpose.msra.mxu0 0.0
    %5395 = vmatprep.subr.mxu0 0.0
    %5396 = vmatpush1.xpose.msra.mxu0 0.0
    %5397 = vmatprep.subr.mxu0 0.0
    %5398 = vmatpush1.xpose.msra.mxu0 0.0
    %5399 = vmatprep.subr.mxu0 0.0
    %5400 = vmatpush1.xpose.msra.mxu0 0.0
    %5401 = vmatprep.subr.mxu0 0.0
    %5402 = vmatpush1.xpose.msra.mxu0 0.0
    %5403 = vmatprep.subr.mxu0 0.0
    %5404 = vmatpush1.xpose.msra.mxu0 0.0
    %5405 = vmatprep.subr.mxu0 0.0
    %5406 = vmatpush1.xpose.msra.mxu0 0.0
    %5407 = vmatprep.subr.mxu0 0.0
    %5408 = vmatpush1.xpose.msra.mxu0 0.0
    %5409 = vmatprep.subr.mxu0 0.0
    %5410 = vmatpush1.xpose.msra.mxu0 0.0
    %5411 = vmatprep.subr.mxu0 0.0
    %5412 = vmatpush1.xpose.msra.mxu0 %v5379
    %5413 = vmatprep.subr.mxu0 0.0
    %5414 = vmatpush2.xpose.msra.mxu0 0.0
    %5415 = vmatprep.subr.mxu0 0.0
    %5416 = vmatpush2.xpose.msra.mxu0 0.0
    %5417 = vmatprep.subr.mxu0 0.0
    %5418 = vmatpush2.xpose.msra.mxu0 0.0
    %5419 = vmatprep.subr.mxu0 0.0
    %5420 = vmatpush2.xpose.msra.mxu0 0.0
    %5421 = vmatprep.subr.mxu0 0.0
    %5422 = vmatpush2.xpose.msra.mxu0 0.0
    %5423 = vmatprep.subr.mxu0 0.0
    %5424 = vmatpush2.xpose.msra.mxu0 0.0
    %5425 = vmatprep.subr.mxu0 0.0
    %5426 = vmatpush2.xpose.msra.mxu0 0.0
    %5427 = vmatprep.subr.mxu0 0.0
    %5428 = vmatpush2.xpose.msra.mxu0 0.0
    %5429 = vmatprep.subr.mxu0 0.0
    %5430 = vmatpush2.xpose.msra.mxu0 0.0
    %5431 = vmatprep.subr.mxu0 0.0
    %5432 = vmatpush2.xpose.msra.mxu0 0.0
    %5433 = vmatprep.subr.mxu0 0.0
    %5434 = vmatpush2.xpose.msra.mxu0 0.0
    %5435 = vmatprep.subr.mxu0 0.0
    %5436 = vmatpush2.xpose.msra.mxu0 0.0
    %5437 = vmatprep.subr.mxu0 0.0
    %5438 = vmatpush2.xpose.msra.mxu0 0.0
    %5439 = vmatprep.subr.mxu0 0.0
    %5440 = vmatpush2.xpose.msra.mxu0 0.0
    %5441 = vmatprep.subr.mxu0 0.0
    %5442 = vmatpush2.xpose.msra.mxu0 0.0
    %5443 = vmatprep.subr.mxu0 0.0
    %5444 = vmatpush2.xpose.msra.mxu0 0.0
    %5445 = vmatprep.mubr.f32.mxu0 0.0
    %5446 = vmatmul.mubr.f32.gmra.mxu0 %v5377
    %v5447 = vpop.f32.mrf.mxu0
    %v5448 = vadd.f32 0.0, %v5447
    %v5449 = vpop.f32.mrf.mxu0
    %5450 = vdwg.mxu0
    %5451 = vrot.lane.b32.xlu0 %v5288, 96
    %v5452 = vpop.permute.xlu0 %5451
    %v5453 = vsel %vm1624, %v5288, 0
    %v5455 = vsel %vm1624, %v5452, 0
    %5457 = vmatprep.subr.mxu0 0.0
    %5458 = vmatpush1.xpose.msra.mxu0 0.0
    %5459 = vmatprep.subr.mxu0 0.0
    %5460 = vmatpush1.xpose.msra.mxu0 0.0
    %5461 = vmatprep.subr.mxu0 0.0
    %5462 = vmatpush1.xpose.msra.mxu0 0.0
    %5463 = vmatprep.subr.mxu0 0.0
    %5464 = vmatpush1.xpose.msra.mxu0 0.0
    %5465 = vmatprep.subr.mxu0 0.0
    %5466 = vmatpush1.xpose.msra.mxu0 0.0
    %5467 = vmatprep.subr.mxu0 0.0
    %5468 = vmatpush1.xpose.msra.mxu0 0.0
    %5469 = vmatprep.subr.mxu0 0.0
    %5470 = vmatpush1.xpose.msra.mxu0 0.0
    %5471 = vmatprep.subr.mxu0 0.0
    %5472 = vmatpush1.xpose.msra.mxu0 0.0
    %5473 = vmatprep.subr.mxu0 0.0
    %5474 = vmatpush1.xpose.msra.mxu0 0.0
    %5475 = vmatprep.subr.mxu0 0.0
    %5476 = vmatpush1.xpose.msra.mxu0 0.0
    %5477 = vmatprep.subr.mxu0 0.0
    %5478 = vmatpush1.xpose.msra.mxu0 0.0
    %5479 = vmatprep.subr.mxu0 0.0
    %5480 = vmatpush1.xpose.msra.mxu0 0.0
    %5481 = vmatprep.subr.mxu0 0.0
    %5482 = vmatpush1.xpose.msra.mxu0 0.0
    %5483 = vmatprep.subr.mxu0 0.0
    %5484 = vmatpush1.xpose.msra.mxu0 0.0
    %5485 = vmatprep.subr.mxu0 0.0
    %5486 = vmatpush1.xpose.msra.mxu0 0.0
    %5487 = vmatprep.subr.mxu0 0.0
    %5488 = vmatpush1.xpose.msra.mxu0 %v5455
    %5489 = vmatprep.subr.mxu0 0.0
    %5490 = vmatpush2.xpose.msra.mxu0 0.0
    %5491 = vmatprep.subr.mxu0 0.0
    %5492 = vmatpush2.xpose.msra.mxu0 0.0
    %5493 = vmatprep.subr.mxu0 0.0
    %5494 = vmatpush2.xpose.msra.mxu0 0.0
    %5495 = vmatprep.subr.mxu0 0.0
    %5496 = vmatpush2.xpose.msra.mxu0 0.0
    %5497 = vmatprep.subr.mxu0 0.0
    %5498 = vmatpush2.xpose.msra.mxu0 0.0
    %5499 = vmatprep.subr.mxu0 0.0
    %5500 = vmatpush2.xpose.msra.mxu0 0.0
    %5501 = vmatprep.subr.mxu0 0.0
    %5502 = vmatpush2.xpose.msra.mxu0 0.0
    %5503 = vmatprep.subr.mxu0 0.0
    %5504 = vmatpush2.xpose.msra.mxu0 0.0
    %5505 = vmatprep.subr.mxu0 0.0
    %5506 = vmatpush2.xpose.msra.mxu0 0.0
    %5507 = vmatprep.subr.mxu0 0.0
    %5508 = vmatpush2.xpose.msra.mxu0 0.0
    %5509 = vmatprep.subr.mxu0 0.0
    %5510 = vmatpush2.xpose.msra.mxu0 0.0
    %5511 = vmatprep.subr.mxu0 0.0
    %5512 = vmatpush2.xpose.msra.mxu0 0.0
    %5513 = vmatprep.subr.mxu0 0.0
    %5514 = vmatpush2.xpose.msra.mxu0 0.0
    %5515 = vmatprep.subr.mxu0 0.0
    %5516 = vmatpush2.xpose.msra.mxu0 0.0
    %5517 = vmatprep.subr.mxu0 0.0
    %5518 = vmatpush2.xpose.msra.mxu0 0.0
    %5519 = vmatprep.subr.mxu0 0.0
    %5520 = vmatpush2.xpose.msra.mxu0 0.0
    %5521 = vmatprep.mubr.f32.mxu0 0.0
    %5522 = vmatmul.mubr.f32.gmra.mxu0 %v5453
    %v5523 = vpop.f32.mrf.mxu0
    %v5524 = vadd.f32 0.0, %v5523
    %v5525 = vpop.f32.mrf.mxu0
    %5526 = vdwg.mxu0
    %5527 = vrot.lane.b32.xlu0 %v5290, 96
    %v5528 = vpop.permute.xlu0 %5527
    %v5529 = vsel %vm1624, %v5290, 0
    %v5531 = vsel %vm1624, %v5528, 0
    %5533 = vmatprep.subr.mxu0 0.0
    %5534 = vmatpush1.xpose.msra.mxu0 0.0
    %5535 = vmatprep.subr.mxu0 0.0
    %5536 = vmatpush1.xpose.msra.mxu0 0.0
    %5537 = vmatprep.subr.mxu0 0.0
    %5538 = vmatpush1.xpose.msra.mxu0 0.0
    %5539 = vmatprep.subr.mxu0 0.0
    %5540 = vmatpush1.xpose.msra.mxu0 0.0
    %5541 = vmatprep.subr.mxu0 0.0
    %5542 = vmatpush1.xpose.msra.mxu0 0.0
    %5543 = vmatprep.subr.mxu0 0.0
    %5544 = vmatpush1.xpose.msra.mxu0 0.0
    %5545 = vmatprep.subr.mxu0 0.0
    %5546 = vmatpush1.xpose.msra.mxu0 0.0
    %5547 = vmatprep.subr.mxu0 0.0
    %5548 = vmatpush1.xpose.msra.mxu0 0.0
    %5549 = vmatprep.subr.mxu0 0.0
    %5550 = vmatpush1.xpose.msra.mxu0 0.0
    %5551 = vmatprep.subr.mxu0 0.0
    %5552 = vmatpush1.xpose.msra.mxu0 0.0
    %5553 = vmatprep.subr.mxu0 0.0
    %5554 = vmatpush1.xpose.msra.mxu0 0.0
    %5555 = vmatprep.subr.mxu0 0.0
    %5556 = vmatpush1.xpose.msra.mxu0 0.0
    %5557 = vmatprep.subr.mxu0 0.0
    %5558 = vmatpush1.xpose.msra.mxu0 0.0
    %5559 = vmatprep.subr.mxu0 0.0
    %5560 = vmatpush1.xpose.msra.mxu0 0.0
    %5561 = vmatprep.subr.mxu0 0.0
    %5562 = vmatpush1.xpose.msra.mxu0 0.0
    %5563 = vmatprep.subr.mxu0 0.0
    %5564 = vmatpush1.xpose.msra.mxu0 %v5531
    %5565 = vmatprep.subr.mxu0 0.0
    %5566 = vmatpush2.xpose.msra.mxu0 0.0
    %5567 = vmatprep.subr.mxu0 0.0
    %5568 = vmatpush2.xpose.msra.mxu0 0.0
    %5569 = vmatprep.subr.mxu0 0.0
    %5570 = vmatpush2.xpose.msra.mxu0 0.0
    %5571 = vmatprep.subr.mxu0 0.0
    %5572 = vmatpush2.xpose.msra.mxu0 0.0
    %5573 = vmatprep.subr.mxu0 0.0
    %5574 = vmatpush2.xpose.msra.mxu0 0.0
    %5575 = vmatprep.subr.mxu0 0.0
    %5576 = vmatpush2.xpose.msra.mxu0 0.0
    %5577 = vmatprep.subr.mxu0 0.0
    %5578 = vmatpush2.xpose.msra.mxu0 0.0
    %5579 = vmatprep.subr.mxu0 0.0
    %5580 = vmatpush2.xpose.msra.mxu0 0.0
    %5581 = vmatprep.subr.mxu0 0.0
    %5582 = vmatpush2.xpose.msra.mxu0 0.0
    %5583 = vmatprep.subr.mxu0 0.0
    %5584 = vmatpush2.xpose.msra.mxu0 0.0
    %5585 = vmatprep.subr.mxu0 0.0
    %5586 = vmatpush2.xpose.msra.mxu0 0.0
    %5587 = vmatprep.subr.mxu0 0.0
    %5588 = vmatpush2.xpose.msra.mxu0 0.0
    %5589 = vmatprep.subr.mxu0 0.0
    %5590 = vmatpush2.xpose.msra.mxu0 0.0
    %5591 = vmatprep.subr.mxu0 0.0
    %5592 = vmatpush2.xpose.msra.mxu0 0.0
    %5593 = vmatprep.subr.mxu0 0.0
    %5594 = vmatpush2.xpose.msra.mxu0 0.0
    %5595 = vmatprep.subr.mxu0 0.0
    %5596 = vmatpush2.xpose.msra.mxu0 0.0
    %5597 = vmatprep.mubr.f32.mxu0 0.0
    %5598 = vmatmul.mubr.f32.gmra.mxu0 %v5529
    %v5599 = vpop.f32.mrf.mxu0
    %v5600 = vadd.f32 0.0, %v5599
    %v5601 = vpop.f32.mrf.mxu0
    %5602 = vdwg.mxu0
    %5603 = vrot.lane.b32.xlu0 %v5292, 96
    %v5604 = vpop.permute.xlu0 %5603
    %v5605 = vsel %vm1624, %v5292, 0
    %v5607 = vsel %vm1624, %v5604, 0
    %5609 = vmatprep.subr.mxu0 0.0
    %5610 = vmatpush1.xpose.msra.mxu0 0.0
    %5611 = vmatprep.subr.mxu0 0.0
    %5612 = vmatpush1.xpose.msra.mxu0 0.0
    %5613 = vmatprep.subr.mxu0 0.0
    %5614 = vmatpush1.xpose.msra.mxu0 0.0
    %5615 = vmatprep.subr.mxu0 0.0
    %5616 = vmatpush1.xpose.msra.mxu0 0.0
    %5617 = vmatprep.subr.mxu0 0.0
    %5618 = vmatpush1.xpose.msra.mxu0 0.0
    %5619 = vmatprep.subr.mxu0 0.0
    %5620 = vmatpush1.xpose.msra.mxu0 0.0
    %5621 = vmatprep.subr.mxu0 0.0
    %5622 = vmatpush1.xpose.msra.mxu0 0.0
    %5623 = vmatprep.subr.mxu0 0.0
    %5624 = vmatpush1.xpose.msra.mxu0 0.0
    %5625 = vmatprep.subr.mxu0 0.0
    %5626 = vmatpush1.xpose.msra.mxu0 0.0
    %5627 = vmatprep.subr.mxu0 0.0
    %5628 = vmatpush1.xpose.msra.mxu0 0.0
    %5629 = vmatprep.subr.mxu0 0.0
    %5630 = vmatpush1.xpose.msra.mxu0 0.0
    %5631 = vmatprep.subr.mxu0 0.0
    %5632 = vmatpush1.xpose.msra.mxu0 0.0
    %5633 = vmatprep.subr.mxu0 0.0
    %5634 = vmatpush1.xpose.msra.mxu0 0.0
    %5635 = vmatprep.subr.mxu0 0.0
    %5636 = vmatpush1.xpose.msra.mxu0 0.0
    %5637 = vmatprep.subr.mxu0 0.0
    %5638 = vmatpush1.xpose.msra.mxu0 0.0
    %5639 = vmatprep.subr.mxu0 0.0
    %5640 = vmatpush1.xpose.msra.mxu0 %v5607
    %5641 = vmatprep.subr.mxu0 0.0
    %5642 = vmatpush2.xpose.msra.mxu0 0.0
    %5643 = vmatprep.subr.mxu0 0.0
    %5644 = vmatpush2.xpose.msra.mxu0 0.0
    %5645 = vmatprep.subr.mxu0 0.0
    %5646 = vmatpush2.xpose.msra.mxu0 0.0
    %5647 = vmatprep.subr.mxu0 0.0
    %5648 = vmatpush2.xpose.msra.mxu0 0.0
    %5649 = vmatprep.subr.mxu0 0.0
    %5650 = vmatpush2.xpose.msra.mxu0 0.0
    %5651 = vmatprep.subr.mxu0 0.0
    %5652 = vmatpush2.xpose.msra.mxu0 0.0
    %5653 = vmatprep.subr.mxu0 0.0
    %5654 = vmatpush2.xpose.msra.mxu0 0.0
    %5655 = vmatprep.subr.mxu0 0.0
    %5656 = vmatpush2.xpose.msra.mxu0 0.0
    %5657 = vmatprep.subr.mxu0 0.0
    %5658 = vmatpush2.xpose.msra.mxu0 0.0
    %5659 = vmatprep.subr.mxu0 0.0
    %5660 = vmatpush2.xpose.msra.mxu0 0.0
    %5661 = vmatprep.subr.mxu0 0.0
    %5662 = vmatpush2.xpose.msra.mxu0 0.0
    %5663 = vmatprep.subr.mxu0 0.0
    %5664 = vmatpush2.xpose.msra.mxu0 0.0
    %5665 = vmatprep.subr.mxu0 0.0
    %5666 = vmatpush2.xpose.msra.mxu0 0.0
    %5667 = vmatprep.subr.mxu0 0.0
    %5668 = vmatpush2.xpose.msra.mxu0 0.0
    %5669 = vmatprep.subr.mxu0 0.0
    %5670 = vmatpush2.xpose.msra.mxu0 0.0
    %5671 = vmatprep.subr.mxu0 0.0
    %5672 = vmatpush2.xpose.msra.mxu0 0.0
    %5673 = vmatprep.mubr.f32.mxu0 0.0
    %5674 = vmatmul.mubr.f32.gmra.mxu0 %v5605
    %v5675 = vpop.f32.mrf.mxu0
    %v5676 = vadd.f32 0.0, %v5675
    %v5677 = vpop.f32.mrf.mxu0
    %5678 = vdwg.mxu0
    %5679 = vrot.lane.b32.xlu0 %v5294, 96
    %v5680 = vpop.permute.xlu0 %5679
    %v5681 = vsel %vm1624, %v5294, 0
    %v5683 = vsel %vm1624, %v5680, 0
    %5685 = vmatprep.subr.mxu0 0.0
    %5686 = vmatpush1.xpose.msra.mxu0 0.0
    %5687 = vmatprep.subr.mxu0 0.0
    %5688 = vmatpush1.xpose.msra.mxu0 0.0
    %5689 = vmatprep.subr.mxu0 0.0
    %5690 = vmatpush1.xpose.msra.mxu0 0.0
    %5691 = vmatprep.subr.mxu0 0.0
    %5692 = vmatpush1.xpose.msra.mxu0 0.0
    %5693 = vmatprep.subr.mxu0 0.0
    %5694 = vmatpush1.xpose.msra.mxu0 0.0
    %5695 = vmatprep.subr.mxu0 0.0
    %5696 = vmatpush1.xpose.msra.mxu0 0.0
    %5697 = vmatprep.subr.mxu0 0.0
    %5698 = vmatpush1.xpose.msra.mxu0 0.0
    %5699 = vmatprep.subr.mxu0 0.0
    %5700 = vmatpush1.xpose.msra.mxu0 0.0
    %5701 = vmatprep.subr.mxu0 0.0
    %5702 = vmatpush1.xpose.msra.mxu0 0.0
    %5703 = vmatprep.subr.mxu0 0.0
    %5704 = vmatpush1.xpose.msra.mxu0 0.0
    %5705 = vmatprep.subr.mxu0 0.0
    %5706 = vmatpush1.xpose.msra.mxu0 0.0
    %5707 = vmatprep.subr.mxu0 0.0
    %5708 = vmatpush1.xpose.msra.mxu0 0.0
    %5709 = vmatprep.subr.mxu0 0.0
    %5710 = vmatpush1.xpose.msra.mxu0 0.0
    %5711 = vmatprep.subr.mxu0 0.0
    %5712 = vmatpush1.xpose.msra.mxu0 0.0
    %5713 = vmatprep.subr.mxu0 0.0
    %5714 = vmatpush1.xpose.msra.mxu0 0.0
    %5715 = vmatprep.subr.mxu0 0.0
    %5716 = vmatpush1.xpose.msra.mxu0 %v5683
    %5717 = vmatprep.subr.mxu0 0.0
    %5718 = vmatpush2.xpose.msra.mxu0 0.0
    %5719 = vmatprep.subr.mxu0 0.0
    %5720 = vmatpush2.xpose.msra.mxu0 0.0
    %5721 = vmatprep.subr.mxu0 0.0
    %5722 = vmatpush2.xpose.msra.mxu0 0.0
    %5723 = vmatprep.subr.mxu0 0.0
    %5724 = vmatpush2.xpose.msra.mxu0 0.0
    %5725 = vmatprep.subr.mxu0 0.0
    %5726 = vmatpush2.xpose.msra.mxu0 0.0
    %5727 = vmatprep.subr.mxu0 0.0
    %5728 = vmatpush2.xpose.msra.mxu0 0.0
    %5729 = vmatprep.subr.mxu0 0.0
    %5730 = vmatpush2.xpose.msra.mxu0 0.0
    %5731 = vmatprep.subr.mxu0 0.0
    %5732 = vmatpush2.xpose.msra.mxu0 0.0
    %5733 = vmatprep.subr.mxu0 0.0
    %5734 = vmatpush2.xpose.msra.mxu0 0.0
    %5735 = vmatprep.subr.mxu0 0.0
    %5736 = vmatpush2.xpose.msra.mxu0 0.0
    %5737 = vmatprep.subr.mxu0 0.0
    %5738 = vmatpush2.xpose.msra.mxu0 0.0
    %5739 = vmatprep.subr.mxu0 0.0
    %5740 = vmatpush2.xpose.msra.mxu0 0.0
    %5741 = vmatprep.subr.mxu0 0.0
    %5742 = vmatpush2.xpose.msra.mxu0 0.0
    %5743 = vmatprep.subr.mxu0 0.0
    %5744 = vmatpush2.xpose.msra.mxu0 0.0
    %5745 = vmatprep.subr.mxu0 0.0
    %5746 = vmatpush2.xpose.msra.mxu0 0.0
    %5747 = vmatprep.subr.mxu0 0.0
    %5748 = vmatpush2.xpose.msra.mxu0 0.0
    %5749 = vmatprep.mubr.f32.mxu0 0.0
    %5750 = vmatmul.mubr.f32.gmra.mxu0 %v5681
    %v5751 = vpop.f32.mrf.mxu0
    %v5752 = vadd.f32 0.0, %v5751
    %v5753 = vpop.f32.mrf.mxu0
    %5754 = vdwg.mxu0
    %5755 = vrot.lane.b32.xlu0 %v5296, 96
    %v5756 = vpop.permute.xlu0 %5755
    %v5757 = vsel %vm1624, %v5296, 0
    %v5759 = vsel %vm1624, %v5756, 0
    %5761 = vmatprep.subr.mxu0 0.0
    %5762 = vmatpush1.xpose.msra.mxu0 0.0
    %5763 = vmatprep.subr.mxu0 0.0
    %5764 = vmatpush1.xpose.msra.mxu0 0.0
    %5765 = vmatprep.subr.mxu0 0.0
    %5766 = vmatpush1.xpose.msra.mxu0 0.0
    %5767 = vmatprep.subr.mxu0 0.0
    %5768 = vmatpush1.xpose.msra.mxu0 0.0
    %5769 = vmatprep.subr.mxu0 0.0
    %5770 = vmatpush1.xpose.msra.mxu0 0.0
    %5771 = vmatprep.subr.mxu0 0.0
    %5772 = vmatpush1.xpose.msra.mxu0 0.0
    %5773 = vmatprep.subr.mxu0 0.0
    %5774 = vmatpush1.xpose.msra.mxu0 0.0
    %5775 = vmatprep.subr.mxu0 0.0
    %5776 = vmatpush1.xpose.msra.mxu0 0.0
    %5777 = vmatprep.subr.mxu0 0.0
    %5778 = vmatpush1.xpose.msra.mxu0 0.0
    %5779 = vmatprep.subr.mxu0 0.0
    %5780 = vmatpush1.xpose.msra.mxu0 0.0
    %5781 = vmatprep.subr.mxu0 0.0
    %5782 = vmatpush1.xpose.msra.mxu0 0.0
    %5783 = vmatprep.subr.mxu0 0.0
    %5784 = vmatpush1.xpose.msra.mxu0 0.0
    %5785 = vmatprep.subr.mxu0 0.0
    %5786 = vmatpush1.xpose.msra.mxu0 0.0
    %5787 = vmatprep.subr.mxu0 0.0
    %5788 = vmatpush1.xpose.msra.mxu0 0.0
    %5789 = vmatprep.subr.mxu0 0.0
    %5790 = vmatpush1.xpose.msra.mxu0 0.0
    %5791 = vmatprep.subr.mxu0 0.0
    %5792 = vmatpush1.xpose.msra.mxu0 %v5759
    %5793 = vmatprep.subr.mxu0 0.0
    %5794 = vmatpush2.xpose.msra.mxu0 0.0
    %5795 = vmatprep.subr.mxu0 0.0
    %5796 = vmatpush2.xpose.msra.mxu0 0.0
    %5797 = vmatprep.subr.mxu0 0.0
    %5798 = vmatpush2.xpose.msra.mxu0 0.0
    %5799 = vmatprep.subr.mxu0 0.0
    %5800 = vmatpush2.xpose.msra.mxu0 0.0
    %5801 = vmatprep.subr.mxu0 0.0
    %5802 = vmatpush2.xpose.msra.mxu0 0.0
    %5803 = vmatprep.subr.mxu0 0.0
    %5804 = vmatpush2.xpose.msra.mxu0 0.0
    %5805 = vmatprep.subr.mxu0 0.0
    %5806 = vmatpush2.xpose.msra.mxu0 0.0
    %5807 = vmatprep.subr.mxu0 0.0
    %5808 = vmatpush2.xpose.msra.mxu0 0.0
    %5809 = vmatprep.subr.mxu0 0.0
    %5810 = vmatpush2.xpose.msra.mxu0 0.0
    %5811 = vmatprep.subr.mxu0 0.0
    %5812 = vmatpush2.xpose.msra.mxu0 0.0
    %5813 = vmatprep.subr.mxu0 0.0
    %5814 = vmatpush2.xpose.msra.mxu0 0.0
    %5815 = vmatprep.subr.mxu0 0.0
    %5816 = vmatpush2.xpose.msra.mxu0 0.0
    %5817 = vmatprep.subr.mxu0 0.0
    %5818 = vmatpush2.xpose.msra.mxu0 0.0
    %5819 = vmatprep.subr.mxu0 0.0
    %5820 = vmatpush2.xpose.msra.mxu0 0.0
    %5821 = vmatprep.subr.mxu0 0.0
    %5822 = vmatpush2.xpose.msra.mxu0 0.0
    %5823 = vmatprep.subr.mxu0 0.0
    %5824 = vmatpush2.xpose.msra.mxu0 0.0
    %5825 = vmatprep.mubr.f32.mxu0 0.0
    %5826 = vmatmul.mubr.f32.gmra.mxu0 %v5757
    %v5827 = vpop.f32.mrf.mxu0
    %v5828 = vadd.f32 0.0, %v5827
    %v5829 = vpop.f32.mrf.mxu0
    %5830 = vdwg.mxu0
    %5831 = vrot.lane.b32.xlu0 %v5298, 96
    %v5832 = vpop.permute.xlu0 %5831
    %v5833 = vsel %vm1624, %v5298, 0
    %v5835 = vsel %vm1624, %v5832, 0
    %5837 = vmatprep.subr.mxu0 0.0
    %5838 = vmatpush1.xpose.msra.mxu0 0.0
    %5839 = vmatprep.subr.mxu0 0.0
    %5840 = vmatpush1.xpose.msra.mxu0 0.0
    %5841 = vmatprep.subr.mxu0 0.0
    %5842 = vmatpush1.xpose.msra.mxu0 0.0
    %5843 = vmatprep.subr.mxu0 0.0
    %5844 = vmatpush1.xpose.msra.mxu0 0.0
    %5845 = vmatprep.subr.mxu0 0.0
    %5846 = vmatpush1.xpose.msra.mxu0 0.0
    %5847 = vmatprep.subr.mxu0 0.0
    %5848 = vmatpush1.xpose.msra.mxu0 0.0
    %5849 = vmatprep.subr.mxu0 0.0
    %5850 = vmatpush1.xpose.msra.mxu0 0.0
    %5851 = vmatprep.subr.mxu0 0.0
    %5852 = vmatpush1.xpose.msra.mxu0 0.0
    %5853 = vmatprep.subr.mxu0 0.0
    %5854 = vmatpush1.xpose.msra.mxu0 0.0
    %5855 = vmatprep.subr.mxu0 0.0
    %5856 = vmatpush1.xpose.msra.mxu0 0.0
    %5857 = vmatprep.subr.mxu0 0.0
    %5858 = vmatpush1.xpose.msra.mxu0 0.0
    %5859 = vmatprep.subr.mxu0 0.0
    %5860 = vmatpush1.xpose.msra.mxu0 0.0
    %5861 = vmatprep.subr.mxu0 0.0
    %5862 = vmatpush1.xpose.msra.mxu0 0.0
    %5863 = vmatprep.subr.mxu0 0.0
    %5864 = vmatpush1.xpose.msra.mxu0 0.0
    %5865 = vmatprep.subr.mxu0 0.0
    %5866 = vmatpush1.xpose.msra.mxu0 0.0
    %5867 = vmatprep.subr.mxu0 0.0
    %5868 = vmatpush1.xpose.msra.mxu0 %v5835
    %5869 = vmatprep.subr.mxu0 0.0
    %5870 = vmatpush2.xpose.msra.mxu0 0.0
    %5871 = vmatprep.subr.mxu0 0.0
    %5872 = vmatpush2.xpose.msra.mxu0 0.0
    %5873 = vmatprep.subr.mxu0 0.0
    %5874 = vmatpush2.xpose.msra.mxu0 0.0
    %5875 = vmatprep.subr.mxu0 0.0
    %5876 = vmatpush2.xpose.msra.mxu0 0.0
    %5877 = vmatprep.subr.mxu0 0.0
    %5878 = vmatpush2.xpose.msra.mxu0 0.0
    %5879 = vmatprep.subr.mxu0 0.0
    %5880 = vmatpush2.xpose.msra.mxu0 0.0
    %5881 = vmatprep.subr.mxu0 0.0
    %5882 = vmatpush2.xpose.msra.mxu0 0.0
    %5883 = vmatprep.subr.mxu0 0.0
    %5884 = vmatpush2.xpose.msra.mxu0 0.0
    %5885 = vmatprep.subr.mxu0 0.0
    %5886 = vmatpush2.xpose.msra.mxu0 0.0
    %5887 = vmatprep.subr.mxu0 0.0
    %5888 = vmatpush2.xpose.msra.mxu0 0.0
    %5889 = vmatprep.subr.mxu0 0.0
    %5890 = vmatpush2.xpose.msra.mxu0 0.0
    %5891 = vmatprep.subr.mxu0 0.0
    %5892 = vmatpush2.xpose.msra.mxu0 0.0
    %5893 = vmatprep.subr.mxu0 0.0
    %5894 = vmatpush2.xpose.msra.mxu0 0.0
    %5895 = vmatprep.subr.mxu0 0.0
    %5896 = vmatpush2.xpose.msra.mxu0 0.0
    %5897 = vmatprep.subr.mxu0 0.0
    %5898 = vmatpush2.xpose.msra.mxu0 0.0
    %5899 = vmatprep.subr.mxu0 0.0
    %5900 = vmatpush2.xpose.msra.mxu0 0.0
    %5901 = vmatprep.mubr.f32.mxu0 0.0
    %5902 = vmatmul.mubr.f32.gmra.mxu0 %v5833
    %v5903 = vpop.f32.mrf.mxu0
    %v5904 = vadd.f32 0.0, %v5903
    %v5905 = vpop.f32.mrf.mxu0
    %5906 = vdwg.mxu0
    %v5907 = vsel %vm1624, %v5372, -inf
    %5908 = vmax.xlane.f32.xlu0 %v5907
    %v5909 = vpop.xlane.xlu0 %5908
    %v5910 = vsel %vm1624, %v5448, -inf
    %5911 = vmax.xlane.f32.xlu0 %v5910
    %v5912 = vpop.xlane.xlu0 %5911
    %v5913 = vsel %vm1624, %v5524, -inf
    %5914 = vmax.xlane.f32.xlu0 %v5913
    %v5915 = vpop.xlane.xlu0 %5914
    %v5916 = vsel %vm1624, %v5600, -inf
    %5917 = vmax.xlane.f32.xlu0 %v5916
    %v5918 = vpop.xlane.xlu0 %5917
    %v5919 = vsel %vm1624, %v5676, -inf
    %5920 = vmax.xlane.f32.xlu0 %v5919
    %v5921 = vpop.xlane.xlu0 %5920
    %v5922 = vsel %vm1624, %v5752, -inf
    %5923 = vmax.xlane.f32.xlu0 %v5922
    %v5924 = vpop.xlane.xlu0 %5923
    %v5925 = vsel %vm1624, %v5828, -inf
    %5926 = vmax.xlane.f32.xlu0 %v5925
    %v5927 = vpop.xlane.xlu0 %5926
    %v5928 = vsel %vm1624, %v5904, -inf
    %5929 = vmax.xlane.f32.xlu0 %v5928
    %v5930 = vpop.xlane.xlu0 %5929
    %v5931 = vsub.f32 %v5372, %v5909
    %v5932 = vsub.f32 %v5448, %v5912
    %v5933 = vsub.f32 %v5524, %v5915
    %v5934 = vsub.f32 %v5600, %v5918
    %v5935 = vsub.f32 %v5676, %v5921
    %v5936 = vsub.f32 %v5752, %v5924
    %v5937 = vsub.f32 %v5828, %v5927
    %v5938 = vsub.f32 %v5904, %v5930
    %v5939 = vmul.f32 %v5931, 1.442695
    %v5940 = vpow.pop %v5939
    %v5941 = vmul.f32 %v5932, 1.442695
    %v5942 = vpow.pop %v5941
    %v5943 = vmul.f32 %v5933, 1.442695
    %v5944 = vpow.pop %v5943
    %v5945 = vmul.f32 %v5934, 1.442695
    %v5946 = vpow.pop %v5945
    %v5947 = vmul.f32 %v5935, 1.442695
    %v5948 = vpow.pop %v5947
    %v5949 = vmul.f32 %v5936, 1.442695
    %v5950 = vpow.pop %v5949
    %v5951 = vmul.f32 %v5937, 1.442695
    %v5952 = vpow.pop %v5951
    %v5953 = vmul.f32 %v5938, 1.442695
    %v5954 = vpow.pop %v5953
    %v5955 = vsel %vm1624, %v5940, 0.0
    %5956 = vadd.xlane.f32.xlu0 %v5955
    %v5957 = vpop.xlane.xlu0 %5956
    %v5958 = vsel %vm1624, %v5942, 0.0
    %5959 = vadd.xlane.f32.xlu0 %v5958
    %v5960 = vpop.xlane.xlu0 %5959
    %v5961 = vsel %vm1624, %v5944, 0.0
    %5962 = vadd.xlane.f32.xlu0 %v5961
    %v5963 = vpop.xlane.xlu0 %5962
    %v5964 = vsel %vm1624, %v5946, 0.0
    %5965 = vadd.xlane.f32.xlu0 %v5964
    %v5966 = vpop.xlane.xlu0 %5965
    %v5967 = vsel %vm1624, %v5948, 0.0
    %5968 = vadd.xlane.f32.xlu0 %v5967
    %v5969 = vpop.xlane.xlu0 %5968
    %v5970 = vsel %vm1624, %v5950, 0.0
    %5971 = vadd.xlane.f32.xlu0 %v5970
    %v5972 = vpop.xlane.xlu0 %5971
    %v5973 = vsel %vm1624, %v5952, 0.0
    %5974 = vadd.xlane.f32.xlu0 %v5973
    %v5975 = vpop.xlane.xlu0 %5974
    %v5976 = vsel %vm1624, %v5954, 0.0
    %5977 = vadd.xlane.f32.xlu0 %v5976
    %v5978 = vpop.xlane.xlu0 %5977
    %v5979 = vrcp.pop %v5957
    %v5980 = vrcp.pop %v5960
    %v5981 = vrcp.pop %v5963
    %v5982 = vrcp.pop %v5966
    %v5983 = vrcp.pop %v5969
    %v5984 = vrcp.pop %v5972
    %v5985 = vrcp.pop %v5975
    %v5986 = vrcp.pop %v5978
    %v5987 = vmul.f32 %v5940, %v5979
    %v5988 = vmul.f32 %v5942, %v5980
    %v5989 = vmul.f32 %v5944, %v5981
    %v5990 = vmul.f32 %v5946, %v5982
    %v5991 = vmul.f32 %v5948, %v5983
    %v5992 = vmul.f32 %v5950, %v5984
    %v5993 = vmul.f32 %v5952, %v5985
    %v5994 = vmul.f32 %v5954, %v5986
    %5995 = vrot.lane.b32.xlu0 %v5277, 64
    %v5996 = vpop.permute.xlu0 %5995
    %v5999 = vsel %vm1624, %v5987, 0
    %6001 = vmatprep.subr.mxu0 0.0
    %6002 = vmatpush1.msra.mxu0 0.0
    %6003 = vmatprep.subr.mxu0 0.0
    %6004 = vmatpush1.msra.mxu0 0.0
    %6005 = vmatprep.subr.mxu0 0.0
    %6006 = vmatpush1.msra.mxu0 0.0
    %6007 = vmatprep.subr.mxu0 0.0
    %6008 = vmatpush1.msra.mxu0 0.0
    %6009 = vmatprep.subr.mxu0 0.0
    %6010 = vmatpush1.msra.mxu0 0.0
    %6011 = vmatprep.subr.mxu0 0.0
    %6012 = vmatpush1.msra.mxu0 0.0
    %6013 = vmatprep.subr.mxu0 0.0
    %6014 = vmatpush1.msra.mxu0 0.0
    %6015 = vmatprep.subr.mxu0 0.0
    %6016 = vmatpush1.msra.mxu0 0.0
    %6017 = vmatprep.subr.mxu0 0.0
    %6018 = vmatpush1.msra.mxu0 0.0
    %6019 = vmatprep.subr.mxu0 0.0
    %6020 = vmatpush1.msra.mxu0 0.0
    %6021 = vmatprep.subr.mxu0 0.0
    %6022 = vmatpush1.msra.mxu0 0.0
    %6023 = vmatprep.subr.mxu0 0.0
    %6024 = vmatpush1.msra.mxu0 0.0
    %6025 = vmatprep.subr.mxu0 0.0
    %6026 = vmatpush1.msra.mxu0 0.0
    %6027 = vmatprep.subr.mxu0 0.0
    %6028 = vmatpush1.msra.mxu0 0.0
    %6029 = vmatprep.subr.mxu0 0.0
    %6030 = vmatpush1.msra.mxu0 0.0
    %6031 = vmatprep.subr.mxu0 0.0
    %6032 = vmatpush1.msra.mxu0 %v5996
    %6033 = vmatprep.subr.mxu0 0.0
    %6034 = vmatpush2.msra.mxu0 0.0
    %6035 = vmatprep.subr.mxu0 0.0
    %6036 = vmatpush2.msra.mxu0 0.0
    %6037 = vmatprep.subr.mxu0 0.0
    %6038 = vmatpush2.msra.mxu0 0.0
    %6039 = vmatprep.subr.mxu0 0.0
    %6040 = vmatpush2.msra.mxu0 0.0
    %6041 = vmatprep.subr.mxu0 0.0
    %6042 = vmatpush2.msra.mxu0 0.0
    %6043 = vmatprep.subr.mxu0 0.0
    %6044 = vmatpush2.msra.mxu0 0.0
    %6045 = vmatprep.subr.mxu0 0.0
    %6046 = vmatpush2.msra.mxu0 0.0
    %6047 = vmatprep.subr.mxu0 0.0
    %6048 = vmatpush2.msra.mxu0 0.0
    %6049 = vmatprep.subr.mxu0 0.0
    %6050 = vmatpush2.msra.mxu0 0.0
    %6051 = vmatprep.subr.mxu0 0.0
    %6052 = vmatpush2.msra.mxu0 0.0
    %6053 = vmatprep.subr.mxu0 0.0
    %6054 = vmatpush2.msra.mxu0 0.0
    %6055 = vmatprep.subr.mxu0 0.0
    %6056 = vmatpush2.msra.mxu0 0.0
    %6057 = vmatprep.subr.mxu0 0.0
    %6058 = vmatpush2.msra.mxu0 0.0
    %6059 = vmatprep.subr.mxu0 0.0
    %6060 = vmatpush2.msra.mxu0 0.0
    %6061 = vmatprep.subr.mxu0 0.0
    %6062 = vmatpush2.msra.mxu0 0.0
    %6063 = vmatprep.subr.mxu0 0.0
    %6064 = vmatpush2.msra.mxu0 0.0
    %6065 = vmatprep.mubr.f32.mxu0 0.0
    %6066 = vmatmul.mubr.f32.gmra.mxu0 %v5999
    %v6067 = vpop.f32.mrf.mxu0
    %v6068 = vadd.f32 0.0, %v6067
    %v6069 = vpop.f32.mrf.mxu0
    %6070 = vdwg.mxu0
    %6071 = vrot.lane.b32.xlu0 %v5282, 64
    %v6072 = vpop.permute.xlu0 %6071
    %v6075 = vsel %vm1624, %v5988, 0
    %6077 = vmatprep.subr.mxu0 0.0
    %6078 = vmatpush1.msra.mxu0 0.0
    %6079 = vmatprep.subr.mxu0 0.0
    %6080 = vmatpush1.msra.mxu0 0.0
    %6081 = vmatprep.subr.mxu0 0.0
    %6082 = vmatpush1.msra.mxu0 0.0
    %6083 = vmatprep.subr.mxu0 0.0
    %6084 = vmatpush1.msra.mxu0 0.0
    %6085 = vmatprep.subr.mxu0 0.0
    %6086 = vmatpush1.msra.mxu0 0.0
    %6087 = vmatprep.subr.mxu0 0.0
    %6088 = vmatpush1.msra.mxu0 0.0
    %6089 = vmatprep.subr.mxu0 0.0
    %6090 = vmatpush1.msra.mxu0 0.0
    %6091 = vmatprep.subr.mxu0 0.0
    %6092 = vmatpush1.msra.mxu0 0.0
    %6093 = vmatprep.subr.mxu0 0.0
    %6094 = vmatpush1.msra.mxu0 0.0
    %6095 = vmatprep.subr.mxu0 0.0
    %6096 = vmatpush1.msra.mxu0 0.0
    %6097 = vmatprep.subr.mxu0 0.0
    %6098 = vmatpush1.msra.mxu0 0.0
    %6099 = vmatprep.subr.mxu0 0.0
    %6100 = vmatpush1.msra.mxu0 0.0
    %6101 = vmatprep.subr.mxu0 0.0
    %6102 = vmatpush1.msra.mxu0 0.0
    %6103 = vmatprep.subr.mxu0 0.0
    %6104 = vmatpush1.msra.mxu0 0.0
    %6105 = vmatprep.subr.mxu0 0.0
    %6106 = vmatpush1.msra.mxu0 0.0
    %6107 = vmatprep.subr.mxu0 0.0
    %6108 = vmatpush1.msra.mxu0 %v6072
    %6109 = vmatprep.subr.mxu0 0.0
    %6110 = vmatpush2.msra.mxu0 0.0
    %6111 = vmatprep.subr.mxu0 0.0
    %6112 = vmatpush2.msra.mxu0 0.0
    %6113 = vmatprep.subr.mxu0 0.0
    %6114 = vmatpush2.msra.mxu0 0.0
    %6115 = vmatprep.subr.mxu0 0.0
    %6116 = vmatpush2.msra.mxu0 0.0
    %6117 = vmatprep.subr.mxu0 0.0
    %6118 = vmatpush2.msra.mxu0 0.0
    %6119 = vmatprep.subr.mxu0 0.0
    %6120 = vmatpush2.msra.mxu0 0.0
    %6121 = vmatprep.subr.mxu0 0.0
    %6122 = vmatpush2.msra.mxu0 0.0
    %6123 = vmatprep.subr.mxu0 0.0
    %6124 = vmatpush2.msra.mxu0 0.0
    %6125 = vmatprep.subr.mxu0 0.0
    %6126 = vmatpush2.msra.mxu0 0.0
    %6127 = vmatprep.subr.mxu0 0.0
    %6128 = vmatpush2.msra.mxu0 0.0
    %6129 = vmatprep.subr.mxu0 0.0
    %6130 = vmatpush2.msra.mxu0 0.0
    %6131 = vmatprep.subr.mxu0 0.0
    %6132 = vmatpush2.msra.mxu0 0.0
    %6133 = vmatprep.subr.mxu0 0.0
    %6134 = vmatpush2.msra.mxu0 0.0
    %6135 = vmatprep.subr.mxu0 0.0
    %6136 = vmatpush2.msra.mxu0 0.0
    %6137 = vmatprep.subr.mxu0 0.0
    %6138 = vmatpush2.msra.mxu0 0.0
    %6139 = vmatprep.subr.mxu0 0.0
    %6140 = vmatpush2.msra.mxu0 0.0
    %6141 = vmatprep.mubr.f32.mxu0 0.0
    %6142 = vmatmul.mubr.f32.gmra.mxu0 %v6075
    %v6143 = vpop.f32.mrf.mxu0
    %v6144 = vadd.f32 0.0, %v6143
    %v6145 = vpop.f32.mrf.mxu0
    %6146 = vdwg.mxu0
    %6147 = vrot.lane.b32.xlu0 %v5288, 64
    %v6148 = vpop.permute.xlu0 %6147
    %v6151 = vsel %vm1624, %v5989, 0
    %6153 = vmatprep.subr.mxu0 0.0
    %6154 = vmatpush1.msra.mxu0 0.0
    %6155 = vmatprep.subr.mxu0 0.0
    %6156 = vmatpush1.msra.mxu0 0.0
    %6157 = vmatprep.subr.mxu0 0.0
    %6158 = vmatpush1.msra.mxu0 0.0
    %6159 = vmatprep.subr.mxu0 0.0
    %6160 = vmatpush1.msra.mxu0 0.0
    %6161 = vmatprep.subr.mxu0 0.0
    %6162 = vmatpush1.msra.mxu0 0.0
    %6163 = vmatprep.subr.mxu0 0.0
    %6164 = vmatpush1.msra.mxu0 0.0
    %6165 = vmatprep.subr.mxu0 0.0
    %6166 = vmatpush1.msra.mxu0 0.0
    %6167 = vmatprep.subr.mxu0 0.0
    %6168 = vmatpush1.msra.mxu0 0.0
    %6169 = vmatprep.subr.mxu0 0.0
    %6170 = vmatpush1.msra.mxu0 0.0
    %6171 = vmatprep.subr.mxu0 0.0
    %6172 = vmatpush1.msra.mxu0 0.0
    %6173 = vmatprep.subr.mxu0 0.0
    %6174 = vmatpush1.msra.mxu0 0.0
    %6175 = vmatprep.subr.mxu0 0.0
    %6176 = vmatpush1.msra.mxu0 0.0
    %6177 = vmatprep.subr.mxu0 0.0
    %6178 = vmatpush1.msra.mxu0 0.0
    %6179 = vmatprep.subr.mxu0 0.0
    %6180 = vmatpush1.msra.mxu0 0.0
    %6181 = vmatprep.subr.mxu0 0.0
    %6182 = vmatpush1.msra.mxu0 0.0
    %6183 = vmatprep.subr.mxu0 0.0
    %6184 = vmatpush1.msra.mxu0 %v6148
    %6185 = vmatprep.subr.mxu0 0.0
    %6186 = vmatpush2.msra.mxu0 0.0
    %6187 = vmatprep.subr.mxu0 0.0
    %6188 = vmatpush2.msra.mxu0 0.0
    %6189 = vmatprep.subr.mxu0 0.0
    %6190 = vmatpush2.msra.mxu0 0.0
    %6191 = vmatprep.subr.mxu0 0.0
    %6192 = vmatpush2.msra.mxu0 0.0
    %6193 = vmatprep.subr.mxu0 0.0
    %6194 = vmatpush2.msra.mxu0 0.0
    %6195 = vmatprep.subr.mxu0 0.0
    %6196 = vmatpush2.msra.mxu0 0.0
    %6197 = vmatprep.subr.mxu0 0.0
    %6198 = vmatpush2.msra.mxu0 0.0
    %6199 = vmatprep.subr.mxu0 0.0
    %6200 = vmatpush2.msra.mxu0 0.0
    %6201 = vmatprep.subr.mxu0 0.0
    %6202 = vmatpush2.msra.mxu0 0.0
    %6203 = vmatprep.subr.mxu0 0.0
    %6204 = vmatpush2.msra.mxu0 0.0
    %6205 = vmatprep.subr.mxu0 0.0
    %6206 = vmatpush2.msra.mxu0 0.0
    %6207 = vmatprep.subr.mxu0 0.0
    %6208 = vmatpush2.msra.mxu0 0.0
    %6209 = vmatprep.subr.mxu0 0.0
    %6210 = vmatpush2.msra.mxu0 0.0
    %6211 = vmatprep.subr.mxu0 0.0
    %6212 = vmatpush2.msra.mxu0 0.0
    %6213 = vmatprep.subr.mxu0 0.0
    %6214 = vmatpush2.msra.mxu0 0.0
    %6215 = vmatprep.subr.mxu0 0.0
    %6216 = vmatpush2.msra.mxu0 0.0
    %6217 = vmatprep.mubr.f32.mxu0 0.0
    %6218 = vmatmul.mubr.f32.gmra.mxu0 %v6151
    %v6219 = vpop.f32.mrf.mxu0
    %v6220 = vadd.f32 0.0, %v6219
    %v6221 = vpop.f32.mrf.mxu0
    %6222 = vdwg.mxu0
    %6223 = vrot.lane.b32.xlu0 %v5290, 64
    %v6224 = vpop.permute.xlu0 %6223
    %v6227 = vsel %vm1624, %v5990, 0
    %6229 = vmatprep.subr.mxu0 0.0
    %6230 = vmatpush1.msra.mxu0 0.0
    %6231 = vmatprep.subr.mxu0 0.0
    %6232 = vmatpush1.msra.mxu0 0.0
    %6233 = vmatprep.subr.mxu0 0.0
    %6234 = vmatpush1.msra.mxu0 0.0
    %6235 = vmatprep.subr.mxu0 0.0
    %6236 = vmatpush1.msra.mxu0 0.0
    %6237 = vmatprep.subr.mxu0 0.0
    %6238 = vmatpush1.msra.mxu0 0.0
    %6239 = vmatprep.subr.mxu0 0.0
    %6240 = vmatpush1.msra.mxu0 0.0
    %6241 = vmatprep.subr.mxu0 0.0
    %6242 = vmatpush1.msra.mxu0 0.0
    %6243 = vmatprep.subr.mxu0 0.0
    %6244 = vmatpush1.msra.mxu0 0.0
    %6245 = vmatprep.subr.mxu0 0.0
    %6246 = vmatpush1.msra.mxu0 0.0
    %6247 = vmatprep.subr.mxu0 0.0
    %6248 = vmatpush1.msra.mxu0 0.0
    %6249 = vmatprep.subr.mxu0 0.0
    %6250 = vmatpush1.msra.mxu0 0.0
    %6251 = vmatprep.subr.mxu0 0.0
    %6252 = vmatpush1.msra.mxu0 0.0
    %6253 = vmatprep.subr.mxu0 0.0
    %6254 = vmatpush1.msra.mxu0 0.0
    %6255 = vmatprep.subr.mxu0 0.0
    %6256 = vmatpush1.msra.mxu0 0.0
    %6257 = vmatprep.subr.mxu0 0.0
    %6258 = vmatpush1.msra.mxu0 0.0
    %6259 = vmatprep.subr.mxu0 0.0
    %6260 = vmatpush1.msra.mxu0 %v6224
    %6261 = vmatprep.subr.mxu0 0.0
    %6262 = vmatpush2.msra.mxu0 0.0
    %6263 = vmatprep.subr.mxu0 0.0
    %6264 = vmatpush2.msra.mxu0 0.0
    %6265 = vmatprep.subr.mxu0 0.0
    %6266 = vmatpush2.msra.mxu0 0.0
    %6267 = vmatprep.subr.mxu0 0.0
    %6268 = vmatpush2.msra.mxu0 0.0
    %6269 = vmatprep.subr.mxu0 0.0
    %6270 = vmatpush2.msra.mxu0 0.0
    %6271 = vmatprep.subr.mxu0 0.0
    %6272 = vmatpush2.msra.mxu0 0.0
    %6273 = vmatprep.subr.mxu0 0.0
    %6274 = vmatpush2.msra.mxu0 0.0
    %6275 = vmatprep.subr.mxu0 0.0
    %6276 = vmatpush2.msra.mxu0 0.0
    %6277 = vmatprep.subr.mxu0 0.0
    %6278 = vmatpush2.msra.mxu0 0.0
    %6279 = vmatprep.subr.mxu0 0.0
    %6280 = vmatpush2.msra.mxu0 0.0
    %6281 = vmatprep.subr.mxu0 0.0
    %6282 = vmatpush2.msra.mxu0 0.0
    %6283 = vmatprep.subr.mxu0 0.0
    %6284 = vmatpush2.msra.mxu0 0.0
    %6285 = vmatprep.subr.mxu0 0.0
    %6286 = vmatpush2.msra.mxu0 0.0
    %6287 = vmatprep.subr.mxu0 0.0
    %6288 = vmatpush2.msra.mxu0 0.0
    %6289 = vmatprep.subr.mxu0 0.0
    %6290 = vmatpush2.msra.mxu0 0.0
    %6291 = vmatprep.subr.mxu0 0.0
    %6292 = vmatpush2.msra.mxu0 0.0
    %6293 = vmatprep.mubr.f32.mxu0 0.0
    %6294 = vmatmul.mubr.f32.gmra.mxu0 %v6227
    %v6295 = vpop.f32.mrf.mxu0
    %v6296 = vadd.f32 0.0, %v6295
    %v6297 = vpop.f32.mrf.mxu0
    %6298 = vdwg.mxu0
    %6299 = vrot.lane.b32.xlu0 %v5292, 64
    %v6300 = vpop.permute.xlu0 %6299
    %v6303 = vsel %vm1624, %v5991, 0
    %6305 = vmatprep.subr.mxu0 0.0
    %6306 = vmatpush1.msra.mxu0 0.0
    %6307 = vmatprep.subr.mxu0 0.0
    %6308 = vmatpush1.msra.mxu0 0.0
    %6309 = vmatprep.subr.mxu0 0.0
    %6310 = vmatpush1.msra.mxu0 0.0
    %6311 = vmatprep.subr.mxu0 0.0
    %6312 = vmatpush1.msra.mxu0 0.0
    %6313 = vmatprep.subr.mxu0 0.0
    %6314 = vmatpush1.msra.mxu0 0.0
    %6315 = vmatprep.subr.mxu0 0.0
    %6316 = vmatpush1.msra.mxu0 0.0
    %6317 = vmatprep.subr.mxu0 0.0
    %6318 = vmatpush1.msra.mxu0 0.0
    %6319 = vmatprep.subr.mxu0 0.0
    %6320 = vmatpush1.msra.mxu0 0.0
    %6321 = vmatprep.subr.mxu0 0.0
    %6322 = vmatpush1.msra.mxu0 0.0
    %6323 = vmatprep.subr.mxu0 0.0
    %6324 = vmatpush1.msra.mxu0 0.0
    %6325 = vmatprep.subr.mxu0 0.0
    %6326 = vmatpush1.msra.mxu0 0.0
    %6327 = vmatprep.subr.mxu0 0.0
    %6328 = vmatpush1.msra.mxu0 0.0
    %6329 = vmatprep.subr.mxu0 0.0
    %6330 = vmatpush1.msra.mxu0 0.0
    %6331 = vmatprep.subr.mxu0 0.0
    %6332 = vmatpush1.msra.mxu0 0.0
    %6333 = vmatprep.subr.mxu0 0.0
    %6334 = vmatpush1.msra.mxu0 0.0
    %6335 = vmatprep.subr.mxu0 0.0
    %6336 = vmatpush1.msra.mxu0 %v6300
    %6337 = vmatprep.subr.mxu0 0.0
    %6338 = vmatpush2.msra.mxu0 0.0
    %6339 = vmatprep.subr.mxu0 0.0
    %6340 = vmatpush2.msra.mxu0 0.0
    %6341 = vmatprep.subr.mxu0 0.0
    %6342 = vmatpush2.msra.mxu0 0.0
    %6343 = vmatprep.subr.mxu0 0.0
    %6344 = vmatpush2.msra.mxu0 0.0
    %6345 = vmatprep.subr.mxu0 0.0
    %6346 = vmatpush2.msra.mxu0 0.0
    %6347 = vmatprep.subr.mxu0 0.0
    %6348 = vmatpush2.msra.mxu0 0.0
    %6349 = vmatprep.subr.mxu0 0.0
    %6350 = vmatpush2.msra.mxu0 0.0
    %6351 = vmatprep.subr.mxu0 0.0
    %6352 = vmatpush2.msra.mxu0 0.0
    %6353 = vmatprep.subr.mxu0 0.0
    %6354 = vmatpush2.msra.mxu0 0.0
    %6355 = vmatprep.subr.mxu0 0.0
    %6356 = vmatpush2.msra.mxu0 0.0
    %6357 = vmatprep.subr.mxu0 0.0
    %6358 = vmatpush2.msra.mxu0 0.0
    %6359 = vmatprep.subr.mxu0 0.0
    %6360 = vmatpush2.msra.mxu0 0.0
    %6361 = vmatprep.subr.mxu0 0.0
    %6362 = vmatpush2.msra.mxu0 0.0
    %6363 = vmatprep.subr.mxu0 0.0
    %6364 = vmatpush2.msra.mxu0 0.0
    %6365 = vmatprep.subr.mxu0 0.0
    %6366 = vmatpush2.msra.mxu0 0.0
    %6367 = vmatprep.subr.mxu0 0.0
    %6368 = vmatpush2.msra.mxu0 0.0
    %6369 = vmatprep.mubr.f32.mxu0 0.0
    %6370 = vmatmul.mubr.f32.gmra.mxu0 %v6303
    %v6371 = vpop.f32.mrf.mxu0
    %v6372 = vadd.f32 0.0, %v6371
    %v6373 = vpop.f32.mrf.mxu0
    %6374 = vdwg.mxu0
    %6375 = vrot.lane.b32.xlu0 %v5294, 64
    %v6376 = vpop.permute.xlu0 %6375
    %v6379 = vsel %vm1624, %v5992, 0
    %6381 = vmatprep.subr.mxu0 0.0
    %6382 = vmatpush1.msra.mxu0 0.0
    %6383 = vmatprep.subr.mxu0 0.0
    %6384 = vmatpush1.msra.mxu0 0.0
    %6385 = vmatprep.subr.mxu0 0.0
    %6386 = vmatpush1.msra.mxu0 0.0
    %6387 = vmatprep.subr.mxu0 0.0
    %6388 = vmatpush1.msra.mxu0 0.0
    %6389 = vmatprep.subr.mxu0 0.0
    %6390 = vmatpush1.msra.mxu0 0.0
    %6391 = vmatprep.subr.mxu0 0.0
    %6392 = vmatpush1.msra.mxu0 0.0
    %6393 = vmatprep.subr.mxu0 0.0
    %6394 = vmatpush1.msra.mxu0 0.0
    %6395 = vmatprep.subr.mxu0 0.0
    %6396 = vmatpush1.msra.mxu0 0.0
    %6397 = vmatprep.subr.mxu0 0.0
    %6398 = vmatpush1.msra.mxu0 0.0
    %6399 = vmatprep.subr.mxu0 0.0
    %6400 = vmatpush1.msra.mxu0 0.0
    %6401 = vmatprep.subr.mxu0 0.0
    %6402 = vmatpush1.msra.mxu0 0.0
    %6403 = vmatprep.subr.mxu0 0.0
    %6404 = vmatpush1.msra.mxu0 0.0
    %6405 = vmatprep.subr.mxu0 0.0
    %6406 = vmatpush1.msra.mxu0 0.0
    %6407 = vmatprep.subr.mxu0 0.0
    %6408 = vmatpush1.msra.mxu0 0.0
    %6409 = vmatprep.subr.mxu0 0.0
    %6410 = vmatpush1.msra.mxu0 0.0
    %6411 = vmatprep.subr.mxu0 0.0
    %6412 = vmatpush1.msra.mxu0 %v6376
    %6413 = vmatprep.subr.mxu0 0.0
    %6414 = vmatpush2.msra.mxu0 0.0
    %6415 = vmatprep.subr.mxu0 0.0
    %6416 = vmatpush2.msra.mxu0 0.0
    %6417 = vmatprep.subr.mxu0 0.0
    %6418 = vmatpush2.msra.mxu0 0.0
    %6419 = vmatprep.subr.mxu0 0.0
    %6420 = vmatpush2.msra.mxu0 0.0
    %6421 = vmatprep.subr.mxu0 0.0
    %6422 = vmatpush2.msra.mxu0 0.0
    %6423 = vmatprep.subr.mxu0 0.0
    %6424 = vmatpush2.msra.mxu0 0.0
    %6425 = vmatprep.subr.mxu0 0.0
    %6426 = vmatpush2.msra.mxu0 0.0
    %6427 = vmatprep.subr.mxu0 0.0
    %6428 = vmatpush2.msra.mxu0 0.0
    %6429 = vmatprep.subr.mxu0 0.0
    %6430 = vmatpush2.msra.mxu0 0.0
    %6431 = vmatprep.subr.mxu0 0.0
    %6432 = vmatpush2.msra.mxu0 0.0
    %6433 = vmatprep.subr.mxu0 0.0
    %6434 = vmatpush2.msra.mxu0 0.0
    %6435 = vmatprep.subr.mxu0 0.0
    %6436 = vmatpush2.msra.mxu0 0.0
    %6437 = vmatprep.subr.mxu0 0.0
    %6438 = vmatpush2.msra.mxu0 0.0
    %6439 = vmatprep.subr.mxu0 0.0
    %6440 = vmatpush2.msra.mxu0 0.0
    %6441 = vmatprep.subr.mxu0 0.0
    %6442 = vmatpush2.msra.mxu0 0.0
    %6443 = vmatprep.subr.mxu0 0.0
    %6444 = vmatpush2.msra.mxu0 0.0
    %6445 = vmatprep.mubr.f32.mxu0 0.0
    %6446 = vmatmul.mubr.f32.gmra.mxu0 %v6379
    %v6447 = vpop.f32.mrf.mxu0
    %v6448 = vadd.f32 0.0, %v6447
    %v6449 = vpop.f32.mrf.mxu0
    %6450 = vdwg.mxu0
    %6451 = vrot.lane.b32.xlu0 %v5296, 64
    %v6452 = vpop.permute.xlu0 %6451
    %v6455 = vsel %vm1624, %v5993, 0
    %6457 = vmatprep.subr.mxu0 0.0
    %6458 = vmatpush1.msra.mxu0 0.0
    %6459 = vmatprep.subr.mxu0 0.0
    %6460 = vmatpush1.msra.mxu0 0.0
    %6461 = vmatprep.subr.mxu0 0.0
    %6462 = vmatpush1.msra.mxu0 0.0
    %6463 = vmatprep.subr.mxu0 0.0
    %6464 = vmatpush1.msra.mxu0 0.0
    %6465 = vmatprep.subr.mxu0 0.0
    %6466 = vmatpush1.msra.mxu0 0.0
    %6467 = vmatprep.subr.mxu0 0.0
    %6468 = vmatpush1.msra.mxu0 0.0
    %6469 = vmatprep.subr.mxu0 0.0
    %6470 = vmatpush1.msra.mxu0 0.0
    %6471 = vmatprep.subr.mxu0 0.0
    %6472 = vmatpush1.msra.mxu0 0.0
    %6473 = vmatprep.subr.mxu0 0.0
    %6474 = vmatpush1.msra.mxu0 0.0
    %6475 = vmatprep.subr.mxu0 0.0
    %6476 = vmatpush1.msra.mxu0 0.0
    %6477 = vmatprep.subr.mxu0 0.0
    %6478 = vmatpush1.msra.mxu0 0.0
    %6479 = vmatprep.subr.mxu0 0.0
    %6480 = vmatpush1.msra.mxu0 0.0
    %6481 = vmatprep.subr.mxu0 0.0
    %6482 = vmatpush1.msra.mxu0 0.0
    %6483 = vmatprep.subr.mxu0 0.0
    %6484 = vmatpush1.msra.mxu0 0.0
    %6485 = vmatprep.subr.mxu0 0.0
    %6486 = vmatpush1.msra.mxu0 0.0
    %6487 = vmatprep.subr.mxu0 0.0
    %6488 = vmatpush1.msra.mxu0 %v6452
    %6489 = vmatprep.subr.mxu0 0.0
    %6490 = vmatpush2.msra.mxu0 0.0
    %6491 = vmatprep.subr.mxu0 0.0
    %6492 = vmatpush2.msra.mxu0 0.0
    %6493 = vmatprep.subr.mxu0 0.0
    %6494 = vmatpush2.msra.mxu0 0.0
    %6495 = vmatprep.subr.mxu0 0.0
    %6496 = vmatpush2.msra.mxu0 0.0
    %6497 = vmatprep.subr.mxu0 0.0
    %6498 = vmatpush2.msra.mxu0 0.0
    %6499 = vmatprep.subr.mxu0 0.0
    %6500 = vmatpush2.msra.mxu0 0.0
    %6501 = vmatprep.subr.mxu0 0.0
    %6502 = vmatpush2.msra.mxu0 0.0
    %6503 = vmatprep.subr.mxu0 0.0
    %6504 = vmatpush2.msra.mxu0 0.0
    %6505 = vmatprep.subr.mxu0 0.0
    %6506 = vmatpush2.msra.mxu0 0.0
    %6507 = vmatprep.subr.mxu0 0.0
    %6508 = vmatpush2.msra.mxu0 0.0
    %6509 = vmatprep.subr.mxu0 0.0
    %6510 = vmatpush2.msra.mxu0 0.0
    %6511 = vmatprep.subr.mxu0 0.0
    %6512 = vmatpush2.msra.mxu0 0.0
    %6513 = vmatprep.subr.mxu0 0.0
    %6514 = vmatpush2.msra.mxu0 0.0
    %6515 = vmatprep.subr.mxu0 0.0
    %6516 = vmatpush2.msra.mxu0 0.0
    %6517 = vmatprep.subr.mxu0 0.0
    %6518 = vmatpush2.msra.mxu0 0.0
    %6519 = vmatprep.subr.mxu0 0.0
    %6520 = vmatpush2.msra.mxu0 0.0
    %6521 = vmatprep.mubr.f32.mxu0 0.0
    %6522 = vmatmul.mubr.f32.gmra.mxu0 %v6455
    %v6523 = vpop.f32.mrf.mxu0
    %v6524 = vadd.f32 0.0, %v6523
    %v6525 = vpop.f32.mrf.mxu0
    %6526 = vdwg.mxu0
    %6527 = vrot.lane.b32.xlu0 %v5298, 64
    %v6528 = vpop.permute.xlu0 %6527
    %v6531 = vsel %vm1624, %v5994, 0
    %6533 = vmatprep.subr.mxu0 0.0
    %6534 = vmatpush1.msra.mxu0 0.0
    %6535 = vmatprep.subr.mxu0 0.0
    %6536 = vmatpush1.msra.mxu0 0.0
    %6537 = vmatprep.subr.mxu0 0.0
    %6538 = vmatpush1.msra.mxu0 0.0
    %6539 = vmatprep.subr.mxu0 0.0
    %6540 = vmatpush1.msra.mxu0 0.0
    %6541 = vmatprep.subr.mxu0 0.0
    %6542 = vmatpush1.msra.mxu0 0.0
    %6543 = vmatprep.subr.mxu0 0.0
    %6544 = vmatpush1.msra.mxu0 0.0
    %6545 = vmatprep.subr.mxu0 0.0
    %6546 = vmatpush1.msra.mxu0 0.0
    %6547 = vmatprep.subr.mxu0 0.0
    %6548 = vmatpush1.msra.mxu0 0.0
    %6549 = vmatprep.subr.mxu0 0.0
    %6550 = vmatpush1.msra.mxu0 0.0
    %6551 = vmatprep.subr.mxu0 0.0
    %6552 = vmatpush1.msra.mxu0 0.0
    %6553 = vmatprep.subr.mxu0 0.0
    %6554 = vmatpush1.msra.mxu0 0.0
    %6555 = vmatprep.subr.mxu0 0.0
    %6556 = vmatpush1.msra.mxu0 0.0
    %6557 = vmatprep.subr.mxu0 0.0
    %6558 = vmatpush1.msra.mxu0 0.0
    %6559 = vmatprep.subr.mxu0 0.0
    %6560 = vmatpush1.msra.mxu0 0.0
    %6561 = vmatprep.subr.mxu0 0.0
    %6562 = vmatpush1.msra.mxu0 0.0
    %6563 = vmatprep.subr.mxu0 0.0
    %6564 = vmatpush1.msra.mxu0 %v6528
    %6565 = vmatprep.subr.mxu0 0.0
    %6566 = vmatpush2.msra.mxu0 0.0
    %6567 = vmatprep.subr.mxu0 0.0
    %6568 = vmatpush2.msra.mxu0 0.0
    %6569 = vmatprep.subr.mxu0 0.0
    %6570 = vmatpush2.msra.mxu0 0.0
    %6571 = vmatprep.subr.mxu0 0.0
    %6572 = vmatpush2.msra.mxu0 0.0
    %6573 = vmatprep.subr.mxu0 0.0
    %6574 = vmatpush2.msra.mxu0 0.0
    %6575 = vmatprep.subr.mxu0 0.0
    %6576 = vmatpush2.msra.mxu0 0.0
    %6577 = vmatprep.subr.mxu0 0.0
    %6578 = vmatpush2.msra.mxu0 0.0
    %6579 = vmatprep.subr.mxu0 0.0
    %6580 = vmatpush2.msra.mxu0 0.0
    %6581 = vmatprep.subr.mxu0 0.0
    %6582 = vmatpush2.msra.mxu0 0.0
    %6583 = vmatprep.subr.mxu0 0.0
    %6584 = vmatpush2.msra.mxu0 0.0
    %6585 = vmatprep.subr.mxu0 0.0
    %6586 = vmatpush2.msra.mxu0 0.0
    %6587 = vmatprep.subr.mxu0 0.0
    %6588 = vmatpush2.msra.mxu0 0.0
    %6589 = vmatprep.subr.mxu0 0.0
    %6590 = vmatpush2.msra.mxu0 0.0
    %6591 = vmatprep.subr.mxu0 0.0
    %6592 = vmatpush2.msra.mxu0 0.0
    %6593 = vmatprep.subr.mxu0 0.0
    %6594 = vmatpush2.msra.mxu0 0.0
    %6595 = vmatprep.subr.mxu0 0.0
    %6596 = vmatpush2.msra.mxu0 0.0
    %6597 = vmatprep.mubr.f32.mxu0 0.0
    %6598 = vmatmul.mubr.f32.gmra.mxu0 %v6531
    %v6599 = vpop.f32.mrf.mxu0
    %v6600 = vadd.f32 0.0, %v6599
    %v6601 = vpop.f32.mrf.mxu0
    %6602 = vdwg.mxu0
    %6605 = vrot.lane.b32.xlu0 %v6220, 8
    %v6606 = vpop.permute.xlu0 %6605
    %6607 = vrot.lane.b32.xlu0 %v6296, 8
    %v6608 = vpop.permute.xlu0 %6607
    %6613 = vrot.lane.b32.xlu0 %v6372, 16
    %v6614 = vpop.permute.xlu0 %6613
    %6615 = vrot.lane.b32.xlu0 %v6448, 16
    %v6616 = vpop.permute.xlu0 %6615
    %6621 = vrot.lane.b32.xlu0 %v6524, 24
    %v6622 = vpop.permute.xlu0 %6621
    %6623 = vrot.lane.b32.xlu0 %v6600, 24
    %v6624 = vpop.permute.xlu0 %6623
    %v6627 = vsel %vm1624, %v6068, %v6606
    %v6628 = vsel %vm1624, %v6144, %v6608
    %v6629 = vsel %vm2233, %v6627, %v6614
    %v6630 = vsel %vm2233, %v6628, %v6616
    %v6631 = vsel %vm570, %v6629, %v6622
    %v6632 = vsel %vm570, %v6630, %v6624
    %v6633 = vld [vmem:[%s5150 + $0x20] sm:$0xff]
    %v6634 = vld [vmem:[%s5150 + $0x28] sm:$0xff]
    %v6635 = vld [vmem:[%s5150 + $0x30] sm:$0xff]
    %v6636 = vld [vmem:[%s5150 + $0x38] sm:$0xff]
    %v6637 = vld [vmem:[%s5150 + $0xe3] sm:$0x1]
    %v6638 = vlaneseq
    %v6639 = vshrl.u32 %v6638, 7
    %v6640 = vsub.s32 0, %v6639
    %v6641 = vrot.slane %v6637, %v6640
    %v6643 = vsel %vm1284, %v6631, 0
    %v6646 = vsel %vm1284, %v6632, 0
    %6648 = vmatprep.subr.mxu0 0.0
    %6649 = vmatpush1.msra.mxu0 0.0
    %6650 = vmatprep.subr.mxu0 0.0
    %6651 = vmatpush1.msra.mxu0 0.0
    %6652 = vmatprep.subr.mxu0 0.0
    %6653 = vmatpush1.msra.mxu0 0.0
    %6654 = vmatprep.subr.mxu0 0.0
    %6655 = vmatpush1.msra.mxu0 0.0
    %6656 = vmatprep.subr.mxu0 0.0
    %6657 = vmatpush1.msra.mxu0 0.0
    %6658 = vmatprep.subr.mxu0 0.0
    %6659 = vmatpush1.msra.mxu0 0.0
    %6660 = vmatprep.subr.mxu0 0.0
    %6661 = vmatpush1.msra.mxu0 0.0
    %6662 = vmatprep.subr.mxu0 0.0
    %6663 = vmatpush1.msra.mxu0 0.0
    %6664 = vmatprep.subr.mxu0 0.0
    %6665 = vmatpush1.msra.mxu0 0.0
    %6666 = vmatprep.subr.mxu0 0.0
    %6667 = vmatpush1.msra.mxu0 0.0
    %6668 = vmatprep.subr.mxu0 0.0
    %6669 = vmatpush1.msra.mxu0 0.0
    %6670 = vmatprep.subr.mxu0 0.0
    %6671 = vmatpush1.msra.mxu0 0.0
    %6672 = vmatprep.subr.mxu0 0.0
    %6673 = vmatpush1.msra.mxu0 %v6636
    %6674 = vmatprep.subr.mxu0 0.0
    %6675 = vmatpush1.msra.mxu0 %v6635
    %6676 = vmatprep.subr.mxu0 0.0
    %6677 = vmatpush1.msra.mxu0 %v6634
    %6678 = vmatprep.subr.mxu0 0.0
    %6679 = vmatpush1.msra.mxu0 %v6633
    %6680 = vmatprep.subr.mxu0 0.0
    %6681 = vmatpush2.msra.mxu0 0.0
    %6682 = vmatprep.subr.mxu0 0.0
    %6683 = vmatpush2.msra.mxu0 0.0
    %6684 = vmatprep.subr.mxu0 0.0
    %6685 = vmatpush2.msra.mxu0 0.0
    %6686 = vmatprep.subr.mxu0 0.0
    %6687 = vmatpush2.msra.mxu0 0.0
    %6688 = vmatprep.subr.mxu0 0.0
    %6689 = vmatpush2.msra.mxu0 0.0
    %6690 = vmatprep.subr.mxu0 0.0
    %6691 = vmatpush2.msra.mxu0 0.0
    %6692 = vmatprep.subr.mxu0 0.0
    %6693 = vmatpush2.msra.mxu0 0.0
    %6694 = vmatprep.subr.mxu0 0.0
    %6695 = vmatpush2.msra.mxu0 0.0
    %6696 = vmatprep.subr.mxu0 0.0
    %6697 = vmatpush2.msra.mxu0 0.0
    %6698 = vmatprep.subr.mxu0 0.0
    %6699 = vmatpush2.msra.mxu0 0.0
    %6700 = vmatprep.subr.mxu0 0.0
    %6701 = vmatpush2.msra.mxu0 0.0
    %6702 = vmatprep.subr.mxu0 0.0
    %6703 = vmatpush2.msra.mxu0 0.0
    %6704 = vmatprep.subr.mxu0 0.0
    %6705 = vmatpush2.msra.mxu0 0.0
    %6706 = vmatprep.subr.mxu0 0.0
    %6707 = vmatpush2.msra.mxu0 0.0
    %6708 = vmatprep.subr.mxu0 0.0
    %6709 = vmatpush2.msra.mxu0 0.0
    %6710 = vmatprep.subr.mxu0 0.0
    %6711 = vmatpush2.msra.mxu0 0.0
    %6712 = vmatprep.mubr.f32.mxu0 0.0
    %6713 = vmatmul.mubr.f32.gmra.mxu0 %v6643
    %v6714 = vpop.f32.mrf.mxu0
    %v6715 = vadd.f32 %v6641, %v6714
    %v6716 = vpop.f32.mrf.mxu0
    %6717 = vmatprep.mubr.f32.mxu0 0.0
    %6718 = vmatmul.mubr.f32.gmra.mxu0 %v6646
    %v6719 = vpop.f32.mrf.mxu0
    %v6720 = vadd.f32 %v6641, %v6719
    %v6721 = vpop.f32.mrf.mxu0
    %6722 = vdwg.mxu0
    %v6723 = vadd.f32 %v5148, %v6715
    %v6724 = vadd.f32 %v5149, %v6720
    %v6725 = vld [vmem:[%s5150 + $0xe4] sm:$0x1]
    %v6726 = vld [vmem:[%s5150 + $0xe5] sm:$0x1]
    %v6727 = vsel %vm1284, %v6723, 0.0
    %6728 = vadd.xlane.f32.xlu0 %v6727
    %v6729 = vpop.xlane.xlu0 %6728
    %v6730 = vsel %vm1284, %v6724, 0.0
    %6731 = vadd.xlane.f32.xlu0 %v6730
    %v6732 = vpop.xlane.xlu0 %6731
    %v6733 = vmul.f32 %v6729, %v1288
    %v6734 = vmul.f32 %v6732, %v1288
    %v6735 = vmul.f32 %v6723, %v6723
    %v6736 = vmul.f32 %v6724, %v6724
    %v6737 = vsel %vm1284, %v6735, 0.0
    %6738 = vadd.xlane.f32.xlu0 %v6737
    %v6739 = vpop.xlane.xlu0 %6738
    %v6740 = vsel %vm1284, %v6736, 0.0
    %6741 = vadd.xlane.f32.xlu0 %v6740
    %v6742 = vpop.xlane.xlu0 %6741
    %v6743 = vmul.f32 %v6739, %v1288
    %v6744 = vmul.f32 %v6742, %v1288
    %v6745 = vmul.f32 %v6733, %v6733
    %v6746 = vmul.f32 %v6734, %v6734
    %v6747 = vsub.f32 %v6743, %v6745
    %v6748 = vsub.f32 %v6744, %v6746
    %v6749 = vsub.f32 %v6723, %v6733
    %v6750 = vsub.f32 %v6724, %v6734
    %v6751 = vadd.f32 %v6747, 1e-05
    %v6752 = vadd.f32 %v6748, 1e-05
    %v6753 = vrsqrt.pop %v6751
    %v6754 = vrsqrt.pop %v6752
    %v6755 = vmul.f32 %v6749, %v6753
    %v6756 = vmul.f32 %v6750, %v6754
    %v6757 = vlaneseq
    %v6758 = vshrl.u32 %v6757, 7
    %v6759 = vsub.s32 0, %v6758
    %v6760 = vrot.slane %v6725, %v6759
    %v6761 = vmul.f32 %v6755, %v6760
    %v6762 = vmul.f32 %v6756, %v6760
    %v6763 = vlaneseq
    %v6764 = vshrl.u32 %v6763, 7
    %v6765 = vsub.s32 0, %v6764
    %v6766 = vrot.slane %v6726, %v6765
    %v6767 = vadd.f32 %v6761, %v6766
    %v6768 = vadd.f32 %v6762, %v6766
    %v6769 = vld [vmem:[%s5150 + $0x40] sm:$0xff]
    %v6770 = vld [vmem:[%s5150 + $0x48] sm:$0xff]
    %v6771 = vld [vmem:[%s5150 + $0x50] sm:$0xff]
    %v6772 = vld [vmem:[%s5150 + $0x58] sm:$0xff]
    %v6773 = vld [vmem:[%s5150 + $0xe6] sm:$0x1]
    %v6774 = vlaneseq
    %v6775 = vshrl.u32 %v6774, 7
    %v6776 = vsub.s32 0, %v6775
    %v6777 = vrot.slane %v6773, %v6776
    %v6779 = vsel %vm1284, %v6767, 0
    %v6782 = vsel %vm1284, %v6768, 0
    %6784 = vmatprep.subr.mxu0 0.0
    %6785 = vmatpush1.msra.mxu0 0.0
    %6786 = vmatprep.subr.mxu0 0.0
    %6787 = vmatpush1.msra.mxu0 0.0
    %6788 = vmatprep.subr.mxu0 0.0
    %6789 = vmatpush1.msra.mxu0 0.0
    %6790 = vmatprep.subr.mxu0 0.0
    %6791 = vmatpush1.msra.mxu0 0.0
    %6792 = vmatprep.subr.mxu0 0.0
    %6793 = vmatpush1.msra.mxu0 0.0
    %6794 = vmatprep.subr.mxu0 0.0
    %6795 = vmatpush1.msra.mxu0 0.0
    %6796 = vmatprep.subr.mxu0 0.0
    %6797 = vmatpush1.msra.mxu0 0.0
    %6798 = vmatprep.subr.mxu0 0.0
    %6799 = vmatpush1.msra.mxu0 0.0
    %6800 = vmatprep.subr.mxu0 0.0
    %6801 = vmatpush1.msra.mxu0 0.0
    %6802 = vmatprep.subr.mxu0 0.0
    %6803 = vmatpush1.msra.mxu0 0.0
    %6804 = vmatprep.subr.mxu0 0.0
    %6805 = vmatpush1.msra.mxu0 0.0
    %6806 = vmatprep.subr.mxu0 0.0
    %6807 = vmatpush1.msra.mxu0 0.0
    %6808 = vmatprep.subr.mxu0 0.0
    %6809 = vmatpush1.msra.mxu0 %v6772
    %6810 = vmatprep.subr.mxu0 0.0
    %6811 = vmatpush1.msra.mxu0 %v6771
    %6812 = vmatprep.subr.mxu0 0.0
    %6813 = vmatpush1.msra.mxu0 %v6770
    %6814 = vmatprep.subr.mxu0 0.0
    %6815 = vmatpush1.msra.mxu0 %v6769
    %6816 = vmatprep.subr.mxu0 0.0
    %6817 = vmatpush2.msra.mxu0 0.0
    %6818 = vmatprep.subr.mxu0 0.0
    %6819 = vmatpush2.msra.mxu0 0.0
    %6820 = vmatprep.subr.mxu0 0.0
    %6821 = vmatpush2.msra.mxu0 0.0
    %6822 = vmatprep.subr.mxu0 0.0
    %6823 = vmatpush2.msra.mxu0 0.0
    %6824 = vmatprep.subr.mxu0 0.0
    %6825 = vmatpush2.msra.mxu0 0.0
    %6826 = vmatprep.subr.mxu0 0.0
    %6827 = vmatpush2.msra.mxu0 0.0
    %6828 = vmatprep.subr.mxu0 0.0
    %6829 = vmatpush2.msra.mxu0 0.0
    %6830 = vmatprep.subr.mxu0 0.0
    %6831 = vmatpush2.msra.mxu0 0.0
    %6832 = vmatprep.subr.mxu0 0.0
    %6833 = vmatpush2.msra.mxu0 0.0
    %6834 = vmatprep.subr.mxu0 0.0
    %6835 = vmatpush2.msra.mxu0 0.0
    %6836 = vmatprep.subr.mxu0 0.0
    %6837 = vmatpush2.msra.mxu0 0.0
    %6838 = vmatprep.subr.mxu0 0.0
    %6839 = vmatpush2.msra.mxu0 0.0
    %6840 = vmatprep.subr.mxu0 0.0
    %6841 = vmatpush2.msra.mxu0 0.0
    %6842 = vmatprep.subr.mxu0 0.0
    %6843 = vmatpush2.msra.mxu0 0.0
    %6844 = vmatprep.subr.mxu0 0.0
    %6845 = vmatpush2.msra.mxu0 0.0
    %6846 = vmatprep.subr.mxu0 0.0
    %6847 = vmatpush2.msra.mxu0 0.0
    %6848 = vmatprep.mubr.f32.mxu0 0.0
    %6849 = vmatmul.mubr.f32.gmra.mxu0 %v6779
    %v6850 = vpop.f32.mrf.mxu0
    %v6851 = vadd.f32 %v6777, %v6850
    %v6852 = vpop.f32.mrf.mxu0
    %6853 = vmatprep.mubr.f32.mxu0 0.0
    %6854 = vmatmul.mubr.f32.gmra.mxu0 %v6782
    %v6855 = vpop.f32.mrf.mxu0
    %v6856 = vadd.f32 %v6777, %v6855
    %v6857 = vpop.f32.mrf.mxu0
    %6858 = vdwg.mxu0
    %v6859 = vmul.f32 %v6851, %v6851
    %v6860 = vmul.f32 %v6856, %v6856
    %v6861 = vmul.f32 %v6851, %v6859
    %v6862 = vmul.f32 %v6856, %v6860
    %v6863 = vmul.f32 %v6861, 0.044715
    %v6864 = vmul.f32 %v6862, 0.044715
    %v6865 = vadd.f32 %v6851, %v6863
    %v6866 = vadd.f32 %v6856, %v6864
    %v6867 = vmul.f32 %v6865, 0.7978846
    %v6868 = vmul.f32 %v6866, 0.7978846
    %v6869 = vtanh.pop %v6867
    %v6870 = vtanh.pop %v6868
    %v6871 = vadd.f32 %v6869, 1.0
    %v6872 = vadd.f32 %v6870, 1.0
    %v6873 = vmul.f32 %v6871, 0.5
    %v6874 = vmul.f32 %v6872, 0.5
    %v6875 = vmul.f32 %v6851, %v6873
    %v6876 = vmul.f32 %v6856, %v6874
    %v6877 = vld [vmem:[%s5150 + $0x60] sm:$0xff]
    %v6878 = vld [vmem:[%s5150 + $0x68] sm:$0xff]
    %v6879 = vld [vmem:[%s5150 + $0x70] sm:$0xff]
    %v6880 = vld [vmem:[%s5150 + $0x78] sm:$0xff]
    %v6881 = vld [vmem:[%s5150 + $0x80] sm:$0xff]
    %v6882 = vld [vmem:[%s5150 + $0x88] sm:$0xff]
    %v6883 = vld [vmem:[%s5150 + $0x90] sm:$0xff]
    %v6884 = vld [vmem:[%s5150 + $0x98] sm:$0xff]
    %v6885 = vld [vmem:[%s5150 + $0xa0] sm:$0xff]
    %v6886 = vld [vmem:[%s5150 + $0xa8] sm:$0xff]
    %v6887 = vld [vmem:[%s5150 + $0xb0] sm:$0xff]
    %v6888 = vld [vmem:[%s5150 + $0xb8] sm:$0xff]
    %v6889 = vld [vmem:[%s5150 + $0xc0] sm:$0xff]
    %v6890 = vld [vmem:[%s5150 + $0xc8] sm:$0xff]
    %v6891 = vld [vmem:[%s5150 + $0xd0] sm:$0xff]
    %v6892 = vld [vmem:[%s5150 + $0xd8] sm:$0xff]
    %v6893 = vld [vmem:[%s5150 + $0xe7] sm:$0x1]
    %v6894 = vlaneseq
    %v6895 = vshrl.u32 %v6894, 7
    %v6896 = vsub.s32 0, %v6895
    %v6897 = vrot.slane %v6893, %v6896
    %6898 = vmatprep.subr.mxu0 0.0
    %6899 = vmatpush1.msra.mxu0 %v6892
    %6900 = vmatprep.subr.mxu0 0.0
    %6901 = vmatpush1.msra.mxu0 %v6891
    %6902 = vmatprep.subr.mxu0 0.0
    %6903 = vmatpush1.msra.mxu0 %v6890
    %6904 = vmatprep.subr.mxu0 0.0
    %6905 = vmatpush1.msra.mxu0 %v6889
    %6906 = vmatprep.subr.mxu0 0.0
    %6907 = vmatpush1.msra.mxu0 %v6888
    %6908 = vmatprep.subr.mxu0 0.0
    %6909 = vmatpush1.msra.mxu0 %v6887
    %6910 = vmatprep.subr.mxu0 0.0
    %6911 = vmatpush1.msra.mxu0 %v6886
    %6912 = vmatprep.subr.mxu0 0.0
    %6913 = vmatpush1.msra.mxu0 %v6885
    %6914 = vmatprep.subr.mxu0 0.0
    %6915 = vmatpush1.msra.mxu0 %v6884
    %6916 = vmatprep.subr.mxu0 0.0
    %6917 = vmatpush1.msra.mxu0 %v6883
    %6918 = vmatprep.subr.mxu0 0.0
    %6919 = vmatpush1.msra.mxu0 %v6882
    %6920 = vmatprep.subr.mxu0 0.0
    %6921 = vmatpush1.msra.mxu0 %v6881
    %6922 = vmatprep.subr.mxu0 0.0
    %6923 = vmatpush1.msra.mxu0 %v6880
    %6924 = vmatprep.subr.mxu0 0.0
    %6925 = vmatpush1.msra.mxu0 %v6879
    %6926 = vmatprep.subr.mxu0 0.0
    %6927 = vmatpush1.msra.mxu0 %v6878
    %6928 = vmatprep.subr.mxu0 0.0
    %6929 = vmatpush1.msra.mxu0 %v6877
    %6930 = vmatprep.subr.mxu0 0.0
    %6931 = vmatpush2.msra.mxu0 0.0
    %6932 = vmatprep.subr.mxu0 0.0
    %6933 = vmatpush2.msra.mxu0 0.0
    %6934 = vmatprep.subr.mxu0 0.0
    %6935 = vmatpush2.msra.mxu0 0.0
    %6936 = vmatprep.subr.mxu0 0.0
    %6937 = vmatpush2.msra.mxu0 0.0
    %6938 = vmatprep.subr.mxu0 0.0
    %6939 = vmatpush2.msra.mxu0 0.0
    %6940 = vmatprep.subr.mxu0 0.0
    %6941 = vmatpush2.msra.mxu0 0.0
    %6942 = vmatprep.subr.mxu0 0.0
    %6943 = vmatpush2.msra.mxu0 0.0
    %6944 = vmatprep.subr.mxu0 0.0
    %6945 = vmatpush2.msra.mxu0 0.0
    %6946 = vmatprep.subr.mxu0 0.0
    %6947 = vmatpush2.msra.mxu0 0.0
    %6948 = vmatprep.subr.mxu0 0.0
    %6949 = vmatpush2.msra.mxu0 0.0
    %6950 = vmatprep.subr.mxu0 0.0
    %6951 = vmatpush2.msra.mxu0 0.0
    %6952 = vmatprep.subr.mxu0 0.0
    %6953 = vmatpush2.msra.mxu0 0.0
    %6954 = vmatprep.subr.mxu0 0.0
    %6955 = vmatpush2.msra.mxu0 0.0
    %6956 = vmatprep.subr.mxu0 0.0
    %6957 = vmatpush2.msra.mxu0 0.0
    %6958 = vmatprep.subr.mxu0 0.0
    %6959 = vmatpush2.msra.mxu0 0.0
    %6960 = vmatprep.subr.mxu0 0.0
    %6961 = vmatpush2.msra.mxu0 0.0
    %6962 = vmatprep.mubr.f32.mxu0 0.0
    %6963 = vmatmul.mubr.f32.gmra.mxu0 %v6875
    %v6964 = vpop.f32.mrf.mxu0
    %v6965 = vadd.f32 %v6897, %v6964
    %v6966 = vpop.f32.mrf.mxu0
    %6967 = vmatprep.mubr.f32.mxu0 0.0
    %6968 = vmatmul.mubr.f32.gmra.mxu0 %v6876
    %v6969 = vpop.f32.mrf.mxu0
    %v6970 = vadd.f32 %v6897, %v6969
    %v6971 = vpop.f32.mrf.mxu0
    %6972 = vdwg.mxu0
    %v6973 = vadd.f32 %v6723, %v6965
    %v6974 = vadd.f32 %v6724, %v6970
    %6975 = vst.msk [vmem:[#allocation7] sm:$0xff] %vm1284, %v6973
    %6976 = vst.msk [vmem:[#allocation7 + $0x8] sm:$0xff] %vm1284, %v6974
    // Predicated region
    $region22: #{tpu_custom_call.1} parent=1 // pred_check
      _
    $region23: #{tpu_custom_call.1} parent=1 // pred_check_branch
      %6978 = sbr.rel (0) target = $region25
    $region24: #{tpu_custom_call.1} parent=1 // pred_region
      %s6980 = ssub.s32 256, 256
      %6981 = vsyncadd [#allocation4], %s6980
      %s6982 = sshll.u32 [#allocation7], 4
      %s6983 = int_to_ptr.vmem [resolvable:$true] %s6982
      %6988 = dma.vmem_to_hbm [thread:$0]  %s6983, 256, %s3, [#allocation4], 128, 128, 8
    $region25: #{tpu_custom_call.1} parent=1 // pred_fallthru
      _
    // Predicated region
    $region26: #{tpu_custom_call.1} parent=1 // pred_check
      _
    $region27: #{tpu_custom_call.1} parent=1 // pred_check_branch
      %6990 = sbr.rel (0) target = $region29
    $region28: #{tpu_custom_call.1} parent=1 // pred_region
      %6991 = dma.done [#allocation4], 256
    $region29: #{tpu_custom_call.1} parent=1 // pred_fallthru
      _
    %6992 = vsyncpa [#allocation3], 1
    %6993 = vsyncpa [#allocation6], 1
    %6994 = vsyncpa [#allocation4], 1

</llo_original>
